<compile_context>
chip_gen: v7x
topology: tpu7x:2x2x1
jax: 0.10.0
libtpu: 0.0.40
codegen_flags: <defaults>
</compile_context>

<pallas_src>
import functools

import jax
import jax.numpy as jnp
from jax.experimental import pallas as pl
from jax.experimental.pallas import tpu as pltpu

NEG_SLOPE = 0.01                  # nn.LeakyReLU default negative_slope
MXU_DTYPE = jnp.bfloat16          # bf16 MXU operands, f32 accumulation


def _leaky(x):
    # LeakyReLU(0.01) == max(x, 0.01*x): one vmax instead of compare+select.
    return jnp.maximum(x, NEG_SLOPE * x)


# ----------------------------------------------------------------------------
# Fused kernel: conv1..conv4 + Flatten + LeakyReLU + Linear(256,1)
# ----------------------------------------------------------------------------
def _critic_kernel(p1_ref, w1_ref, b1_ref, w2_ref, b2_ref, w3_ref, b3_ref,
                   w4_ref, b4_ref, wfc_ref, bfc_ref, o_ref, *, bt):
    f32 = jnp.float32

    # ----- conv1: 1->24, 3x3, pad=1 (im2col patches DMA'd) — one MXU dot ----
    p1 = p1_ref[...].reshape(bt * 64, 9)                 # bf16, rows (b,h,w)
    a1 = jnp.dot(p1, w1_ref[...], preferred_element_type=f32)     # (bt*64,24)
    a1 = _leaky(a1 + b1_ref[...]).astype(MXU_DTYPE).reshape(bt, 8, 8, 24)

    # ----- conv2: 24->64, 3x3 valid — build im2col once, one dot ------------
    p2 = jnp.concatenate(
        [a1[:, ki:ki + 6, kj:kj + 6, :] for ki in range(3) for kj in range(3)],
        axis=-1).reshape(bt * 36, 216)                   # lanes = (ki,kj,ci)
    a2 = jnp.dot(p2, w2_ref[...], preferred_element_type=f32)     # (bt*36,64)
    a2 = _leaky(a2 + b2_ref[...]).astype(MXU_DTYPE).reshape(bt, 6, 6, 64)

    # ----- conv3: 64->128, 3x3 valid — build im2col once, one dot -----------
    p3 = jnp.concatenate(
        [a2[:, ki:ki + 4, kj:kj + 4, :] for ki in range(3) for kj in range(3)],
        axis=-1).reshape(bt * 16, 576)                   # lanes = (ki,kj,ci)
    a3 = jnp.dot(p3, w3_ref[...], preferred_element_type=f32)     # (bt*16,128)
    a3 = _leaky(a3 + b3_ref[...]).astype(MXU_DTYPE)      # rows (b,h,w)

    # ----- conv4: 128->256, 4x4 over a 4x4 map == flatten @ W ---------------
    p4 = a3.reshape(bt, 2048)                            # lanes = (h,w,c)
    a4 = jnp.dot(p4, w4_ref[...], preferred_element_type=f32)     # (bt,256)
    feat = _leaky(a4 + b4_ref[...])                      # Flatten -> LeakyReLU

    # ----- Linear(256,1): VPU multiply + lane (XLU) reduction ---------------
    value = jnp.sum(feat * wfc_ref[...], axis=-1, keepdims=True) + bfc_ref[...]
    o_ref[...] = value.astype(o_ref.dtype)


# ----------------------------------------------------------------------------
# Wrapper
# ----------------------------------------------------------------------------
def _reorder_conv_weight(w):
    """PyTorch (Cout,Cin,K,K) -> (K*K*Cin, Cout) matrix, row order (ki,kj,ci)."""
    cout, cin, k, _ = w.shape
    return jnp.transpose(w, (2, 3, 1, 0)).reshape(k * k * cin, cout)


@functools.partial(jax.jit, static_argnames=("batch_tile",))
def critic_forward(params, state, batch_tile=128):
    """state: PyTorch NCHW (B,1,8,8) -> value (B,1) f32."""
    b, c, h, w = state.shape
    assert (c, h, w) == (1, 8, 8), "Flatten->Linear(256,1) requires (B,1,8,8) input"
    x = state.astype(jnp.float32).reshape(b, 8, 8)

    # Batch tile: multiple of 8, capped by batch_tile, and sized so the grid
    # has >= 2 steps when the batch allows it (v7x megacore).
    bt_cap = max(8, (batch_tile // 8) * 8)
    bt = min(bt_cap, max(8, (-(-b // 2) + 7) // 8 * 8))
    bp = -(-b // bt) * bt
    if bp != b:
        x = jnp.pad(x, ((0, bp - b), (0, 0), (0, 0)))

    # conv1 im2col on the tiny raw input (wrapper-side layout plumbing only;
    # per-sample rows of 64x9 taps -> contiguous DMA, small VMEM block).
    xp = jnp.pad(x, ((0, 0), (1, 1), (1, 1)))                      # (Bp,10,10)
    p1 = jnp.stack([xp[:, ki:ki + 8, kj:kj + 8]
                    for ki in range(3) for kj in range(3)], axis=-1)
    p1 = p1.reshape(bp, 64, 9).astype(MXU_DTYPE)                   # taps (ki,kj)

    w1 = _reorder_conv_weight(params["w1"]).astype(MXU_DTYPE)      # (9,24)
    w2 = _reorder_conv_weight(params["w2"]).astype(MXU_DTYPE)      # (216,64)
    w3 = _reorder_conv_weight(params["w3"]).astype(MXU_DTYPE)      # (576,128)
    w4 = _reorder_conv_weight(params["w4"]).astype(MXU_DTYPE)      # (2048,256)
    b1 = params["b1"].reshape(1, 24).astype(jnp.float32)
    b2 = params["b2"].reshape(1, 64).astype(jnp.float32)
    b3 = params["b3"].reshape(1, 128).astype(jnp.float32)
    b4 = params["b4"].reshape(1, 256).astype(jnp.float32)
    wfc = params["wfc"].reshape(1, 256).astype(jnp.float32)
    bfc = params["bfc"].reshape(1, 1).astype(jnp.float32)

    def full(a):
        return pl.BlockSpec(a.shape, lambda i, _n=a.ndim: (0,) * _n)

    out = pl.pallas_call(
        functools.partial(_critic_kernel, bt=bt),
        out_shape=jax.ShapeDtypeStruct((bp, 1), jnp.float32),
        grid=(bp // bt,),
        in_specs=[
            pl.BlockSpec((bt, 64, 9), lambda i: (i, 0, 0)),        # conv1 patches
            full(w1), full(b1), full(w2), full(b2),
            full(w3), full(b3), full(w4), full(b4),
            full(wfc), full(bfc),
        ],
        out_specs=pl.BlockSpec((bt, 1), lambda i: (i, 0)),
        compiler_params=pltpu.CompilerParams(
            dimension_semantics=("parallel",),
            vmem_limit_bytes=48 * 1024 * 1024,
        ),
    )(p1, w1, b1, w2, b2, w3, b3, w4, b4, wfc, bfc)
    return out[:b]


# ----------------------------------------------------------------------------
# Deterministic PyTorch-default-style parameter init
# ----------------------------------------------------------------------------
def _uniform(key, shape, fan_in):
    bound = 1.0 / jnp.sqrt(float(fan_in))
    return jax.random.uniform(key, shape, jnp.float32, -bound, bound)


def init_params(key):
    ks = jax.random.split(key, 10)
    return {
        "w1": _uniform(ks[0], (24, 1, 3, 3), 1 * 3 * 3),
        "b1": _uniform(ks[1], (24,), 1 * 3 * 3),
        "w2": _uniform(ks[2], (64, 24, 3, 3), 24 * 3 * 3),
        "b2": _uniform(ks[3], (64,), 24 * 3 * 3),
        "w3": _uniform(ks[4], (128, 64, 3, 3), 64 * 3 * 3),
        "b3": _uniform(ks[5], (128,), 64 * 3 * 3),
        "w4": _uniform(ks[6], (256, 128, 4, 4), 128 * 4 * 4),
        "b4": _uniform(ks[7], (256,), 128 * 4 * 4),
        "wfc": _uniform(ks[8], (1, 256), 256),   # PyTorch Linear: (out, in)
        "bfc": _uniform(ks[9], (1,), 256),
    }


if __name__ == "__main__":
    key = jax.random.PRNGKey(0)
    x = jax.random.normal(key, (2, 1, 8, 8), dtype=jnp.float32)   # NCHW
    params = init_params(jax.random.PRNGKey(42))

    value = critic_forward(params, x)
    jax.block_until_ready(value)
    assert value.shape == (2, 1) and value.dtype == jnp.float32
    print("KERNEL_OK")
</pallas_src>

<mosaic_0001>
module attributes {stable_mosaic.version = 11 : i64} {
  func.func @_critic_kernel(%arg0: i32, %arg1: memref<8x64x9xbf16, #tpu.memory_space<vmem>>, %arg2: memref<9x24xbf16, #tpu.memory_space<vmem>>, %arg3: memref<1x24xf32, #tpu.memory_space<vmem>>, %arg4: memref<216x64xbf16, #tpu.memory_space<vmem>>, %arg5: memref<1x64xf32, #tpu.memory_space<vmem>>, %arg6: memref<576x128xbf16, #tpu.memory_space<vmem>>, %arg7: memref<1x128xf32, #tpu.memory_space<vmem>>, %arg8: memref<2048x256xbf16, #tpu.memory_space<vmem>>, %arg9: memref<1x256xf32, #tpu.memory_space<vmem>>, %arg10: memref<1x256xf32, #tpu.memory_space<vmem>>, %arg11: memref<1x1xf32, #tpu.memory_space<vmem>>, %arg12: memref<8x1xf32, #tpu.memory_space<vmem>>) attributes {dimension_semantics = [#tpu.dimension_semantics<parallel>], iteration_bounds = array<i64: 1>, scalar_prefetch = 0 : i64, scratch_operands = 0 : i64, tpu.core_type = #tpu.core_type<tc>, window_params = [{transform_indices = @transform_0, window_bounds = array<i64: 8, 64, 9>}, {pipeline_mode = #tpu.pipeline_mode<synchronous>, transform_indices = @transform_1, window_bounds = array<i64: 9, 24>}, {pipeline_mode = #tpu.pipeline_mode<synchronous>, transform_indices = @transform_2, window_bounds = array<i64: 1, 24>}, {pipeline_mode = #tpu.pipeline_mode<synchronous>, transform_indices = @transform_3, window_bounds = array<i64: 216, 64>}, {pipeline_mode = #tpu.pipeline_mode<synchronous>, transform_indices = @transform_4, window_bounds = array<i64: 1, 64>}, {pipeline_mode = #tpu.pipeline_mode<synchronous>, transform_indices = @transform_5, window_bounds = array<i64: 576, 128>}, {pipeline_mode = #tpu.pipeline_mode<synchronous>, transform_indices = @transform_6, window_bounds = array<i64: 1, 128>}, {pipeline_mode = #tpu.pipeline_mode<synchronous>, transform_indices = @transform_7, window_bounds = array<i64: 2048, 256>}, {pipeline_mode = #tpu.pipeline_mode<synchronous>, transform_indices = @transform_8, window_bounds = array<i64: 1, 256>}, {pipeline_mode = #tpu.pipeline_mode<synchronous>, transform_indices = @transform_9, window_bounds = array<i64: 1, 256>}, {pipeline_mode = #tpu.pipeline_mode<synchronous>, transform_indices = @transform_10, window_bounds = array<i64: 1, 1>}, {transform_indices = @transform_11, window_bounds = array<i64: 8, 1>}]} {
    %c0 = arith.constant 0 : index
    %c0_0 = arith.constant 0 : index
    %c0_1 = arith.constant 0 : index
    %0 = vector.load %arg1[%c0, %c0_0, %c0_1] : memref<8x64x9xbf16, #tpu.memory_space<vmem>>, vector<8x64x9xbf16>
    %1 = vector.shape_cast %0 : vector<8x64x9xbf16> to vector<512x9xbf16>
    %c0_2 = arith.constant 0 : index
    %c0_3 = arith.constant 0 : index
    %2 = vector.load %arg2[%c0_2, %c0_3] : memref<9x24xbf16, #tpu.memory_space<vmem>>, vector<9x24xbf16>
    %cst = arith.constant dense<0.000000e+00> : vector<512x24xf32>
    %3 = tpu.matmul %1, %2, %cst {dimension_numbers = #tpu.dot_dimension_numbers<[1], [0], [0], [1], [0, 0, 1, 1], [], []>} : vector<512x9xbf16>, vector<9x24xbf16>, vector<512x24xf32> -> vector<512x24xf32>
    %c0_4 = arith.constant 0 : index
    %c0_5 = arith.constant 0 : index
    %4 = vector.load %arg3[%c0_4, %c0_5] : memref<1x24xf32, #tpu.memory_space<vmem>>, vector<1x24xf32>
    %5 = vector.broadcast %4 : vector<1x24xf32> to vector<512x24xf32>
    %6 = arith.addf %3, %5 : vector<512x24xf32>
    %cst_6 = arith.constant 0.00999999977 : f32
    %7 = vector.broadcast %cst_6 : f32 to vector<512x24xf32>
    %8 = arith.mulf %7, %6 : vector<512x24xf32>
    %9 = arith.maximumf %6, %8 : vector<512x24xf32>
    %10 = arith.truncf %9 : vector<512x24xf32> to vector<512x24xbf16>
    %11 = vector.shape_cast %10 : vector<512x24xbf16> to vector<8x8x8x24xbf16>
    %12 = vector.extract_strided_slice %11 {offsets = [0, 0, 0, 0], sizes = [8, 6, 6, 24], strides = [1, 1, 1, 1]} : vector<8x8x8x24xbf16> to vector<8x6x6x24xbf16>
    %13 = vector.extract_strided_slice %11 {offsets = [0, 0, 1, 0], sizes = [8, 6, 6, 24], strides = [1, 1, 1, 1]} : vector<8x8x8x24xbf16> to vector<8x6x6x24xbf16>
    %14 = vector.extract_strided_slice %11 {offsets = [0, 0, 2, 0], sizes = [8, 6, 6, 24], strides = [1, 1, 1, 1]} : vector<8x8x8x24xbf16> to vector<8x6x6x24xbf16>
    %15 = vector.extract_strided_slice %11 {offsets = [0, 1, 0, 0], sizes = [8, 6, 6, 24], strides = [1, 1, 1, 1]} : vector<8x8x8x24xbf16> to vector<8x6x6x24xbf16>
    %16 = vector.extract_strided_slice %11 {offsets = [0, 1, 1, 0], sizes = [8, 6, 6, 24], strides = [1, 1, 1, 1]} : vector<8x8x8x24xbf16> to vector<8x6x6x24xbf16>
    %17 = vector.extract_strided_slice %11 {offsets = [0, 1, 2, 0], sizes = [8, 6, 6, 24], strides = [1, 1, 1, 1]} : vector<8x8x8x24xbf16> to vector<8x6x6x24xbf16>
    %18 = vector.extract_strided_slice %11 {offsets = [0, 2, 0, 0], sizes = [8, 6, 6, 24], strides = [1, 1, 1, 1]} : vector<8x8x8x24xbf16> to vector<8x6x6x24xbf16>
    %19 = vector.extract_strided_slice %11 {offsets = [0, 2, 1, 0], sizes = [8, 6, 6, 24], strides = [1, 1, 1, 1]} : vector<8x8x8x24xbf16> to vector<8x6x6x24xbf16>
    %20 = vector.extract_strided_slice %11 {offsets = [0, 2, 2, 0], sizes = [8, 6, 6, 24], strides = [1, 1, 1, 1]} : vector<8x8x8x24xbf16> to vector<8x6x6x24xbf16>
    %21 = tpu.concatenate %12, %13, %14, %15, %16, %17, %18, %19, %20 in 3 : vector<8x6x6x24xbf16>, vector<8x6x6x24xbf16>, vector<8x6x6x24xbf16>, vector<8x6x6x24xbf16>, vector<8x6x6x24xbf16>, vector<8x6x6x24xbf16>, vector<8x6x6x24xbf16>, vector<8x6x6x24xbf16>, vector<8x6x6x24xbf16> -> vector<8x6x6x216xbf16>
    %22 = vector.shape_cast %21 : vector<8x6x6x216xbf16> to vector<288x216xbf16>
    %c0_7 = arith.constant 0 : index
    %c0_8 = arith.constant 0 : index
    %23 = vector.load %arg4[%c0_7, %c0_8] : memref<216x64xbf16, #tpu.memory_space<vmem>>, vector<216x64xbf16>
    %cst_9 = arith.constant dense<0.000000e+00> : vector<288x64xf32>
    %24 = tpu.matmul %22, %23, %cst_9 {dimension_numbers = #tpu.dot_dimension_numbers<[1], [0], [0], [1], [0, 0, 1, 1], [], []>} : vector<288x216xbf16>, vector<216x64xbf16>, vector<288x64xf32> -> vector<288x64xf32>
    %c0_10 = arith.constant 0 : index
    %c0_11 = arith.constant 0 : index
    %25 = vector.load %arg5[%c0_10, %c0_11] : memref<1x64xf32, #tpu.memory_space<vmem>>, vector<1x64xf32>
    %26 = vector.broadcast %25 : vector<1x64xf32> to vector<288x64xf32>
    %27 = arith.addf %24, %26 : vector<288x64xf32>
    %cst_12 = arith.constant 0.00999999977 : f32
    %28 = vector.broadcast %cst_12 : f32 to vector<288x64xf32>
    %29 = arith.mulf %28, %27 : vector<288x64xf32>
    %30 = arith.maximumf %27, %29 : vector<288x64xf32>
    %31 = arith.truncf %30 : vector<288x64xf32> to vector<288x64xbf16>
    %32 = vector.shape_cast %31 : vector<288x64xbf16> to vector<8x6x6x64xbf16>
    %33 = vector.extract_strided_slice %32 {offsets = [0, 0, 0, 0], sizes = [8, 4, 4, 64], strides = [1, 1, 1, 1]} : vector<8x6x6x64xbf16> to vector<8x4x4x64xbf16>
    %34 = vector.extract_strided_slice %32 {offsets = [0, 0, 1, 0], sizes = [8, 4, 4, 64], strides = [1, 1, 1, 1]} : vector<8x6x6x64xbf16> to vector<8x4x4x64xbf16>
    %35 = vector.extract_strided_slice %32 {offsets = [0, 0, 2, 0], sizes = [8, 4, 4, 64], strides = [1, 1, 1, 1]} : vector<8x6x6x64xbf16> to vector<8x4x4x64xbf16>
    %36 = vector.extract_strided_slice %32 {offsets = [0, 1, 0, 0], sizes = [8, 4, 4, 64], strides = [1, 1, 1, 1]} : vector<8x6x6x64xbf16> to vector<8x4x4x64xbf16>
    %37 = vector.extract_strided_slice %32 {offsets = [0, 1, 1, 0], sizes = [8, 4, 4, 64], strides = [1, 1, 1, 1]} : vector<8x6x6x64xbf16> to vector<8x4x4x64xbf16>
    %38 = vector.extract_strided_slice %32 {offsets = [0, 1, 2, 0], sizes = [8, 4, 4, 64], strides = [1, 1, 1, 1]} : vector<8x6x6x64xbf16> to vector<8x4x4x64xbf16>
    %39 = vector.extract_strided_slice %32 {offsets = [0, 2, 0, 0], sizes = [8, 4, 4, 64], strides = [1, 1, 1, 1]} : vector<8x6x6x64xbf16> to vector<8x4x4x64xbf16>
    %40 = vector.extract_strided_slice %32 {offsets = [0, 2, 1, 0], sizes = [8, 4, 4, 64], strides = [1, 1, 1, 1]} : vector<8x6x6x64xbf16> to vector<8x4x4x64xbf16>
    %41 = vector.extract_strided_slice %32 {offsets = [0, 2, 2, 0], sizes = [8, 4, 4, 64], strides = [1, 1, 1, 1]} : vector<8x6x6x64xbf16> to vector<8x4x4x64xbf16>
    %42 = tpu.concatenate %33, %34, %35, %36, %37, %38, %39, %40, %41 in 3 : vector<8x4x4x64xbf16>, vector<8x4x4x64xbf16>, vector<8x4x4x64xbf16>, vector<8x4x4x64xbf16>, vector<8x4x4x64xbf16>, vector<8x4x4x64xbf16>, vector<8x4x4x64xbf16>, vector<8x4x4x64xbf16>, vector<8x4x4x64xbf16> -> vector<8x4x4x576xbf16>
    %43 = vector.shape_cast %42 : vector<8x4x4x576xbf16> to vector<128x576xbf16>
    %c0_13 = arith.constant 0 : index
    %c0_14 = arith.constant 0 : index
    %44 = vector.load %arg6[%c0_13, %c0_14] : memref<576x128xbf16, #tpu.memory_space<vmem>>, vector<576x128xbf16>
    %cst_15 = arith.constant dense<0.000000e+00> : vector<128x128xf32>
    %45 = tpu.matmul %43, %44, %cst_15 {dimension_numbers = #tpu.dot_dimension_numbers<[1], [0], [0], [1], [0, 0, 1, 1], [], []>} : vector<128x576xbf16>, vector<576x128xbf16>, vector<128x128xf32> -> vector<128x128xf32>
    %c0_16 = arith.constant 0 : index
    %c0_17 = arith.constant 0 : index
    %46 = vector.load %arg7[%c0_16, %c0_17] : memref<1x128xf32, #tpu.memory_space<vmem>>, vector<1x128xf32>
    %47 = vector.broadcast %46 : vector<1x128xf32> to vector<128x128xf32>
    %48 = arith.addf %45, %47 : vector<128x128xf32>
    %cst_18 = arith.constant 0.00999999977 : f32
    %49 = vector.broadcast %cst_18 : f32 to vector<128x128xf32>
    %50 = arith.mulf %49, %48 : vector<128x128xf32>
    %51 = arith.maximumf %48, %50 : vector<128x128xf32>
    %52 = arith.truncf %51 : vector<128x128xf32> to vector<128x128xbf16>
    %53 = vector.shape_cast %52 : vector<128x128xbf16> to vector<8x2048xbf16>
    %c0_19 = arith.constant 0 : index
    %c0_20 = arith.constant 0 : index
    %54 = vector.load %arg8[%c0_19, %c0_20] : memref<2048x256xbf16, #tpu.memory_space<vmem>>, vector<2048x256xbf16>
    %cst_21 = arith.constant dense<0.000000e+00> : vector<8x256xf32>
    %55 = tpu.matmul %53, %54, %cst_21 {dimension_numbers = #tpu.dot_dimension_numbers<[1], [0], [0], [1], [0, 0, 1, 1], [], []>} : vector<8x2048xbf16>, vector<2048x256xbf16>, vector<8x256xf32> -> vector<8x256xf32>
    %c0_22 = arith.constant 0 : index
    %c0_23 = arith.constant 0 : index
    %56 = vector.load %arg9[%c0_22, %c0_23] : memref<1x256xf32, #tpu.memory_space<vmem>>, vector<1x256xf32>
    %57 = vector.broadcast %56 : vector<1x256xf32> to vector<8x256xf32>
    %58 = arith.addf %55, %57 : vector<8x256xf32>
    %cst_24 = arith.constant 0.00999999977 : f32
    %59 = vector.broadcast %cst_24 : f32 to vector<8x256xf32>
    %60 = arith.mulf %59, %58 : vector<8x256xf32>
    %61 = arith.maximumf %58, %60 : vector<8x256xf32>
    %c0_25 = arith.constant 0 : index
    %c0_26 = arith.constant 0 : index
    %62 = vector.load %arg10[%c0_25, %c0_26] : memref<1x256xf32, #tpu.memory_space<vmem>>, vector<1x256xf32>
    %63 = vector.broadcast %62 : vector<1x256xf32> to vector<8x256xf32>
    %64 = arith.mulf %61, %63 : vector<8x256xf32>
    %cst_27 = arith.constant dense<0.000000e+00> : vector<8xf32>
    %65 = vector.multi_reduction <add>, %64, %cst_27 [1] : vector<8x256xf32> to vector<8xf32>
    %66 = vector.shape_cast %65 : vector<8xf32> to vector<8x1xf32>
    %c0_28 = arith.constant 0 : index
    %c0_29 = arith.constant 0 : index
    %67 = vector.load %arg11[%c0_28, %c0_29] : memref<1x1xf32, #tpu.memory_space<vmem>>, vector<1x1xf32>
    %68 = vector.broadcast %67 : vector<1x1xf32> to vector<8x1xf32>
    %69 = arith.addf %66, %68 : vector<8x1xf32>
    %c0_30 = arith.constant 0 : index
    %c0_31 = arith.constant 0 : index
    %70 = vector.load %arg12[%c0_30, %c0_31] : memref<8x1xf32, #tpu.memory_space<vmem>>, vector<8x1xf32>
    tpu.vector_store %arg12[%c0_30, %c0_31], %69 {strides = array<i32>} : memref<8x1xf32, #tpu.memory_space<vmem>>, vector<8x1xf32>,
    return
  }
  func.func @transform_0(%arg0: i32) -> (i32, i32, i32) {
    %c0_i32 = arith.constant 0 : i32
    %c0_i32_0 = arith.constant 0 : i32
    %c0_i32_1 = arith.constant 0 : i32
    return %arg0, %c0_i32, %c0_i32_0 : i32, i32, i32
  }
  func.func @transform_1(%arg0: i32) -> (i32, i32) {
    %c0_i32 = arith.constant 0 : i32
    %c0_i32_0 = arith.constant 0 : i32
    %c0_i32_1 = arith.constant 0 : i32
    return %c0_i32, %c0_i32_0 : i32, i32
  }
  func.func @transform_2(%arg0: i32) -> (i32, i32) {
    %c0_i32 = arith.constant 0 : i32
    %c0_i32_0 = arith.constant 0 : i32
    %c0_i32_1 = arith.constant 0 : i32
    return %c0_i32, %c0_i32_0 : i32, i32
  }
  func.func @transform_3(%arg0: i32) -> (i32, i32) {
    %c0_i32 = arith.constant 0 : i32
    %c0_i32_0 = arith.constant 0 : i32
    %c0_i32_1 = arith.constant 0 : i32
    return %c0_i32, %c0_i32_0 : i32, i32
  }
  func.func @transform_4(%arg0: i32) -> (i32, i32) {
    %c0_i32 = arith.constant 0 : i32
    %c0_i32_0 = arith.constant 0 : i32
    %c0_i32_1 = arith.constant 0 : i32
    return %c0_i32, %c0_i32_0 : i32, i32
  }
  func.func @transform_5(%arg0: i32) -> (i32, i32) {
    %c0_i32 = arith.constant 0 : i32
    %c0_i32_0 = arith.constant 0 : i32
    %c0_i32_1 = arith.constant 0 : i32
    return %c0_i32, %c0_i32_0 : i32, i32
  }
  func.func @transform_6(%arg0: i32) -> (i32, i32) {
    %c0_i32 = arith.constant 0 : i32
    %c0_i32_0 = arith.constant 0 : i32
    %c0_i32_1 = arith.constant 0 : i32
    return %c0_i32, %c0_i32_0 : i32, i32
  }
  func.func @transform_7(%arg0: i32) -> (i32, i32) {
    %c0_i32 = arith.constant 0 : i32
    %c0_i32_0 = arith.constant 0 : i32
    %c0_i32_1 = arith.constant 0 : i32
    return %c0_i32, %c0_i32_0 : i32, i32
  }
  func.func @transform_8(%arg0: i32) -> (i32, i32) {
    %c0_i32 = arith.constant 0 : i32
    %c0_i32_0 = arith.constant 0 : i32
    %c0_i32_1 = arith.constant 0 : i32
    return %c0_i32, %c0_i32_0 : i32, i32
  }
  func.func @transform_9(%arg0: i32) -> (i32, i32) {
    %c0_i32 = arith.constant 0 : i32
    %c0_i32_0 = arith.constant 0 : i32
    %c0_i32_1 = arith.constant 0 : i32
    return %c0_i32, %c0_i32_0 : i32, i32
  }
  func.func @transform_10(%arg0: i32) -> (i32, i32) {
    %c0_i32 = arith.constant 0 : i32
    %c0_i32_0 = arith.constant 0 : i32
    %c0_i32_1 = arith.constant 0 : i32
    return %c0_i32, %c0_i32_0 : i32, i32
  }
  func.func @transform_11(%arg0: i32) -> (i32, i32) {
    %c0_i32 = arith.constant 0 : i32
    %c0_i32_0 = arith.constant 0 : i32
    return %arg0, %c0_i32 : i32, i32
  }
}

</mosaic_0001>

<llo_original>
// kernel: critic_forward.1
$region0: #{critic_forward.1}
  #allocation0 [shape = 'u32[]', space=smem, size = 0x4, offset = 0x4, fixed_abs, tag = 'smem constant byte address 0x4 - core index']
  #allocation1 [shape = 'u32[144,128]{1,0:T(1,128)}', space=vmem, size = 0x12000, scoped, tag = 'internal scratch']
  #allocation2 [shape = 'f32[1,1]{1,0:T(1,128)S(1)}', space=vmem, size = 0x200, scoped, tag = 'scoped memory for critic_forward.1']
  %s0 = inlined_call_operand.vmem [shape: bf16[8,64,9], index: 0, kind: input, shape index: {}]
  %s1 = inlined_call_operand.vmem [shape: bf16[9,24], index: 1, kind: input, shape index: {}]
  %s2 = inlined_call_operand.vmem [shape: f32[1,24], index: 2, kind: input, shape index: {}]
  %s3 = inlined_call_operand.vmem [shape: bf16[216,64], index: 3, kind: input, shape index: {}]
  %s4 = inlined_call_operand.vmem [shape: f32[1,64], index: 4, kind: input, shape index: {}]
  %s5 = inlined_call_operand.vmem [shape: bf16[576,128], index: 5, kind: input, shape index: {}]
  %s6 = inlined_call_operand.vmem [shape: f32[1,128], index: 6, kind: input, shape index: {}]
  %s7 = inlined_call_operand.vmem [shape: bf16[2048,256], index: 7, kind: input, shape index: {}]
  %s8 = inlined_call_operand.vmem [shape: f32[1,256], index: 8, kind: input, shape index: {}]
  %s9 = inlined_call_operand.vmem [shape: f32[1,256], index: 9, kind: input, shape index: {}]
  %s10 = inlined_call_operand.<no memory space> [shape: f32[1,1], index: 10, kind: input, shape index: {}]
  %s11 = inlined_call_operand.vmem [shape: f32[8,1], index: 11, kind: output, shape index: {}]
  %s12 = sld [smem:[#allocation0]]
  $region54: #{critic_forward.1} parent=0
    _
  %s14 = ssub.s32 1, %s12
  %s15 = scalar_select 0, %s14, %s12
  %v16 = vstv %s10
  %17 = vst [vmem:[#allocation2] sm:$0x1] %v16
  // Predicated region
  $region2: #{critic_forward.1} parent=0 // pred_check
    _
  $region3: #{critic_forward.1} parent=0 // pred_check_branch
    %19 = sbr.rel (0) target = $region5
  $region4: #{critic_forward.1} parent=0 // pred_region
    _
  $region5: #{critic_forward.1} parent=0 // pred_fallthru
    _
  // Predicated region
  $region6: #{critic_forward.1} parent=0 // pred_check
    _
  $region7: #{critic_forward.1} parent=0 // pred_check_branch
    %21 = sbr.rel (0) target = $region9
  $region8: #{critic_forward.1} parent=0 // pred_region
    _
  $region9: #{critic_forward.1} parent=0 // pred_fallthru
    _
  // Predicated region
  $region10: #{critic_forward.1} parent=0 // pred_check
    _
  $region11: #{critic_forward.1} parent=0 // pred_check_branch
    %23 = sbr.rel (0) target = $region13
  $region12: #{critic_forward.1} parent=0 // pred_region
    _
  $region13: #{critic_forward.1} parent=0 // pred_fallthru
    _
  // Predicated region
  $region14: #{critic_forward.1} parent=0 // pred_check
    _
  $region15: #{critic_forward.1} parent=0 // pred_check_branch
    %25 = sbr.rel (0) target = $region17
  $region16: #{critic_forward.1} parent=0 // pred_region
    _
  $region17: #{critic_forward.1} parent=0 // pred_fallthru
    _
  // Predicated region
  $region18: #{critic_forward.1} parent=0 // pred_check
    _
  $region19: #{critic_forward.1} parent=0 // pred_check_branch
    %27 = sbr.rel (0) target = $region21
  $region20: #{critic_forward.1} parent=0 // pred_region
    _
  $region21: #{critic_forward.1} parent=0 // pred_fallthru
    _
  // Predicated region
  $region22: #{critic_forward.1} parent=0 // pred_check
    _
  $region23: #{critic_forward.1} parent=0 // pred_check_branch
    %29 = sbr.rel (0) target = $region25
  $region24: #{critic_forward.1} parent=0 // pred_region
    _
  $region25: #{critic_forward.1} parent=0 // pred_fallthru
    _
  // Predicated region
  $region26: #{critic_forward.1} parent=0 // pred_check
    _
  $region27: #{critic_forward.1} parent=0 // pred_check_branch
    %31 = sbr.rel (0) target = $region29
  $region28: #{critic_forward.1} parent=0 // pred_region
    _
  $region29: #{critic_forward.1} parent=0 // pred_fallthru
    _
  // Predicated region
  $region30: #{critic_forward.1} parent=0 // pred_check
    _
  $region31: #{critic_forward.1} parent=0 // pred_check_branch
    %33 = sbr.rel (0) target = $region33
  $region32: #{critic_forward.1} parent=0 // pred_region
    _
  $region33: #{critic_forward.1} parent=0 // pred_fallthru
    _
  // Predicated region
  $region34: #{critic_forward.1} parent=0 // pred_check
    _
  $region35: #{critic_forward.1} parent=0 // pred_check_branch
    %35 = sbr.rel (0) target = $region37
  $region36: #{critic_forward.1} parent=0 // pred_region
    _
  $region37: #{critic_forward.1} parent=0 // pred_fallthru
    _
  // Predicated region
  $region38: #{critic_forward.1} parent=0 // pred_check
    _
  $region39: #{critic_forward.1} parent=0 // pred_check_branch
    %37 = sbr.rel (0) target = $region41
  $region40: #{critic_forward.1} parent=0 // pred_region
    _
  $region41: #{critic_forward.1} parent=0 // pred_fallthru
    _
  // Predicated region
  $region42: #{critic_forward.1} parent=0 // pred_check
    _
  $region43: #{critic_forward.1} parent=0 // pred_check_branch
    %39 = sbr.rel (0) target = $region45
  $region44: #{critic_forward.1} parent=0 // pred_region
    _
  $region45: #{critic_forward.1} parent=0 // pred_fallthru
    _
  %v41 = vld [vmem:[%s0] sm:$0xf]
  %v42 = vld [vmem:[%s0 + $0x4] sm:$0xf]
  %v43 = vld [vmem:[%s0 + $0x8] sm:$0xf]
  %v44 = vld [vmem:[%s0 + $0xc] sm:$0xf]
  %v45 = vld [vmem:[%s0 + $0x10] sm:$0xf]
  %v46 = vld [vmem:[%s0 + $0x14] sm:$0xf]
  %v47 = vld [vmem:[%s0 + $0x18] sm:$0xf]
  %v48 = vld [vmem:[%s0 + $0x1c] sm:$0xf]
  %v49 = vld [vmem:[%s0 + $0x20] sm:$0xf]
  %v50 = vld [vmem:[%s0 + $0x24] sm:$0xf]
  %v51 = vld [vmem:[%s0 + $0x28] sm:$0xf]
  %v52 = vld [vmem:[%s0 + $0x2c] sm:$0xf]
  %v53 = vld [vmem:[%s0 + $0x30] sm:$0xf]
  %v54 = vld [vmem:[%s0 + $0x34] sm:$0xf]
  %v55 = vld [vmem:[%s0 + $0x38] sm:$0xf]
  %v56 = vld [vmem:[%s0 + $0x3c] sm:$0xf]
  %v57 = vld [vmem:[%s0 + $0x40] sm:$0xf]
  %v58 = vld [vmem:[%s0 + $0x44] sm:$0xf]
  %v59 = vld [vmem:[%s0 + $0x48] sm:$0xf]
  %v60 = vld [vmem:[%s0 + $0x4c] sm:$0xf]
  %v61 = vld [vmem:[%s0 + $0x50] sm:$0xf]
  %v62 = vld [vmem:[%s0 + $0x54] sm:$0xf]
  %v63 = vld [vmem:[%s0 + $0x58] sm:$0xf]
  %v64 = vld [vmem:[%s0 + $0x5c] sm:$0xf]
  %v65 = vld [vmem:[%s0 + $0x60] sm:$0xf]
  %v66 = vld [vmem:[%s0 + $0x64] sm:$0xf]
  %v67 = vld [vmem:[%s0 + $0x68] sm:$0xf]
  %v68 = vld [vmem:[%s0 + $0x6c] sm:$0xf]
  %v69 = vld [vmem:[%s0 + $0x70] sm:$0xf]
  %v70 = vld [vmem:[%s0 + $0x74] sm:$0xf]
  %v71 = vld [vmem:[%s0 + $0x78] sm:$0xf]
  %v72 = vld [vmem:[%s0 + $0x7c] sm:$0xf]
  %v73 = vld [vmem:[%s0 + $0x80] sm:$0xf]
  %v74 = vld [vmem:[%s0 + $0x84] sm:$0xf]
  %v75 = vld [vmem:[%s0 + $0x88] sm:$0xf]
  %v76 = vld [vmem:[%s0 + $0x8c] sm:$0xf]
  %v77 = vld [vmem:[%s0 + $0x90] sm:$0xf]
  %v78 = vld [vmem:[%s0 + $0x94] sm:$0xf]
  %v79 = vld [vmem:[%s0 + $0x98] sm:$0xf]
  %v80 = vld [vmem:[%s0 + $0x9c] sm:$0xf]
  %v81 = vld [vmem:[%s0 + $0xa0] sm:$0xf]
  %v82 = vld [vmem:[%s0 + $0xa4] sm:$0xf]
  %v83 = vld [vmem:[%s0 + $0xa8] sm:$0xf]
  %v84 = vld [vmem:[%s0 + $0xac] sm:$0xf]
  %v85 = vld [vmem:[%s0 + $0xb0] sm:$0xf]
  %v86 = vld [vmem:[%s0 + $0xb4] sm:$0xf]
  %v87 = vld [vmem:[%s0 + $0xb8] sm:$0xf]
  %v88 = vld [vmem:[%s0 + $0xbc] sm:$0xf]
  %v89 = vld [vmem:[%s0 + $0xc0] sm:$0xf]
  %v90 = vld [vmem:[%s0 + $0xc4] sm:$0xf]
  %v91 = vld [vmem:[%s0 + $0xc8] sm:$0xf]
  %v92 = vld [vmem:[%s0 + $0xcc] sm:$0xf]
  %v93 = vld [vmem:[%s0 + $0xd0] sm:$0xf]
  %v94 = vld [vmem:[%s0 + $0xd4] sm:$0xf]
  %v95 = vld [vmem:[%s0 + $0xd8] sm:$0xf]
  %v96 = vld [vmem:[%s0 + $0xdc] sm:$0xf]
  %v97 = vld [vmem:[%s0 + $0xe0] sm:$0xf]
  %v98 = vld [vmem:[%s0 + $0xe4] sm:$0xf]
  %v99 = vld [vmem:[%s0 + $0xe8] sm:$0xf]
  %v100 = vld [vmem:[%s0 + $0xec] sm:$0xf]
  %v101 = vld [vmem:[%s0 + $0xf0] sm:$0xf]
  %v102 = vld [vmem:[%s0 + $0xf4] sm:$0xf]
  %v103 = vld [vmem:[%s0 + $0xf8] sm:$0xf]
  %v104 = vld [vmem:[%s0 + $0xfc] sm:$0xf]
  %v105 = vld [vmem:[%s1] sm:$0xf]
  %v106 = vld [vmem:[%s1 + $0x4] sm:$0x1]
  %v107 = vld [vmem:[%s2] sm:$0x1]
  %v109 = vlaneseq
  %v110 = vshrl.u32 %v109, 7
  %v111 = vsub.s32 0, %v110
  %v112 = vrot.slane %v107, %v111
  %v178 = vunpack.c.l.b16 %v41
  %v179 = vunpack.c.l.b16 %v42
  %v180 = vunpack.c.l.b16 %v43
  %v181 = vunpack.c.l.b16 %v44
  %v182 = vunpack.c.l.b16 %v45
  %v183 = vunpack.c.l.b16 %v46
  %v184 = vunpack.c.l.b16 %v47
  %v185 = vunpack.c.l.b16 %v48
  %v186 = vunpack.c.l.b16 %v49
  %v187 = vunpack.c.l.b16 %v50
  %v188 = vunpack.c.l.b16 %v51
  %v189 = vunpack.c.l.b16 %v52
  %v190 = vunpack.c.l.b16 %v53
  %v191 = vunpack.c.l.b16 %v54
  %v192 = vunpack.c.l.b16 %v55
  %v193 = vunpack.c.l.b16 %v56
  %v194 = vunpack.c.l.b16 %v57
  %v195 = vunpack.c.l.b16 %v58
  %v196 = vunpack.c.l.b16 %v59
  %v197 = vunpack.c.l.b16 %v60
  %v198 = vunpack.c.l.b16 %v61
  %v199 = vunpack.c.l.b16 %v62
  %v200 = vunpack.c.l.b16 %v63
  %v201 = vunpack.c.l.b16 %v64
  %v202 = vunpack.c.l.b16 %v65
  %v203 = vunpack.c.l.b16 %v66
  %v204 = vunpack.c.l.b16 %v67
  %v205 = vunpack.c.l.b16 %v68
  %v206 = vunpack.c.l.b16 %v69
  %v207 = vunpack.c.l.b16 %v70
  %v208 = vunpack.c.l.b16 %v71
  %v209 = vunpack.c.l.b16 %v72
  %v210 = vunpack.c.l.b16 %v73
  %v211 = vunpack.c.l.b16 %v74
  %v212 = vunpack.c.l.b16 %v75
  %v213 = vunpack.c.l.b16 %v76
  %v214 = vunpack.c.l.b16 %v77
  %v215 = vunpack.c.l.b16 %v78
  %v216 = vunpack.c.l.b16 %v79
  %v217 = vunpack.c.l.b16 %v80
  %v218 = vunpack.c.l.b16 %v81
  %v219 = vunpack.c.l.b16 %v82
  %v220 = vunpack.c.l.b16 %v83
  %v221 = vunpack.c.l.b16 %v84
  %v222 = vunpack.c.l.b16 %v85
  %v223 = vunpack.c.l.b16 %v86
  %v224 = vunpack.c.l.b16 %v87
  %v225 = vunpack.c.l.b16 %v88
  %v226 = vunpack.c.l.b16 %v89
  %v227 = vunpack.c.l.b16 %v90
  %v228 = vunpack.c.l.b16 %v91
  %v229 = vunpack.c.l.b16 %v92
  %v230 = vunpack.c.l.b16 %v93
  %v231 = vunpack.c.l.b16 %v94
  %v232 = vunpack.c.l.b16 %v95
  %v233 = vunpack.c.l.b16 %v96
  %v234 = vunpack.c.l.b16 %v97
  %v235 = vunpack.c.l.b16 %v98
  %v236 = vunpack.c.l.b16 %v99
  %v237 = vunpack.c.l.b16 %v100
  %v238 = vunpack.c.l.b16 %v101
  %v239 = vunpack.c.l.b16 %v102
  %v240 = vunpack.c.l.b16 %v103
  %v241 = vunpack.c.l.b16 %v104
  %v242 = vpack.c.b16 %v179, %v178
  %v243 = vpack.c.b16 %v181, %v180
  %v244 = vpack.c.b16 %v183, %v182
  %v245 = vpack.c.b16 %v185, %v184
  %v246 = vpack.c.b16 %v187, %v186
  %v247 = vpack.c.b16 %v189, %v188
  %v248 = vpack.c.b16 %v191, %v190
  %v249 = vpack.c.b16 %v193, %v192
  %v250 = vpack.c.b16 %v195, %v194
  %v251 = vpack.c.b16 %v197, %v196
  %v252 = vpack.c.b16 %v199, %v198
  %v253 = vpack.c.b16 %v201, %v200
  %v254 = vpack.c.b16 %v203, %v202
  %v255 = vpack.c.b16 %v205, %v204
  %v256 = vpack.c.b16 %v207, %v206
  %v257 = vpack.c.b16 %v209, %v208
  %v258 = vpack.c.b16 %v211, %v210
  %v259 = vpack.c.b16 %v213, %v212
  %v260 = vpack.c.b16 %v215, %v214
  %v261 = vpack.c.b16 %v217, %v216
  %v262 = vpack.c.b16 %v219, %v218
  %v263 = vpack.c.b16 %v221, %v220
  %v264 = vpack.c.b16 %v223, %v222
  %v265 = vpack.c.b16 %v225, %v224
  %v266 = vpack.c.b16 %v227, %v226
  %v267 = vpack.c.b16 %v229, %v228
  %v268 = vpack.c.b16 %v231, %v230
  %v269 = vpack.c.b16 %v233, %v232
  %v270 = vpack.c.b16 %v235, %v234
  %v271 = vpack.c.b16 %v237, %v236
  %v272 = vpack.c.b16 %v239, %v238
  %v273 = vpack.c.b16 %v241, %v240
  %v276 = vunpack.c.l.b16 %v105
  %v277 = vunpack.c.l.b16 %v106
  %v278 = vpack.c.b16 %v277, %v276
  %vm279 = vcmask 72704
  %v281 = vsel %vm279, %v242, 0
  %v284 = vsel %vm279, %v243, 0
  %v287 = vsel %vm279, %v244, 0
  %v290 = vsel %vm279, %v245, 0
  %v293 = vsel %vm279, %v246, 0
  %v296 = vsel %vm279, %v247, 0
  %v299 = vsel %vm279, %v248, 0
  %v302 = vsel %vm279, %v249, 0
  %v305 = vsel %vm279, %v250, 0
  %v308 = vsel %vm279, %v251, 0
  %v311 = vsel %vm279, %v252, 0
  %v314 = vsel %vm279, %v253, 0
  %v317 = vsel %vm279, %v254, 0
  %v320 = vsel %vm279, %v255, 0
  %v323 = vsel %vm279, %v256, 0
  %v326 = vsel %vm279, %v257, 0
  %v329 = vsel %vm279, %v258, 0
  %v332 = vsel %vm279, %v259, 0
  %v335 = vsel %vm279, %v260, 0
  %v338 = vsel %vm279, %v261, 0
  %v341 = vsel %vm279, %v262, 0
  %v344 = vsel %vm279, %v263, 0
  %v347 = vsel %vm279, %v264, 0
  %v350 = vsel %vm279, %v265, 0
  %v353 = vsel %vm279, %v266, 0
  %v356 = vsel %vm279, %v267, 0
  %v359 = vsel %vm279, %v268, 0
  %v362 = vsel %vm279, %v269, 0
  %v365 = vsel %vm279, %v270, 0
  %v368 = vsel %vm279, %v271, 0
  %v371 = vsel %vm279, %v272, 0
  %v374 = vsel %vm279, %v273, 0
  %vm376 = vcmask 1043456
  %vm377 = vcmask 1044480
  %v378 = vsel %vm376, 4294967295, 65535
  %v379 = vsel %vm377, %v378, 0
  %v381 = vand.u32 %v278, %v379
  %383 = vmatprep.subr.bf16.mxu0 0
  %384 = vmatpush1.bf16.msra.mxu0 %v381
  %385 = vmatprep.subr.bf16.mxu0 0
  %386 = vmatpush1.bf16.msra.mxu0 0
  %387 = vmatprep.subr.bf16.mxu0 0
  %388 = vmatpush1.bf16.msra.mxu0 0
  %389 = vmatprep.subr.bf16.mxu0 0
  %390 = vmatpush1.bf16.msra.mxu0 0
  %391 = vmatprep.subr.bf16.mxu0 0
  %392 = vmatpush1.bf16.msra.mxu0 0
  %393 = vmatprep.subr.bf16.mxu0 0
  %394 = vmatpush1.bf16.msra.mxu0 0
  %395 = vmatprep.subr.bf16.mxu0 0
  %396 = vmatpush1.bf16.msra.mxu0 0
  %397 = vmatprep.subr.bf16.mxu0 0
  %398 = vmatpush1.bf16.msra.mxu0 0
  %399 = vmatprep.subr.bf16.mxu0 0
  %400 = vmatpush1.bf16.msra.mxu0 0
  %401 = vmatprep.subr.bf16.mxu0 0
  %402 = vmatpush1.bf16.msra.mxu0 0
  %403 = vmatprep.subr.bf16.mxu0 0
  %404 = vmatpush1.bf16.msra.mxu0 0
  %405 = vmatprep.subr.bf16.mxu0 0
  %406 = vmatpush1.bf16.msra.mxu0 0
  %407 = vmatprep.subr.bf16.mxu0 0
  %408 = vmatpush1.bf16.msra.mxu0 0
  %409 = vmatprep.subr.bf16.mxu0 0
  %410 = vmatpush1.bf16.msra.mxu0 0
  %411 = vmatprep.subr.bf16.mxu0 0
  %412 = vmatpush1.bf16.msra.mxu0 0
  %413 = vmatprep.subr.bf16.mxu0 0
  %414 = vmatpush1.bf16.msra.mxu0 0
  %415 = vmatprep.mubr.bf16.mxu0 0
  %416 = vmatmul.mubr.bf16.gmra.mrb[0].mxu0 %v281
  %v417 = vpop.f32.mrb[0].mxu0
  %v418 = vadd.f32 %v112, %v417
  %v419 = vpop.f32.mrb[0].mxu0
  %v420 = vpop.f32.mrb[0].mxu0
  %v421 = vadd.f32 %v112, %v420
  %v422 = vpop.f32.mrb[0].mxu0
  %423 = vmatprep.mubr.bf16.mxu0 0
  %424 = vmatmul.mubr.bf16.gmra.mrb[0].mxu0 %v284
  %v425 = vpop.f32.mrb[0].mxu0
  %v426 = vadd.f32 %v112, %v425
  %v427 = vpop.f32.mrb[0].mxu0
  %v428 = vpop.f32.mrb[0].mxu0
  %v429 = vadd.f32 %v112, %v428
  %v430 = vpop.f32.mrb[0].mxu0
  %431 = vmatprep.mubr.bf16.mxu0 0
  %432 = vmatmul.mubr.bf16.gmra.mrb[0].mxu0 %v287
  %v433 = vpop.f32.mrb[0].mxu0
  %v434 = vadd.f32 %v112, %v433
  %v435 = vpop.f32.mrb[0].mxu0
  %v436 = vpop.f32.mrb[0].mxu0
  %v437 = vadd.f32 %v112, %v436
  %v438 = vpop.f32.mrb[0].mxu0
  %439 = vmatprep.mubr.bf16.mxu0 0
  %440 = vmatmul.mubr.bf16.gmra.mrb[0].mxu0 %v290
  %v441 = vpop.f32.mrb[0].mxu0
  %v442 = vadd.f32 %v112, %v441
  %v443 = vpop.f32.mrb[0].mxu0
  %v444 = vpop.f32.mrb[0].mxu0
  %v445 = vadd.f32 %v112, %v444
  %v446 = vpop.f32.mrb[0].mxu0
  %447 = vmatprep.mubr.bf16.mxu0 0
  %448 = vmatmul.mubr.bf16.gmra.mrb[0].mxu0 %v293
  %v449 = vpop.f32.mrb[0].mxu0
  %v450 = vadd.f32 %v112, %v449
  %v451 = vpop.f32.mrb[0].mxu0
  %v452 = vpop.f32.mrb[0].mxu0
  %v453 = vadd.f32 %v112, %v452
  %v454 = vpop.f32.mrb[0].mxu0
  %455 = vmatprep.mubr.bf16.mxu0 0
  %456 = vmatmul.mubr.bf16.gmra.mrb[0].mxu0 %v296
  %v457 = vpop.f32.mrb[0].mxu0
  %v458 = vadd.f32 %v112, %v457
  %v459 = vpop.f32.mrb[0].mxu0
  %v460 = vpop.f32.mrb[0].mxu0
  %v461 = vadd.f32 %v112, %v460
  %v462 = vpop.f32.mrb[0].mxu0
  %463 = vmatprep.mubr.bf16.mxu0 0
  %464 = vmatmul.mubr.bf16.gmra.mrb[0].mxu0 %v299
  %v465 = vpop.f32.mrb[0].mxu0
  %v466 = vadd.f32 %v112, %v465
  %v467 = vpop.f32.mrb[0].mxu0
  %v468 = vpop.f32.mrb[0].mxu0
  %v469 = vadd.f32 %v112, %v468
  %v470 = vpop.f32.mrb[0].mxu0
  %471 = vmatprep.mubr.bf16.mxu0 0
  %472 = vmatmul.mubr.bf16.gmra.mrb[0].mxu0 %v302
  %v473 = vpop.f32.mrb[0].mxu0
  %v474 = vadd.f32 %v112, %v473
  %v475 = vpop.f32.mrb[0].mxu0
  %v476 = vpop.f32.mrb[0].mxu0
  %v477 = vadd.f32 %v112, %v476
  %v478 = vpop.f32.mrb[0].mxu0
  %479 = vmatprep.mubr.bf16.mxu0 0
  %480 = vmatmul.mubr.bf16.gmra.mrb[0].mxu0 %v305
  %v481 = vpop.f32.mrb[0].mxu0
  %v482 = vadd.f32 %v112, %v481
  %v483 = vpop.f32.mrb[0].mxu0
  %v484 = vpop.f32.mrb[0].mxu0
  %v485 = vadd.f32 %v112, %v484
  %v486 = vpop.f32.mrb[0].mxu0
  %487 = vmatprep.mubr.bf16.mxu0 0
  %488 = vmatmul.mubr.bf16.gmra.mrb[0].mxu0 %v308
  %v489 = vpop.f32.mrb[0].mxu0
  %v490 = vadd.f32 %v112, %v489
  %v491 = vpop.f32.mrb[0].mxu0
  %v492 = vpop.f32.mrb[0].mxu0
  %v493 = vadd.f32 %v112, %v492
  %v494 = vpop.f32.mrb[0].mxu0
  %495 = vmatprep.mubr.bf16.mxu0 0
  %496 = vmatmul.mubr.bf16.gmra.mrb[0].mxu0 %v311
  %v497 = vpop.f32.mrb[0].mxu0
  %v498 = vadd.f32 %v112, %v497
  %v499 = vpop.f32.mrb[0].mxu0
  %v500 = vpop.f32.mrb[0].mxu0
  %v501 = vadd.f32 %v112, %v500
  %v502 = vpop.f32.mrb[0].mxu0
  %503 = vmatprep.mubr.bf16.mxu0 0
  %504 = vmatmul.mubr.bf16.gmra.mrb[0].mxu0 %v314
  %v505 = vpop.f32.mrb[0].mxu0
  %v506 = vadd.f32 %v112, %v505
  %v507 = vpop.f32.mrb[0].mxu0
  %v508 = vpop.f32.mrb[0].mxu0
  %v509 = vadd.f32 %v112, %v508
  %v510 = vpop.f32.mrb[0].mxu0
  %511 = vmatprep.mubr.bf16.mxu0 0
  %512 = vmatmul.mubr.bf16.gmra.mrb[0].mxu0 %v317
  %v513 = vpop.f32.mrb[0].mxu0
  %v514 = vadd.f32 %v112, %v513
  %v515 = vpop.f32.mrb[0].mxu0
  %v516 = vpop.f32.mrb[0].mxu0
  %v517 = vadd.f32 %v112, %v516
  %v518 = vpop.f32.mrb[0].mxu0
  %519 = vmatprep.mubr.bf16.mxu0 0
  %520 = vmatmul.mubr.bf16.gmra.mrb[0].mxu0 %v320
  %v521 = vpop.f32.mrb[0].mxu0
  %v522 = vadd.f32 %v112, %v521
  %v523 = vpop.f32.mrb[0].mxu0
  %v524 = vpop.f32.mrb[0].mxu0
  %v525 = vadd.f32 %v112, %v524
  %v526 = vpop.f32.mrb[0].mxu0
  %527 = vmatprep.mubr.bf16.mxu0 0
  %528 = vmatmul.mubr.bf16.gmra.mrb[0].mxu0 %v323
  %v529 = vpop.f32.mrb[0].mxu0
  %v530 = vadd.f32 %v112, %v529
  %v531 = vpop.f32.mrb[0].mxu0
  %v532 = vpop.f32.mrb[0].mxu0
  %v533 = vadd.f32 %v112, %v532
  %v534 = vpop.f32.mrb[0].mxu0
  %535 = vmatprep.mubr.bf16.mxu0 0
  %536 = vmatmul.mubr.bf16.gmra.mrb[0].mxu0 %v326
  %v537 = vpop.f32.mrb[0].mxu0
  %v538 = vadd.f32 %v112, %v537
  %v539 = vpop.f32.mrb[0].mxu0
  %v540 = vpop.f32.mrb[0].mxu0
  %v541 = vadd.f32 %v112, %v540
  %v542 = vpop.f32.mrb[0].mxu0
  %543 = vmatprep.mubr.bf16.mxu0 0
  %544 = vmatmul.mubr.bf16.gmra.mrb[0].mxu0 %v329
  %v545 = vpop.f32.mrb[0].mxu0
  %v546 = vadd.f32 %v112, %v545
  %v547 = vpop.f32.mrb[0].mxu0
  %v548 = vpop.f32.mrb[0].mxu0
  %v549 = vadd.f32 %v112, %v548
  %v550 = vpop.f32.mrb[0].mxu0
  %551 = vmatprep.mubr.bf16.mxu0 0
  %552 = vmatmul.mubr.bf16.gmra.mrb[0].mxu0 %v332
  %v553 = vpop.f32.mrb[0].mxu0
  %v554 = vadd.f32 %v112, %v553
  %v555 = vpop.f32.mrb[0].mxu0
  %v556 = vpop.f32.mrb[0].mxu0
  %v557 = vadd.f32 %v112, %v556
  %v558 = vpop.f32.mrb[0].mxu0
  %559 = vmatprep.mubr.bf16.mxu0 0
  %560 = vmatmul.mubr.bf16.gmra.mrb[0].mxu0 %v335
  %v561 = vpop.f32.mrb[0].mxu0
  %v562 = vadd.f32 %v112, %v561
  %v563 = vpop.f32.mrb[0].mxu0
  %v564 = vpop.f32.mrb[0].mxu0
  %v565 = vadd.f32 %v112, %v564
  %v566 = vpop.f32.mrb[0].mxu0
  %567 = vmatprep.mubr.bf16.mxu0 0
  %568 = vmatmul.mubr.bf16.gmra.mrb[0].mxu0 %v338
  %v569 = vpop.f32.mrb[0].mxu0
  %v570 = vadd.f32 %v112, %v569
  %v571 = vpop.f32.mrb[0].mxu0
  %v572 = vpop.f32.mrb[0].mxu0
  %v573 = vadd.f32 %v112, %v572
  %v574 = vpop.f32.mrb[0].mxu0
  %575 = vmatprep.mubr.bf16.mxu0 0
  %576 = vmatmul.mubr.bf16.gmra.mrb[0].mxu0 %v341
  %v577 = vpop.f32.mrb[0].mxu0
  %v578 = vadd.f32 %v112, %v577
  %v579 = vpop.f32.mrb[0].mxu0
  %v580 = vpop.f32.mrb[0].mxu0
  %v581 = vadd.f32 %v112, %v580
  %v582 = vpop.f32.mrb[0].mxu0
  %583 = vmatprep.mubr.bf16.mxu0 0
  %584 = vmatmul.mubr.bf16.gmra.mrb[0].mxu0 %v344
  %v585 = vpop.f32.mrb[0].mxu0
  %v586 = vadd.f32 %v112, %v585
  %v587 = vpop.f32.mrb[0].mxu0
  %v588 = vpop.f32.mrb[0].mxu0
  %v589 = vadd.f32 %v112, %v588
  %v590 = vpop.f32.mrb[0].mxu0
  %591 = vmatprep.mubr.bf16.mxu0 0
  %592 = vmatmul.mubr.bf16.gmra.mrb[0].mxu0 %v347
  %v593 = vpop.f32.mrb[0].mxu0
  %v594 = vadd.f32 %v112, %v593
  %v595 = vpop.f32.mrb[0].mxu0
  %v596 = vpop.f32.mrb[0].mxu0
  %v597 = vadd.f32 %v112, %v596
  %v598 = vpop.f32.mrb[0].mxu0
  %599 = vmatprep.mubr.bf16.mxu0 0
  %600 = vmatmul.mubr.bf16.gmra.mrb[0].mxu0 %v350
  %v601 = vpop.f32.mrb[0].mxu0
  %v602 = vadd.f32 %v112, %v601
  %v603 = vpop.f32.mrb[0].mxu0
  %v604 = vpop.f32.mrb[0].mxu0
  %v605 = vadd.f32 %v112, %v604
  %v606 = vpop.f32.mrb[0].mxu0
  %607 = vmatprep.mubr.bf16.mxu0 0
  %608 = vmatmul.mubr.bf16.gmra.mrb[0].mxu0 %v353
  %v609 = vpop.f32.mrb[0].mxu0
  %v610 = vadd.f32 %v112, %v609
  %v611 = vpop.f32.mrb[0].mxu0
  %v612 = vpop.f32.mrb[0].mxu0
  %v613 = vadd.f32 %v112, %v612
  %v614 = vpop.f32.mrb[0].mxu0
  %615 = vmatprep.mubr.bf16.mxu0 0
  %616 = vmatmul.mubr.bf16.gmra.mrb[0].mxu0 %v356
  %v617 = vpop.f32.mrb[0].mxu0
  %v618 = vadd.f32 %v112, %v617
  %v619 = vpop.f32.mrb[0].mxu0
  %v620 = vpop.f32.mrb[0].mxu0
  %v621 = vadd.f32 %v112, %v620
  %v622 = vpop.f32.mrb[0].mxu0
  %623 = vmatprep.mubr.bf16.mxu0 0
  %624 = vmatmul.mubr.bf16.gmra.mrb[0].mxu0 %v359
  %v625 = vpop.f32.mrb[0].mxu0
  %v626 = vadd.f32 %v112, %v625
  %v627 = vpop.f32.mrb[0].mxu0
  %v628 = vpop.f32.mrb[0].mxu0
  %v629 = vadd.f32 %v112, %v628
  %v630 = vpop.f32.mrb[0].mxu0
  %631 = vmatprep.mubr.bf16.mxu0 0
  %632 = vmatmul.mubr.bf16.gmra.mrb[0].mxu0 %v362
  %v633 = vpop.f32.mrb[0].mxu0
  %v634 = vadd.f32 %v112, %v633
  %v635 = vpop.f32.mrb[0].mxu0
  %v636 = vpop.f32.mrb[0].mxu0
  %v637 = vadd.f32 %v112, %v636
  %v638 = vpop.f32.mrb[0].mxu0
  %639 = vmatprep.mubr.bf16.mxu0 0
  %640 = vmatmul.mubr.bf16.gmra.mrb[0].mxu0 %v365
  %v641 = vpop.f32.mrb[0].mxu0
  %v642 = vadd.f32 %v112, %v641
  %v643 = vpop.f32.mrb[0].mxu0
  %v644 = vpop.f32.mrb[0].mxu0
  %v645 = vadd.f32 %v112, %v644
  %v646 = vpop.f32.mrb[0].mxu0
  %647 = vmatprep.mubr.bf16.mxu0 0
  %648 = vmatmul.mubr.bf16.gmra.mrb[0].mxu0 %v368
  %v649 = vpop.f32.mrb[0].mxu0
  %v650 = vadd.f32 %v112, %v649
  %v651 = vpop.f32.mrb[0].mxu0
  %v652 = vpop.f32.mrb[0].mxu0
  %v653 = vadd.f32 %v112, %v652
  %v654 = vpop.f32.mrb[0].mxu0
  %655 = vmatprep.mubr.bf16.mxu0 0
  %656 = vmatmul.mubr.bf16.gmra.mrb[0].mxu0 %v371
  %v657 = vpop.f32.mrb[0].mxu0
  %v658 = vadd.f32 %v112, %v657
  %v659 = vpop.f32.mrb[0].mxu0
  %v660 = vpop.f32.mrb[0].mxu0
  %v661 = vadd.f32 %v112, %v660
  %v662 = vpop.f32.mrb[0].mxu0
  %663 = vmatprep.mubr.bf16.mxu0 0
  %664 = vmatmul.mubr.bf16.gmra.mrb[0].mxu0 %v374
  %v665 = vpop.f32.mrb[0].mxu0
  %v666 = vadd.f32 %v112, %v665
  %v667 = vpop.f32.mrb[0].mxu0
  %v668 = vpop.f32.mrb[0].mxu0
  %v669 = vadd.f32 %v112, %v668
  %v670 = vpop.f32.mrb[0].mxu0
  %671 = vdwg.mxu0
  %v672 = vmul.f32 %v418, 0.01
  %v673 = vmul.f32 %v421, 0.01
  %v674 = vmul.f32 %v426, 0.01
  %v675 = vmul.f32 %v429, 0.01
  %v676 = vmul.f32 %v434, 0.01
  %v677 = vmul.f32 %v437, 0.01
  %v678 = vmul.f32 %v442, 0.01
  %v679 = vmul.f32 %v445, 0.01
  %v680 = vmul.f32 %v450, 0.01
  %v681 = vmul.f32 %v453, 0.01
  %v682 = vmul.f32 %v458, 0.01
  %v683 = vmul.f32 %v461, 0.01
  %v684 = vmul.f32 %v466, 0.01
  %v685 = vmul.f32 %v469, 0.01
  %v686 = vmul.f32 %v474, 0.01
  %v687 = vmul.f32 %v477, 0.01
  %v688 = vmul.f32 %v482, 0.01
  %v689 = vmul.f32 %v485, 0.01
  %v690 = vmul.f32 %v490, 0.01
  %v691 = vmul.f32 %v493, 0.01
  %v692 = vmul.f32 %v498, 0.01
  %v693 = vmul.f32 %v501, 0.01
  %v694 = vmul.f32 %v506, 0.01
  %v695 = vmul.f32 %v509, 0.01
  %v696 = vmul.f32 %v514, 0.01
  %v697 = vmul.f32 %v517, 0.01
  %v698 = vmul.f32 %v522, 0.01
  %v699 = vmul.f32 %v525, 0.01
  %v700 = vmul.f32 %v530, 0.01
  %v701 = vmul.f32 %v533, 0.01
  %v702 = vmul.f32 %v538, 0.01
  %v703 = vmul.f32 %v541, 0.01
  %v704 = vmul.f32 %v546, 0.01
  %v705 = vmul.f32 %v549, 0.01
  %v706 = vmul.f32 %v554, 0.01
  %v707 = vmul.f32 %v557, 0.01
  %v708 = vmul.f32 %v562, 0.01
  %v709 = vmul.f32 %v565, 0.01
  %v710 = vmul.f32 %v570, 0.01
  %v711 = vmul.f32 %v573, 0.01
  %v712 = vmul.f32 %v578, 0.01
  %v713 = vmul.f32 %v581, 0.01
  %v714 = vmul.f32 %v586, 0.01
  %v715 = vmul.f32 %v589, 0.01
  %v716 = vmul.f32 %v594, 0.01
  %v717 = vmul.f32 %v597, 0.01
  %v718 = vmul.f32 %v602, 0.01
  %v719 = vmul.f32 %v605, 0.01
  %v720 = vmul.f32 %v610, 0.01
  %v721 = vmul.f32 %v613, 0.01
  %v722 = vmul.f32 %v618, 0.01
  %v723 = vmul.f32 %v621, 0.01
  %v724 = vmul.f32 %v626, 0.01
  %v725 = vmul.f32 %v629, 0.01
  %v726 = vmul.f32 %v634, 0.01
  %v727 = vmul.f32 %v637, 0.01
  %v728 = vmul.f32 %v642, 0.01
  %v729 = vmul.f32 %v645, 0.01
  %v730 = vmul.f32 %v650, 0.01
  %v731 = vmul.f32 %v653, 0.01
  %v732 = vmul.f32 %v658, 0.01
  %v733 = vmul.f32 %v661, 0.01
  %v734 = vmul.f32 %v666, 0.01
  %v735 = vmul.f32 %v669, 0.01
  %v736 = vmax.f32 %v418, %v672
  %v737 = vmax.f32 %v421, %v673
  %v738 = vmax.f32 %v426, %v674
  %v739 = vmax.f32 %v429, %v675
  %v740 = vmax.f32 %v434, %v676
  %v741 = vmax.f32 %v437, %v677
  %v742 = vmax.f32 %v442, %v678
  %v743 = vmax.f32 %v445, %v679
  %v744 = vmax.f32 %v450, %v680
  %v745 = vmax.f32 %v453, %v681
  %v746 = vmax.f32 %v458, %v682
  %v747 = vmax.f32 %v461, %v683
  %v748 = vmax.f32 %v466, %v684
  %v749 = vmax.f32 %v469, %v685
  %v750 = vmax.f32 %v474, %v686
  %v751 = vmax.f32 %v477, %v687
  %v752 = vmax.f32 %v482, %v688
  %v753 = vmax.f32 %v485, %v689
  %v754 = vmax.f32 %v490, %v690
  %v755 = vmax.f32 %v493, %v691
  %v756 = vmax.f32 %v498, %v692
  %v757 = vmax.f32 %v501, %v693
  %v758 = vmax.f32 %v506, %v694
  %v759 = vmax.f32 %v509, %v695
  %v760 = vmax.f32 %v514, %v696
  %v761 = vmax.f32 %v517, %v697
  %v762 = vmax.f32 %v522, %v698
  %v763 = vmax.f32 %v525, %v699
  %v764 = vmax.f32 %v530, %v700
  %v765 = vmax.f32 %v533, %v701
  %v766 = vmax.f32 %v538, %v702
  %v767 = vmax.f32 %v541, %v703
  %v768 = vmax.f32 %v546, %v704
  %v769 = vmax.f32 %v549, %v705
  %v770 = vmax.f32 %v554, %v706
  %v771 = vmax.f32 %v557, %v707
  %v772 = vmax.f32 %v562, %v708
  %v773 = vmax.f32 %v565, %v709
  %v774 = vmax.f32 %v570, %v710
  %v775 = vmax.f32 %v573, %v711
  %v776 = vmax.f32 %v578, %v712
  %v777 = vmax.f32 %v581, %v713
  %v778 = vmax.f32 %v586, %v714
  %v779 = vmax.f32 %v589, %v715
  %v780 = vmax.f32 %v594, %v716
  %v781 = vmax.f32 %v597, %v717
  %v782 = vmax.f32 %v602, %v718
  %v783 = vmax.f32 %v605, %v719
  %v784 = vmax.f32 %v610, %v720
  %v785 = vmax.f32 %v613, %v721
  %v786 = vmax.f32 %v618, %v722
  %v787 = vmax.f32 %v621, %v723
  %v788 = vmax.f32 %v626, %v724
  %v789 = vmax.f32 %v629, %v725
  %v790 = vmax.f32 %v634, %v726
  %v791 = vmax.f32 %v637, %v727
  %v792 = vmax.f32 %v642, %v728
  %v793 = vmax.f32 %v645, %v729
  %v794 = vmax.f32 %v650, %v730
  %v795 = vmax.f32 %v653, %v731
  %v796 = vmax.f32 %v658, %v732
  %v797 = vmax.f32 %v661, %v733
  %v798 = vmax.f32 %v666, %v734
  %v799 = vmax.f32 %v669, %v735
  %v800 = vpack.c.bf16 %v737, %v736
  %v801 = vpack.c.bf16 %v739, %v738
  %v802 = vpack.c.bf16 %v741, %v740
  %v803 = vpack.c.bf16 %v743, %v742
  %v804 = vpack.c.bf16 %v745, %v744
  %v805 = vpack.c.bf16 %v747, %v746
  %v806 = vpack.c.bf16 %v749, %v748
  %v807 = vpack.c.bf16 %v751, %v750
  %v808 = vpack.c.bf16 %v753, %v752
  %v809 = vpack.c.bf16 %v755, %v754
  %v810 = vpack.c.bf16 %v757, %v756
  %v811 = vpack.c.bf16 %v759, %v758
  %v812 = vpack.c.bf16 %v761, %v760
  %v813 = vpack.c.bf16 %v763, %v762
  %v814 = vpack.c.bf16 %v765, %v764
  %v815 = vpack.c.bf16 %v767, %v766
  %v816 = vpack.c.bf16 %v769, %v768
  %v817 = vpack.c.bf16 %v771, %v770
  %v818 = vpack.c.bf16 %v773, %v772
  %v819 = vpack.c.bf16 %v775, %v774
  %v820 = vpack.c.bf16 %v777, %v776
  %v821 = vpack.c.bf16 %v779, %v778
  %v822 = vpack.c.bf16 %v781, %v780
  %v823 = vpack.c.bf16 %v783, %v782
  %v824 = vpack.c.bf16 %v785, %v784
  %v825 = vpack.c.bf16 %v787, %v786
  %v826 = vpack.c.bf16 %v789, %v788
  %v827 = vpack.c.bf16 %v791, %v790
  %v828 = vpack.c.bf16 %v793, %v792
  %v829 = vpack.c.bf16 %v795, %v794
  %v830 = vpack.c.bf16 %v797, %v796
  %v831 = vpack.c.bf16 %v799, %v798
  %v864 = vunpack.c.l.b16 %v800
  %v865 = vunpack.c.h.b16 %v800
  %v866 = vunpack.c.l.b16 %v801
  %v867 = vunpack.c.h.b16 %v801
  %v868 = vunpack.c.l.b16 %v802
  %v869 = vunpack.c.h.b16 %v802
  %v870 = vunpack.c.l.b16 %v803
  %v871 = vunpack.c.h.b16 %v803
  %v872 = vunpack.c.l.b16 %v804
  %v873 = vunpack.c.h.b16 %v804
  %v874 = vunpack.c.l.b16 %v805
  %v875 = vunpack.c.h.b16 %v805
  %v876 = vunpack.c.l.b16 %v806
  %v877 = vunpack.c.h.b16 %v806
  %v878 = vunpack.c.l.b16 %v807
  %v879 = vunpack.c.h.b16 %v807
  %v880 = vunpack.c.l.b16 %v808
  %v881 = vunpack.c.h.b16 %v808
  %v882 = vunpack.c.l.b16 %v809
  %v883 = vunpack.c.h.b16 %v809
  %v884 = vunpack.c.l.b16 %v810
  %v885 = vunpack.c.h.b16 %v810
  %v886 = vunpack.c.l.b16 %v811
  %v887 = vunpack.c.h.b16 %v811
  %v888 = vunpack.c.l.b16 %v812
  %v889 = vunpack.c.h.b16 %v812
  %v890 = vunpack.c.l.b16 %v813
  %v891 = vunpack.c.h.b16 %v813
  %v892 = vunpack.c.l.b16 %v814
  %v893 = vunpack.c.h.b16 %v814
  %v894 = vunpack.c.l.b16 %v815
  %v895 = vunpack.c.h.b16 %v815
  %v896 = vunpack.c.l.b16 %v816
  %v897 = vunpack.c.h.b16 %v816
  %v898 = vunpack.c.l.b16 %v817
  %v899 = vunpack.c.h.b16 %v817
  %v900 = vunpack.c.l.b16 %v818
  %v901 = vunpack.c.h.b16 %v818
  %v902 = vunpack.c.l.b16 %v819
  %v903 = vunpack.c.h.b16 %v819
  %v904 = vunpack.c.l.b16 %v820
  %v905 = vunpack.c.h.b16 %v820
  %v906 = vunpack.c.l.b16 %v821
  %v907 = vunpack.c.h.b16 %v821
  %v908 = vunpack.c.l.b16 %v822
  %v909 = vunpack.c.h.b16 %v822
  %v910 = vunpack.c.l.b16 %v823
  %v911 = vunpack.c.h.b16 %v823
  %v912 = vunpack.c.l.b16 %v824
  %v913 = vunpack.c.h.b16 %v824
  %v914 = vunpack.c.l.b16 %v825
  %v915 = vunpack.c.h.b16 %v825
  %v916 = vunpack.c.l.b16 %v826
  %v917 = vunpack.c.h.b16 %v826
  %v918 = vunpack.c.l.b16 %v827
  %v919 = vunpack.c.h.b16 %v827
  %v920 = vunpack.c.l.b16 %v828
  %v921 = vunpack.c.h.b16 %v828
  %v922 = vunpack.c.l.b16 %v829
  %v923 = vunpack.c.h.b16 %v829
  %v924 = vunpack.c.l.b16 %v830
  %v925 = vunpack.c.h.b16 %v830
  %v926 = vunpack.c.l.b16 %v831
  %v927 = vunpack.c.h.b16 %v831
  %v928 = vpack.c.b16 %v864, %v864
  %v929 = vpack.c.b16 %v865, %v865
  %v930 = vpack.c.b16 %v866, %v866
  %v931 = vpack.c.b16 %v867, %v867
  %v932 = vpack.c.b16 %v868, %v868
  %v933 = vpack.c.b16 %v869, %v869
  %v934 = vpack.c.b16 %v872, %v872
  %v935 = vpack.c.b16 %v873, %v873
  %v936 = vpack.c.b16 %v874, %v874
  %v937 = vpack.c.b16 %v875, %v875
  %v938 = vpack.c.b16 %v876, %v876
  %v939 = vpack.c.b16 %v877, %v877
  %v940 = vpack.c.b16 %v880, %v880
  %v941 = vpack.c.b16 %v881, %v881
  %v942 = vpack.c.b16 %v882, %v882
  %v943 = vpack.c.b16 %v883, %v883
  %v944 = vpack.c.b16 %v884, %v884
  %v945 = vpack.c.b16 %v885, %v885
  %v946 = vpack.c.b16 %v888, %v888
  %v947 = vpack.c.b16 %v889, %v889
  %v948 = vpack.c.b16 %v890, %v890
  %v949 = vpack.c.b16 %v891, %v891
  %v950 = vpack.c.b16 %v892, %v892
  %v951 = vpack.c.b16 %v893, %v893
  %v952 = vpack.c.b16 %v896, %v896
  %v953 = vpack.c.b16 %v897, %v897
  %v954 = vpack.c.b16 %v898, %v898
  %v955 = vpack.c.b16 %v899, %v899
  %v956 = vpack.c.b16 %v900, %v900
  %v957 = vpack.c.b16 %v901, %v901
  %v958 = vpack.c.b16 %v904, %v904
  %v959 = vpack.c.b16 %v905, %v905
  %v960 = vpack.c.b16 %v906, %v906
  %v961 = vpack.c.b16 %v907, %v907
  %v962 = vpack.c.b16 %v908, %v908
  %v963 = vpack.c.b16 %v909, %v909
  %v964 = vpack.c.b16 %v912, %v912
  %v965 = vpack.c.b16 %v913, %v913
  %v966 = vpack.c.b16 %v914, %v914
  %v967 = vpack.c.b16 %v915, %v915
  %v968 = vpack.c.b16 %v916, %v916
  %v969 = vpack.c.b16 %v917, %v917
  %v970 = vpack.c.b16 %v920, %v920
  %v971 = vpack.c.b16 %v921, %v921
  %v972 = vpack.c.b16 %v922, %v922
  %v973 = vpack.c.b16 %v923, %v923
  %v974 = vpack.c.b16 %v924, %v924
  %v975 = vpack.c.b16 %v925, %v925
  %v977 = vshrl.u32 %v928, 16
  %v979 = vshll.u32 %v928, 16
  %v981 = vrot.slane %v979, 1
  %v982 = vor.u32 %v977, %v981
  %v984 = vshrl.u32 %v929, 16
  %v986 = vshll.u32 %v929, 16
  %v988 = vrot.slane %v986, 1
  %v989 = vor.u32 %v984, %v988
  %v991 = vshrl.u32 %v930, 16
  %v993 = vshll.u32 %v930, 16
  %v995 = vrot.slane %v993, 1
  %v996 = vor.u32 %v991, %v995
  %v998 = vshrl.u32 %v931, 16
  %v1000 = vshll.u32 %v931, 16
  %v1002 = vrot.slane %v1000, 1
  %v1003 = vor.u32 %v998, %v1002
  %v1005 = vshrl.u32 %v932, 16
  %v1007 = vshll.u32 %v932, 16
  %v1009 = vrot.slane %v1007, 1
  %v1010 = vor.u32 %v1005, %v1009
  %v1012 = vshrl.u32 %v933, 16
  %v1014 = vshll.u32 %v933, 16
  %v1016 = vrot.slane %v1014, 1
  %v1017 = vor.u32 %v1012, %v1016
  %v1019 = vshrl.u32 %v934, 16
  %v1021 = vshll.u32 %v934, 16
  %v1023 = vrot.slane %v1021, 1
  %v1024 = vor.u32 %v1019, %v1023
  %v1026 = vshrl.u32 %v935, 16
  %v1028 = vshll.u32 %v935, 16
  %v1030 = vrot.slane %v1028, 1
  %v1031 = vor.u32 %v1026, %v1030
  %v1033 = vshrl.u32 %v936, 16
  %v1035 = vshll.u32 %v936, 16
  %v1037 = vrot.slane %v1035, 1
  %v1038 = vor.u32 %v1033, %v1037
  %v1040 = vshrl.u32 %v937, 16
  %v1042 = vshll.u32 %v937, 16
  %v1044 = vrot.slane %v1042, 1
  %v1045 = vor.u32 %v1040, %v1044
  %v1047 = vshrl.u32 %v938, 16
  %v1049 = vshll.u32 %v938, 16
  %v1051 = vrot.slane %v1049, 1
  %v1052 = vor.u32 %v1047, %v1051
  %v1054 = vshrl.u32 %v939, 16
  %v1056 = vshll.u32 %v939, 16
  %v1058 = vrot.slane %v1056, 1
  %v1059 = vor.u32 %v1054, %v1058
  %v1061 = vshrl.u32 %v940, 16
  %v1063 = vshll.u32 %v940, 16
  %v1065 = vrot.slane %v1063, 1
  %v1066 = vor.u32 %v1061, %v1065
  %v1068 = vshrl.u32 %v941, 16
  %v1070 = vshll.u32 %v941, 16
  %v1072 = vrot.slane %v1070, 1
  %v1073 = vor.u32 %v1068, %v1072
  %v1075 = vshrl.u32 %v942, 16
  %v1077 = vshll.u32 %v942, 16
  %v1079 = vrot.slane %v1077, 1
  %v1080 = vor.u32 %v1075, %v1079
  %v1082 = vshrl.u32 %v943, 16
  %v1084 = vshll.u32 %v943, 16
  %v1086 = vrot.slane %v1084, 1
  %v1087 = vor.u32 %v1082, %v1086
  %v1089 = vshrl.u32 %v944, 16
  %v1091 = vshll.u32 %v944, 16
  %v1093 = vrot.slane %v1091, 1
  %v1094 = vor.u32 %v1089, %v1093
  %v1096 = vshrl.u32 %v945, 16
  %v1098 = vshll.u32 %v945, 16
  %v1100 = vrot.slane %v1098, 1
  %v1101 = vor.u32 %v1096, %v1100
  %v1103 = vshrl.u32 %v946, 16
  %v1105 = vshll.u32 %v946, 16
  %v1107 = vrot.slane %v1105, 1
  %v1108 = vor.u32 %v1103, %v1107
  %v1110 = vshrl.u32 %v947, 16
  %v1112 = vshll.u32 %v947, 16
  %v1114 = vrot.slane %v1112, 1
  %v1115 = vor.u32 %v1110, %v1114
  %v1117 = vshrl.u32 %v948, 16
  %v1119 = vshll.u32 %v948, 16
  %v1121 = vrot.slane %v1119, 1
  %v1122 = vor.u32 %v1117, %v1121
  %v1124 = vshrl.u32 %v949, 16
  %v1126 = vshll.u32 %v949, 16
  %v1128 = vrot.slane %v1126, 1
  %v1129 = vor.u32 %v1124, %v1128
  %v1131 = vshrl.u32 %v950, 16
  %v1133 = vshll.u32 %v950, 16
  %v1135 = vrot.slane %v1133, 1
  %v1136 = vor.u32 %v1131, %v1135
  %v1138 = vshrl.u32 %v951, 16
  %v1140 = vshll.u32 %v951, 16
  %v1142 = vrot.slane %v1140, 1
  %v1143 = vor.u32 %v1138, %v1142
  %v1145 = vshrl.u32 %v952, 16
  %v1147 = vshll.u32 %v952, 16
  %v1149 = vrot.slane %v1147, 1
  %v1150 = vor.u32 %v1145, %v1149
  %v1152 = vshrl.u32 %v953, 16
  %v1154 = vshll.u32 %v953, 16
  %v1156 = vrot.slane %v1154, 1
  %v1157 = vor.u32 %v1152, %v1156
  %v1159 = vshrl.u32 %v954, 16
  %v1161 = vshll.u32 %v954, 16
  %v1163 = vrot.slane %v1161, 1
  %v1164 = vor.u32 %v1159, %v1163
  %v1166 = vshrl.u32 %v955, 16
  %v1168 = vshll.u32 %v955, 16
  %v1170 = vrot.slane %v1168, 1
  %v1171 = vor.u32 %v1166, %v1170
  %v1173 = vshrl.u32 %v956, 16
  %v1175 = vshll.u32 %v956, 16
  %v1177 = vrot.slane %v1175, 1
  %v1178 = vor.u32 %v1173, %v1177
  %v1180 = vshrl.u32 %v957, 16
  %v1182 = vshll.u32 %v957, 16
  %v1184 = vrot.slane %v1182, 1
  %v1185 = vor.u32 %v1180, %v1184
  %v1187 = vshrl.u32 %v958, 16
  %v1189 = vshll.u32 %v958, 16
  %v1191 = vrot.slane %v1189, 1
  %v1192 = vor.u32 %v1187, %v1191
  %v1194 = vshrl.u32 %v959, 16
  %v1196 = vshll.u32 %v959, 16
  %v1198 = vrot.slane %v1196, 1
  %v1199 = vor.u32 %v1194, %v1198
  %v1201 = vshrl.u32 %v960, 16
  %v1203 = vshll.u32 %v960, 16
  %v1205 = vrot.slane %v1203, 1
  %v1206 = vor.u32 %v1201, %v1205
  %v1208 = vshrl.u32 %v961, 16
  %v1210 = vshll.u32 %v961, 16
  %v1212 = vrot.slane %v1210, 1
  %v1213 = vor.u32 %v1208, %v1212
  %v1215 = vshrl.u32 %v962, 16
  %v1217 = vshll.u32 %v962, 16
  %v1219 = vrot.slane %v1217, 1
  %v1220 = vor.u32 %v1215, %v1219
  %v1222 = vshrl.u32 %v963, 16
  %v1224 = vshll.u32 %v963, 16
  %v1226 = vrot.slane %v1224, 1
  %v1227 = vor.u32 %v1222, %v1226
  %v1229 = vshrl.u32 %v964, 16
  %v1231 = vshll.u32 %v964, 16
  %v1233 = vrot.slane %v1231, 1
  %v1234 = vor.u32 %v1229, %v1233
  %v1236 = vshrl.u32 %v965, 16
  %v1238 = vshll.u32 %v965, 16
  %v1240 = vrot.slane %v1238, 1
  %v1241 = vor.u32 %v1236, %v1240
  %v1243 = vshrl.u32 %v966, 16
  %v1245 = vshll.u32 %v966, 16
  %v1247 = vrot.slane %v1245, 1
  %v1248 = vor.u32 %v1243, %v1247
  %v1250 = vshrl.u32 %v967, 16
  %v1252 = vshll.u32 %v967, 16
  %v1254 = vrot.slane %v1252, 1
  %v1255 = vor.u32 %v1250, %v1254
  %v1257 = vshrl.u32 %v968, 16
  %v1259 = vshll.u32 %v968, 16
  %v1261 = vrot.slane %v1259, 1
  %v1262 = vor.u32 %v1257, %v1261
  %v1264 = vshrl.u32 %v969, 16
  %v1266 = vshll.u32 %v969, 16
  %v1268 = vrot.slane %v1266, 1
  %v1269 = vor.u32 %v1264, %v1268
  %v1271 = vshrl.u32 %v970, 16
  %v1273 = vshll.u32 %v970, 16
  %v1275 = vrot.slane %v1273, 1
  %v1276 = vor.u32 %v1271, %v1275
  %v1278 = vshrl.u32 %v971, 16
  %v1280 = vshll.u32 %v971, 16
  %v1282 = vrot.slane %v1280, 1
  %v1283 = vor.u32 %v1278, %v1282
  %v1285 = vshrl.u32 %v972, 16
  %v1287 = vshll.u32 %v972, 16
  %v1289 = vrot.slane %v1287, 1
  %v1290 = vor.u32 %v1285, %v1289
  %v1292 = vshrl.u32 %v973, 16
  %v1294 = vshll.u32 %v973, 16
  %v1296 = vrot.slane %v1294, 1
  %v1297 = vor.u32 %v1292, %v1296
  %v1299 = vshrl.u32 %v974, 16
  %v1301 = vshll.u32 %v974, 16
  %v1303 = vrot.slane %v1301, 1
  %v1304 = vor.u32 %v1299, %v1303
  %v1306 = vshrl.u32 %v975, 16
  %v1308 = vshll.u32 %v975, 16
  %v1310 = vrot.slane %v1308, 1
  %v1311 = vor.u32 %v1306, %v1310
  %1312 = vrot.lane.b32.xlu0 %v982, 24
  %v1313 = vpop.permute.xlu0 %1312
  %1314 = vrot.lane.b32.xlu0 %v989, 24
  %v1315 = vpop.permute.xlu0 %1314
  %1316 = vrot.lane.b32.xlu0 %v996, 24
  %v1317 = vpop.permute.xlu0 %1316
  %1318 = vrot.lane.b32.xlu0 %v1003, 24
  %v1319 = vpop.permute.xlu0 %1318
  %1320 = vrot.lane.b32.xlu0 %v1010, 24
  %v1321 = vpop.permute.xlu0 %1320
  %1322 = vrot.lane.b32.xlu0 %v1017, 24
  %v1323 = vpop.permute.xlu0 %1322
  %1324 = vrot.lane.b32.xlu0 %v1024, 24
  %v1325 = vpop.permute.xlu0 %1324
  %1326 = vrot.lane.b32.xlu0 %v1031, 24
  %v1327 = vpop.permute.xlu0 %1326
  %1328 = vrot.lane.b32.xlu0 %v1038, 24
  %v1329 = vpop.permute.xlu0 %1328
  %1330 = vrot.lane.b32.xlu0 %v1045, 24
  %v1331 = vpop.permute.xlu0 %1330
  %1332 = vrot.lane.b32.xlu0 %v1052, 24
  %v1333 = vpop.permute.xlu0 %1332
  %1334 = vrot.lane.b32.xlu0 %v1059, 24
  %v1335 = vpop.permute.xlu0 %1334
  %1336 = vrot.lane.b32.xlu0 %v1066, 24
  %v1337 = vpop.permute.xlu0 %1336
  %1338 = vrot.lane.b32.xlu0 %v1073, 24
  %v1339 = vpop.permute.xlu0 %1338
  %1340 = vrot.lane.b32.xlu0 %v1080, 24
  %v1341 = vpop.permute.xlu0 %1340
  %1342 = vrot.lane.b32.xlu0 %v1087, 24
  %v1343 = vpop.permute.xlu0 %1342
  %1344 = vrot.lane.b32.xlu0 %v1094, 24
  %v1345 = vpop.permute.xlu0 %1344
  %1346 = vrot.lane.b32.xlu0 %v1101, 24
  %v1347 = vpop.permute.xlu0 %1346
  %1348 = vrot.lane.b32.xlu0 %v1108, 24
  %v1349 = vpop.permute.xlu0 %1348
  %1350 = vrot.lane.b32.xlu0 %v1115, 24
  %v1351 = vpop.permute.xlu0 %1350
  %1352 = vrot.lane.b32.xlu0 %v1122, 24
  %v1353 = vpop.permute.xlu0 %1352
  %1354 = vrot.lane.b32.xlu0 %v1129, 24
  %v1355 = vpop.permute.xlu0 %1354
  %1356 = vrot.lane.b32.xlu0 %v1136, 24
  %v1357 = vpop.permute.xlu0 %1356
  %1358 = vrot.lane.b32.xlu0 %v1143, 24
  %v1359 = vpop.permute.xlu0 %1358
  %1360 = vrot.lane.b32.xlu0 %v1150, 24
  %v1361 = vpop.permute.xlu0 %1360
  %1362 = vrot.lane.b32.xlu0 %v1157, 24
  %v1363 = vpop.permute.xlu0 %1362
  %1364 = vrot.lane.b32.xlu0 %v1164, 24
  %v1365 = vpop.permute.xlu0 %1364
  %1366 = vrot.lane.b32.xlu0 %v1171, 24
  %v1367 = vpop.permute.xlu0 %1366
  %1368 = vrot.lane.b32.xlu0 %v1178, 24
  %v1369 = vpop.permute.xlu0 %1368
  %1370 = vrot.lane.b32.xlu0 %v1185, 24
  %v1371 = vpop.permute.xlu0 %1370
  %1372 = vrot.lane.b32.xlu0 %v1192, 24
  %v1373 = vpop.permute.xlu0 %1372
  %1374 = vrot.lane.b32.xlu0 %v1199, 24
  %v1375 = vpop.permute.xlu0 %1374
  %1376 = vrot.lane.b32.xlu0 %v1206, 24
  %v1377 = vpop.permute.xlu0 %1376
  %1378 = vrot.lane.b32.xlu0 %v1213, 24
  %v1379 = vpop.permute.xlu0 %1378
  %1380 = vrot.lane.b32.xlu0 %v1220, 24
  %v1381 = vpop.permute.xlu0 %1380
  %1382 = vrot.lane.b32.xlu0 %v1227, 24
  %v1383 = vpop.permute.xlu0 %1382
  %1384 = vrot.lane.b32.xlu0 %v1234, 24
  %v1385 = vpop.permute.xlu0 %1384
  %1386 = vrot.lane.b32.xlu0 %v1241, 24
  %v1387 = vpop.permute.xlu0 %1386
  %1388 = vrot.lane.b32.xlu0 %v1248, 24
  %v1389 = vpop.permute.xlu0 %1388
  %1390 = vrot.lane.b32.xlu0 %v1255, 24
  %v1391 = vpop.permute.xlu0 %1390
  %1392 = vrot.lane.b32.xlu0 %v1262, 24
  %v1393 = vpop.permute.xlu0 %1392
  %1394 = vrot.lane.b32.xlu0 %v1269, 24
  %v1395 = vpop.permute.xlu0 %1394
  %1396 = vrot.lane.b32.xlu0 %v1276, 24
  %v1397 = vpop.permute.xlu0 %1396
  %1398 = vrot.lane.b32.xlu0 %v1283, 24
  %v1399 = vpop.permute.xlu0 %1398
  %1400 = vrot.lane.b32.xlu0 %v1290, 24
  %v1401 = vpop.permute.xlu0 %1400
  %1402 = vrot.lane.b32.xlu0 %v1297, 24
  %v1403 = vpop.permute.xlu0 %1402
  %1404 = vrot.lane.b32.xlu0 %v1304, 24
  %v1405 = vpop.permute.xlu0 %1404
  %1406 = vrot.lane.b32.xlu0 %v1311, 24
  %v1407 = vpop.permute.xlu0 %1406
  %v1408 = vrot.slane %v928, 1
  %v1409 = vrot.slane %v929, 1
  %v1410 = vrot.slane %v930, 1
  %v1411 = vrot.slane %v931, 1
  %v1412 = vrot.slane %v932, 1
  %v1413 = vrot.slane %v933, 1
  %v1414 = vrot.slane %v934, 1
  %v1415 = vrot.slane %v935, 1
  %v1416 = vrot.slane %v936, 1
  %v1417 = vrot.slane %v937, 1
  %v1418 = vrot.slane %v938, 1
  %v1419 = vrot.slane %v939, 1
  %v1420 = vrot.slane %v940, 1
  %v1421 = vrot.slane %v941, 1
  %v1422 = vrot.slane %v942, 1
  %v1423 = vrot.slane %v943, 1
  %v1424 = vrot.slane %v944, 1
  %v1425 = vrot.slane %v945, 1
  %v1426 = vrot.slane %v946, 1
  %v1427 = vrot.slane %v947, 1
  %v1428 = vrot.slane %v948, 1
  %v1429 = vrot.slane %v949, 1
  %v1430 = vrot.slane %v950, 1
  %v1431 = vrot.slane %v951, 1
  %v1432 = vrot.slane %v952, 1
  %v1433 = vrot.slane %v953, 1
  %v1434 = vrot.slane %v954, 1
  %v1435 = vrot.slane %v955, 1
  %v1436 = vrot.slane %v956, 1
  %v1437 = vrot.slane %v957, 1
  %v1438 = vrot.slane %v958, 1
  %v1439 = vrot.slane %v959, 1
  %v1440 = vrot.slane %v960, 1
  %v1441 = vrot.slane %v961, 1
  %v1442 = vrot.slane %v962, 1
  %v1443 = vrot.slane %v963, 1
  %v1444 = vrot.slane %v964, 1
  %v1445 = vrot.slane %v965, 1
  %v1446 = vrot.slane %v966, 1
  %v1447 = vrot.slane %v967, 1
  %v1448 = vrot.slane %v968, 1
  %v1449 = vrot.slane %v969, 1
  %v1450 = vrot.slane %v970, 1
  %v1451 = vrot.slane %v971, 1
  %v1452 = vrot.slane %v972, 1
  %v1453 = vrot.slane %v973, 1
  %v1454 = vrot.slane %v974, 1
  %v1455 = vrot.slane %v975, 1
  %1456 = vrot.lane.b32.xlu0 %v1408, 48
  %v1457 = vpop.permute.xlu0 %1456
  %1458 = vrot.lane.b32.xlu0 %v1409, 48
  %v1459 = vpop.permute.xlu0 %1458
  %1460 = vrot.lane.b32.xlu0 %v1410, 48
  %v1461 = vpop.permute.xlu0 %1460
  %1462 = vrot.lane.b32.xlu0 %v1411, 48
  %v1463 = vpop.permute.xlu0 %1462
  %1464 = vrot.lane.b32.xlu0 %v1412, 48
  %v1465 = vpop.permute.xlu0 %1464
  %1466 = vrot.lane.b32.xlu0 %v1413, 48
  %v1467 = vpop.permute.xlu0 %1466
  %1468 = vrot.lane.b32.xlu0 %v1414, 48
  %v1469 = vpop.permute.xlu0 %1468
  %1470 = vrot.lane.b32.xlu0 %v1415, 48
  %v1471 = vpop.permute.xlu0 %1470
  %1472 = vrot.lane.b32.xlu0 %v1416, 48
  %v1473 = vpop.permute.xlu0 %1472
  %1474 = vrot.lane.b32.xlu0 %v1417, 48
  %v1475 = vpop.permute.xlu0 %1474
  %1476 = vrot.lane.b32.xlu0 %v1418, 48
  %v1477 = vpop.permute.xlu0 %1476
  %1478 = vrot.lane.b32.xlu0 %v1419, 48
  %v1479 = vpop.permute.xlu0 %1478
  %1480 = vrot.lane.b32.xlu0 %v1420, 48
  %v1481 = vpop.permute.xlu0 %1480
  %1482 = vrot.lane.b32.xlu0 %v1421, 48
  %v1483 = vpop.permute.xlu0 %1482
  %1484 = vrot.lane.b32.xlu0 %v1422, 48
  %v1485 = vpop.permute.xlu0 %1484
  %1486 = vrot.lane.b32.xlu0 %v1423, 48
  %v1487 = vpop.permute.xlu0 %1486
  %1488 = vrot.lane.b32.xlu0 %v1424, 48
  %v1489 = vpop.permute.xlu0 %1488
  %1490 = vrot.lane.b32.xlu0 %v1425, 48
  %v1491 = vpop.permute.xlu0 %1490
  %1492 = vrot.lane.b32.xlu0 %v1426, 48
  %v1493 = vpop.permute.xlu0 %1492
  %1494 = vrot.lane.b32.xlu0 %v1427, 48
  %v1495 = vpop.permute.xlu0 %1494
  %1496 = vrot.lane.b32.xlu0 %v1428, 48
  %v1497 = vpop.permute.xlu0 %1496
  %1498 = vrot.lane.b32.xlu0 %v1429, 48
  %v1499 = vpop.permute.xlu0 %1498
  %1500 = vrot.lane.b32.xlu0 %v1430, 48
  %v1501 = vpop.permute.xlu0 %1500
  %1502 = vrot.lane.b32.xlu0 %v1431, 48
  %v1503 = vpop.permute.xlu0 %1502
  %1504 = vrot.lane.b32.xlu0 %v1432, 48
  %v1505 = vpop.permute.xlu0 %1504
  %1506 = vrot.lane.b32.xlu0 %v1433, 48
  %v1507 = vpop.permute.xlu0 %1506
  %1508 = vrot.lane.b32.xlu0 %v1434, 48
  %v1509 = vpop.permute.xlu0 %1508
  %1510 = vrot.lane.b32.xlu0 %v1435, 48
  %v1511 = vpop.permute.xlu0 %1510
  %1512 = vrot.lane.b32.xlu0 %v1436, 48
  %v1513 = vpop.permute.xlu0 %1512
  %1514 = vrot.lane.b32.xlu0 %v1437, 48
  %v1515 = vpop.permute.xlu0 %1514
  %1516 = vrot.lane.b32.xlu0 %v1438, 48
  %v1517 = vpop.permute.xlu0 %1516
  %1518 = vrot.lane.b32.xlu0 %v1439, 48
  %v1519 = vpop.permute.xlu0 %1518
  %1520 = vrot.lane.b32.xlu0 %v1440, 48
  %v1521 = vpop.permute.xlu0 %1520
  %1522 = vrot.lane.b32.xlu0 %v1441, 48
  %v1523 = vpop.permute.xlu0 %1522
  %1524 = vrot.lane.b32.xlu0 %v1442, 48
  %v1525 = vpop.permute.xlu0 %1524
  %1526 = vrot.lane.b32.xlu0 %v1443, 48
  %v1527 = vpop.permute.xlu0 %1526
  %1528 = vrot.lane.b32.xlu0 %v1444, 48
  %v1529 = vpop.permute.xlu0 %1528
  %1530 = vrot.lane.b32.xlu0 %v1445, 48
  %v1531 = vpop.permute.xlu0 %1530
  %1532 = vrot.lane.b32.xlu0 %v1446, 48
  %v1533 = vpop.permute.xlu0 %1532
  %1534 = vrot.lane.b32.xlu0 %v1447, 48
  %v1535 = vpop.permute.xlu0 %1534
  %1536 = vrot.lane.b32.xlu0 %v1448, 48
  %v1537 = vpop.permute.xlu0 %1536
  %1538 = vrot.lane.b32.xlu0 %v1449, 48
  %v1539 = vpop.permute.xlu0 %1538
  %1540 = vrot.lane.b32.xlu0 %v1450, 48
  %v1541 = vpop.permute.xlu0 %1540
  %1542 = vrot.lane.b32.xlu0 %v1451, 48
  %v1543 = vpop.permute.xlu0 %1542
  %1544 = vrot.lane.b32.xlu0 %v1452, 48
  %v1545 = vpop.permute.xlu0 %1544
  %1546 = vrot.lane.b32.xlu0 %v1453, 48
  %v1547 = vpop.permute.xlu0 %1546
  %1548 = vrot.lane.b32.xlu0 %v1454, 48
  %v1549 = vpop.permute.xlu0 %1548
  %1550 = vrot.lane.b32.xlu0 %v1455, 48
  %v1551 = vpop.permute.xlu0 %1550
  %v1552 = vpack.c.b16 %v870, %v870
  %v1553 = vpack.c.b16 %v878, %v878
  %v1554 = vpack.c.b16 %v886, %v886
  %v1555 = vpack.c.b16 %v894, %v894
  %v1556 = vpack.c.b16 %v902, %v902
  %v1557 = vpack.c.b16 %v910, %v910
  %v1558 = vpack.c.b16 %v918, %v918
  %v1559 = vpack.c.b16 %v926, %v926
  %1560 = vrot.lane.b32.xlu0 %v929, 72
  %v1561 = vpop.permute.xlu0 %1560
  %1562 = vrot.lane.b32.xlu0 %v930, 72
  %v1563 = vpop.permute.xlu0 %1562
  %1564 = vrot.lane.b32.xlu0 %v931, 72
  %v1565 = vpop.permute.xlu0 %1564
  %1566 = vrot.lane.b32.xlu0 %v932, 72
  %v1567 = vpop.permute.xlu0 %1566
  %1568 = vrot.lane.b32.xlu0 %v933, 72
  %v1569 = vpop.permute.xlu0 %1568
  %1570 = vrot.lane.b32.xlu0 %v1552, 72
  %v1571 = vpop.permute.xlu0 %1570
  %1572 = vrot.lane.b32.xlu0 %v935, 72
  %v1573 = vpop.permute.xlu0 %1572
  %1574 = vrot.lane.b32.xlu0 %v936, 72
  %v1575 = vpop.permute.xlu0 %1574
  %1576 = vrot.lane.b32.xlu0 %v937, 72
  %v1577 = vpop.permute.xlu0 %1576
  %1578 = vrot.lane.b32.xlu0 %v938, 72
  %v1579 = vpop.permute.xlu0 %1578
  %1580 = vrot.lane.b32.xlu0 %v939, 72
  %v1581 = vpop.permute.xlu0 %1580
  %1582 = vrot.lane.b32.xlu0 %v1553, 72
  %v1583 = vpop.permute.xlu0 %1582
  %1584 = vrot.lane.b32.xlu0 %v941, 72
  %v1585 = vpop.permute.xlu0 %1584
  %1586 = vrot.lane.b32.xlu0 %v942, 72
  %v1587 = vpop.permute.xlu0 %1586
  %1588 = vrot.lane.b32.xlu0 %v943, 72
  %v1589 = vpop.permute.xlu0 %1588
  %1590 = vrot.lane.b32.xlu0 %v944, 72
  %v1591 = vpop.permute.xlu0 %1590
  %1592 = vrot.lane.b32.xlu0 %v945, 72
  %v1593 = vpop.permute.xlu0 %1592
  %1594 = vrot.lane.b32.xlu0 %v1554, 72
  %v1595 = vpop.permute.xlu0 %1594
  %1596 = vrot.lane.b32.xlu0 %v947, 72
  %v1597 = vpop.permute.xlu0 %1596
  %1598 = vrot.lane.b32.xlu0 %v948, 72
  %v1599 = vpop.permute.xlu0 %1598
  %1600 = vrot.lane.b32.xlu0 %v949, 72
  %v1601 = vpop.permute.xlu0 %1600
  %1602 = vrot.lane.b32.xlu0 %v950, 72
  %v1603 = vpop.permute.xlu0 %1602
  %1604 = vrot.lane.b32.xlu0 %v951, 72
  %v1605 = vpop.permute.xlu0 %1604
  %1606 = vrot.lane.b32.xlu0 %v1555, 72
  %v1607 = vpop.permute.xlu0 %1606
  %1608 = vrot.lane.b32.xlu0 %v953, 72
  %v1609 = vpop.permute.xlu0 %1608
  %1610 = vrot.lane.b32.xlu0 %v954, 72
  %v1611 = vpop.permute.xlu0 %1610
  %1612 = vrot.lane.b32.xlu0 %v955, 72
  %v1613 = vpop.permute.xlu0 %1612
  %1614 = vrot.lane.b32.xlu0 %v956, 72
  %v1615 = vpop.permute.xlu0 %1614
  %1616 = vrot.lane.b32.xlu0 %v957, 72
  %v1617 = vpop.permute.xlu0 %1616
  %1618 = vrot.lane.b32.xlu0 %v1556, 72
  %v1619 = vpop.permute.xlu0 %1618
  %1620 = vrot.lane.b32.xlu0 %v959, 72
  %v1621 = vpop.permute.xlu0 %1620
  %1622 = vrot.lane.b32.xlu0 %v960, 72
  %v1623 = vpop.permute.xlu0 %1622
  %1624 = vrot.lane.b32.xlu0 %v961, 72
  %v1625 = vpop.permute.xlu0 %1624
  %1626 = vrot.lane.b32.xlu0 %v962, 72
  %v1627 = vpop.permute.xlu0 %1626
  %1628 = vrot.lane.b32.xlu0 %v963, 72
  %v1629 = vpop.permute.xlu0 %1628
  %1630 = vrot.lane.b32.xlu0 %v1557, 72
  %v1631 = vpop.permute.xlu0 %1630
  %1632 = vrot.lane.b32.xlu0 %v965, 72
  %v1633 = vpop.permute.xlu0 %1632
  %1634 = vrot.lane.b32.xlu0 %v966, 72
  %v1635 = vpop.permute.xlu0 %1634
  %1636 = vrot.lane.b32.xlu0 %v967, 72
  %v1637 = vpop.permute.xlu0 %1636
  %1638 = vrot.lane.b32.xlu0 %v968, 72
  %v1639 = vpop.permute.xlu0 %1638
  %1640 = vrot.lane.b32.xlu0 %v969, 72
  %v1641 = vpop.permute.xlu0 %1640
  %1642 = vrot.lane.b32.xlu0 %v1558, 72
  %v1643 = vpop.permute.xlu0 %1642
  %1644 = vrot.lane.b32.xlu0 %v971, 72
  %v1645 = vpop.permute.xlu0 %1644
  %1646 = vrot.lane.b32.xlu0 %v972, 72
  %v1647 = vpop.permute.xlu0 %1646
  %1648 = vrot.lane.b32.xlu0 %v973, 72
  %v1649 = vpop.permute.xlu0 %1648
  %1650 = vrot.lane.b32.xlu0 %v974, 72
  %v1651 = vpop.permute.xlu0 %1650
  %1652 = vrot.lane.b32.xlu0 %v975, 72
  %v1653 = vpop.permute.xlu0 %1652
  %1654 = vrot.lane.b32.xlu0 %v1559, 72
  %v1655 = vpop.permute.xlu0 %1654
  %v1657 = vshrl.u32 %v1552, 16
  %v1659 = vshll.u32 %v1552, 16
  %v1661 = vrot.slane %v1659, 1
  %v1662 = vor.u32 %v1657, %v1661
  %v1664 = vshrl.u32 %v1553, 16
  %v1666 = vshll.u32 %v1553, 16
  %v1668 = vrot.slane %v1666, 1
  %v1669 = vor.u32 %v1664, %v1668
  %v1671 = vshrl.u32 %v1554, 16
  %v1673 = vshll.u32 %v1554, 16
  %v1675 = vrot.slane %v1673, 1
  %v1676 = vor.u32 %v1671, %v1675
  %v1678 = vshrl.u32 %v1555, 16
  %v1680 = vshll.u32 %v1555, 16
  %v1682 = vrot.slane %v1680, 1
  %v1683 = vor.u32 %v1678, %v1682
  %v1685 = vshrl.u32 %v1556, 16
  %v1687 = vshll.u32 %v1556, 16
  %v1689 = vrot.slane %v1687, 1
  %v1690 = vor.u32 %v1685, %v1689
  %v1692 = vshrl.u32 %v1557, 16
  %v1694 = vshll.u32 %v1557, 16
  %v1696 = vrot.slane %v1694, 1
  %v1697 = vor.u32 %v1692, %v1696
  %v1699 = vshrl.u32 %v1558, 16
  %v1701 = vshll.u32 %v1558, 16
  %v1703 = vrot.slane %v1701, 1
  %v1704 = vor.u32 %v1699, %v1703
  %v1706 = vshrl.u32 %v1559, 16
  %v1708 = vshll.u32 %v1559, 16
  %v1710 = vrot.slane %v1708, 1
  %v1711 = vor.u32 %v1706, %v1710
  %1712 = vrot.lane.b32.xlu0 %v989, 96
  %v1713 = vpop.permute.xlu0 %1712
  %1714 = vrot.lane.b32.xlu0 %v996, 96
  %v1715 = vpop.permute.xlu0 %1714
  %1716 = vrot.lane.b32.xlu0 %v1003, 96
  %v1717 = vpop.permute.xlu0 %1716
  %1718 = vrot.lane.b32.xlu0 %v1010, 96
  %v1719 = vpop.permute.xlu0 %1718
  %1720 = vrot.lane.b32.xlu0 %v1017, 96
  %v1721 = vpop.permute.xlu0 %1720
  %1722 = vrot.lane.b32.xlu0 %v1662, 96
  %v1723 = vpop.permute.xlu0 %1722
  %1724 = vrot.lane.b32.xlu0 %v1031, 96
  %v1725 = vpop.permute.xlu0 %1724
  %1726 = vrot.lane.b32.xlu0 %v1038, 96
  %v1727 = vpop.permute.xlu0 %1726
  %1728 = vrot.lane.b32.xlu0 %v1045, 96
  %v1729 = vpop.permute.xlu0 %1728
  %1730 = vrot.lane.b32.xlu0 %v1052, 96
  %v1731 = vpop.permute.xlu0 %1730
  %1732 = vrot.lane.b32.xlu0 %v1059, 96
  %v1733 = vpop.permute.xlu0 %1732
  %1734 = vrot.lane.b32.xlu0 %v1669, 96
  %v1735 = vpop.permute.xlu0 %1734
  %1736 = vrot.lane.b32.xlu0 %v1073, 96
  %v1737 = vpop.permute.xlu0 %1736
  %1738 = vrot.lane.b32.xlu0 %v1080, 96
  %v1739 = vpop.permute.xlu0 %1738
  %1740 = vrot.lane.b32.xlu0 %v1087, 96
  %v1741 = vpop.permute.xlu0 %1740
  %1742 = vrot.lane.b32.xlu0 %v1094, 96
  %v1743 = vpop.permute.xlu0 %1742
  %1744 = vrot.lane.b32.xlu0 %v1101, 96
  %v1745 = vpop.permute.xlu0 %1744
  %1746 = vrot.lane.b32.xlu0 %v1676, 96
  %v1747 = vpop.permute.xlu0 %1746
  %1748 = vrot.lane.b32.xlu0 %v1115, 96
  %v1749 = vpop.permute.xlu0 %1748
  %1750 = vrot.lane.b32.xlu0 %v1122, 96
  %v1751 = vpop.permute.xlu0 %1750
  %1752 = vrot.lane.b32.xlu0 %v1129, 96
  %v1753 = vpop.permute.xlu0 %1752
  %1754 = vrot.lane.b32.xlu0 %v1136, 96
  %v1755 = vpop.permute.xlu0 %1754
  %1756 = vrot.lane.b32.xlu0 %v1143, 96
  %v1757 = vpop.permute.xlu0 %1756
  %1758 = vrot.lane.b32.xlu0 %v1683, 96
  %v1759 = vpop.permute.xlu0 %1758
  %1760 = vrot.lane.b32.xlu0 %v1157, 96
  %v1761 = vpop.permute.xlu0 %1760
  %1762 = vrot.lane.b32.xlu0 %v1164, 96
  %v1763 = vpop.permute.xlu0 %1762
  %1764 = vrot.lane.b32.xlu0 %v1171, 96
  %v1765 = vpop.permute.xlu0 %1764
  %1766 = vrot.lane.b32.xlu0 %v1178, 96
  %v1767 = vpop.permute.xlu0 %1766
  %1768 = vrot.lane.b32.xlu0 %v1185, 96
  %v1769 = vpop.permute.xlu0 %1768
  %1770 = vrot.lane.b32.xlu0 %v1690, 96
  %v1771 = vpop.permute.xlu0 %1770
  %1772 = vrot.lane.b32.xlu0 %v1199, 96
  %v1773 = vpop.permute.xlu0 %1772
  %1774 = vrot.lane.b32.xlu0 %v1206, 96
  %v1775 = vpop.permute.xlu0 %1774
  %1776 = vrot.lane.b32.xlu0 %v1213, 96
  %v1777 = vpop.permute.xlu0 %1776
  %1778 = vrot.lane.b32.xlu0 %v1220, 96
  %v1779 = vpop.permute.xlu0 %1778
  %1780 = vrot.lane.b32.xlu0 %v1227, 96
  %v1781 = vpop.permute.xlu0 %1780
  %1782 = vrot.lane.b32.xlu0 %v1697, 96
  %v1783 = vpop.permute.xlu0 %1782
  %1784 = vrot.lane.b32.xlu0 %v1241, 96
  %v1785 = vpop.permute.xlu0 %1784
  %1786 = vrot.lane.b32.xlu0 %v1248, 96
  %v1787 = vpop.permute.xlu0 %1786
  %1788 = vrot.lane.b32.xlu0 %v1255, 96
  %v1789 = vpop.permute.xlu0 %1788
  %1790 = vrot.lane.b32.xlu0 %v1262, 96
  %v1791 = vpop.permute.xlu0 %1790
  %1792 = vrot.lane.b32.xlu0 %v1269, 96
  %v1793 = vpop.permute.xlu0 %1792
  %1794 = vrot.lane.b32.xlu0 %v1704, 96
  %v1795 = vpop.permute.xlu0 %1794
  %1796 = vrot.lane.b32.xlu0 %v1283, 96
  %v1797 = vpop.permute.xlu0 %1796
  %1798 = vrot.lane.b32.xlu0 %v1290, 96
  %v1799 = vpop.permute.xlu0 %1798
  %1800 = vrot.lane.b32.xlu0 %v1297, 96
  %v1801 = vpop.permute.xlu0 %1800
  %1802 = vrot.lane.b32.xlu0 %v1304, 96
  %v1803 = vpop.permute.xlu0 %1802
  %1804 = vrot.lane.b32.xlu0 %v1311, 96
  %v1805 = vpop.permute.xlu0 %1804
  %1806 = vrot.lane.b32.xlu0 %v1711, 96
  %v1807 = vpop.permute.xlu0 %1806
  %v1808 = vrot.slane %v1552, 1
  %v1809 = vrot.slane %v1553, 1
  %v1810 = vrot.slane %v1554, 1
  %v1811 = vrot.slane %v1555, 1
  %v1812 = vrot.slane %v1556, 1
  %v1813 = vrot.slane %v1557, 1
  %v1814 = vrot.slane %v1558, 1
  %v1815 = vrot.slane %v1559, 1
  %1816 = vrot.lane.b32.xlu0 %v1409, 120
  %v1817 = vpop.permute.xlu0 %1816
  %1818 = vrot.lane.b32.xlu0 %v1410, 120
  %v1819 = vpop.permute.xlu0 %1818
  %1820 = vrot.lane.b32.xlu0 %v1411, 120
  %v1821 = vpop.permute.xlu0 %1820
  %1822 = vrot.lane.b32.xlu0 %v1412, 120
  %v1823 = vpop.permute.xlu0 %1822
  %1824 = vrot.lane.b32.xlu0 %v1413, 120
  %v1825 = vpop.permute.xlu0 %1824
  %1826 = vrot.lane.b32.xlu0 %v1808, 120
  %v1827 = vpop.permute.xlu0 %1826
  %1828 = vrot.lane.b32.xlu0 %v1415, 120
  %v1829 = vpop.permute.xlu0 %1828
  %1830 = vrot.lane.b32.xlu0 %v1416, 120
  %v1831 = vpop.permute.xlu0 %1830
  %1832 = vrot.lane.b32.xlu0 %v1417, 120
  %v1833 = vpop.permute.xlu0 %1832
  %1834 = vrot.lane.b32.xlu0 %v1418, 120
  %v1835 = vpop.permute.xlu0 %1834
  %1836 = vrot.lane.b32.xlu0 %v1419, 120
  %v1837 = vpop.permute.xlu0 %1836
  %1838 = vrot.lane.b32.xlu0 %v1809, 120
  %v1839 = vpop.permute.xlu0 %1838
  %1840 = vrot.lane.b32.xlu0 %v1421, 120
  %v1841 = vpop.permute.xlu0 %1840
  %1842 = vrot.lane.b32.xlu0 %v1422, 120
  %v1843 = vpop.permute.xlu0 %1842
  %1844 = vrot.lane.b32.xlu0 %v1423, 120
  %v1845 = vpop.permute.xlu0 %1844
  %1846 = vrot.lane.b32.xlu0 %v1424, 120
  %v1847 = vpop.permute.xlu0 %1846
  %1848 = vrot.lane.b32.xlu0 %v1425, 120
  %v1849 = vpop.permute.xlu0 %1848
  %1850 = vrot.lane.b32.xlu0 %v1810, 120
  %v1851 = vpop.permute.xlu0 %1850
  %1852 = vrot.lane.b32.xlu0 %v1427, 120
  %v1853 = vpop.permute.xlu0 %1852
  %1854 = vrot.lane.b32.xlu0 %v1428, 120
  %v1855 = vpop.permute.xlu0 %1854
  %1856 = vrot.lane.b32.xlu0 %v1429, 120
  %v1857 = vpop.permute.xlu0 %1856
  %1858 = vrot.lane.b32.xlu0 %v1430, 120
  %v1859 = vpop.permute.xlu0 %1858
  %1860 = vrot.lane.b32.xlu0 %v1431, 120
  %v1861 = vpop.permute.xlu0 %1860
  %1862 = vrot.lane.b32.xlu0 %v1811, 120
  %v1863 = vpop.permute.xlu0 %1862
  %1864 = vrot.lane.b32.xlu0 %v1433, 120
  %v1865 = vpop.permute.xlu0 %1864
  %1866 = vrot.lane.b32.xlu0 %v1434, 120
  %v1867 = vpop.permute.xlu0 %1866
  %1868 = vrot.lane.b32.xlu0 %v1435, 120
  %v1869 = vpop.permute.xlu0 %1868
  %1870 = vrot.lane.b32.xlu0 %v1436, 120
  %v1871 = vpop.permute.xlu0 %1870
  %1872 = vrot.lane.b32.xlu0 %v1437, 120
  %v1873 = vpop.permute.xlu0 %1872
  %1874 = vrot.lane.b32.xlu0 %v1812, 120
  %v1875 = vpop.permute.xlu0 %1874
  %1876 = vrot.lane.b32.xlu0 %v1439, 120
  %v1877 = vpop.permute.xlu0 %1876
  %1878 = vrot.lane.b32.xlu0 %v1440, 120
  %v1879 = vpop.permute.xlu0 %1878
  %1880 = vrot.lane.b32.xlu0 %v1441, 120
  %v1881 = vpop.permute.xlu0 %1880
  %1882 = vrot.lane.b32.xlu0 %v1442, 120
  %v1883 = vpop.permute.xlu0 %1882
  %1884 = vrot.lane.b32.xlu0 %v1443, 120
  %v1885 = vpop.permute.xlu0 %1884
  %1886 = vrot.lane.b32.xlu0 %v1813, 120
  %v1887 = vpop.permute.xlu0 %1886
  %1888 = vrot.lane.b32.xlu0 %v1445, 120
  %v1889 = vpop.permute.xlu0 %1888
  %1890 = vrot.lane.b32.xlu0 %v1446, 120
  %v1891 = vpop.permute.xlu0 %1890
  %1892 = vrot.lane.b32.xlu0 %v1447, 120
  %v1893 = vpop.permute.xlu0 %1892
  %1894 = vrot.lane.b32.xlu0 %v1448, 120
  %v1895 = vpop.permute.xlu0 %1894
  %1896 = vrot.lane.b32.xlu0 %v1449, 120
  %v1897 = vpop.permute.xlu0 %1896
  %1898 = vrot.lane.b32.xlu0 %v1814, 120
  %v1899 = vpop.permute.xlu0 %1898
  %1900 = vrot.lane.b32.xlu0 %v1451, 120
  %v1901 = vpop.permute.xlu0 %1900
  %1902 = vrot.lane.b32.xlu0 %v1452, 120
  %v1903 = vpop.permute.xlu0 %1902
  %1904 = vrot.lane.b32.xlu0 %v1453, 120
  %v1905 = vpop.permute.xlu0 %1904
  %1906 = vrot.lane.b32.xlu0 %v1454, 120
  %v1907 = vpop.permute.xlu0 %1906
  %1908 = vrot.lane.b32.xlu0 %v1455, 120
  %v1909 = vpop.permute.xlu0 %1908
  %1910 = vrot.lane.b32.xlu0 %v1815, 120
  %v1911 = vpop.permute.xlu0 %1910
  %v1912 = vpack.c.b16 %v871, %v871
  %v1913 = vpack.c.b16 %v879, %v879
  %v1914 = vpack.c.b16 %v887, %v887
  %v1915 = vpack.c.b16 %v895, %v895
  %v1916 = vpack.c.b16 %v903, %v903
  %v1917 = vpack.c.b16 %v911, %v911
  %v1918 = vpack.c.b16 %v919, %v919
  %v1919 = vpack.c.b16 %v927, %v927
  %1920 = vrot.lane.b32.xlu0 %v930, 16
  %v1921 = vpop.permute.xlu0 %1920
  %1922 = vrot.lane.b32.xlu0 %v931, 16
  %v1923 = vpop.permute.xlu0 %1922
  %1924 = vrot.lane.b32.xlu0 %v932, 16
  %v1925 = vpop.permute.xlu0 %1924
  %1926 = vrot.lane.b32.xlu0 %v933, 16
  %v1927 = vpop.permute.xlu0 %1926
  %1928 = vrot.lane.b32.xlu0 %v1552, 16
  %v1929 = vpop.permute.xlu0 %1928
  %1930 = vrot.lane.b32.xlu0 %v1912, 16
  %v1931 = vpop.permute.xlu0 %1930
  %1932 = vrot.lane.b32.xlu0 %v936, 16
  %v1933 = vpop.permute.xlu0 %1932
  %1934 = vrot.lane.b32.xlu0 %v937, 16
  %v1935 = vpop.permute.xlu0 %1934
  %1936 = vrot.lane.b32.xlu0 %v938, 16
  %v1937 = vpop.permute.xlu0 %1936
  %1938 = vrot.lane.b32.xlu0 %v939, 16
  %v1939 = vpop.permute.xlu0 %1938
  %1940 = vrot.lane.b32.xlu0 %v1553, 16
  %v1941 = vpop.permute.xlu0 %1940
  %1942 = vrot.lane.b32.xlu0 %v1913, 16
  %v1943 = vpop.permute.xlu0 %1942
  %1944 = vrot.lane.b32.xlu0 %v942, 16
  %v1945 = vpop.permute.xlu0 %1944
  %1946 = vrot.lane.b32.xlu0 %v943, 16
  %v1947 = vpop.permute.xlu0 %1946
  %1948 = vrot.lane.b32.xlu0 %v944, 16
  %v1949 = vpop.permute.xlu0 %1948
  %1950 = vrot.lane.b32.xlu0 %v945, 16
  %v1951 = vpop.permute.xlu0 %1950
  %1952 = vrot.lane.b32.xlu0 %v1554, 16
  %v1953 = vpop.permute.xlu0 %1952
  %1954 = vrot.lane.b32.xlu0 %v1914, 16
  %v1955 = vpop.permute.xlu0 %1954
  %1956 = vrot.lane.b32.xlu0 %v948, 16
  %v1957 = vpop.permute.xlu0 %1956
  %1958 = vrot.lane.b32.xlu0 %v949, 16
  %v1959 = vpop.permute.xlu0 %1958
  %1960 = vrot.lane.b32.xlu0 %v950, 16
  %v1961 = vpop.permute.xlu0 %1960
  %1962 = vrot.lane.b32.xlu0 %v951, 16
  %v1963 = vpop.permute.xlu0 %1962
  %1964 = vrot.lane.b32.xlu0 %v1555, 16
  %v1965 = vpop.permute.xlu0 %1964
  %1966 = vrot.lane.b32.xlu0 %v1915, 16
  %v1967 = vpop.permute.xlu0 %1966
  %1968 = vrot.lane.b32.xlu0 %v954, 16
  %v1969 = vpop.permute.xlu0 %1968
  %1970 = vrot.lane.b32.xlu0 %v955, 16
  %v1971 = vpop.permute.xlu0 %1970
  %1972 = vrot.lane.b32.xlu0 %v956, 16
  %v1973 = vpop.permute.xlu0 %1972
  %1974 = vrot.lane.b32.xlu0 %v957, 16
  %v1975 = vpop.permute.xlu0 %1974
  %1976 = vrot.lane.b32.xlu0 %v1556, 16
  %v1977 = vpop.permute.xlu0 %1976
  %1978 = vrot.lane.b32.xlu0 %v1916, 16
  %v1979 = vpop.permute.xlu0 %1978
  %1980 = vrot.lane.b32.xlu0 %v960, 16
  %v1981 = vpop.permute.xlu0 %1980
  %1982 = vrot.lane.b32.xlu0 %v961, 16
  %v1983 = vpop.permute.xlu0 %1982
  %1984 = vrot.lane.b32.xlu0 %v962, 16
  %v1985 = vpop.permute.xlu0 %1984
  %1986 = vrot.lane.b32.xlu0 %v963, 16
  %v1987 = vpop.permute.xlu0 %1986
  %1988 = vrot.lane.b32.xlu0 %v1557, 16
  %v1989 = vpop.permute.xlu0 %1988
  %1990 = vrot.lane.b32.xlu0 %v1917, 16
  %v1991 = vpop.permute.xlu0 %1990
  %1992 = vrot.lane.b32.xlu0 %v966, 16
  %v1993 = vpop.permute.xlu0 %1992
  %1994 = vrot.lane.b32.xlu0 %v967, 16
  %v1995 = vpop.permute.xlu0 %1994
  %1996 = vrot.lane.b32.xlu0 %v968, 16
  %v1997 = vpop.permute.xlu0 %1996
  %1998 = vrot.lane.b32.xlu0 %v969, 16
  %v1999 = vpop.permute.xlu0 %1998
  %2000 = vrot.lane.b32.xlu0 %v1558, 16
  %v2001 = vpop.permute.xlu0 %2000
  %2002 = vrot.lane.b32.xlu0 %v1918, 16
  %v2003 = vpop.permute.xlu0 %2002
  %2004 = vrot.lane.b32.xlu0 %v972, 16
  %v2005 = vpop.permute.xlu0 %2004
  %2006 = vrot.lane.b32.xlu0 %v973, 16
  %v2007 = vpop.permute.xlu0 %2006
  %2008 = vrot.lane.b32.xlu0 %v974, 16
  %v2009 = vpop.permute.xlu0 %2008
  %2010 = vrot.lane.b32.xlu0 %v975, 16
  %v2011 = vpop.permute.xlu0 %2010
  %2012 = vrot.lane.b32.xlu0 %v1559, 16
  %v2013 = vpop.permute.xlu0 %2012
  %2014 = vrot.lane.b32.xlu0 %v1919, 16
  %v2015 = vpop.permute.xlu0 %2014
  %v2017 = vshrl.u32 %v1912, 16
  %v2019 = vshll.u32 %v1912, 16
  %v2021 = vrot.slane %v2019, 1
  %v2022 = vor.u32 %v2017, %v2021
  %v2024 = vshrl.u32 %v1913, 16
  %v2026 = vshll.u32 %v1913, 16
  %v2028 = vrot.slane %v2026, 1
  %v2029 = vor.u32 %v2024, %v2028
  %v2031 = vshrl.u32 %v1914, 16
  %v2033 = vshll.u32 %v1914, 16
  %v2035 = vrot.slane %v2033, 1
  %v2036 = vor.u32 %v2031, %v2035
  %v2038 = vshrl.u32 %v1915, 16
  %v2040 = vshll.u32 %v1915, 16
  %v2042 = vrot.slane %v2040, 1
  %v2043 = vor.u32 %v2038, %v2042
  %v2045 = vshrl.u32 %v1916, 16
  %v2047 = vshll.u32 %v1916, 16
  %v2049 = vrot.slane %v2047, 1
  %v2050 = vor.u32 %v2045, %v2049
  %v2052 = vshrl.u32 %v1917, 16
  %v2054 = vshll.u32 %v1917, 16
  %v2056 = vrot.slane %v2054, 1
  %v2057 = vor.u32 %v2052, %v2056
  %v2059 = vshrl.u32 %v1918, 16
  %v2061 = vshll.u32 %v1918, 16
  %v2063 = vrot.slane %v2061, 1
  %v2064 = vor.u32 %v2059, %v2063
  %v2066 = vshrl.u32 %v1919, 16
  %v2068 = vshll.u32 %v1919, 16
  %v2070 = vrot.slane %v2068, 1
  %v2071 = vor.u32 %v2066, %v2070
  %2072 = vrot.lane.b32.xlu0 %v996, 40
  %v2073 = vpop.permute.xlu0 %2072
  %2074 = vrot.lane.b32.xlu0 %v1003, 40
  %v2075 = vpop.permute.xlu0 %2074
  %2076 = vrot.lane.b32.xlu0 %v1010, 40
  %v2077 = vpop.permute.xlu0 %2076
  %2078 = vrot.lane.b32.xlu0 %v1017, 40
  %v2079 = vpop.permute.xlu0 %2078
  %2080 = vrot.lane.b32.xlu0 %v1662, 40
  %v2081 = vpop.permute.xlu0 %2080
  %2082 = vrot.lane.b32.xlu0 %v2022, 40
  %v2083 = vpop.permute.xlu0 %2082
  %2084 = vrot.lane.b32.xlu0 %v1038, 40
  %v2085 = vpop.permute.xlu0 %2084
  %2086 = vrot.lane.b32.xlu0 %v1045, 40
  %v2087 = vpop.permute.xlu0 %2086
  %2088 = vrot.lane.b32.xlu0 %v1052, 40
  %v2089 = vpop.permute.xlu0 %2088
  %2090 = vrot.lane.b32.xlu0 %v1059, 40
  %v2091 = vpop.permute.xlu0 %2090
  %2092 = vrot.lane.b32.xlu0 %v1669, 40
  %v2093 = vpop.permute.xlu0 %2092
  %2094 = vrot.lane.b32.xlu0 %v2029, 40
  %v2095 = vpop.permute.xlu0 %2094
  %2096 = vrot.lane.b32.xlu0 %v1080, 40
  %v2097 = vpop.permute.xlu0 %2096
  %2098 = vrot.lane.b32.xlu0 %v1087, 40
  %v2099 = vpop.permute.xlu0 %2098
  %2100 = vrot.lane.b32.xlu0 %v1094, 40
  %v2101 = vpop.permute.xlu0 %2100
  %2102 = vrot.lane.b32.xlu0 %v1101, 40
  %v2103 = vpop.permute.xlu0 %2102
  %2104 = vrot.lane.b32.xlu0 %v1676, 40
  %v2105 = vpop.permute.xlu0 %2104
  %2106 = vrot.lane.b32.xlu0 %v2036, 40
  %v2107 = vpop.permute.xlu0 %2106
  %2108 = vrot.lane.b32.xlu0 %v1122, 40
  %v2109 = vpop.permute.xlu0 %2108
  %2110 = vrot.lane.b32.xlu0 %v1129, 40
  %v2111 = vpop.permute.xlu0 %2110
  %2112 = vrot.lane.b32.xlu0 %v1136, 40
  %v2113 = vpop.permute.xlu0 %2112
  %2114 = vrot.lane.b32.xlu0 %v1143, 40
  %v2115 = vpop.permute.xlu0 %2114
  %2116 = vrot.lane.b32.xlu0 %v1683, 40
  %v2117 = vpop.permute.xlu0 %2116
  %2118 = vrot.lane.b32.xlu0 %v2043, 40
  %v2119 = vpop.permute.xlu0 %2118
  %2120 = vrot.lane.b32.xlu0 %v1164, 40
  %v2121 = vpop.permute.xlu0 %2120
  %2122 = vrot.lane.b32.xlu0 %v1171, 40
  %v2123 = vpop.permute.xlu0 %2122
  %2124 = vrot.lane.b32.xlu0 %v1178, 40
  %v2125 = vpop.permute.xlu0 %2124
  %2126 = vrot.lane.b32.xlu0 %v1185, 40
  %v2127 = vpop.permute.xlu0 %2126
  %2128 = vrot.lane.b32.xlu0 %v1690, 40
  %v2129 = vpop.permute.xlu0 %2128
  %2130 = vrot.lane.b32.xlu0 %v2050, 40
  %v2131 = vpop.permute.xlu0 %2130
  %2132 = vrot.lane.b32.xlu0 %v1206, 40
  %v2133 = vpop.permute.xlu0 %2132
  %2134 = vrot.lane.b32.xlu0 %v1213, 40
  %v2135 = vpop.permute.xlu0 %2134
  %2136 = vrot.lane.b32.xlu0 %v1220, 40
  %v2137 = vpop.permute.xlu0 %2136
  %2138 = vrot.lane.b32.xlu0 %v1227, 40
  %v2139 = vpop.permute.xlu0 %2138
  %2140 = vrot.lane.b32.xlu0 %v1697, 40
  %v2141 = vpop.permute.xlu0 %2140
  %2142 = vrot.lane.b32.xlu0 %v2057, 40
  %v2143 = vpop.permute.xlu0 %2142
  %2144 = vrot.lane.b32.xlu0 %v1248, 40
  %v2145 = vpop.permute.xlu0 %2144
  %2146 = vrot.lane.b32.xlu0 %v1255, 40
  %v2147 = vpop.permute.xlu0 %2146
  %2148 = vrot.lane.b32.xlu0 %v1262, 40
  %v2149 = vpop.permute.xlu0 %2148
  %2150 = vrot.lane.b32.xlu0 %v1269, 40
  %v2151 = vpop.permute.xlu0 %2150
  %2152 = vrot.lane.b32.xlu0 %v1704, 40
  %v2153 = vpop.permute.xlu0 %2152
  %2154 = vrot.lane.b32.xlu0 %v2064, 40
  %v2155 = vpop.permute.xlu0 %2154
  %2156 = vrot.lane.b32.xlu0 %v1290, 40
  %v2157 = vpop.permute.xlu0 %2156
  %2158 = vrot.lane.b32.xlu0 %v1297, 40
  %v2159 = vpop.permute.xlu0 %2158
  %2160 = vrot.lane.b32.xlu0 %v1304, 40
  %v2161 = vpop.permute.xlu0 %2160
  %2162 = vrot.lane.b32.xlu0 %v1311, 40
  %v2163 = vpop.permute.xlu0 %2162
  %2164 = vrot.lane.b32.xlu0 %v1711, 40
  %v2165 = vpop.permute.xlu0 %2164
  %2166 = vrot.lane.b32.xlu0 %v2071, 40
  %v2167 = vpop.permute.xlu0 %2166
  %v2168 = vrot.slane %v1912, 1
  %v2169 = vrot.slane %v1913, 1
  %v2170 = vrot.slane %v1914, 1
  %v2171 = vrot.slane %v1915, 1
  %v2172 = vrot.slane %v1916, 1
  %v2173 = vrot.slane %v1917, 1
  %v2174 = vrot.slane %v1918, 1
  %v2175 = vrot.slane %v1919, 1
  %2176 = vrot.lane.b32.xlu0 %v1410, 64
  %v2177 = vpop.permute.xlu0 %2176
  %2178 = vrot.lane.b32.xlu0 %v1411, 64
  %v2179 = vpop.permute.xlu0 %2178
  %2180 = vrot.lane.b32.xlu0 %v1412, 64
  %v2181 = vpop.permute.xlu0 %2180
  %2182 = vrot.lane.b32.xlu0 %v1413, 64
  %v2183 = vpop.permute.xlu0 %2182
  %2184 = vrot.lane.b32.xlu0 %v1808, 64
  %v2185 = vpop.permute.xlu0 %2184
  %2186 = vrot.lane.b32.xlu0 %v2168, 64
  %v2187 = vpop.permute.xlu0 %2186
  %2188 = vrot.lane.b32.xlu0 %v1416, 64
  %v2189 = vpop.permute.xlu0 %2188
  %2190 = vrot.lane.b32.xlu0 %v1417, 64
  %v2191 = vpop.permute.xlu0 %2190
  %2192 = vrot.lane.b32.xlu0 %v1418, 64
  %v2193 = vpop.permute.xlu0 %2192
  %2194 = vrot.lane.b32.xlu0 %v1419, 64
  %v2195 = vpop.permute.xlu0 %2194
  %2196 = vrot.lane.b32.xlu0 %v1809, 64
  %v2197 = vpop.permute.xlu0 %2196
  %2198 = vrot.lane.b32.xlu0 %v2169, 64
  %v2199 = vpop.permute.xlu0 %2198
  %2200 = vrot.lane.b32.xlu0 %v1422, 64
  %v2201 = vpop.permute.xlu0 %2200
  %2202 = vrot.lane.b32.xlu0 %v1423, 64
  %v2203 = vpop.permute.xlu0 %2202
  %2204 = vrot.lane.b32.xlu0 %v1424, 64
  %v2205 = vpop.permute.xlu0 %2204
  %2206 = vrot.lane.b32.xlu0 %v1425, 64
  %v2207 = vpop.permute.xlu0 %2206
  %2208 = vrot.lane.b32.xlu0 %v1810, 64
  %v2209 = vpop.permute.xlu0 %2208
  %2210 = vrot.lane.b32.xlu0 %v2170, 64
  %v2211 = vpop.permute.xlu0 %2210
  %2212 = vrot.lane.b32.xlu0 %v1428, 64
  %v2213 = vpop.permute.xlu0 %2212
  %2214 = vrot.lane.b32.xlu0 %v1429, 64
  %v2215 = vpop.permute.xlu0 %2214
  %2216 = vrot.lane.b32.xlu0 %v1430, 64
  %v2217 = vpop.permute.xlu0 %2216
  %2218 = vrot.lane.b32.xlu0 %v1431, 64
  %v2219 = vpop.permute.xlu0 %2218
  %2220 = vrot.lane.b32.xlu0 %v1811, 64
  %v2221 = vpop.permute.xlu0 %2220
  %2222 = vrot.lane.b32.xlu0 %v2171, 64
  %v2223 = vpop.permute.xlu0 %2222
  %2224 = vrot.lane.b32.xlu0 %v1434, 64
  %v2225 = vpop.permute.xlu0 %2224
  %2226 = vrot.lane.b32.xlu0 %v1435, 64
  %v2227 = vpop.permute.xlu0 %2226
  %2228 = vrot.lane.b32.xlu0 %v1436, 64
  %v2229 = vpop.permute.xlu0 %2228
  %2230 = vrot.lane.b32.xlu0 %v1437, 64
  %v2231 = vpop.permute.xlu0 %2230
  %2232 = vrot.lane.b32.xlu0 %v1812, 64
  %v2233 = vpop.permute.xlu0 %2232
  %2234 = vrot.lane.b32.xlu0 %v2172, 64
  %v2235 = vpop.permute.xlu0 %2234
  %2236 = vrot.lane.b32.xlu0 %v1440, 64
  %v2237 = vpop.permute.xlu0 %2236
  %2238 = vrot.lane.b32.xlu0 %v1441, 64
  %v2239 = vpop.permute.xlu0 %2238
  %2240 = vrot.lane.b32.xlu0 %v1442, 64
  %v2241 = vpop.permute.xlu0 %2240
  %2242 = vrot.lane.b32.xlu0 %v1443, 64
  %v2243 = vpop.permute.xlu0 %2242
  %2244 = vrot.lane.b32.xlu0 %v1813, 64
  %v2245 = vpop.permute.xlu0 %2244
  %2246 = vrot.lane.b32.xlu0 %v2173, 64
  %v2247 = vpop.permute.xlu0 %2246
  %2248 = vrot.lane.b32.xlu0 %v1446, 64
  %v2249 = vpop.permute.xlu0 %2248
  %2250 = vrot.lane.b32.xlu0 %v1447, 64
  %v2251 = vpop.permute.xlu0 %2250
  %2252 = vrot.lane.b32.xlu0 %v1448, 64
  %v2253 = vpop.permute.xlu0 %2252
  %2254 = vrot.lane.b32.xlu0 %v1449, 64
  %v2255 = vpop.permute.xlu0 %2254
  %2256 = vrot.lane.b32.xlu0 %v1814, 64
  %v2257 = vpop.permute.xlu0 %2256
  %2258 = vrot.lane.b32.xlu0 %v2174, 64
  %v2259 = vpop.permute.xlu0 %2258
  %2260 = vrot.lane.b32.xlu0 %v1452, 64
  %v2261 = vpop.permute.xlu0 %2260
  %2262 = vrot.lane.b32.xlu0 %v1453, 64
  %v2263 = vpop.permute.xlu0 %2262
  %2264 = vrot.lane.b32.xlu0 %v1454, 64
  %v2265 = vpop.permute.xlu0 %2264
  %2266 = vrot.lane.b32.xlu0 %v1455, 64
  %v2267 = vpop.permute.xlu0 %2266
  %2268 = vrot.lane.b32.xlu0 %v1815, 64
  %v2269 = vpop.permute.xlu0 %2268
  %2270 = vrot.lane.b32.xlu0 %v2175, 64
  %v2271 = vpop.permute.xlu0 %2270
  %vm2272 = vcmask 195584
  %v2274 = vsel %vm2272, %v928, %v1313
  %v2276 = vsel %vm2272, %v929, %v1315
  %v2278 = vsel %vm2272, %v930, %v1317
  %v2280 = vsel %vm2272, %v931, %v1319
  %v2282 = vsel %vm2272, %v932, %v1321
  %v2284 = vsel %vm2272, %v933, %v1323
  %v2286 = vsel %vm2272, %v934, %v1325
  %v2288 = vsel %vm2272, %v935, %v1327
  %v2290 = vsel %vm2272, %v936, %v1329
  %v2292 = vsel %vm2272, %v937, %v1331
  %v2294 = vsel %vm2272, %v938, %v1333
  %v2296 = vsel %vm2272, %v939, %v1335
  %v2298 = vsel %vm2272, %v940, %v1337
  %v2300 = vsel %vm2272, %v941, %v1339
  %v2302 = vsel %vm2272, %v942, %v1341
  %v2304 = vsel %vm2272, %v943, %v1343
  %v2306 = vsel %vm2272, %v944, %v1345
  %v2308 = vsel %vm2272, %v945, %v1347
  %v2310 = vsel %vm2272, %v946, %v1349
  %v2312 = vsel %vm2272, %v947, %v1351
  %v2314 = vsel %vm2272, %v948, %v1353
  %v2316 = vsel %vm2272, %v949, %v1355
  %v2318 = vsel %vm2272, %v950, %v1357
  %v2320 = vsel %vm2272, %v951, %v1359
  %v2322 = vsel %vm2272, %v952, %v1361
  %v2324 = vsel %vm2272, %v953, %v1363
  %v2326 = vsel %vm2272, %v954, %v1365
  %v2328 = vsel %vm2272, %v955, %v1367
  %v2330 = vsel %vm2272, %v956, %v1369
  %v2332 = vsel %vm2272, %v957, %v1371
  %v2334 = vsel %vm2272, %v958, %v1373
  %v2336 = vsel %vm2272, %v959, %v1375
  %v2338 = vsel %vm2272, %v960, %v1377
  %v2340 = vsel %vm2272, %v961, %v1379
  %v2342 = vsel %vm2272, %v962, %v1381
  %v2344 = vsel %vm2272, %v963, %v1383
  %v2346 = vsel %vm2272, %v964, %v1385
  %v2348 = vsel %vm2272, %v965, %v1387
  %v2350 = vsel %vm2272, %v966, %v1389
  %v2352 = vsel %vm2272, %v967, %v1391
  %v2354 = vsel %vm2272, %v968, %v1393
  %v2356 = vsel %vm2272, %v969, %v1395
  %v2358 = vsel %vm2272, %v970, %v1397
  %v2360 = vsel %vm2272, %v971, %v1399
  %v2362 = vsel %vm2272, %v972, %v1401
  %v2364 = vsel %vm2272, %v973, %v1403
  %v2366 = vsel %vm2272, %v974, %v1405
  %v2368 = vsel %vm2272, %v975, %v1407
  %vm2369 = vcmask 392192
  %v2371 = vsel %vm2369, %v2274, %v1457
  %v2373 = vsel %vm2369, %v2276, %v1459
  %v2375 = vsel %vm2369, %v2278, %v1461
  %v2377 = vsel %vm2369, %v2280, %v1463
  %v2379 = vsel %vm2369, %v2282, %v1465
  %v2381 = vsel %vm2369, %v2284, %v1467
  %v2383 = vsel %vm2369, %v2286, %v1469
  %v2385 = vsel %vm2369, %v2288, %v1471
  %v2387 = vsel %vm2369, %v2290, %v1473
  %v2389 = vsel %vm2369, %v2292, %v1475
  %v2391 = vsel %vm2369, %v2294, %v1477
  %v2393 = vsel %vm2369, %v2296, %v1479
  %v2395 = vsel %vm2369, %v2298, %v1481
  %v2397 = vsel %vm2369, %v2300, %v1483
  %v2399 = vsel %vm2369, %v2302, %v1485
  %v2401 = vsel %vm2369, %v2304, %v1487
  %v2403 = vsel %vm2369, %v2306, %v1489
  %v2405 = vsel %vm2369, %v2308, %v1491
  %v2407 = vsel %vm2369, %v2310, %v1493
  %v2409 = vsel %vm2369, %v2312, %v1495
  %v2411 = vsel %vm2369, %v2314, %v1497
  %v2413 = vsel %vm2369, %v2316, %v1499
  %v2415 = vsel %vm2369, %v2318, %v1501
  %v2417 = vsel %vm2369, %v2320, %v1503
  %v2419 = vsel %vm2369, %v2322, %v1505
  %v2421 = vsel %vm2369, %v2324, %v1507
  %v2423 = vsel %vm2369, %v2326, %v1509
  %v2425 = vsel %vm2369, %v2328, %v1511
  %v2427 = vsel %vm2369, %v2330, %v1513
  %v2429 = vsel %vm2369, %v2332, %v1515
  %v2431 = vsel %vm2369, %v2334, %v1517
  %v2433 = vsel %vm2369, %v2336, %v1519
  %v2435 = vsel %vm2369, %v2338, %v1521
  %v2437 = vsel %vm2369, %v2340, %v1523
  %v2439 = vsel %vm2369, %v2342, %v1525
  %v2441 = vsel %vm2369, %v2344, %v1527
  %v2443 = vsel %vm2369, %v2346, %v1529
  %v2445 = vsel %vm2369, %v2348, %v1531
  %v2447 = vsel %vm2369, %v2350, %v1533
  %v2449 = vsel %vm2369, %v2352, %v1535
  %v2451 = vsel %vm2369, %v2354, %v1537
  %v2453 = vsel %vm2369, %v2356, %v1539
  %v2455 = vsel %vm2369, %v2358, %v1541
  %v2457 = vsel %vm2369, %v2360, %v1543
  %v2459 = vsel %vm2369, %v2362, %v1545
  %v2461 = vsel %vm2369, %v2364, %v1547
  %v2463 = vsel %vm2369, %v2366, %v1549
  %v2465 = vsel %vm2369, %v2368, %v1551
  %vm2466 = vcmask 588800
  %v2468 = vsel %vm2466, %v2371, %v1561
  %v2470 = vsel %vm2466, %v2373, %v1563
  %v2472 = vsel %vm2466, %v2375, %v1565
  %v2474 = vsel %vm2466, %v2377, %v1567
  %v2476 = vsel %vm2466, %v2379, %v1569
  %v2478 = vsel %vm2466, %v2381, %v1571
  %v2480 = vsel %vm2466, %v2383, %v1573
  %v2482 = vsel %vm2466, %v2385, %v1575
  %v2484 = vsel %vm2466, %v2387, %v1577
  %v2486 = vsel %vm2466, %v2389, %v1579
  %v2488 = vsel %vm2466, %v2391, %v1581
  %v2490 = vsel %vm2466, %v2393, %v1583
  %v2492 = vsel %vm2466, %v2395, %v1585
  %v2494 = vsel %vm2466, %v2397, %v1587
  %v2496 = vsel %vm2466, %v2399, %v1589
  %v2498 = vsel %vm2466, %v2401, %v1591
  %v2500 = vsel %vm2466, %v2403, %v1593
  %v2502 = vsel %vm2466, %v2405, %v1595
  %v2504 = vsel %vm2466, %v2407, %v1597
  %v2506 = vsel %vm2466, %v2409, %v1599
  %v2508 = vsel %vm2466, %v2411, %v1601
  %v2510 = vsel %vm2466, %v2413, %v1603
  %v2512 = vsel %vm2466, %v2415, %v1605
  %v2514 = vsel %vm2466, %v2417, %v1607
  %v2516 = vsel %vm2466, %v2419, %v1609
  %v2518 = vsel %vm2466, %v2421, %v1611
  %v2520 = vsel %vm2466, %v2423, %v1613
  %v2522 = vsel %vm2466, %v2425, %v1615
  %v2524 = vsel %vm2466, %v2427, %v1617
  %v2526 = vsel %vm2466, %v2429, %v1619
  %v2528 = vsel %vm2466, %v2431, %v1621
  %v2530 = vsel %vm2466, %v2433, %v1623
  %v2532 = vsel %vm2466, %v2435, %v1625
  %v2534 = vsel %vm2466, %v2437, %v1627
  %v2536 = vsel %vm2466, %v2439, %v1629
  %v2538 = vsel %vm2466, %v2441, %v1631
  %v2540 = vsel %vm2466, %v2443, %v1633
  %v2542 = vsel %vm2466, %v2445, %v1635
  %v2544 = vsel %vm2466, %v2447, %v1637
  %v2546 = vsel %vm2466, %v2449, %v1639
  %v2548 = vsel %vm2466, %v2451, %v1641
  %v2550 = vsel %vm2466, %v2453, %v1643
  %v2552 = vsel %vm2466, %v2455, %v1645
  %v2554 = vsel %vm2466, %v2457, %v1647
  %v2556 = vsel %vm2466, %v2459, %v1649
  %v2558 = vsel %vm2466, %v2461, %v1651
  %v2560 = vsel %vm2466, %v2463, %v1653
  %v2562 = vsel %vm2466, %v2465, %v1655
  %vm2563 = vcmask 785408
  %v2565 = vsel %vm2563, %v2468, %v1713
  %v2567 = vsel %vm2563, %v2470, %v1715
  %v2569 = vsel %vm2563, %v2472, %v1717
  %v2571 = vsel %vm2563, %v2474, %v1719
  %v2573 = vsel %vm2563, %v2476, %v1721
  %v2575 = vsel %vm2563, %v2478, %v1723
  %v2577 = vsel %vm2563, %v2480, %v1725
  %v2579 = vsel %vm2563, %v2482, %v1727
  %v2581 = vsel %vm2563, %v2484, %v1729
  %v2583 = vsel %vm2563, %v2486, %v1731
  %v2585 = vsel %vm2563, %v2488, %v1733
  %v2587 = vsel %vm2563, %v2490, %v1735
  %v2589 = vsel %vm2563, %v2492, %v1737
  %v2591 = vsel %vm2563, %v2494, %v1739
  %v2593 = vsel %vm2563, %v2496, %v1741
  %v2595 = vsel %vm2563, %v2498, %v1743
  %v2597 = vsel %vm2563, %v2500, %v1745
  %v2599 = vsel %vm2563, %v2502, %v1747
  %v2601 = vsel %vm2563, %v2504, %v1749
  %v2603 = vsel %vm2563, %v2506, %v1751
  %v2605 = vsel %vm2563, %v2508, %v1753
  %v2607 = vsel %vm2563, %v2510, %v1755
  %v2609 = vsel %vm2563, %v2512, %v1757
  %v2611 = vsel %vm2563, %v2514, %v1759
  %v2613 = vsel %vm2563, %v2516, %v1761
  %v2615 = vsel %vm2563, %v2518, %v1763
  %v2617 = vsel %vm2563, %v2520, %v1765
  %v2619 = vsel %vm2563, %v2522, %v1767
  %v2621 = vsel %vm2563, %v2524, %v1769
  %v2623 = vsel %vm2563, %v2526, %v1771
  %v2625 = vsel %vm2563, %v2528, %v1773
  %v2627 = vsel %vm2563, %v2530, %v1775
  %v2629 = vsel %vm2563, %v2532, %v1777
  %v2631 = vsel %vm2563, %v2534, %v1779
  %v2633 = vsel %vm2563, %v2536, %v1781
  %v2635 = vsel %vm2563, %v2538, %v1783
  %v2637 = vsel %vm2563, %v2540, %v1785
  %v2639 = vsel %vm2563, %v2542, %v1787
  %v2641 = vsel %vm2563, %v2544, %v1789
  %v2643 = vsel %vm2563, %v2546, %v1791
  %v2645 = vsel %vm2563, %v2548, %v1793
  %v2647 = vsel %vm2563, %v2550, %v1795
  %v2649 = vsel %vm2563, %v2552, %v1797
  %v2651 = vsel %vm2563, %v2554, %v1799
  %v2653 = vsel %vm2563, %v2556, %v1801
  %v2655 = vsel %vm2563, %v2558, %v1803
  %v2657 = vsel %vm2563, %v2560, %v1805
  %v2659 = vsel %vm2563, %v2562, %v1807
  %vm2660 = vcmask 982016
  %v2662 = vsel %vm2660, %v2565, %v1817
  %v2664 = vsel %vm2660, %v2567, %v1819
  %v2666 = vsel %vm2660, %v2569, %v1821
  %v2668 = vsel %vm2660, %v2571, %v1823
  %v2670 = vsel %vm2660, %v2573, %v1825
  %v2672 = vsel %vm2660, %v2575, %v1827
  %v2674 = vsel %vm2660, %v2577, %v1829
  %v2676 = vsel %vm2660, %v2579, %v1831
  %v2678 = vsel %vm2660, %v2581, %v1833
  %v2680 = vsel %vm2660, %v2583, %v1835
  %v2682 = vsel %vm2660, %v2585, %v1837
  %v2684 = vsel %vm2660, %v2587, %v1839
  %v2686 = vsel %vm2660, %v2589, %v1841
  %v2688 = vsel %vm2660, %v2591, %v1843
  %v2690 = vsel %vm2660, %v2593, %v1845
  %v2692 = vsel %vm2660, %v2595, %v1847
  %v2694 = vsel %vm2660, %v2597, %v1849
  %v2696 = vsel %vm2660, %v2599, %v1851
  %v2698 = vsel %vm2660, %v2601, %v1853
  %v2700 = vsel %vm2660, %v2603, %v1855
  %v2702 = vsel %vm2660, %v2605, %v1857
  %v2704 = vsel %vm2660, %v2607, %v1859
  %v2706 = vsel %vm2660, %v2609, %v1861
  %v2708 = vsel %vm2660, %v2611, %v1863
  %v2710 = vsel %vm2660, %v2613, %v1865
  %v2712 = vsel %vm2660, %v2615, %v1867
  %v2714 = vsel %vm2660, %v2617, %v1869
  %v2716 = vsel %vm2660, %v2619, %v1871
  %v2718 = vsel %vm2660, %v2621, %v1873
  %v2720 = vsel %vm2660, %v2623, %v1875
  %v2722 = vsel %vm2660, %v2625, %v1877
  %v2724 = vsel %vm2660, %v2627, %v1879
  %v2726 = vsel %vm2660, %v2629, %v1881
  %v2728 = vsel %vm2660, %v2631, %v1883
  %v2730 = vsel %vm2660, %v2633, %v1885
  %v2732 = vsel %vm2660, %v2635, %v1887
  %v2734 = vsel %vm2660, %v2637, %v1889
  %v2736 = vsel %vm2660, %v2639, %v1891
  %v2738 = vsel %vm2660, %v2641, %v1893
  %v2740 = vsel %vm2660, %v2643, %v1895
  %v2742 = vsel %vm2660, %v2645, %v1897
  %v2744 = vsel %vm2660, %v2647, %v1899
  %v2746 = vsel %vm2660, %v2649, %v1901
  %v2748 = vsel %vm2660, %v2651, %v1903
  %v2750 = vsel %vm2660, %v2653, %v1905
  %v2752 = vsel %vm2660, %v2655, %v1907
  %v2754 = vsel %vm2660, %v2657, %v1909
  %v2756 = vsel %vm2660, %v2659, %v1911
  %vm2757 = vcmask 130048
  %v2759 = vsel %vm2757, %v1817, %v1921
  %v2761 = vsel %vm2757, %v1819, %v1923
  %v2763 = vsel %vm2757, %v1821, %v1925
  %v2765 = vsel %vm2757, %v1823, %v1927
  %v2767 = vsel %vm2757, %v1825, %v1929
  %v2769 = vsel %vm2757, %v1827, %v1931
  %v2771 = vsel %vm2757, %v1829, %v1933
  %v2773 = vsel %vm2757, %v1831, %v1935
  %v2775 = vsel %vm2757, %v1833, %v1937
  %v2777 = vsel %vm2757, %v1835, %v1939
  %v2779 = vsel %vm2757, %v1837, %v1941
  %v2781 = vsel %vm2757, %v1839, %v1943
  %v2783 = vsel %vm2757, %v1841, %v1945
  %v2785 = vsel %vm2757, %v1843, %v1947
  %v2787 = vsel %vm2757, %v1845, %v1949
  %v2789 = vsel %vm2757, %v1847, %v1951
  %v2791 = vsel %vm2757, %v1849, %v1953
  %v2793 = vsel %vm2757, %v1851, %v1955
  %v2795 = vsel %vm2757, %v1853, %v1957
  %v2797 = vsel %vm2757, %v1855, %v1959
  %v2799 = vsel %vm2757, %v1857, %v1961
  %v2801 = vsel %vm2757, %v1859, %v1963
  %v2803 = vsel %vm2757, %v1861, %v1965
  %v2805 = vsel %vm2757, %v1863, %v1967
  %v2807 = vsel %vm2757, %v1865, %v1969
  %v2809 = vsel %vm2757, %v1867, %v1971
  %v2811 = vsel %vm2757, %v1869, %v1973
  %v2813 = vsel %vm2757, %v1871, %v1975
  %v2815 = vsel %vm2757, %v1873, %v1977
  %v2817 = vsel %vm2757, %v1875, %v1979
  %v2819 = vsel %vm2757, %v1877, %v1981
  %v2821 = vsel %vm2757, %v1879, %v1983
  %v2823 = vsel %vm2757, %v1881, %v1985
  %v2825 = vsel %vm2757, %v1883, %v1987
  %v2827 = vsel %vm2757, %v1885, %v1989
  %v2829 = vsel %vm2757, %v1887, %v1991
  %v2831 = vsel %vm2757, %v1889, %v1993
  %v2833 = vsel %vm2757, %v1891, %v1995
  %v2835 = vsel %vm2757, %v1893, %v1997
  %v2837 = vsel %vm2757, %v1895, %v1999
  %v2839 = vsel %vm2757, %v1897, %v2001
  %v2841 = vsel %vm2757, %v1899, %v2003
  %v2843 = vsel %vm2757, %v1901, %v2005
  %v2845 = vsel %vm2757, %v1903, %v2007
  %v2847 = vsel %vm2757, %v1905, %v2009
  %v2849 = vsel %vm2757, %v1907, %v2011
  %v2851 = vsel %vm2757, %v1909, %v2013
  %v2853 = vsel %vm2757, %v1911, %v2015
  %vm2854 = vcmask 326656
  %v2856 = vsel %vm2854, %v2759, %v2073
  %v2858 = vsel %vm2854, %v2761, %v2075
  %v2860 = vsel %vm2854, %v2763, %v2077
  %v2862 = vsel %vm2854, %v2765, %v2079
  %v2864 = vsel %vm2854, %v2767, %v2081
  %v2866 = vsel %vm2854, %v2769, %v2083
  %v2868 = vsel %vm2854, %v2771, %v2085
  %v2870 = vsel %vm2854, %v2773, %v2087
  %v2872 = vsel %vm2854, %v2775, %v2089
  %v2874 = vsel %vm2854, %v2777, %v2091
  %v2876 = vsel %vm2854, %v2779, %v2093
  %v2878 = vsel %vm2854, %v2781, %v2095
  %v2880 = vsel %vm2854, %v2783, %v2097
  %v2882 = vsel %vm2854, %v2785, %v2099
  %v2884 = vsel %vm2854, %v2787, %v2101
  %v2886 = vsel %vm2854, %v2789, %v2103
  %v2888 = vsel %vm2854, %v2791, %v2105
  %v2890 = vsel %vm2854, %v2793, %v2107
  %v2892 = vsel %vm2854, %v2795, %v2109
  %v2894 = vsel %vm2854, %v2797, %v2111
  %v2896 = vsel %vm2854, %v2799, %v2113
  %v2898 = vsel %vm2854, %v2801, %v2115
  %v2900 = vsel %vm2854, %v2803, %v2117
  %v2902 = vsel %vm2854, %v2805, %v2119
  %v2904 = vsel %vm2854, %v2807, %v2121
  %v2906 = vsel %vm2854, %v2809, %v2123
  %v2908 = vsel %vm2854, %v2811, %v2125
  %v2910 = vsel %vm2854, %v2813, %v2127
  %v2912 = vsel %vm2854, %v2815, %v2129
  %v2914 = vsel %vm2854, %v2817, %v2131
  %v2916 = vsel %vm2854, %v2819, %v2133
  %v2918 = vsel %vm2854, %v2821, %v2135
  %v2920 = vsel %vm2854, %v2823, %v2137
  %v2922 = vsel %vm2854, %v2825, %v2139
  %v2924 = vsel %vm2854, %v2827, %v2141
  %v2926 = vsel %vm2854, %v2829, %v2143
  %v2928 = vsel %vm2854, %v2831, %v2145
  %v2930 = vsel %vm2854, %v2833, %v2147
  %v2932 = vsel %vm2854, %v2835, %v2149
  %v2934 = vsel %vm2854, %v2837, %v2151
  %v2936 = vsel %vm2854, %v2839, %v2153
  %v2938 = vsel %vm2854, %v2841, %v2155
  %v2940 = vsel %vm2854, %v2843, %v2157
  %v2942 = vsel %vm2854, %v2845, %v2159
  %v2944 = vsel %vm2854, %v2847, %v2161
  %v2946 = vsel %vm2854, %v2849, %v2163
  %v2948 = vsel %vm2854, %v2851, %v2165
  %v2950 = vsel %vm2854, %v2853, %v2167
  %vm2951 = vcmask 523264
  %v2953 = vsel %vm2951, %v2856, %v2177
  %v2955 = vsel %vm2951, %v2858, %v2179
  %v2957 = vsel %vm2951, %v2860, %v2181
  %v2959 = vsel %vm2951, %v2862, %v2183
  %v2961 = vsel %vm2951, %v2864, %v2185
  %v2963 = vsel %vm2951, %v2866, %v2187
  %v2965 = vsel %vm2951, %v2868, %v2189
  %v2967 = vsel %vm2951, %v2870, %v2191
  %v2969 = vsel %vm2951, %v2872, %v2193
  %v2971 = vsel %vm2951, %v2874, %v2195
  %v2973 = vsel %vm2951, %v2876, %v2197
  %v2975 = vsel %vm2951, %v2878, %v2199
  %v2977 = vsel %vm2951, %v2880, %v2201
  %v2979 = vsel %vm2951, %v2882, %v2203
  %v2981 = vsel %vm2951, %v2884, %v2205
  %v2983 = vsel %vm2951, %v2886, %v2207
  %v2985 = vsel %vm2951, %v2888, %v2209
  %v2987 = vsel %vm2951, %v2890, %v2211
  %v2989 = vsel %vm2951, %v2892, %v2213
  %v2991 = vsel %vm2951, %v2894, %v2215
  %v2993 = vsel %vm2951, %v2896, %v2217
  %v2995 = vsel %vm2951, %v2898, %v2219
  %v2997 = vsel %vm2951, %v2900, %v2221
  %v2999 = vsel %vm2951, %v2902, %v2223
  %v3001 = vsel %vm2951, %v2904, %v2225
  %v3003 = vsel %vm2951, %v2906, %v2227
  %v3005 = vsel %vm2951, %v2908, %v2229
  %v3007 = vsel %vm2951, %v2910, %v2231
  %v3009 = vsel %vm2951, %v2912, %v2233
  %v3011 = vsel %vm2951, %v2914, %v2235
  %v3013 = vsel %vm2951, %v2916, %v2237
  %v3015 = vsel %vm2951, %v2918, %v2239
  %v3017 = vsel %vm2951, %v2920, %v2241
  %v3019 = vsel %vm2951, %v2922, %v2243
  %v3021 = vsel %vm2951, %v2924, %v2245
  %v3023 = vsel %vm2951, %v2926, %v2247
  %v3025 = vsel %vm2951, %v2928, %v2249
  %v3027 = vsel %vm2951, %v2930, %v2251
  %v3029 = vsel %vm2951, %v2932, %v2253
  %v3031 = vsel %vm2951, %v2934, %v2255
  %v3033 = vsel %vm2951, %v2936, %v2257
  %v3035 = vsel %vm2951, %v2938, %v2259
  %v3037 = vsel %vm2951, %v2940, %v2261
  %v3039 = vsel %vm2951, %v2942, %v2263
  %v3041 = vsel %vm2951, %v2944, %v2265
  %v3043 = vsel %vm2951, %v2946, %v2267
  %v3045 = vsel %vm2951, %v2948, %v2269
  %v3047 = vsel %vm2951, %v2950, %v2271
  %v3144 = vcombine.low %v2662, %v2953
  %v3146 = vunpack.c.l.s4 1966171168
  %v3147 = vunpack.c.0.s8 %v3146
  %v3148 = vlaneseq
  %v3149 = vshrl.u32 %v3148, 7
  %v3150 = vsub.s32 %v3147, %v3149
  %v3151 = vrot.slane %v3144, %v3150
  %v3152 = vcombine.high %v3151, %v3151
  %v3154 = vunpack.c.l.s4 1966171168
  %v3155 = vunpack.c.0.s8 %v3154
  %v3156 = vlaneseq
  %v3157 = vshrl.u32 %v3156, 7
  %v3158 = vsub.s32 %v3155, %v3157
  %v3159 = vrot.slane %v3151, %v3158
  %v3161 = vunpack.c.l.s4 1966171168
  %v3162 = vunpack.c.0.s8 %v3161
  %v3163 = vlaneseq
  %v3164 = vshrl.u32 %v3163, 7
  %v3165 = vsub.s32 %v3162, %v3164
  %v3166 = vrot.slane %v3152, %v3165
  %v3167 = vcombine.high %v3159, %v3159
  %v3168 = vcombine.low %v2664, %v2955
  %v3170 = vunpack.c.l.s4 1966171168
  %v3171 = vunpack.c.0.s8 %v3170
  %v3172 = vlaneseq
  %v3173 = vshrl.u32 %v3172, 7
  %v3174 = vsub.s32 %v3171, %v3173
  %v3175 = vrot.slane %v3168, %v3174
  %v3176 = vcombine.high %v3175, %v3175
  %v3178 = vunpack.c.l.s4 1966171168
  %v3179 = vunpack.c.0.s8 %v3178
  %v3180 = vlaneseq
  %v3181 = vshrl.u32 %v3180, 7
  %v3182 = vsub.s32 %v3179, %v3181
  %v3183 = vrot.slane %v3175, %v3182
  %v3185 = vunpack.c.l.s4 1966171168
  %v3186 = vunpack.c.0.s8 %v3185
  %v3187 = vlaneseq
  %v3188 = vshrl.u32 %v3187, 7
  %v3189 = vsub.s32 %v3186, %v3188
  %v3190 = vrot.slane %v3176, %v3189
  %v3191 = vcombine.high %v3183, %v3183
  %v3192 = vcombine.low %v2666, %v2957
  %v3194 = vunpack.c.l.s4 1966171168
  %v3195 = vunpack.c.0.s8 %v3194
  %v3196 = vlaneseq
  %v3197 = vshrl.u32 %v3196, 7
  %v3198 = vsub.s32 %v3195, %v3197
  %v3199 = vrot.slane %v3192, %v3198
  %v3200 = vcombine.high %v3199, %v3199
  %v3202 = vunpack.c.l.s4 1966171168
  %v3203 = vunpack.c.0.s8 %v3202
  %v3204 = vlaneseq
  %v3205 = vshrl.u32 %v3204, 7
  %v3206 = vsub.s32 %v3203, %v3205
  %v3207 = vrot.slane %v3199, %v3206
  %v3209 = vunpack.c.l.s4 1966171168
  %v3210 = vunpack.c.0.s8 %v3209
  %v3211 = vlaneseq
  %v3212 = vshrl.u32 %v3211, 7
  %v3213 = vsub.s32 %v3210, %v3212
  %v3214 = vrot.slane %v3200, %v3213
  %v3215 = vcombine.high %v3207, %v3207
  %v3216 = vcombine.low %v2668, %v2959
  %v3218 = vunpack.c.l.s4 1966171168
  %v3219 = vunpack.c.0.s8 %v3218
  %v3220 = vlaneseq
  %v3221 = vshrl.u32 %v3220, 7
  %v3222 = vsub.s32 %v3219, %v3221
  %v3223 = vrot.slane %v3216, %v3222
  %v3224 = vcombine.high %v3223, %v3223
  %v3226 = vunpack.c.l.s4 1966171168
  %v3227 = vunpack.c.0.s8 %v3226
  %v3228 = vlaneseq
  %v3229 = vshrl.u32 %v3228, 7
  %v3230 = vsub.s32 %v3227, %v3229
  %v3231 = vrot.slane %v3223, %v3230
  %v3233 = vunpack.c.l.s4 1966171168
  %v3234 = vunpack.c.0.s8 %v3233
  %v3235 = vlaneseq
  %v3236 = vshrl.u32 %v3235, 7
  %v3237 = vsub.s32 %v3234, %v3236
  %v3238 = vrot.slane %v3224, %v3237
  %v3239 = vcombine.high %v3231, %v3231
  %v3240 = vcombine.low %v2670, %v2961
  %v3242 = vunpack.c.l.s4 1966171168
  %v3243 = vunpack.c.0.s8 %v3242
  %v3244 = vlaneseq
  %v3245 = vshrl.u32 %v3244, 7
  %v3246 = vsub.s32 %v3243, %v3245
  %v3247 = vrot.slane %v3240, %v3246
  %v3248 = vcombine.high %v3247, %v3247
  %v3250 = vunpack.c.l.s4 1966171168
  %v3251 = vunpack.c.0.s8 %v3250
  %v3252 = vlaneseq
  %v3253 = vshrl.u32 %v3252, 7
  %v3254 = vsub.s32 %v3251, %v3253
  %v3255 = vrot.slane %v3247, %v3254
  %v3257 = vunpack.c.l.s4 1966171168
  %v3258 = vunpack.c.0.s8 %v3257
  %v3259 = vlaneseq
  %v3260 = vshrl.u32 %v3259, 7
  %v3261 = vsub.s32 %v3258, %v3260
  %v3262 = vrot.slane %v3248, %v3261
  %v3263 = vcombine.high %v3255, %v3255
  %v3264 = vcombine.low %v2672, %v2963
  %v3266 = vunpack.c.l.s4 1966171168
  %v3267 = vunpack.c.0.s8 %v3266
  %v3268 = vlaneseq
  %v3269 = vshrl.u32 %v3268, 7
  %v3270 = vsub.s32 %v3267, %v3269
  %v3271 = vrot.slane %v3264, %v3270
  %v3272 = vcombine.high %v3271, %v3271
  %v3274 = vunpack.c.l.s4 1966171168
  %v3275 = vunpack.c.0.s8 %v3274
  %v3276 = vlaneseq
  %v3277 = vshrl.u32 %v3276, 7
  %v3278 = vsub.s32 %v3275, %v3277
  %v3279 = vrot.slane %v3271, %v3278
  %v3281 = vunpack.c.l.s4 1966171168
  %v3282 = vunpack.c.0.s8 %v3281
  %v3283 = vlaneseq
  %v3284 = vshrl.u32 %v3283, 7
  %v3285 = vsub.s32 %v3282, %v3284
  %v3286 = vrot.slane %v3272, %v3285
  %v3287 = vcombine.high %v3279, %v3279
  %v3288 = vcombine.low %v2674, %v2965
  %v3290 = vunpack.c.l.s4 1966171168
  %v3291 = vunpack.c.0.s8 %v3290
  %v3292 = vlaneseq
  %v3293 = vshrl.u32 %v3292, 7
  %v3294 = vsub.s32 %v3291, %v3293
  %v3295 = vrot.slane %v3288, %v3294
  %v3296 = vcombine.high %v3295, %v3295
  %v3298 = vunpack.c.l.s4 1966171168
  %v3299 = vunpack.c.0.s8 %v3298
  %v3300 = vlaneseq
  %v3301 = vshrl.u32 %v3300, 7
  %v3302 = vsub.s32 %v3299, %v3301
  %v3303 = vrot.slane %v3295, %v3302
  %v3305 = vunpack.c.l.s4 1966171168
  %v3306 = vunpack.c.0.s8 %v3305
  %v3307 = vlaneseq
  %v3308 = vshrl.u32 %v3307, 7
  %v3309 = vsub.s32 %v3306, %v3308
  %v3310 = vrot.slane %v3296, %v3309
  %v3311 = vcombine.high %v3303, %v3303
  %v3312 = vcombine.low %v2676, %v2967
  %v3314 = vunpack.c.l.s4 1966171168
  %v3315 = vunpack.c.0.s8 %v3314
  %v3316 = vlaneseq
  %v3317 = vshrl.u32 %v3316, 7
  %v3318 = vsub.s32 %v3315, %v3317
  %v3319 = vrot.slane %v3312, %v3318
  %v3320 = vcombine.high %v3319, %v3319
  %v3322 = vunpack.c.l.s4 1966171168
  %v3323 = vunpack.c.0.s8 %v3322
  %v3324 = vlaneseq
  %v3325 = vshrl.u32 %v3324, 7
  %v3326 = vsub.s32 %v3323, %v3325
  %v3327 = vrot.slane %v3319, %v3326
  %v3329 = vunpack.c.l.s4 1966171168
  %v3330 = vunpack.c.0.s8 %v3329
  %v3331 = vlaneseq
  %v3332 = vshrl.u32 %v3331, 7
  %v3333 = vsub.s32 %v3330, %v3332
  %v3334 = vrot.slane %v3320, %v3333
  %v3335 = vcombine.high %v3327, %v3327
  %v3336 = vcombine.low %v2678, %v2969
  %v3338 = vunpack.c.l.s4 1966171168
  %v3339 = vunpack.c.0.s8 %v3338
  %v3340 = vlaneseq
  %v3341 = vshrl.u32 %v3340, 7
  %v3342 = vsub.s32 %v3339, %v3341
  %v3343 = vrot.slane %v3336, %v3342
  %v3344 = vcombine.high %v3343, %v3343
  %v3346 = vunpack.c.l.s4 1966171168
  %v3347 = vunpack.c.0.s8 %v3346
  %v3348 = vlaneseq
  %v3349 = vshrl.u32 %v3348, 7
  %v3350 = vsub.s32 %v3347, %v3349
  %v3351 = vrot.slane %v3343, %v3350
  %v3353 = vunpack.c.l.s4 1966171168
  %v3354 = vunpack.c.0.s8 %v3353
  %v3355 = vlaneseq
  %v3356 = vshrl.u32 %v3355, 7
  %v3357 = vsub.s32 %v3354, %v3356
  %v3358 = vrot.slane %v3344, %v3357
  %v3359 = vcombine.high %v3351, %v3351
  %v3360 = vcombine.low %v2680, %v2971
  %v3362 = vunpack.c.l.s4 1966171168
  %v3363 = vunpack.c.0.s8 %v3362
  %v3364 = vlaneseq
  %v3365 = vshrl.u32 %v3364, 7
  %v3366 = vsub.s32 %v3363, %v3365
  %v3367 = vrot.slane %v3360, %v3366
  %v3368 = vcombine.high %v3367, %v3367
  %v3370 = vunpack.c.l.s4 1966171168
  %v3371 = vunpack.c.0.s8 %v3370
  %v3372 = vlaneseq
  %v3373 = vshrl.u32 %v3372, 7
  %v3374 = vsub.s32 %v3371, %v3373
  %v3375 = vrot.slane %v3367, %v3374
  %v3377 = vunpack.c.l.s4 1966171168
  %v3378 = vunpack.c.0.s8 %v3377
  %v3379 = vlaneseq
  %v3380 = vshrl.u32 %v3379, 7
  %v3381 = vsub.s32 %v3378, %v3380
  %v3382 = vrot.slane %v3368, %v3381
  %v3383 = vcombine.high %v3375, %v3375
  %v3384 = vcombine.low %v2682, %v2973
  %v3386 = vunpack.c.l.s4 1966171168
  %v3387 = vunpack.c.0.s8 %v3386
  %v3388 = vlaneseq
  %v3389 = vshrl.u32 %v3388, 7
  %v3390 = vsub.s32 %v3387, %v3389
  %v3391 = vrot.slane %v3384, %v3390
  %v3392 = vcombine.high %v3391, %v3391
  %v3394 = vunpack.c.l.s4 1966171168
  %v3395 = vunpack.c.0.s8 %v3394
  %v3396 = vlaneseq
  %v3397 = vshrl.u32 %v3396, 7
  %v3398 = vsub.s32 %v3395, %v3397
  %v3399 = vrot.slane %v3391, %v3398
  %v3401 = vunpack.c.l.s4 1966171168
  %v3402 = vunpack.c.0.s8 %v3401
  %v3403 = vlaneseq
  %v3404 = vshrl.u32 %v3403, 7
  %v3405 = vsub.s32 %v3402, %v3404
  %v3406 = vrot.slane %v3392, %v3405
  %v3407 = vcombine.high %v3399, %v3399
  %v3408 = vcombine.low %v2684, %v2975
  %v3410 = vunpack.c.l.s4 1966171168
  %v3411 = vunpack.c.0.s8 %v3410
  %v3412 = vlaneseq
  %v3413 = vshrl.u32 %v3412, 7
  %v3414 = vsub.s32 %v3411, %v3413
  %v3415 = vrot.slane %v3408, %v3414
  %v3416 = vcombine.high %v3415, %v3415
  %v3418 = vunpack.c.l.s4 1966171168
  %v3419 = vunpack.c.0.s8 %v3418
  %v3420 = vlaneseq
  %v3421 = vshrl.u32 %v3420, 7
  %v3422 = vsub.s32 %v3419, %v3421
  %v3423 = vrot.slane %v3415, %v3422
  %v3425 = vunpack.c.l.s4 1966171168
  %v3426 = vunpack.c.0.s8 %v3425
  %v3427 = vlaneseq
  %v3428 = vshrl.u32 %v3427, 7
  %v3429 = vsub.s32 %v3426, %v3428
  %v3430 = vrot.slane %v3416, %v3429
  %v3431 = vcombine.high %v3423, %v3423
  %v3432 = vcombine.low %v2686, %v2977
  %v3434 = vunpack.c.l.s4 1966171168
  %v3435 = vunpack.c.0.s8 %v3434
  %v3436 = vlaneseq
  %v3437 = vshrl.u32 %v3436, 7
  %v3438 = vsub.s32 %v3435, %v3437
  %v3439 = vrot.slane %v3432, %v3438
  %v3440 = vcombine.high %v3439, %v3439
  %v3442 = vunpack.c.l.s4 1966171168
  %v3443 = vunpack.c.0.s8 %v3442
  %v3444 = vlaneseq
  %v3445 = vshrl.u32 %v3444, 7
  %v3446 = vsub.s32 %v3443, %v3445
  %v3447 = vrot.slane %v3439, %v3446
  %v3449 = vunpack.c.l.s4 1966171168
  %v3450 = vunpack.c.0.s8 %v3449
  %v3451 = vlaneseq
  %v3452 = vshrl.u32 %v3451, 7
  %v3453 = vsub.s32 %v3450, %v3452
  %v3454 = vrot.slane %v3440, %v3453
  %v3455 = vcombine.high %v3447, %v3447
  %v3456 = vcombine.low %v2688, %v2979
  %v3458 = vunpack.c.l.s4 1966171168
  %v3459 = vunpack.c.0.s8 %v3458
  %v3460 = vlaneseq
  %v3461 = vshrl.u32 %v3460, 7
  %v3462 = vsub.s32 %v3459, %v3461
  %v3463 = vrot.slane %v3456, %v3462
  %v3464 = vcombine.high %v3463, %v3463
  %v3466 = vunpack.c.l.s4 1966171168
  %v3467 = vunpack.c.0.s8 %v3466
  %v3468 = vlaneseq
  %v3469 = vshrl.u32 %v3468, 7
  %v3470 = vsub.s32 %v3467, %v3469
  %v3471 = vrot.slane %v3463, %v3470
  %v3473 = vunpack.c.l.s4 1966171168
  %v3474 = vunpack.c.0.s8 %v3473
  %v3475 = vlaneseq
  %v3476 = vshrl.u32 %v3475, 7
  %v3477 = vsub.s32 %v3474, %v3476
  %v3478 = vrot.slane %v3464, %v3477
  %v3479 = vcombine.high %v3471, %v3471
  %v3480 = vcombine.low %v2690, %v2981
  %v3482 = vunpack.c.l.s4 1966171168
  %v3483 = vunpack.c.0.s8 %v3482
  %v3484 = vlaneseq
  %v3485 = vshrl.u32 %v3484, 7
  %v3486 = vsub.s32 %v3483, %v3485
  %v3487 = vrot.slane %v3480, %v3486
  %v3488 = vcombine.high %v3487, %v3487
  %v3490 = vunpack.c.l.s4 1966171168
  %v3491 = vunpack.c.0.s8 %v3490
  %v3492 = vlaneseq
  %v3493 = vshrl.u32 %v3492, 7
  %v3494 = vsub.s32 %v3491, %v3493
  %v3495 = vrot.slane %v3487, %v3494
  %v3497 = vunpack.c.l.s4 1966171168
  %v3498 = vunpack.c.0.s8 %v3497
  %v3499 = vlaneseq
  %v3500 = vshrl.u32 %v3499, 7
  %v3501 = vsub.s32 %v3498, %v3500
  %v3502 = vrot.slane %v3488, %v3501
  %v3503 = vcombine.high %v3495, %v3495
  %v3504 = vcombine.low %v2692, %v2983
  %v3506 = vunpack.c.l.s4 1966171168
  %v3507 = vunpack.c.0.s8 %v3506
  %v3508 = vlaneseq
  %v3509 = vshrl.u32 %v3508, 7
  %v3510 = vsub.s32 %v3507, %v3509
  %v3511 = vrot.slane %v3504, %v3510
  %v3512 = vcombine.high %v3511, %v3511
  %v3514 = vunpack.c.l.s4 1966171168
  %v3515 = vunpack.c.0.s8 %v3514
  %v3516 = vlaneseq
  %v3517 = vshrl.u32 %v3516, 7
  %v3518 = vsub.s32 %v3515, %v3517
  %v3519 = vrot.slane %v3511, %v3518
  %v3521 = vunpack.c.l.s4 1966171168
  %v3522 = vunpack.c.0.s8 %v3521
  %v3523 = vlaneseq
  %v3524 = vshrl.u32 %v3523, 7
  %v3525 = vsub.s32 %v3522, %v3524
  %v3526 = vrot.slane %v3512, %v3525
  %v3527 = vcombine.high %v3519, %v3519
  %v3528 = vcombine.low %v2694, %v2985
  %v3530 = vunpack.c.l.s4 1966171168
  %v3531 = vunpack.c.0.s8 %v3530
  %v3532 = vlaneseq
  %v3533 = vshrl.u32 %v3532, 7
  %v3534 = vsub.s32 %v3531, %v3533
  %v3535 = vrot.slane %v3528, %v3534
  %v3536 = vcombine.high %v3535, %v3535
  %v3538 = vunpack.c.l.s4 1966171168
  %v3539 = vunpack.c.0.s8 %v3538
  %v3540 = vlaneseq
  %v3541 = vshrl.u32 %v3540, 7
  %v3542 = vsub.s32 %v3539, %v3541
  %v3543 = vrot.slane %v3535, %v3542
  %v3545 = vunpack.c.l.s4 1966171168
  %v3546 = vunpack.c.0.s8 %v3545
  %v3547 = vlaneseq
  %v3548 = vshrl.u32 %v3547, 7
  %v3549 = vsub.s32 %v3546, %v3548
  %v3550 = vrot.slane %v3536, %v3549
  %v3551 = vcombine.high %v3543, %v3543
  %v3552 = vcombine.low %v2696, %v2987
  %v3554 = vunpack.c.l.s4 1966171168
  %v3555 = vunpack.c.0.s8 %v3554
  %v3556 = vlaneseq
  %v3557 = vshrl.u32 %v3556, 7
  %v3558 = vsub.s32 %v3555, %v3557
  %v3559 = vrot.slane %v3552, %v3558
  %v3560 = vcombine.high %v3559, %v3559
  %v3562 = vunpack.c.l.s4 1966171168
  %v3563 = vunpack.c.0.s8 %v3562
  %v3564 = vlaneseq
  %v3565 = vshrl.u32 %v3564, 7
  %v3566 = vsub.s32 %v3563, %v3565
  %v3567 = vrot.slane %v3559, %v3566
  %v3569 = vunpack.c.l.s4 1966171168
  %v3570 = vunpack.c.0.s8 %v3569
  %v3571 = vlaneseq
  %v3572 = vshrl.u32 %v3571, 7
  %v3573 = vsub.s32 %v3570, %v3572
  %v3574 = vrot.slane %v3560, %v3573
  %v3575 = vcombine.high %v3567, %v3567
  %v3576 = vcombine.low %v2698, %v2989
  %v3578 = vunpack.c.l.s4 1966171168
  %v3579 = vunpack.c.0.s8 %v3578
  %v3580 = vlaneseq
  %v3581 = vshrl.u32 %v3580, 7
  %v3582 = vsub.s32 %v3579, %v3581
  %v3583 = vrot.slane %v3576, %v3582
  %v3584 = vcombine.high %v3583, %v3583
  %v3586 = vunpack.c.l.s4 1966171168
  %v3587 = vunpack.c.0.s8 %v3586
  %v3588 = vlaneseq
  %v3589 = vshrl.u32 %v3588, 7
  %v3590 = vsub.s32 %v3587, %v3589
  %v3591 = vrot.slane %v3583, %v3590
  %v3593 = vunpack.c.l.s4 1966171168
  %v3594 = vunpack.c.0.s8 %v3593
  %v3595 = vlaneseq
  %v3596 = vshrl.u32 %v3595, 7
  %v3597 = vsub.s32 %v3594, %v3596
  %v3598 = vrot.slane %v3584, %v3597
  %v3599 = vcombine.high %v3591, %v3591
  %v3600 = vcombine.low %v2700, %v2991
  %v3602 = vunpack.c.l.s4 1966171168
  %v3603 = vunpack.c.0.s8 %v3602
  %v3604 = vlaneseq
  %v3605 = vshrl.u32 %v3604, 7
  %v3606 = vsub.s32 %v3603, %v3605
  %v3607 = vrot.slane %v3600, %v3606
  %v3608 = vcombine.high %v3607, %v3607
  %v3610 = vunpack.c.l.s4 1966171168
  %v3611 = vunpack.c.0.s8 %v3610
  %v3612 = vlaneseq
  %v3613 = vshrl.u32 %v3612, 7
  %v3614 = vsub.s32 %v3611, %v3613
  %v3615 = vrot.slane %v3607, %v3614
  %v3617 = vunpack.c.l.s4 1966171168
  %v3618 = vunpack.c.0.s8 %v3617
  %v3619 = vlaneseq
  %v3620 = vshrl.u32 %v3619, 7
  %v3621 = vsub.s32 %v3618, %v3620
  %v3622 = vrot.slane %v3608, %v3621
  %v3623 = vcombine.high %v3615, %v3615
  %v3624 = vcombine.low %v2702, %v2993
  %v3626 = vunpack.c.l.s4 1966171168
  %v3627 = vunpack.c.0.s8 %v3626
  %v3628 = vlaneseq
  %v3629 = vshrl.u32 %v3628, 7
  %v3630 = vsub.s32 %v3627, %v3629
  %v3631 = vrot.slane %v3624, %v3630
  %v3632 = vcombine.high %v3631, %v3631
  %v3634 = vunpack.c.l.s4 1966171168
  %v3635 = vunpack.c.0.s8 %v3634
  %v3636 = vlaneseq
  %v3637 = vshrl.u32 %v3636, 7
  %v3638 = vsub.s32 %v3635, %v3637
  %v3639 = vrot.slane %v3631, %v3638
  %v3641 = vunpack.c.l.s4 1966171168
  %v3642 = vunpack.c.0.s8 %v3641
  %v3643 = vlaneseq
  %v3644 = vshrl.u32 %v3643, 7
  %v3645 = vsub.s32 %v3642, %v3644
  %v3646 = vrot.slane %v3632, %v3645
  %v3647 = vcombine.high %v3639, %v3639
  %v3648 = vcombine.low %v2704, %v2995
  %v3650 = vunpack.c.l.s4 1966171168
  %v3651 = vunpack.c.0.s8 %v3650
  %v3652 = vlaneseq
  %v3653 = vshrl.u32 %v3652, 7
  %v3654 = vsub.s32 %v3651, %v3653
  %v3655 = vrot.slane %v3648, %v3654
  %v3656 = vcombine.high %v3655, %v3655
  %v3658 = vunpack.c.l.s4 1966171168
  %v3659 = vunpack.c.0.s8 %v3658
  %v3660 = vlaneseq
  %v3661 = vshrl.u32 %v3660, 7
  %v3662 = vsub.s32 %v3659, %v3661
  %v3663 = vrot.slane %v3655, %v3662
  %v3665 = vunpack.c.l.s4 1966171168
  %v3666 = vunpack.c.0.s8 %v3665
  %v3667 = vlaneseq
  %v3668 = vshrl.u32 %v3667, 7
  %v3669 = vsub.s32 %v3666, %v3668
  %v3670 = vrot.slane %v3656, %v3669
  %v3671 = vcombine.high %v3663, %v3663
  %v3672 = vcombine.low %v2706, %v2997
  %v3674 = vunpack.c.l.s4 1966171168
  %v3675 = vunpack.c.0.s8 %v3674
  %v3676 = vlaneseq
  %v3677 = vshrl.u32 %v3676, 7
  %v3678 = vsub.s32 %v3675, %v3677
  %v3679 = vrot.slane %v3672, %v3678
  %v3680 = vcombine.high %v3679, %v3679
  %v3682 = vunpack.c.l.s4 1966171168
  %v3683 = vunpack.c.0.s8 %v3682
  %v3684 = vlaneseq
  %v3685 = vshrl.u32 %v3684, 7
  %v3686 = vsub.s32 %v3683, %v3685
  %v3687 = vrot.slane %v3679, %v3686
  %v3689 = vunpack.c.l.s4 1966171168
  %v3690 = vunpack.c.0.s8 %v3689
  %v3691 = vlaneseq
  %v3692 = vshrl.u32 %v3691, 7
  %v3693 = vsub.s32 %v3690, %v3692
  %v3694 = vrot.slane %v3680, %v3693
  %v3695 = vcombine.high %v3687, %v3687
  %v3696 = vcombine.low %v2708, %v2999
  %v3698 = vunpack.c.l.s4 1966171168
  %v3699 = vunpack.c.0.s8 %v3698
  %v3700 = vlaneseq
  %v3701 = vshrl.u32 %v3700, 7
  %v3702 = vsub.s32 %v3699, %v3701
  %v3703 = vrot.slane %v3696, %v3702
  %v3704 = vcombine.high %v3703, %v3703
  %v3706 = vunpack.c.l.s4 1966171168
  %v3707 = vunpack.c.0.s8 %v3706
  %v3708 = vlaneseq
  %v3709 = vshrl.u32 %v3708, 7
  %v3710 = vsub.s32 %v3707, %v3709
  %v3711 = vrot.slane %v3703, %v3710
  %v3713 = vunpack.c.l.s4 1966171168
  %v3714 = vunpack.c.0.s8 %v3713
  %v3715 = vlaneseq
  %v3716 = vshrl.u32 %v3715, 7
  %v3717 = vsub.s32 %v3714, %v3716
  %v3718 = vrot.slane %v3704, %v3717
  %v3719 = vcombine.high %v3711, %v3711
  %v3720 = vcombine.low %v2710, %v3001
  %v3722 = vunpack.c.l.s4 1966171168
  %v3723 = vunpack.c.0.s8 %v3722
  %v3724 = vlaneseq
  %v3725 = vshrl.u32 %v3724, 7
  %v3726 = vsub.s32 %v3723, %v3725
  %v3727 = vrot.slane %v3720, %v3726
  %v3728 = vcombine.high %v3727, %v3727
  %v3730 = vunpack.c.l.s4 1966171168
  %v3731 = vunpack.c.0.s8 %v3730
  %v3732 = vlaneseq
  %v3733 = vshrl.u32 %v3732, 7
  %v3734 = vsub.s32 %v3731, %v3733
  %v3735 = vrot.slane %v3727, %v3734
  %v3737 = vunpack.c.l.s4 1966171168
  %v3738 = vunpack.c.0.s8 %v3737
  %v3739 = vlaneseq
  %v3740 = vshrl.u32 %v3739, 7
  %v3741 = vsub.s32 %v3738, %v3740
  %v3742 = vrot.slane %v3728, %v3741
  %v3743 = vcombine.high %v3735, %v3735
  %v3744 = vcombine.low %v2712, %v3003
  %v3746 = vunpack.c.l.s4 1966171168
  %v3747 = vunpack.c.0.s8 %v3746
  %v3748 = vlaneseq
  %v3749 = vshrl.u32 %v3748, 7
  %v3750 = vsub.s32 %v3747, %v3749
  %v3751 = vrot.slane %v3744, %v3750
  %v3752 = vcombine.high %v3751, %v3751
  %v3754 = vunpack.c.l.s4 1966171168
  %v3755 = vunpack.c.0.s8 %v3754
  %v3756 = vlaneseq
  %v3757 = vshrl.u32 %v3756, 7
  %v3758 = vsub.s32 %v3755, %v3757
  %v3759 = vrot.slane %v3751, %v3758
  %v3761 = vunpack.c.l.s4 1966171168
  %v3762 = vunpack.c.0.s8 %v3761
  %v3763 = vlaneseq
  %v3764 = vshrl.u32 %v3763, 7
  %v3765 = vsub.s32 %v3762, %v3764
  %v3766 = vrot.slane %v3752, %v3765
  %v3767 = vcombine.high %v3759, %v3759
  %v3768 = vcombine.low %v2714, %v3005
  %v3770 = vunpack.c.l.s4 1966171168
  %v3771 = vunpack.c.0.s8 %v3770
  %v3772 = vlaneseq
  %v3773 = vshrl.u32 %v3772, 7
  %v3774 = vsub.s32 %v3771, %v3773
  %v3775 = vrot.slane %v3768, %v3774
  %v3776 = vcombine.high %v3775, %v3775
  %v3778 = vunpack.c.l.s4 1966171168
  %v3779 = vunpack.c.0.s8 %v3778
  %v3780 = vlaneseq
  %v3781 = vshrl.u32 %v3780, 7
  %v3782 = vsub.s32 %v3779, %v3781
  %v3783 = vrot.slane %v3775, %v3782
  %v3785 = vunpack.c.l.s4 1966171168
  %v3786 = vunpack.c.0.s8 %v3785
  %v3787 = vlaneseq
  %v3788 = vshrl.u32 %v3787, 7
  %v3789 = vsub.s32 %v3786, %v3788
  %v3790 = vrot.slane %v3776, %v3789
  %v3791 = vcombine.high %v3783, %v3783
  %v3792 = vcombine.low %v2716, %v3007
  %v3794 = vunpack.c.l.s4 1966171168
  %v3795 = vunpack.c.0.s8 %v3794
  %v3796 = vlaneseq
  %v3797 = vshrl.u32 %v3796, 7
  %v3798 = vsub.s32 %v3795, %v3797
  %v3799 = vrot.slane %v3792, %v3798
  %v3800 = vcombine.high %v3799, %v3799
  %v3802 = vunpack.c.l.s4 1966171168
  %v3803 = vunpack.c.0.s8 %v3802
  %v3804 = vlaneseq
  %v3805 = vshrl.u32 %v3804, 7
  %v3806 = vsub.s32 %v3803, %v3805
  %v3807 = vrot.slane %v3799, %v3806
  %v3809 = vunpack.c.l.s4 1966171168
  %v3810 = vunpack.c.0.s8 %v3809
  %v3811 = vlaneseq
  %v3812 = vshrl.u32 %v3811, 7
  %v3813 = vsub.s32 %v3810, %v3812
  %v3814 = vrot.slane %v3800, %v3813
  %v3815 = vcombine.high %v3807, %v3807
  %v3816 = vcombine.low %v2718, %v3009
  %v3818 = vunpack.c.l.s4 1966171168
  %v3819 = vunpack.c.0.s8 %v3818
  %v3820 = vlaneseq
  %v3821 = vshrl.u32 %v3820, 7
  %v3822 = vsub.s32 %v3819, %v3821
  %v3823 = vrot.slane %v3816, %v3822
  %v3824 = vcombine.high %v3823, %v3823
  %v3826 = vunpack.c.l.s4 1966171168
  %v3827 = vunpack.c.0.s8 %v3826
  %v3828 = vlaneseq
  %v3829 = vshrl.u32 %v3828, 7
  %v3830 = vsub.s32 %v3827, %v3829
  %v3831 = vrot.slane %v3823, %v3830
  %v3833 = vunpack.c.l.s4 1966171168
  %v3834 = vunpack.c.0.s8 %v3833
  %v3835 = vlaneseq
  %v3836 = vshrl.u32 %v3835, 7
  %v3837 = vsub.s32 %v3834, %v3836
  %v3838 = vrot.slane %v3824, %v3837
  %v3839 = vcombine.high %v3831, %v3831
  %v3840 = vcombine.low %v2720, %v3011
  %v3842 = vunpack.c.l.s4 1966171168
  %v3843 = vunpack.c.0.s8 %v3842
  %v3844 = vlaneseq
  %v3845 = vshrl.u32 %v3844, 7
  %v3846 = vsub.s32 %v3843, %v3845
  %v3847 = vrot.slane %v3840, %v3846
  %v3848 = vcombine.high %v3847, %v3847
  %v3850 = vunpack.c.l.s4 1966171168
  %v3851 = vunpack.c.0.s8 %v3850
  %v3852 = vlaneseq
  %v3853 = vshrl.u32 %v3852, 7
  %v3854 = vsub.s32 %v3851, %v3853
  %v3855 = vrot.slane %v3847, %v3854
  %v3857 = vunpack.c.l.s4 1966171168
  %v3858 = vunpack.c.0.s8 %v3857
  %v3859 = vlaneseq
  %v3860 = vshrl.u32 %v3859, 7
  %v3861 = vsub.s32 %v3858, %v3860
  %v3862 = vrot.slane %v3848, %v3861
  %v3863 = vcombine.high %v3855, %v3855
  %v3864 = vcombine.low %v2722, %v3013
  %v3866 = vunpack.c.l.s4 1966171168
  %v3867 = vunpack.c.0.s8 %v3866
  %v3868 = vlaneseq
  %v3869 = vshrl.u32 %v3868, 7
  %v3870 = vsub.s32 %v3867, %v3869
  %v3871 = vrot.slane %v3864, %v3870
  %v3872 = vcombine.high %v3871, %v3871
  %v3874 = vunpack.c.l.s4 1966171168
  %v3875 = vunpack.c.0.s8 %v3874
  %v3876 = vlaneseq
  %v3877 = vshrl.u32 %v3876, 7
  %v3878 = vsub.s32 %v3875, %v3877
  %v3879 = vrot.slane %v3871, %v3878
  %v3881 = vunpack.c.l.s4 1966171168
  %v3882 = vunpack.c.0.s8 %v3881
  %v3883 = vlaneseq
  %v3884 = vshrl.u32 %v3883, 7
  %v3885 = vsub.s32 %v3882, %v3884
  %v3886 = vrot.slane %v3872, %v3885
  %v3887 = vcombine.high %v3879, %v3879
  %v3888 = vcombine.low %v2724, %v3015
  %v3890 = vunpack.c.l.s4 1966171168
  %v3891 = vunpack.c.0.s8 %v3890
  %v3892 = vlaneseq
  %v3893 = vshrl.u32 %v3892, 7
  %v3894 = vsub.s32 %v3891, %v3893
  %v3895 = vrot.slane %v3888, %v3894
  %v3896 = vcombine.high %v3895, %v3895
  %v3898 = vunpack.c.l.s4 1966171168
  %v3899 = vunpack.c.0.s8 %v3898
  %v3900 = vlaneseq
  %v3901 = vshrl.u32 %v3900, 7
  %v3902 = vsub.s32 %v3899, %v3901
  %v3903 = vrot.slane %v3895, %v3902
  %v3905 = vunpack.c.l.s4 1966171168
  %v3906 = vunpack.c.0.s8 %v3905
  %v3907 = vlaneseq
  %v3908 = vshrl.u32 %v3907, 7
  %v3909 = vsub.s32 %v3906, %v3908
  %v3910 = vrot.slane %v3896, %v3909
  %v3911 = vcombine.high %v3903, %v3903
  %v3912 = vcombine.low %v2726, %v3017
  %v3914 = vunpack.c.l.s4 1966171168
  %v3915 = vunpack.c.0.s8 %v3914
  %v3916 = vlaneseq
  %v3917 = vshrl.u32 %v3916, 7
  %v3918 = vsub.s32 %v3915, %v3917
  %v3919 = vrot.slane %v3912, %v3918
  %v3920 = vcombine.high %v3919, %v3919
  %v3922 = vunpack.c.l.s4 1966171168
  %v3923 = vunpack.c.0.s8 %v3922
  %v3924 = vlaneseq
  %v3925 = vshrl.u32 %v3924, 7
  %v3926 = vsub.s32 %v3923, %v3925
  %v3927 = vrot.slane %v3919, %v3926
  %v3929 = vunpack.c.l.s4 1966171168
  %v3930 = vunpack.c.0.s8 %v3929
  %v3931 = vlaneseq
  %v3932 = vshrl.u32 %v3931, 7
  %v3933 = vsub.s32 %v3930, %v3932
  %v3934 = vrot.slane %v3920, %v3933
  %v3935 = vcombine.high %v3927, %v3927
  %v3936 = vcombine.low %v2728, %v3019
  %v3938 = vunpack.c.l.s4 1966171168
  %v3939 = vunpack.c.0.s8 %v3938
  %v3940 = vlaneseq
  %v3941 = vshrl.u32 %v3940, 7
  %v3942 = vsub.s32 %v3939, %v3941
  %v3943 = vrot.slane %v3936, %v3942
  %v3944 = vcombine.high %v3943, %v3943
  %v3946 = vunpack.c.l.s4 1966171168
  %v3947 = vunpack.c.0.s8 %v3946
  %v3948 = vlaneseq
  %v3949 = vshrl.u32 %v3948, 7
  %v3950 = vsub.s32 %v3947, %v3949
  %v3951 = vrot.slane %v3943, %v3950
  %v3953 = vunpack.c.l.s4 1966171168
  %v3954 = vunpack.c.0.s8 %v3953
  %v3955 = vlaneseq
  %v3956 = vshrl.u32 %v3955, 7
  %v3957 = vsub.s32 %v3954, %v3956
  %v3958 = vrot.slane %v3944, %v3957
  %v3959 = vcombine.high %v3951, %v3951
  %v3960 = vcombine.low %v2730, %v3021
  %v3962 = vunpack.c.l.s4 1966171168
  %v3963 = vunpack.c.0.s8 %v3962
  %v3964 = vlaneseq
  %v3965 = vshrl.u32 %v3964, 7
  %v3966 = vsub.s32 %v3963, %v3965
  %v3967 = vrot.slane %v3960, %v3966
  %v3968 = vcombine.high %v3967, %v3967
  %v3970 = vunpack.c.l.s4 1966171168
  %v3971 = vunpack.c.0.s8 %v3970
  %v3972 = vlaneseq
  %v3973 = vshrl.u32 %v3972, 7
  %v3974 = vsub.s32 %v3971, %v3973
  %v3975 = vrot.slane %v3967, %v3974
  %v3977 = vunpack.c.l.s4 1966171168
  %v3978 = vunpack.c.0.s8 %v3977
  %v3979 = vlaneseq
  %v3980 = vshrl.u32 %v3979, 7
  %v3981 = vsub.s32 %v3978, %v3980
  %v3982 = vrot.slane %v3968, %v3981
  %v3983 = vcombine.high %v3975, %v3975
  %v3984 = vcombine.low %v2732, %v3023
  %v3986 = vunpack.c.l.s4 1966171168
  %v3987 = vunpack.c.0.s8 %v3986
  %v3988 = vlaneseq
  %v3989 = vshrl.u32 %v3988, 7
  %v3990 = vsub.s32 %v3987, %v3989
  %v3991 = vrot.slane %v3984, %v3990
  %v3992 = vcombine.high %v3991, %v3991
  %v3994 = vunpack.c.l.s4 1966171168
  %v3995 = vunpack.c.0.s8 %v3994
  %v3996 = vlaneseq
  %v3997 = vshrl.u32 %v3996, 7
  %v3998 = vsub.s32 %v3995, %v3997
  %v3999 = vrot.slane %v3991, %v3998
  %v4001 = vunpack.c.l.s4 1966171168
  %v4002 = vunpack.c.0.s8 %v4001
  %v4003 = vlaneseq
  %v4004 = vshrl.u32 %v4003, 7
  %v4005 = vsub.s32 %v4002, %v4004
  %v4006 = vrot.slane %v3992, %v4005
  %v4007 = vcombine.high %v3999, %v3999
  %v4008 = vcombine.low %v2734, %v3025
  %v4010 = vunpack.c.l.s4 1966171168
  %v4011 = vunpack.c.0.s8 %v4010
  %v4012 = vlaneseq
  %v4013 = vshrl.u32 %v4012, 7
  %v4014 = vsub.s32 %v4011, %v4013
  %v4015 = vrot.slane %v4008, %v4014
  %v4016 = vcombine.high %v4015, %v4015
  %v4018 = vunpack.c.l.s4 1966171168
  %v4019 = vunpack.c.0.s8 %v4018
  %v4020 = vlaneseq
  %v4021 = vshrl.u32 %v4020, 7
  %v4022 = vsub.s32 %v4019, %v4021
  %v4023 = vrot.slane %v4015, %v4022
  %v4025 = vunpack.c.l.s4 1966171168
  %v4026 = vunpack.c.0.s8 %v4025
  %v4027 = vlaneseq
  %v4028 = vshrl.u32 %v4027, 7
  %v4029 = vsub.s32 %v4026, %v4028
  %v4030 = vrot.slane %v4016, %v4029
  %v4031 = vcombine.high %v4023, %v4023
  %v4032 = vcombine.low %v2736, %v3027
  %v4034 = vunpack.c.l.s4 1966171168
  %v4035 = vunpack.c.0.s8 %v4034
  %v4036 = vlaneseq
  %v4037 = vshrl.u32 %v4036, 7
  %v4038 = vsub.s32 %v4035, %v4037
  %v4039 = vrot.slane %v4032, %v4038
  %v4040 = vcombine.high %v4039, %v4039
  %v4042 = vunpack.c.l.s4 1966171168
  %v4043 = vunpack.c.0.s8 %v4042
  %v4044 = vlaneseq
  %v4045 = vshrl.u32 %v4044, 7
  %v4046 = vsub.s32 %v4043, %v4045
  %v4047 = vrot.slane %v4039, %v4046
  %v4049 = vunpack.c.l.s4 1966171168
  %v4050 = vunpack.c.0.s8 %v4049
  %v4051 = vlaneseq
  %v4052 = vshrl.u32 %v4051, 7
  %v4053 = vsub.s32 %v4050, %v4052
  %v4054 = vrot.slane %v4040, %v4053
  %v4055 = vcombine.high %v4047, %v4047
  %v4056 = vcombine.low %v2738, %v3029
  %v4058 = vunpack.c.l.s4 1966171168
  %v4059 = vunpack.c.0.s8 %v4058
  %v4060 = vlaneseq
  %v4061 = vshrl.u32 %v4060, 7
  %v4062 = vsub.s32 %v4059, %v4061
  %v4063 = vrot.slane %v4056, %v4062
  %v4064 = vcombine.high %v4063, %v4063
  %v4066 = vunpack.c.l.s4 1966171168
  %v4067 = vunpack.c.0.s8 %v4066
  %v4068 = vlaneseq
  %v4069 = vshrl.u32 %v4068, 7
  %v4070 = vsub.s32 %v4067, %v4069
  %v4071 = vrot.slane %v4063, %v4070
  %v4073 = vunpack.c.l.s4 1966171168
  %v4074 = vunpack.c.0.s8 %v4073
  %v4075 = vlaneseq
  %v4076 = vshrl.u32 %v4075, 7
  %v4077 = vsub.s32 %v4074, %v4076
  %v4078 = vrot.slane %v4064, %v4077
  %v4079 = vcombine.high %v4071, %v4071
  %v4080 = vcombine.low %v2740, %v3031
  %v4082 = vunpack.c.l.s4 1966171168
  %v4083 = vunpack.c.0.s8 %v4082
  %v4084 = vlaneseq
  %v4085 = vshrl.u32 %v4084, 7
  %v4086 = vsub.s32 %v4083, %v4085
  %v4087 = vrot.slane %v4080, %v4086
  %v4088 = vcombine.high %v4087, %v4087
  %v4090 = vunpack.c.l.s4 1966171168
  %v4091 = vunpack.c.0.s8 %v4090
  %v4092 = vlaneseq
  %v4093 = vshrl.u32 %v4092, 7
  %v4094 = vsub.s32 %v4091, %v4093
  %v4095 = vrot.slane %v4087, %v4094
  %v4097 = vunpack.c.l.s4 1966171168
  %v4098 = vunpack.c.0.s8 %v4097
  %v4099 = vlaneseq
  %v4100 = vshrl.u32 %v4099, 7
  %v4101 = vsub.s32 %v4098, %v4100
  %v4102 = vrot.slane %v4088, %v4101
  %v4103 = vcombine.high %v4095, %v4095
  %v4104 = vcombine.low %v2742, %v3033
  %v4106 = vunpack.c.l.s4 1966171168
  %v4107 = vunpack.c.0.s8 %v4106
  %v4108 = vlaneseq
  %v4109 = vshrl.u32 %v4108, 7
  %v4110 = vsub.s32 %v4107, %v4109
  %v4111 = vrot.slane %v4104, %v4110
  %v4112 = vcombine.high %v4111, %v4111
  %v4114 = vunpack.c.l.s4 1966171168
  %v4115 = vunpack.c.0.s8 %v4114
  %v4116 = vlaneseq
  %v4117 = vshrl.u32 %v4116, 7
  %v4118 = vsub.s32 %v4115, %v4117
  %v4119 = vrot.slane %v4111, %v4118
  %v4121 = vunpack.c.l.s4 1966171168
  %v4122 = vunpack.c.0.s8 %v4121
  %v4123 = vlaneseq
  %v4124 = vshrl.u32 %v4123, 7
  %v4125 = vsub.s32 %v4122, %v4124
  %v4126 = vrot.slane %v4112, %v4125
  %v4127 = vcombine.high %v4119, %v4119
  %v4128 = vcombine.low %v2744, %v3035
  %v4130 = vunpack.c.l.s4 1966171168
  %v4131 = vunpack.c.0.s8 %v4130
  %v4132 = vlaneseq
  %v4133 = vshrl.u32 %v4132, 7
  %v4134 = vsub.s32 %v4131, %v4133
  %v4135 = vrot.slane %v4128, %v4134
  %v4136 = vcombine.high %v4135, %v4135
  %v4138 = vunpack.c.l.s4 1966171168
  %v4139 = vunpack.c.0.s8 %v4138
  %v4140 = vlaneseq
  %v4141 = vshrl.u32 %v4140, 7
  %v4142 = vsub.s32 %v4139, %v4141
  %v4143 = vrot.slane %v4135, %v4142
  %v4145 = vunpack.c.l.s4 1966171168
  %v4146 = vunpack.c.0.s8 %v4145
  %v4147 = vlaneseq
  %v4148 = vshrl.u32 %v4147, 7
  %v4149 = vsub.s32 %v4146, %v4148
  %v4150 = vrot.slane %v4136, %v4149
  %v4151 = vcombine.high %v4143, %v4143
  %v4152 = vcombine.low %v2746, %v3037
  %v4154 = vunpack.c.l.s4 1966171168
  %v4155 = vunpack.c.0.s8 %v4154
  %v4156 = vlaneseq
  %v4157 = vshrl.u32 %v4156, 7
  %v4158 = vsub.s32 %v4155, %v4157
  %v4159 = vrot.slane %v4152, %v4158
  %v4160 = vcombine.high %v4159, %v4159
  %v4162 = vunpack.c.l.s4 1966171168
  %v4163 = vunpack.c.0.s8 %v4162
  %v4164 = vlaneseq
  %v4165 = vshrl.u32 %v4164, 7
  %v4166 = vsub.s32 %v4163, %v4165
  %v4167 = vrot.slane %v4159, %v4166
  %v4169 = vunpack.c.l.s4 1966171168
  %v4170 = vunpack.c.0.s8 %v4169
  %v4171 = vlaneseq
  %v4172 = vshrl.u32 %v4171, 7
  %v4173 = vsub.s32 %v4170, %v4172
  %v4174 = vrot.slane %v4160, %v4173
  %v4175 = vcombine.high %v4167, %v4167
  %v4176 = vcombine.low %v2748, %v3039
  %v4178 = vunpack.c.l.s4 1966171168
  %v4179 = vunpack.c.0.s8 %v4178
  %v4180 = vlaneseq
  %v4181 = vshrl.u32 %v4180, 7
  %v4182 = vsub.s32 %v4179, %v4181
  %v4183 = vrot.slane %v4176, %v4182
  %v4184 = vcombine.high %v4183, %v4183
  %v4186 = vunpack.c.l.s4 1966171168
  %v4187 = vunpack.c.0.s8 %v4186
  %v4188 = vlaneseq
  %v4189 = vshrl.u32 %v4188, 7
  %v4190 = vsub.s32 %v4187, %v4189
  %v4191 = vrot.slane %v4183, %v4190
  %v4193 = vunpack.c.l.s4 1966171168
  %v4194 = vunpack.c.0.s8 %v4193
  %v4195 = vlaneseq
  %v4196 = vshrl.u32 %v4195, 7
  %v4197 = vsub.s32 %v4194, %v4196
  %v4198 = vrot.slane %v4184, %v4197
  %v4199 = vcombine.high %v4191, %v4191
  %v4200 = vcombine.low %v2750, %v3041
  %v4202 = vunpack.c.l.s4 1966171168
  %v4203 = vunpack.c.0.s8 %v4202
  %v4204 = vlaneseq
  %v4205 = vshrl.u32 %v4204, 7
  %v4206 = vsub.s32 %v4203, %v4205
  %v4207 = vrot.slane %v4200, %v4206
  %v4208 = vcombine.high %v4207, %v4207
  %v4210 = vunpack.c.l.s4 1966171168
  %v4211 = vunpack.c.0.s8 %v4210
  %v4212 = vlaneseq
  %v4213 = vshrl.u32 %v4212, 7
  %v4214 = vsub.s32 %v4211, %v4213
  %v4215 = vrot.slane %v4207, %v4214
  %v4217 = vunpack.c.l.s4 1966171168
  %v4218 = vunpack.c.0.s8 %v4217
  %v4219 = vlaneseq
  %v4220 = vshrl.u32 %v4219, 7
  %v4221 = vsub.s32 %v4218, %v4220
  %v4222 = vrot.slane %v4208, %v4221
  %v4223 = vcombine.high %v4215, %v4215
  %v4224 = vcombine.low %v2752, %v3043
  %v4226 = vunpack.c.l.s4 1966171168
  %v4227 = vunpack.c.0.s8 %v4226
  %v4228 = vlaneseq
  %v4229 = vshrl.u32 %v4228, 7
  %v4230 = vsub.s32 %v4227, %v4229
  %v4231 = vrot.slane %v4224, %v4230
  %v4232 = vcombine.high %v4231, %v4231
  %v4234 = vunpack.c.l.s4 1966171168
  %v4235 = vunpack.c.0.s8 %v4234
  %v4236 = vlaneseq
  %v4237 = vshrl.u32 %v4236, 7
  %v4238 = vsub.s32 %v4235, %v4237
  %v4239 = vrot.slane %v4231, %v4238
  %v4241 = vunpack.c.l.s4 1966171168
  %v4242 = vunpack.c.0.s8 %v4241
  %v4243 = vlaneseq
  %v4244 = vshrl.u32 %v4243, 7
  %v4245 = vsub.s32 %v4242, %v4244
  %v4246 = vrot.slane %v4232, %v4245
  %v4247 = vcombine.high %v4239, %v4239
  %v4248 = vcombine.low %v2754, %v3045
  %v4250 = vunpack.c.l.s4 1966171168
  %v4251 = vunpack.c.0.s8 %v4250
  %v4252 = vlaneseq
  %v4253 = vshrl.u32 %v4252, 7
  %v4254 = vsub.s32 %v4251, %v4253
  %v4255 = vrot.slane %v4248, %v4254
  %v4256 = vcombine.high %v4255, %v4255
  %v4258 = vunpack.c.l.s4 1966171168
  %v4259 = vunpack.c.0.s8 %v4258
  %v4260 = vlaneseq
  %v4261 = vshrl.u32 %v4260, 7
  %v4262 = vsub.s32 %v4259, %v4261
  %v4263 = vrot.slane %v4255, %v4262
  %v4265 = vunpack.c.l.s4 1966171168
  %v4266 = vunpack.c.0.s8 %v4265
  %v4267 = vlaneseq
  %v4268 = vshrl.u32 %v4267, 7
  %v4269 = vsub.s32 %v4266, %v4268
  %v4270 = vrot.slane %v4256, %v4269
  %v4271 = vcombine.high %v4263, %v4263
  %v4272 = vcombine.low %v2756, %v3047
  %v4274 = vunpack.c.l.s4 1966171168
  %v4275 = vunpack.c.0.s8 %v4274
  %v4276 = vlaneseq
  %v4277 = vshrl.u32 %v4276, 7
  %v4278 = vsub.s32 %v4275, %v4277
  %v4279 = vrot.slane %v4272, %v4278
  %v4280 = vcombine.high %v4279, %v4279
  %v4282 = vunpack.c.l.s4 1966171168
  %v4283 = vunpack.c.0.s8 %v4282
  %v4284 = vlaneseq
  %v4285 = vshrl.u32 %v4284, 7
  %v4286 = vsub.s32 %v4283, %v4285
  %v4287 = vrot.slane %v4279, %v4286
  %v4289 = vunpack.c.l.s4 1966171168
  %v4290 = vunpack.c.0.s8 %v4289
  %v4291 = vlaneseq
  %v4292 = vshrl.u32 %v4291, 7
  %v4293 = vsub.s32 %v4290, %v4292
  %v4294 = vrot.slane %v4280, %v4293
  %v4295 = vcombine.high %v4287, %v4287
  %v4296 = vld [vmem:[%s3] sm:$0xf]
  %v4297 = vld [vmem:[%s3 + $0x4] sm:$0xf]
  %v4298 = vld [vmem:[%s3 + $0x8] sm:$0xf]
  %v4299 = vld [vmem:[%s3 + $0xc] sm:$0xf]
  %v4300 = vld [vmem:[%s3 + $0x10] sm:$0xf]
  %v4301 = vld [vmem:[%s3 + $0x14] sm:$0xf]
  %v4302 = vld [vmem:[%s3 + $0x18] sm:$0xf]
  %v4303 = vld [vmem:[%s3 + $0x1c] sm:$0xf]
  %v4304 = vld [vmem:[%s3 + $0x20] sm:$0xf]
  %v4305 = vld [vmem:[%s3 + $0x24] sm:$0xf]
  %v4306 = vld [vmem:[%s3 + $0x28] sm:$0xf]
  %v4307 = vld [vmem:[%s3 + $0x2c] sm:$0xf]
  %v4308 = vld [vmem:[%s3 + $0x30] sm:$0xf]
  %v4309 = vld [vmem:[%s3 + $0x34] sm:$0xf]
  %v4310 = vld [vmem:[%s3 + $0x38] sm:$0xf]
  %v4311 = vld [vmem:[%s3 + $0x3c] sm:$0xf]
  %v4312 = vld [vmem:[%s3 + $0x40] sm:$0xf]
  %v4313 = vld [vmem:[%s3 + $0x44] sm:$0xf]
  %v4314 = vld [vmem:[%s3 + $0x48] sm:$0xf]
  %v4315 = vld [vmem:[%s3 + $0x4c] sm:$0xf]
  %v4316 = vld [vmem:[%s3 + $0x50] sm:$0xf]
  %v4317 = vld [vmem:[%s3 + $0x54] sm:$0xf]
  %v4318 = vld [vmem:[%s3 + $0x58] sm:$0xf]
  %v4319 = vld [vmem:[%s3 + $0x5c] sm:$0xf]
  %v4320 = vld [vmem:[%s3 + $0x60] sm:$0xf]
  %v4321 = vld [vmem:[%s3 + $0x64] sm:$0xf]
  %v4322 = vld [vmem:[%s3 + $0x68] sm:$0xf]
  %v4323 = vld [vmem:[%s4] sm:$0x1]
  %v4325 = vlaneseq
  %v4326 = vshrl.u32 %v4325, 7
  %v4327 = vsub.s32 0, %v4326
  %v4328 = vrot.slane %v4323, %v4327
  %v4330 = vcombine.low %v3159, %v3166
  %v4331 = vcombine.low %v3167, %v3183
  %v4332 = vcombine.low %v3190, %v3191
  %v4333 = vcombine.low %v3207, %v3214
  %v4335 = vunpack.c.l.s4 1966171168
  %v4336 = vunpack.c.0.s8 %v4335
  %v4337 = vlaneseq
  %v4338 = vshrl.u32 %v4337, 7
  %v4339 = vsub.s32 %v4336, %v4338
  %v4340 = vrot.slane %v4330, %v4339
  %v4342 = vunpack.c.l.s4 1966171168
  %v4343 = vunpack.c.0.s8 %v4342
  %v4344 = vlaneseq
  %v4345 = vshrl.u32 %v4344, 7
  %v4346 = vsub.s32 %v4343, %v4345
  %v4347 = vrot.slane %v4331, %v4346
  %v4349 = vunpack.c.l.s4 1966171168
  %v4350 = vunpack.c.0.s8 %v4349
  %v4351 = vlaneseq
  %v4352 = vshrl.u32 %v4351, 7
  %v4353 = vsub.s32 %v4350, %v4352
  %v4354 = vrot.slane %v4332, %v4353
  %v4356 = vunpack.c.l.s4 1966171168
  %v4357 = vunpack.c.0.s8 %v4356
  %v4358 = vlaneseq
  %v4359 = vshrl.u32 %v4358, 7
  %v4360 = vsub.s32 %v4357, %v4359
  %v4361 = vrot.slane %v4333, %v4360
  %v4362 = vcombine.low %v4340, %v4347
  %v4363 = vcombine.high %v4340, %v4347
  %v4364 = vcombine.low %v4354, %v4361
  %v4365 = vcombine.high %v4354, %v4361
  %v4367 = vunpack.c.l.s4 1966171168
  %v4368 = vunpack.c.0.s8 %v4367
  %v4369 = vlaneseq
  %v4370 = vshrl.u32 %v4369, 7
  %v4371 = vsub.s32 %v4368, %v4370
  %v4372 = vrot.slane %v4362, %v4371
  %v4374 = vunpack.c.l.s4 1966171168
  %v4375 = vunpack.c.0.s8 %v4374
  %v4376 = vlaneseq
  %v4377 = vshrl.u32 %v4376, 7
  %v4378 = vsub.s32 %v4375, %v4377
  %v4379 = vrot.slane %v4363, %v4378
  %v4381 = vunpack.c.l.s4 1966171168
  %v4382 = vunpack.c.0.s8 %v4381
  %v4383 = vlaneseq
  %v4384 = vshrl.u32 %v4383, 7
  %v4385 = vsub.s32 %v4382, %v4384
  %v4386 = vrot.slane %v4364, %v4385
  %v4388 = vunpack.c.l.s4 1966171168
  %v4389 = vunpack.c.0.s8 %v4388
  %v4390 = vlaneseq
  %v4391 = vshrl.u32 %v4390, 7
  %v4392 = vsub.s32 %v4389, %v4391
  %v4393 = vrot.slane %v4365, %v4392
  %v4394 = vcombine.low %v4372, %v4386
  %v4395 = vcombine.low %v4379, %v4393
  %v4396 = vcombine.low %v3215, %v3231
  %v4397 = vcombine.low %v3238, %v3239
  %v4398 = vcombine.low %v3255, %v3262
  %v4399 = vcombine.low %v3263, %v3279
  %v4401 = vunpack.c.l.s4 1966171168
  %v4402 = vunpack.c.0.s8 %v4401
  %v4403 = vlaneseq
  %v4404 = vshrl.u32 %v4403, 7
  %v4405 = vsub.s32 %v4402, %v4404
  %v4406 = vrot.slane %v4396, %v4405
  %v4408 = vunpack.c.l.s4 1966171168
  %v4409 = vunpack.c.0.s8 %v4408
  %v4410 = vlaneseq
  %v4411 = vshrl.u32 %v4410, 7
  %v4412 = vsub.s32 %v4409, %v4411
  %v4413 = vrot.slane %v4397, %v4412
  %v4415 = vunpack.c.l.s4 1966171168
  %v4416 = vunpack.c.0.s8 %v4415
  %v4417 = vlaneseq
  %v4418 = vshrl.u32 %v4417, 7
  %v4419 = vsub.s32 %v4416, %v4418
  %v4420 = vrot.slane %v4398, %v4419
  %v4422 = vunpack.c.l.s4 1966171168
  %v4423 = vunpack.c.0.s8 %v4422
  %v4424 = vlaneseq
  %v4425 = vshrl.u32 %v4424, 7
  %v4426 = vsub.s32 %v4423, %v4425
  %v4427 = vrot.slane %v4399, %v4426
  %v4428 = vcombine.low %v4406, %v4413
  %v4429 = vcombine.high %v4406, %v4413
  %v4430 = vcombine.low %v4420, %v4427
  %v4431 = vcombine.high %v4420, %v4427
  %v4433 = vunpack.c.l.s4 1966171168
  %v4434 = vunpack.c.0.s8 %v4433
  %v4435 = vlaneseq
  %v4436 = vshrl.u32 %v4435, 7
  %v4437 = vsub.s32 %v4434, %v4436
  %v4438 = vrot.slane %v4428, %v4437
  %v4440 = vunpack.c.l.s4 1966171168
  %v4441 = vunpack.c.0.s8 %v4440
  %v4442 = vlaneseq
  %v4443 = vshrl.u32 %v4442, 7
  %v4444 = vsub.s32 %v4441, %v4443
  %v4445 = vrot.slane %v4429, %v4444
  %v4447 = vunpack.c.l.s4 1966171168
  %v4448 = vunpack.c.0.s8 %v4447
  %v4449 = vlaneseq
  %v4450 = vshrl.u32 %v4449, 7
  %v4451 = vsub.s32 %v4448, %v4450
  %v4452 = vrot.slane %v4430, %v4451
  %v4454 = vunpack.c.l.s4 1966171168
  %v4455 = vunpack.c.0.s8 %v4454
  %v4456 = vlaneseq
  %v4457 = vshrl.u32 %v4456, 7
  %v4458 = vsub.s32 %v4455, %v4457
  %v4459 = vrot.slane %v4431, %v4458
  %v4460 = vcombine.low %v4438, %v4452
  %v4461 = vcombine.low %v4445, %v4459
  %v4462 = vcombine.low %v3286, %v3287
  %v4463 = vcombine.low %v3303, %v3310
  %v4464 = vcombine.low %v3311, %v3327
  %v4465 = vcombine.low %v3334, %v3335
  %v4467 = vunpack.c.l.s4 1966171168
  %v4468 = vunpack.c.0.s8 %v4467
  %v4469 = vlaneseq
  %v4470 = vshrl.u32 %v4469, 7
  %v4471 = vsub.s32 %v4468, %v4470
  %v4472 = vrot.slane %v4462, %v4471
  %v4474 = vunpack.c.l.s4 1966171168
  %v4475 = vunpack.c.0.s8 %v4474
  %v4476 = vlaneseq
  %v4477 = vshrl.u32 %v4476, 7
  %v4478 = vsub.s32 %v4475, %v4477
  %v4479 = vrot.slane %v4463, %v4478
  %v4481 = vunpack.c.l.s4 1966171168
  %v4482 = vunpack.c.0.s8 %v4481
  %v4483 = vlaneseq
  %v4484 = vshrl.u32 %v4483, 7
  %v4485 = vsub.s32 %v4482, %v4484
  %v4486 = vrot.slane %v4464, %v4485
  %v4488 = vunpack.c.l.s4 1966171168
  %v4489 = vunpack.c.0.s8 %v4488
  %v4490 = vlaneseq
  %v4491 = vshrl.u32 %v4490, 7
  %v4492 = vsub.s32 %v4489, %v4491
  %v4493 = vrot.slane %v4465, %v4492
  %v4494 = vcombine.low %v4472, %v4479
  %v4495 = vcombine.high %v4472, %v4479
  %v4496 = vcombine.low %v4486, %v4493
  %v4497 = vcombine.high %v4486, %v4493
  %v4499 = vunpack.c.l.s4 1966171168
  %v4500 = vunpack.c.0.s8 %v4499
  %v4501 = vlaneseq
  %v4502 = vshrl.u32 %v4501, 7
  %v4503 = vsub.s32 %v4500, %v4502
  %v4504 = vrot.slane %v4494, %v4503
  %v4506 = vunpack.c.l.s4 1966171168
  %v4507 = vunpack.c.0.s8 %v4506
  %v4508 = vlaneseq
  %v4509 = vshrl.u32 %v4508, 7
  %v4510 = vsub.s32 %v4507, %v4509
  %v4511 = vrot.slane %v4495, %v4510
  %v4513 = vunpack.c.l.s4 1966171168
  %v4514 = vunpack.c.0.s8 %v4513
  %v4515 = vlaneseq
  %v4516 = vshrl.u32 %v4515, 7
  %v4517 = vsub.s32 %v4514, %v4516
  %v4518 = vrot.slane %v4496, %v4517
  %v4520 = vunpack.c.l.s4 1966171168
  %v4521 = vunpack.c.0.s8 %v4520
  %v4522 = vlaneseq
  %v4523 = vshrl.u32 %v4522, 7
  %v4524 = vsub.s32 %v4521, %v4523
  %v4525 = vrot.slane %v4497, %v4524
  %v4526 = vcombine.low %v4504, %v4518
  %v4527 = vcombine.low %v4511, %v4525
  %v4528 = vcombine.low %v3351, %v3358
  %v4529 = vcombine.low %v3359, %v3375
  %v4530 = vcombine.low %v3382, %v3383
  %v4531 = vcombine.low %v3399, %v3406
  %v4533 = vunpack.c.l.s4 1966171168
  %v4534 = vunpack.c.0.s8 %v4533
  %v4535 = vlaneseq
  %v4536 = vshrl.u32 %v4535, 7
  %v4537 = vsub.s32 %v4534, %v4536
  %v4538 = vrot.slane %v4528, %v4537
  %v4540 = vunpack.c.l.s4 1966171168
  %v4541 = vunpack.c.0.s8 %v4540
  %v4542 = vlaneseq
  %v4543 = vshrl.u32 %v4542, 7
  %v4544 = vsub.s32 %v4541, %v4543
  %v4545 = vrot.slane %v4529, %v4544
  %v4547 = vunpack.c.l.s4 1966171168
  %v4548 = vunpack.c.0.s8 %v4547
  %v4549 = vlaneseq
  %v4550 = vshrl.u32 %v4549, 7
  %v4551 = vsub.s32 %v4548, %v4550
  %v4552 = vrot.slane %v4530, %v4551
  %v4554 = vunpack.c.l.s4 1966171168
  %v4555 = vunpack.c.0.s8 %v4554
  %v4556 = vlaneseq
  %v4557 = vshrl.u32 %v4556, 7
  %v4558 = vsub.s32 %v4555, %v4557
  %v4559 = vrot.slane %v4531, %v4558
  %v4560 = vcombine.low %v4538, %v4545
  %v4561 = vcombine.high %v4538, %v4545
  %v4562 = vcombine.low %v4552, %v4559
  %v4563 = vcombine.high %v4552, %v4559
  %v4565 = vunpack.c.l.s4 1966171168
  %v4566 = vunpack.c.0.s8 %v4565
  %v4567 = vlaneseq
  %v4568 = vshrl.u32 %v4567, 7
  %v4569 = vsub.s32 %v4566, %v4568
  %v4570 = vrot.slane %v4560, %v4569
  %v4572 = vunpack.c.l.s4 1966171168
  %v4573 = vunpack.c.0.s8 %v4572
  %v4574 = vlaneseq
  %v4575 = vshrl.u32 %v4574, 7
  %v4576 = vsub.s32 %v4573, %v4575
  %v4577 = vrot.slane %v4561, %v4576
  %v4579 = vunpack.c.l.s4 1966171168
  %v4580 = vunpack.c.0.s8 %v4579
  %v4581 = vlaneseq
  %v4582 = vshrl.u32 %v4581, 7
  %v4583 = vsub.s32 %v4580, %v4582
  %v4584 = vrot.slane %v4562, %v4583
  %v4586 = vunpack.c.l.s4 1966171168
  %v4587 = vunpack.c.0.s8 %v4586
  %v4588 = vlaneseq
  %v4589 = vshrl.u32 %v4588, 7
  %v4590 = vsub.s32 %v4587, %v4589
  %v4591 = vrot.slane %v4563, %v4590
  %v4592 = vcombine.low %v4570, %v4584
  %v4593 = vcombine.low %v4577, %v4591
  %v4594 = vcombine.low %v3407, %v3423
  %v4595 = vcombine.low %v3430, %v3431
  %v4596 = vcombine.low %v3447, %v3454
  %v4597 = vcombine.low %v3455, %v3471
  %v4599 = vunpack.c.l.s4 1966171168
  %v4600 = vunpack.c.0.s8 %v4599
  %v4601 = vlaneseq
  %v4602 = vshrl.u32 %v4601, 7
  %v4603 = vsub.s32 %v4600, %v4602
  %v4604 = vrot.slane %v4594, %v4603
  %v4606 = vunpack.c.l.s4 1966171168
  %v4607 = vunpack.c.0.s8 %v4606
  %v4608 = vlaneseq
  %v4609 = vshrl.u32 %v4608, 7
  %v4610 = vsub.s32 %v4607, %v4609
  %v4611 = vrot.slane %v4595, %v4610
  %v4613 = vunpack.c.l.s4 1966171168
  %v4614 = vunpack.c.0.s8 %v4613
  %v4615 = vlaneseq
  %v4616 = vshrl.u32 %v4615, 7
  %v4617 = vsub.s32 %v4614, %v4616
  %v4618 = vrot.slane %v4596, %v4617
  %v4620 = vunpack.c.l.s4 1966171168
  %v4621 = vunpack.c.0.s8 %v4620
  %v4622 = vlaneseq
  %v4623 = vshrl.u32 %v4622, 7
  %v4624 = vsub.s32 %v4621, %v4623
  %v4625 = vrot.slane %v4597, %v4624
  %v4626 = vcombine.low %v4604, %v4611
  %v4627 = vcombine.high %v4604, %v4611
  %v4628 = vcombine.low %v4618, %v4625
  %v4629 = vcombine.high %v4618, %v4625
  %v4631 = vunpack.c.l.s4 1966171168
  %v4632 = vunpack.c.0.s8 %v4631
  %v4633 = vlaneseq
  %v4634 = vshrl.u32 %v4633, 7
  %v4635 = vsub.s32 %v4632, %v4634
  %v4636 = vrot.slane %v4626, %v4635
  %v4638 = vunpack.c.l.s4 1966171168
  %v4639 = vunpack.c.0.s8 %v4638
  %v4640 = vlaneseq
  %v4641 = vshrl.u32 %v4640, 7
  %v4642 = vsub.s32 %v4639, %v4641
  %v4643 = vrot.slane %v4627, %v4642
  %v4645 = vunpack.c.l.s4 1966171168
  %v4646 = vunpack.c.0.s8 %v4645
  %v4647 = vlaneseq
  %v4648 = vshrl.u32 %v4647, 7
  %v4649 = vsub.s32 %v4646, %v4648
  %v4650 = vrot.slane %v4628, %v4649
  %v4652 = vunpack.c.l.s4 1966171168
  %v4653 = vunpack.c.0.s8 %v4652
  %v4654 = vlaneseq
  %v4655 = vshrl.u32 %v4654, 7
  %v4656 = vsub.s32 %v4653, %v4655
  %v4657 = vrot.slane %v4629, %v4656
  %v4658 = vcombine.low %v4636, %v4650
  %v4659 = vcombine.low %v4643, %v4657
  %v4660 = vcombine.low %v3478, %v3479
  %v4661 = vcombine.low %v3495, %v3502
  %v4662 = vcombine.low %v3503, %v3519
  %v4663 = vcombine.low %v3526, %v3527
  %v4665 = vunpack.c.l.s4 1966171168
  %v4666 = vunpack.c.0.s8 %v4665
  %v4667 = vlaneseq
  %v4668 = vshrl.u32 %v4667, 7
  %v4669 = vsub.s32 %v4666, %v4668
  %v4670 = vrot.slane %v4660, %v4669
  %v4672 = vunpack.c.l.s4 1966171168
  %v4673 = vunpack.c.0.s8 %v4672
  %v4674 = vlaneseq
  %v4675 = vshrl.u32 %v4674, 7
  %v4676 = vsub.s32 %v4673, %v4675
  %v4677 = vrot.slane %v4661, %v4676
  %v4679 = vunpack.c.l.s4 1966171168
  %v4680 = vunpack.c.0.s8 %v4679
  %v4681 = vlaneseq
  %v4682 = vshrl.u32 %v4681, 7
  %v4683 = vsub.s32 %v4680, %v4682
  %v4684 = vrot.slane %v4662, %v4683
  %v4686 = vunpack.c.l.s4 1966171168
  %v4687 = vunpack.c.0.s8 %v4686
  %v4688 = vlaneseq
  %v4689 = vshrl.u32 %v4688, 7
  %v4690 = vsub.s32 %v4687, %v4689
  %v4691 = vrot.slane %v4663, %v4690
  %v4692 = vcombine.low %v4670, %v4677
  %v4693 = vcombine.high %v4670, %v4677
  %v4694 = vcombine.low %v4684, %v4691
  %v4695 = vcombine.high %v4684, %v4691
  %v4697 = vunpack.c.l.s4 1966171168
  %v4698 = vunpack.c.0.s8 %v4697
  %v4699 = vlaneseq
  %v4700 = vshrl.u32 %v4699, 7
  %v4701 = vsub.s32 %v4698, %v4700
  %v4702 = vrot.slane %v4692, %v4701
  %v4704 = vunpack.c.l.s4 1966171168
  %v4705 = vunpack.c.0.s8 %v4704
  %v4706 = vlaneseq
  %v4707 = vshrl.u32 %v4706, 7
  %v4708 = vsub.s32 %v4705, %v4707
  %v4709 = vrot.slane %v4693, %v4708
  %v4711 = vunpack.c.l.s4 1966171168
  %v4712 = vunpack.c.0.s8 %v4711
  %v4713 = vlaneseq
  %v4714 = vshrl.u32 %v4713, 7
  %v4715 = vsub.s32 %v4712, %v4714
  %v4716 = vrot.slane %v4694, %v4715
  %v4718 = vunpack.c.l.s4 1966171168
  %v4719 = vunpack.c.0.s8 %v4718
  %v4720 = vlaneseq
  %v4721 = vshrl.u32 %v4720, 7
  %v4722 = vsub.s32 %v4719, %v4721
  %v4723 = vrot.slane %v4695, %v4722
  %v4724 = vcombine.low %v4702, %v4716
  %v4725 = vcombine.low %v4709, %v4723
  %v4726 = vcombine.low %v3543, %v3550
  %v4727 = vcombine.low %v3551, %v3567
  %v4728 = vcombine.low %v3574, %v3575
  %v4729 = vcombine.low %v3591, %v3598
  %v4731 = vunpack.c.l.s4 1966171168
  %v4732 = vunpack.c.0.s8 %v4731
  %v4733 = vlaneseq
  %v4734 = vshrl.u32 %v4733, 7
  %v4735 = vsub.s32 %v4732, %v4734
  %v4736 = vrot.slane %v4726, %v4735
  %v4738 = vunpack.c.l.s4 1966171168
  %v4739 = vunpack.c.0.s8 %v4738
  %v4740 = vlaneseq
  %v4741 = vshrl.u32 %v4740, 7
  %v4742 = vsub.s32 %v4739, %v4741
  %v4743 = vrot.slane %v4727, %v4742
  %v4745 = vunpack.c.l.s4 1966171168
  %v4746 = vunpack.c.0.s8 %v4745
  %v4747 = vlaneseq
  %v4748 = vshrl.u32 %v4747, 7
  %v4749 = vsub.s32 %v4746, %v4748
  %v4750 = vrot.slane %v4728, %v4749
  %v4752 = vunpack.c.l.s4 1966171168
  %v4753 = vunpack.c.0.s8 %v4752
  %v4754 = vlaneseq
  %v4755 = vshrl.u32 %v4754, 7
  %v4756 = vsub.s32 %v4753, %v4755
  %v4757 = vrot.slane %v4729, %v4756
  %v4758 = vcombine.low %v4736, %v4743
  %v4759 = vcombine.high %v4736, %v4743
  %v4760 = vcombine.low %v4750, %v4757
  %v4761 = vcombine.high %v4750, %v4757
  %v4763 = vunpack.c.l.s4 1966171168
  %v4764 = vunpack.c.0.s8 %v4763
  %v4765 = vlaneseq
  %v4766 = vshrl.u32 %v4765, 7
  %v4767 = vsub.s32 %v4764, %v4766
  %v4768 = vrot.slane %v4758, %v4767
  %v4770 = vunpack.c.l.s4 1966171168
  %v4771 = vunpack.c.0.s8 %v4770
  %v4772 = vlaneseq
  %v4773 = vshrl.u32 %v4772, 7
  %v4774 = vsub.s32 %v4771, %v4773
  %v4775 = vrot.slane %v4759, %v4774
  %v4777 = vunpack.c.l.s4 1966171168
  %v4778 = vunpack.c.0.s8 %v4777
  %v4779 = vlaneseq
  %v4780 = vshrl.u32 %v4779, 7
  %v4781 = vsub.s32 %v4778, %v4780
  %v4782 = vrot.slane %v4760, %v4781
  %v4784 = vunpack.c.l.s4 1966171168
  %v4785 = vunpack.c.0.s8 %v4784
  %v4786 = vlaneseq
  %v4787 = vshrl.u32 %v4786, 7
  %v4788 = vsub.s32 %v4785, %v4787
  %v4789 = vrot.slane %v4761, %v4788
  %v4790 = vcombine.low %v4768, %v4782
  %v4791 = vcombine.low %v4775, %v4789
  %v4792 = vcombine.low %v3599, %v3615
  %v4793 = vcombine.low %v3622, %v3623
  %v4794 = vcombine.low %v3639, %v3646
  %v4795 = vcombine.low %v3647, %v3663
  %v4797 = vunpack.c.l.s4 1966171168
  %v4798 = vunpack.c.0.s8 %v4797
  %v4799 = vlaneseq
  %v4800 = vshrl.u32 %v4799, 7
  %v4801 = vsub.s32 %v4798, %v4800
  %v4802 = vrot.slane %v4792, %v4801
  %v4804 = vunpack.c.l.s4 1966171168
  %v4805 = vunpack.c.0.s8 %v4804
  %v4806 = vlaneseq
  %v4807 = vshrl.u32 %v4806, 7
  %v4808 = vsub.s32 %v4805, %v4807
  %v4809 = vrot.slane %v4793, %v4808
  %v4811 = vunpack.c.l.s4 1966171168
  %v4812 = vunpack.c.0.s8 %v4811
  %v4813 = vlaneseq
  %v4814 = vshrl.u32 %v4813, 7
  %v4815 = vsub.s32 %v4812, %v4814
  %v4816 = vrot.slane %v4794, %v4815
  %v4818 = vunpack.c.l.s4 1966171168
  %v4819 = vunpack.c.0.s8 %v4818
  %v4820 = vlaneseq
  %v4821 = vshrl.u32 %v4820, 7
  %v4822 = vsub.s32 %v4819, %v4821
  %v4823 = vrot.slane %v4795, %v4822
  %v4824 = vcombine.low %v4802, %v4809
  %v4825 = vcombine.high %v4802, %v4809
  %v4826 = vcombine.low %v4816, %v4823
  %v4827 = vcombine.high %v4816, %v4823
  %v4829 = vunpack.c.l.s4 1966171168
  %v4830 = vunpack.c.0.s8 %v4829
  %v4831 = vlaneseq
  %v4832 = vshrl.u32 %v4831, 7
  %v4833 = vsub.s32 %v4830, %v4832
  %v4834 = vrot.slane %v4824, %v4833
  %v4836 = vunpack.c.l.s4 1966171168
  %v4837 = vunpack.c.0.s8 %v4836
  %v4838 = vlaneseq
  %v4839 = vshrl.u32 %v4838, 7
  %v4840 = vsub.s32 %v4837, %v4839
  %v4841 = vrot.slane %v4825, %v4840
  %v4843 = vunpack.c.l.s4 1966171168
  %v4844 = vunpack.c.0.s8 %v4843
  %v4845 = vlaneseq
  %v4846 = vshrl.u32 %v4845, 7
  %v4847 = vsub.s32 %v4844, %v4846
  %v4848 = vrot.slane %v4826, %v4847
  %v4850 = vunpack.c.l.s4 1966171168
  %v4851 = vunpack.c.0.s8 %v4850
  %v4852 = vlaneseq
  %v4853 = vshrl.u32 %v4852, 7
  %v4854 = vsub.s32 %v4851, %v4853
  %v4855 = vrot.slane %v4827, %v4854
  %v4856 = vcombine.low %v4834, %v4848
  %v4857 = vcombine.low %v4841, %v4855
  %v4858 = vcombine.low %v3670, %v3671
  %v4859 = vcombine.low %v3687, %v3694
  %v4860 = vcombine.low %v3695, %v3711
  %v4861 = vcombine.low %v3718, %v3719
  %v4863 = vunpack.c.l.s4 1966171168
  %v4864 = vunpack.c.0.s8 %v4863
  %v4865 = vlaneseq
  %v4866 = vshrl.u32 %v4865, 7
  %v4867 = vsub.s32 %v4864, %v4866
  %v4868 = vrot.slane %v4858, %v4867
  %v4870 = vunpack.c.l.s4 1966171168
  %v4871 = vunpack.c.0.s8 %v4870
  %v4872 = vlaneseq
  %v4873 = vshrl.u32 %v4872, 7
  %v4874 = vsub.s32 %v4871, %v4873
  %v4875 = vrot.slane %v4859, %v4874
  %v4877 = vunpack.c.l.s4 1966171168
  %v4878 = vunpack.c.0.s8 %v4877
  %v4879 = vlaneseq
  %v4880 = vshrl.u32 %v4879, 7
  %v4881 = vsub.s32 %v4878, %v4880
  %v4882 = vrot.slane %v4860, %v4881
  %v4884 = vunpack.c.l.s4 1966171168
  %v4885 = vunpack.c.0.s8 %v4884
  %v4886 = vlaneseq
  %v4887 = vshrl.u32 %v4886, 7
  %v4888 = vsub.s32 %v4885, %v4887
  %v4889 = vrot.slane %v4861, %v4888
  %v4890 = vcombine.low %v4868, %v4875
  %v4891 = vcombine.high %v4868, %v4875
  %v4892 = vcombine.low %v4882, %v4889
  %v4893 = vcombine.high %v4882, %v4889
  %v4895 = vunpack.c.l.s4 1966171168
  %v4896 = vunpack.c.0.s8 %v4895
  %v4897 = vlaneseq
  %v4898 = vshrl.u32 %v4897, 7
  %v4899 = vsub.s32 %v4896, %v4898
  %v4900 = vrot.slane %v4890, %v4899
  %v4902 = vunpack.c.l.s4 1966171168
  %v4903 = vunpack.c.0.s8 %v4902
  %v4904 = vlaneseq
  %v4905 = vshrl.u32 %v4904, 7
  %v4906 = vsub.s32 %v4903, %v4905
  %v4907 = vrot.slane %v4891, %v4906
  %v4909 = vunpack.c.l.s4 1966171168
  %v4910 = vunpack.c.0.s8 %v4909
  %v4911 = vlaneseq
  %v4912 = vshrl.u32 %v4911, 7
  %v4913 = vsub.s32 %v4910, %v4912
  %v4914 = vrot.slane %v4892, %v4913
  %v4916 = vunpack.c.l.s4 1966171168
  %v4917 = vunpack.c.0.s8 %v4916
  %v4918 = vlaneseq
  %v4919 = vshrl.u32 %v4918, 7
  %v4920 = vsub.s32 %v4917, %v4919
  %v4921 = vrot.slane %v4893, %v4920
  %v4922 = vcombine.low %v4900, %v4914
  %v4923 = vcombine.low %v4907, %v4921
  %v4924 = vcombine.low %v3735, %v3742
  %v4925 = vcombine.low %v3743, %v3759
  %v4926 = vcombine.low %v3766, %v3767
  %v4927 = vcombine.low %v3783, %v3790
  %v4929 = vunpack.c.l.s4 1966171168
  %v4930 = vunpack.c.0.s8 %v4929
  %v4931 = vlaneseq
  %v4932 = vshrl.u32 %v4931, 7
  %v4933 = vsub.s32 %v4930, %v4932
  %v4934 = vrot.slane %v4924, %v4933
  %v4936 = vunpack.c.l.s4 1966171168
  %v4937 = vunpack.c.0.s8 %v4936
  %v4938 = vlaneseq
  %v4939 = vshrl.u32 %v4938, 7
  %v4940 = vsub.s32 %v4937, %v4939
  %v4941 = vrot.slane %v4925, %v4940
  %v4943 = vunpack.c.l.s4 1966171168
  %v4944 = vunpack.c.0.s8 %v4943
  %v4945 = vlaneseq
  %v4946 = vshrl.u32 %v4945, 7
  %v4947 = vsub.s32 %v4944, %v4946
  %v4948 = vrot.slane %v4926, %v4947
  %v4950 = vunpack.c.l.s4 1966171168
  %v4951 = vunpack.c.0.s8 %v4950
  %v4952 = vlaneseq
  %v4953 = vshrl.u32 %v4952, 7
  %v4954 = vsub.s32 %v4951, %v4953
  %v4955 = vrot.slane %v4927, %v4954
  %v4956 = vcombine.low %v4934, %v4941
  %v4957 = vcombine.high %v4934, %v4941
  %v4958 = vcombine.low %v4948, %v4955
  %v4959 = vcombine.high %v4948, %v4955
  %v4961 = vunpack.c.l.s4 1966171168
  %v4962 = vunpack.c.0.s8 %v4961
  %v4963 = vlaneseq
  %v4964 = vshrl.u32 %v4963, 7
  %v4965 = vsub.s32 %v4962, %v4964
  %v4966 = vrot.slane %v4956, %v4965
  %v4968 = vunpack.c.l.s4 1966171168
  %v4969 = vunpack.c.0.s8 %v4968
  %v4970 = vlaneseq
  %v4971 = vshrl.u32 %v4970, 7
  %v4972 = vsub.s32 %v4969, %v4971
  %v4973 = vrot.slane %v4957, %v4972
  %v4975 = vunpack.c.l.s4 1966171168
  %v4976 = vunpack.c.0.s8 %v4975
  %v4977 = vlaneseq
  %v4978 = vshrl.u32 %v4977, 7
  %v4979 = vsub.s32 %v4976, %v4978
  %v4980 = vrot.slane %v4958, %v4979
  %v4982 = vunpack.c.l.s4 1966171168
  %v4983 = vunpack.c.0.s8 %v4982
  %v4984 = vlaneseq
  %v4985 = vshrl.u32 %v4984, 7
  %v4986 = vsub.s32 %v4983, %v4985
  %v4987 = vrot.slane %v4959, %v4986
  %v4988 = vcombine.low %v4966, %v4980
  %v4989 = vcombine.low %v4973, %v4987
  %v4990 = vcombine.low %v3791, %v3807
  %v4991 = vcombine.low %v3814, %v3815
  %v4992 = vcombine.low %v3831, %v3838
  %v4993 = vcombine.low %v3839, %v3855
  %v4995 = vunpack.c.l.s4 1966171168
  %v4996 = vunpack.c.0.s8 %v4995
  %v4997 = vlaneseq
  %v4998 = vshrl.u32 %v4997, 7
  %v4999 = vsub.s32 %v4996, %v4998
  %v5000 = vrot.slane %v4990, %v4999
  %v5002 = vunpack.c.l.s4 1966171168
  %v5003 = vunpack.c.0.s8 %v5002
  %v5004 = vlaneseq
  %v5005 = vshrl.u32 %v5004, 7
  %v5006 = vsub.s32 %v5003, %v5005
  %v5007 = vrot.slane %v4991, %v5006
  %v5009 = vunpack.c.l.s4 1966171168
  %v5010 = vunpack.c.0.s8 %v5009
  %v5011 = vlaneseq
  %v5012 = vshrl.u32 %v5011, 7
  %v5013 = vsub.s32 %v5010, %v5012
  %v5014 = vrot.slane %v4992, %v5013
  %v5016 = vunpack.c.l.s4 1966171168
  %v5017 = vunpack.c.0.s8 %v5016
  %v5018 = vlaneseq
  %v5019 = vshrl.u32 %v5018, 7
  %v5020 = vsub.s32 %v5017, %v5019
  %v5021 = vrot.slane %v4993, %v5020
  %v5022 = vcombine.low %v5000, %v5007
  %v5023 = vcombine.high %v5000, %v5007
  %v5024 = vcombine.low %v5014, %v5021
  %v5025 = vcombine.high %v5014, %v5021
  %v5027 = vunpack.c.l.s4 1966171168
  %v5028 = vunpack.c.0.s8 %v5027
  %v5029 = vlaneseq
  %v5030 = vshrl.u32 %v5029, 7
  %v5031 = vsub.s32 %v5028, %v5030
  %v5032 = vrot.slane %v5022, %v5031
  %v5034 = vunpack.c.l.s4 1966171168
  %v5035 = vunpack.c.0.s8 %v5034
  %v5036 = vlaneseq
  %v5037 = vshrl.u32 %v5036, 7
  %v5038 = vsub.s32 %v5035, %v5037
  %v5039 = vrot.slane %v5023, %v5038
  %v5041 = vunpack.c.l.s4 1966171168
  %v5042 = vunpack.c.0.s8 %v5041
  %v5043 = vlaneseq
  %v5044 = vshrl.u32 %v5043, 7
  %v5045 = vsub.s32 %v5042, %v5044
  %v5046 = vrot.slane %v5024, %v5045
  %v5048 = vunpack.c.l.s4 1966171168
  %v5049 = vunpack.c.0.s8 %v5048
  %v5050 = vlaneseq
  %v5051 = vshrl.u32 %v5050, 7
  %v5052 = vsub.s32 %v5049, %v5051
  %v5053 = vrot.slane %v5025, %v5052
  %v5054 = vcombine.low %v5032, %v5046
  %v5055 = vcombine.low %v5039, %v5053
  %v5056 = vcombine.low %v3862, %v3863
  %v5057 = vcombine.low %v3879, %v3886
  %v5058 = vcombine.low %v3887, %v3903
  %v5059 = vcombine.low %v3910, %v3911
  %v5061 = vunpack.c.l.s4 1966171168
  %v5062 = vunpack.c.0.s8 %v5061
  %v5063 = vlaneseq
  %v5064 = vshrl.u32 %v5063, 7
  %v5065 = vsub.s32 %v5062, %v5064
  %v5066 = vrot.slane %v5056, %v5065
  %v5068 = vunpack.c.l.s4 1966171168
  %v5069 = vunpack.c.0.s8 %v5068
  %v5070 = vlaneseq
  %v5071 = vshrl.u32 %v5070, 7
  %v5072 = vsub.s32 %v5069, %v5071
  %v5073 = vrot.slane %v5057, %v5072
  %v5075 = vunpack.c.l.s4 1966171168
  %v5076 = vunpack.c.0.s8 %v5075
  %v5077 = vlaneseq
  %v5078 = vshrl.u32 %v5077, 7
  %v5079 = vsub.s32 %v5076, %v5078
  %v5080 = vrot.slane %v5058, %v5079
  %v5082 = vunpack.c.l.s4 1966171168
  %v5083 = vunpack.c.0.s8 %v5082
  %v5084 = vlaneseq
  %v5085 = vshrl.u32 %v5084, 7
  %v5086 = vsub.s32 %v5083, %v5085
  %v5087 = vrot.slane %v5059, %v5086
  %v5088 = vcombine.low %v5066, %v5073
  %v5089 = vcombine.high %v5066, %v5073
  %v5090 = vcombine.low %v5080, %v5087
  %v5091 = vcombine.high %v5080, %v5087
  %v5093 = vunpack.c.l.s4 1966171168
  %v5094 = vunpack.c.0.s8 %v5093
  %v5095 = vlaneseq
  %v5096 = vshrl.u32 %v5095, 7
  %v5097 = vsub.s32 %v5094, %v5096
  %v5098 = vrot.slane %v5088, %v5097
  %v5100 = vunpack.c.l.s4 1966171168
  %v5101 = vunpack.c.0.s8 %v5100
  %v5102 = vlaneseq
  %v5103 = vshrl.u32 %v5102, 7
  %v5104 = vsub.s32 %v5101, %v5103
  %v5105 = vrot.slane %v5089, %v5104
  %v5107 = vunpack.c.l.s4 1966171168
  %v5108 = vunpack.c.0.s8 %v5107
  %v5109 = vlaneseq
  %v5110 = vshrl.u32 %v5109, 7
  %v5111 = vsub.s32 %v5108, %v5110
  %v5112 = vrot.slane %v5090, %v5111
  %v5114 = vunpack.c.l.s4 1966171168
  %v5115 = vunpack.c.0.s8 %v5114
  %v5116 = vlaneseq
  %v5117 = vshrl.u32 %v5116, 7
  %v5118 = vsub.s32 %v5115, %v5117
  %v5119 = vrot.slane %v5091, %v5118
  %v5120 = vcombine.low %v5098, %v5112
  %v5121 = vcombine.low %v5105, %v5119
  %v5122 = vcombine.low %v3927, %v3934
  %v5123 = vcombine.low %v3935, %v3951
  %v5124 = vcombine.low %v3958, %v3959
  %v5125 = vcombine.low %v3975, %v3982
  %v5127 = vunpack.c.l.s4 1966171168
  %v5128 = vunpack.c.0.s8 %v5127
  %v5129 = vlaneseq
  %v5130 = vshrl.u32 %v5129, 7
  %v5131 = vsub.s32 %v5128, %v5130
  %v5132 = vrot.slane %v5122, %v5131
  %v5134 = vunpack.c.l.s4 1966171168
  %v5135 = vunpack.c.0.s8 %v5134
  %v5136 = vlaneseq
  %v5137 = vshrl.u32 %v5136, 7
  %v5138 = vsub.s32 %v5135, %v5137
  %v5139 = vrot.slane %v5123, %v5138
  %v5141 = vunpack.c.l.s4 1966171168
  %v5142 = vunpack.c.0.s8 %v5141
  %v5143 = vlaneseq
  %v5144 = vshrl.u32 %v5143, 7
  %v5145 = vsub.s32 %v5142, %v5144
  %v5146 = vrot.slane %v5124, %v5145
  %v5148 = vunpack.c.l.s4 1966171168
  %v5149 = vunpack.c.0.s8 %v5148
  %v5150 = vlaneseq
  %v5151 = vshrl.u32 %v5150, 7
  %v5152 = vsub.s32 %v5149, %v5151
  %v5153 = vrot.slane %v5125, %v5152
  %v5154 = vcombine.low %v5132, %v5139
  %v5155 = vcombine.high %v5132, %v5139
  %v5156 = vcombine.low %v5146, %v5153
  %v5157 = vcombine.high %v5146, %v5153
  %v5159 = vunpack.c.l.s4 1966171168
  %v5160 = vunpack.c.0.s8 %v5159
  %v5161 = vlaneseq
  %v5162 = vshrl.u32 %v5161, 7
  %v5163 = vsub.s32 %v5160, %v5162
  %v5164 = vrot.slane %v5154, %v5163
  %v5166 = vunpack.c.l.s4 1966171168
  %v5167 = vunpack.c.0.s8 %v5166
  %v5168 = vlaneseq
  %v5169 = vshrl.u32 %v5168, 7
  %v5170 = vsub.s32 %v5167, %v5169
  %v5171 = vrot.slane %v5155, %v5170
  %v5173 = vunpack.c.l.s4 1966171168
  %v5174 = vunpack.c.0.s8 %v5173
  %v5175 = vlaneseq
  %v5176 = vshrl.u32 %v5175, 7
  %v5177 = vsub.s32 %v5174, %v5176
  %v5178 = vrot.slane %v5156, %v5177
  %v5180 = vunpack.c.l.s4 1966171168
  %v5181 = vunpack.c.0.s8 %v5180
  %v5182 = vlaneseq
  %v5183 = vshrl.u32 %v5182, 7
  %v5184 = vsub.s32 %v5181, %v5183
  %v5185 = vrot.slane %v5157, %v5184
  %v5186 = vcombine.low %v5164, %v5178
  %v5187 = vcombine.low %v5171, %v5185
  %v5188 = vcombine.low %v3983, %v3999
  %v5189 = vcombine.low %v4006, %v4007
  %v5190 = vcombine.low %v4023, %v4030
  %v5191 = vcombine.low %v4031, %v4047
  %v5193 = vunpack.c.l.s4 1966171168
  %v5194 = vunpack.c.0.s8 %v5193
  %v5195 = vlaneseq
  %v5196 = vshrl.u32 %v5195, 7
  %v5197 = vsub.s32 %v5194, %v5196
  %v5198 = vrot.slane %v5188, %v5197
  %v5200 = vunpack.c.l.s4 1966171168
  %v5201 = vunpack.c.0.s8 %v5200
  %v5202 = vlaneseq
  %v5203 = vshrl.u32 %v5202, 7
  %v5204 = vsub.s32 %v5201, %v5203
  %v5205 = vrot.slane %v5189, %v5204
  %v5207 = vunpack.c.l.s4 1966171168
  %v5208 = vunpack.c.0.s8 %v5207
  %v5209 = vlaneseq
  %v5210 = vshrl.u32 %v5209, 7
  %v5211 = vsub.s32 %v5208, %v5210
  %v5212 = vrot.slane %v5190, %v5211
  %v5214 = vunpack.c.l.s4 1966171168
  %v5215 = vunpack.c.0.s8 %v5214
  %v5216 = vlaneseq
  %v5217 = vshrl.u32 %v5216, 7
  %v5218 = vsub.s32 %v5215, %v5217
  %v5219 = vrot.slane %v5191, %v5218
  %v5220 = vcombine.low %v5198, %v5205
  %v5221 = vcombine.high %v5198, %v5205
  %v5222 = vcombine.low %v5212, %v5219
  %v5223 = vcombine.high %v5212, %v5219
  %v5225 = vunpack.c.l.s4 1966171168
  %v5226 = vunpack.c.0.s8 %v5225
  %v5227 = vlaneseq
  %v5228 = vshrl.u32 %v5227, 7
  %v5229 = vsub.s32 %v5226, %v5228
  %v5230 = vrot.slane %v5220, %v5229
  %v5232 = vunpack.c.l.s4 1966171168
  %v5233 = vunpack.c.0.s8 %v5232
  %v5234 = vlaneseq
  %v5235 = vshrl.u32 %v5234, 7
  %v5236 = vsub.s32 %v5233, %v5235
  %v5237 = vrot.slane %v5221, %v5236
  %v5239 = vunpack.c.l.s4 1966171168
  %v5240 = vunpack.c.0.s8 %v5239
  %v5241 = vlaneseq
  %v5242 = vshrl.u32 %v5241, 7
  %v5243 = vsub.s32 %v5240, %v5242
  %v5244 = vrot.slane %v5222, %v5243
  %v5246 = vunpack.c.l.s4 1966171168
  %v5247 = vunpack.c.0.s8 %v5246
  %v5248 = vlaneseq
  %v5249 = vshrl.u32 %v5248, 7
  %v5250 = vsub.s32 %v5247, %v5249
  %v5251 = vrot.slane %v5223, %v5250
  %v5252 = vcombine.low %v5230, %v5244
  %v5253 = vcombine.low %v5237, %v5251
  %v5254 = vcombine.low %v4054, %v4055
  %v5255 = vcombine.low %v4071, %v4078
  %v5256 = vcombine.low %v4079, %v4095
  %v5257 = vcombine.low %v4102, %v4103
  %v5259 = vunpack.c.l.s4 1966171168
  %v5260 = vunpack.c.0.s8 %v5259
  %v5261 = vlaneseq
  %v5262 = vshrl.u32 %v5261, 7
  %v5263 = vsub.s32 %v5260, %v5262
  %v5264 = vrot.slane %v5254, %v5263
  %v5266 = vunpack.c.l.s4 1966171168
  %v5267 = vunpack.c.0.s8 %v5266
  %v5268 = vlaneseq
  %v5269 = vshrl.u32 %v5268, 7
  %v5270 = vsub.s32 %v5267, %v5269
  %v5271 = vrot.slane %v5255, %v5270
  %v5273 = vunpack.c.l.s4 1966171168
  %v5274 = vunpack.c.0.s8 %v5273
  %v5275 = vlaneseq
  %v5276 = vshrl.u32 %v5275, 7
  %v5277 = vsub.s32 %v5274, %v5276
  %v5278 = vrot.slane %v5256, %v5277
  %v5280 = vunpack.c.l.s4 1966171168
  %v5281 = vunpack.c.0.s8 %v5280
  %v5282 = vlaneseq
  %v5283 = vshrl.u32 %v5282, 7
  %v5284 = vsub.s32 %v5281, %v5283
  %v5285 = vrot.slane %v5257, %v5284
  %v5286 = vcombine.low %v5264, %v5271
  %v5287 = vcombine.high %v5264, %v5271
  %v5288 = vcombine.low %v5278, %v5285
  %v5289 = vcombine.high %v5278, %v5285
  %v5291 = vunpack.c.l.s4 1966171168
  %v5292 = vunpack.c.0.s8 %v5291
  %v5293 = vlaneseq
  %v5294 = vshrl.u32 %v5293, 7
  %v5295 = vsub.s32 %v5292, %v5294
  %v5296 = vrot.slane %v5286, %v5295
  %v5298 = vunpack.c.l.s4 1966171168
  %v5299 = vunpack.c.0.s8 %v5298
  %v5300 = vlaneseq
  %v5301 = vshrl.u32 %v5300, 7
  %v5302 = vsub.s32 %v5299, %v5301
  %v5303 = vrot.slane %v5287, %v5302
  %v5305 = vunpack.c.l.s4 1966171168
  %v5306 = vunpack.c.0.s8 %v5305
  %v5307 = vlaneseq
  %v5308 = vshrl.u32 %v5307, 7
  %v5309 = vsub.s32 %v5306, %v5308
  %v5310 = vrot.slane %v5288, %v5309
  %v5312 = vunpack.c.l.s4 1966171168
  %v5313 = vunpack.c.0.s8 %v5312
  %v5314 = vlaneseq
  %v5315 = vshrl.u32 %v5314, 7
  %v5316 = vsub.s32 %v5313, %v5315
  %v5317 = vrot.slane %v5289, %v5316
  %v5318 = vcombine.low %v5296, %v5310
  %v5319 = vcombine.low %v5303, %v5317
  %v5320 = vcombine.low %v4119, %v4126
  %v5321 = vcombine.low %v4127, %v4143
  %v5322 = vcombine.low %v4150, %v4151
  %v5323 = vcombine.low %v4167, %v4174
  %v5325 = vunpack.c.l.s4 1966171168
  %v5326 = vunpack.c.0.s8 %v5325
  %v5327 = vlaneseq
  %v5328 = vshrl.u32 %v5327, 7
  %v5329 = vsub.s32 %v5326, %v5328
  %v5330 = vrot.slane %v5320, %v5329
  %v5332 = vunpack.c.l.s4 1966171168
  %v5333 = vunpack.c.0.s8 %v5332
  %v5334 = vlaneseq
  %v5335 = vshrl.u32 %v5334, 7
  %v5336 = vsub.s32 %v5333, %v5335
  %v5337 = vrot.slane %v5321, %v5336
  %v5339 = vunpack.c.l.s4 1966171168
  %v5340 = vunpack.c.0.s8 %v5339
  %v5341 = vlaneseq
  %v5342 = vshrl.u32 %v5341, 7
  %v5343 = vsub.s32 %v5340, %v5342
  %v5344 = vrot.slane %v5322, %v5343
  %v5346 = vunpack.c.l.s4 1966171168
  %v5347 = vunpack.c.0.s8 %v5346
  %v5348 = vlaneseq
  %v5349 = vshrl.u32 %v5348, 7
  %v5350 = vsub.s32 %v5347, %v5349
  %v5351 = vrot.slane %v5323, %v5350
  %v5352 = vcombine.low %v5330, %v5337
  %v5353 = vcombine.high %v5330, %v5337
  %v5354 = vcombine.low %v5344, %v5351
  %v5355 = vcombine.high %v5344, %v5351
  %v5357 = vunpack.c.l.s4 1966171168
  %v5358 = vunpack.c.0.s8 %v5357
  %v5359 = vlaneseq
  %v5360 = vshrl.u32 %v5359, 7
  %v5361 = vsub.s32 %v5358, %v5360
  %v5362 = vrot.slane %v5352, %v5361
  %v5364 = vunpack.c.l.s4 1966171168
  %v5365 = vunpack.c.0.s8 %v5364
  %v5366 = vlaneseq
  %v5367 = vshrl.u32 %v5366, 7
  %v5368 = vsub.s32 %v5365, %v5367
  %v5369 = vrot.slane %v5353, %v5368
  %v5371 = vunpack.c.l.s4 1966171168
  %v5372 = vunpack.c.0.s8 %v5371
  %v5373 = vlaneseq
  %v5374 = vshrl.u32 %v5373, 7
  %v5375 = vsub.s32 %v5372, %v5374
  %v5376 = vrot.slane %v5354, %v5375
  %v5378 = vunpack.c.l.s4 1966171168
  %v5379 = vunpack.c.0.s8 %v5378
  %v5380 = vlaneseq
  %v5381 = vshrl.u32 %v5380, 7
  %v5382 = vsub.s32 %v5379, %v5381
  %v5383 = vrot.slane %v5355, %v5382
  %v5384 = vcombine.low %v5362, %v5376
  %v5385 = vcombine.low %v5369, %v5383
  %v5386 = vcombine.low %v4175, %v4191
  %v5387 = vcombine.low %v4198, %v4199
  %v5388 = vcombine.low %v4215, %v4222
  %v5389 = vcombine.low %v4223, %v4239
  %v5391 = vunpack.c.l.s4 1966171168
  %v5392 = vunpack.c.0.s8 %v5391
  %v5393 = vlaneseq
  %v5394 = vshrl.u32 %v5393, 7
  %v5395 = vsub.s32 %v5392, %v5394
  %v5396 = vrot.slane %v5386, %v5395
  %v5398 = vunpack.c.l.s4 1966171168
  %v5399 = vunpack.c.0.s8 %v5398
  %v5400 = vlaneseq
  %v5401 = vshrl.u32 %v5400, 7
  %v5402 = vsub.s32 %v5399, %v5401
  %v5403 = vrot.slane %v5387, %v5402
  %v5405 = vunpack.c.l.s4 1966171168
  %v5406 = vunpack.c.0.s8 %v5405
  %v5407 = vlaneseq
  %v5408 = vshrl.u32 %v5407, 7
  %v5409 = vsub.s32 %v5406, %v5408
  %v5410 = vrot.slane %v5388, %v5409
  %v5412 = vunpack.c.l.s4 1966171168
  %v5413 = vunpack.c.0.s8 %v5412
  %v5414 = vlaneseq
  %v5415 = vshrl.u32 %v5414, 7
  %v5416 = vsub.s32 %v5413, %v5415
  %v5417 = vrot.slane %v5389, %v5416
  %v5418 = vcombine.low %v5396, %v5403
  %v5419 = vcombine.high %v5396, %v5403
  %v5420 = vcombine.low %v5410, %v5417
  %v5421 = vcombine.high %v5410, %v5417
  %v5423 = vunpack.c.l.s4 1966171168
  %v5424 = vunpack.c.0.s8 %v5423
  %v5425 = vlaneseq
  %v5426 = vshrl.u32 %v5425, 7
  %v5427 = vsub.s32 %v5424, %v5426
  %v5428 = vrot.slane %v5418, %v5427
  %v5430 = vunpack.c.l.s4 1966171168
  %v5431 = vunpack.c.0.s8 %v5430
  %v5432 = vlaneseq
  %v5433 = vshrl.u32 %v5432, 7
  %v5434 = vsub.s32 %v5431, %v5433
  %v5435 = vrot.slane %v5419, %v5434
  %v5437 = vunpack.c.l.s4 1966171168
  %v5438 = vunpack.c.0.s8 %v5437
  %v5439 = vlaneseq
  %v5440 = vshrl.u32 %v5439, 7
  %v5441 = vsub.s32 %v5438, %v5440
  %v5442 = vrot.slane %v5420, %v5441
  %v5444 = vunpack.c.l.s4 1966171168
  %v5445 = vunpack.c.0.s8 %v5444
  %v5446 = vlaneseq
  %v5447 = vshrl.u32 %v5446, 7
  %v5448 = vsub.s32 %v5445, %v5447
  %v5449 = vrot.slane %v5421, %v5448
  %v5450 = vcombine.low %v5428, %v5442
  %v5451 = vcombine.low %v5435, %v5449
  %v5452 = vcombine.low %v4246, %v4247
  %v5453 = vcombine.low %v4263, %v4270
  %v5454 = vcombine.low %v4271, %v4287
  %v5455 = vcombine.low %v4294, %v4295
  %v5457 = vunpack.c.l.s4 1966171168
  %v5458 = vunpack.c.0.s8 %v5457
  %v5459 = vlaneseq
  %v5460 = vshrl.u32 %v5459, 7
  %v5461 = vsub.s32 %v5458, %v5460
  %v5462 = vrot.slane %v5452, %v5461
  %v5464 = vunpack.c.l.s4 1966171168
  %v5465 = vunpack.c.0.s8 %v5464
  %v5466 = vlaneseq
  %v5467 = vshrl.u32 %v5466, 7
  %v5468 = vsub.s32 %v5465, %v5467
  %v5469 = vrot.slane %v5453, %v5468
  %v5471 = vunpack.c.l.s4 1966171168
  %v5472 = vunpack.c.0.s8 %v5471
  %v5473 = vlaneseq
  %v5474 = vshrl.u32 %v5473, 7
  %v5475 = vsub.s32 %v5472, %v5474
  %v5476 = vrot.slane %v5454, %v5475
  %v5478 = vunpack.c.l.s4 1966171168
  %v5479 = vunpack.c.0.s8 %v5478
  %v5480 = vlaneseq
  %v5481 = vshrl.u32 %v5480, 7
  %v5482 = vsub.s32 %v5479, %v5481
  %v5483 = vrot.slane %v5455, %v5482
  %v5484 = vcombine.low %v5462, %v5469
  %v5485 = vcombine.high %v5462, %v5469
  %v5486 = vcombine.low %v5476, %v5483
  %v5487 = vcombine.high %v5476, %v5483
  %v5489 = vunpack.c.l.s4 1966171168
  %v5490 = vunpack.c.0.s8 %v5489
  %v5491 = vlaneseq
  %v5492 = vshrl.u32 %v5491, 7
  %v5493 = vsub.s32 %v5490, %v5492
  %v5494 = vrot.slane %v5484, %v5493
  %v5496 = vunpack.c.l.s4 1966171168
  %v5497 = vunpack.c.0.s8 %v5496
  %v5498 = vlaneseq
  %v5499 = vshrl.u32 %v5498, 7
  %v5500 = vsub.s32 %v5497, %v5499
  %v5501 = vrot.slane %v5485, %v5500
  %v5503 = vunpack.c.l.s4 1966171168
  %v5504 = vunpack.c.0.s8 %v5503
  %v5505 = vlaneseq
  %v5506 = vshrl.u32 %v5505, 7
  %v5507 = vsub.s32 %v5504, %v5506
  %v5508 = vrot.slane %v5486, %v5507
  %v5510 = vunpack.c.l.s4 1966171168
  %v5511 = vunpack.c.0.s8 %v5510
  %v5512 = vlaneseq
  %v5513 = vshrl.u32 %v5512, 7
  %v5514 = vsub.s32 %v5511, %v5513
  %v5515 = vrot.slane %v5487, %v5514
  %v5516 = vcombine.low %v5494, %v5508
  %v5517 = vcombine.low %v5501, %v5515
  %v5563 = vunpack.c.l.b16 %v4296
  %v5564 = vunpack.c.l.b16 %v4297
  %v5565 = vunpack.c.l.b16 %v4298
  %v5566 = vunpack.c.l.b16 %v4299
  %v5567 = vunpack.c.l.b16 %v4300
  %v5568 = vunpack.c.l.b16 %v4301
  %v5569 = vunpack.c.l.b16 %v4302
  %v5570 = vunpack.c.l.b16 %v4303
  %v5571 = vunpack.c.l.b16 %v4304
  %v5572 = vunpack.c.l.b16 %v4305
  %v5573 = vunpack.c.l.b16 %v4306
  %v5574 = vunpack.c.l.b16 %v4307
  %v5575 = vunpack.c.l.b16 %v4308
  %v5576 = vunpack.c.l.b16 %v4309
  %v5577 = vunpack.c.l.b16 %v4310
  %v5578 = vunpack.c.l.b16 %v4311
  %v5579 = vunpack.c.l.b16 %v4312
  %v5580 = vunpack.c.l.b16 %v4313
  %v5581 = vunpack.c.l.b16 %v4314
  %v5582 = vunpack.c.l.b16 %v4315
  %v5583 = vunpack.c.l.b16 %v4316
  %v5584 = vunpack.c.l.b16 %v4317
  %v5585 = vunpack.c.l.b16 %v4318
  %v5586 = vunpack.c.l.b16 %v4319
  %v5587 = vunpack.c.l.b16 %v4320
  %v5588 = vunpack.c.l.b16 %v4321
  %v5589 = vunpack.c.l.b16 %v4322
  %v5590 = vpack.c.b16 %v5564, %v5563
  %v5591 = vpack.c.b16 %v5566, %v5565
  %v5592 = vpack.c.b16 %v5568, %v5567
  %v5593 = vpack.c.b16 %v5570, %v5569
  %v5594 = vpack.c.b16 %v5572, %v5571
  %v5595 = vpack.c.b16 %v5574, %v5573
  %v5596 = vpack.c.b16 %v5576, %v5575
  %v5597 = vpack.c.b16 %v5578, %v5577
  %v5598 = vpack.c.b16 %v5580, %v5579
  %v5599 = vpack.c.b16 %v5582, %v5581
  %v5600 = vpack.c.b16 %v5584, %v5583
  %v5601 = vpack.c.b16 %v5586, %v5585
  %v5602 = vpack.c.b16 %v5588, %v5587
  %v5603 = vpack.c.b16 %v5589, %v5589
  %vm5617 = vcmask 719872
  %v5619 = vsel %vm5617, %v4395, 0
  %v5622 = vsel %vm5617, %v4461, 0
  %v5625 = vsel %vm5617, %v4527, 0
  %v5628 = vsel %vm5617, %v4593, 0
  %v5631 = vsel %vm5617, %v4659, 0
  %v5634 = vsel %vm5617, %v4725, 0
  %v5637 = vsel %vm5617, %v4791, 0
  %v5640 = vsel %vm5617, %v4857, 0
  %v5643 = vsel %vm5617, %v4923, 0
  %v5646 = vsel %vm5617, %v4989, 0
  %v5649 = vsel %vm5617, %v5055, 0
  %v5652 = vsel %vm5617, %v5121, 0
  %v5655 = vsel %vm5617, %v5187, 0
  %v5658 = vsel %vm5617, %v5253, 0
  %v5661 = vsel %vm5617, %v5319, 0
  %v5664 = vsel %vm5617, %v5385, 0
  %v5667 = vsel %vm5617, %v5451, 0
  %v5670 = vsel %vm5617, %v5517, 0
  %v5673 = vsel %vm376, %v5603, 0
  %5675 = vmatprep.subr.bf16.mxu0 0
  %5676 = vmatpush1.bf16.msra.mxu0 %v5590
  %5677 = vmatprep.subr.bf16.mxu0 0
  %5678 = vmatpush1.bf16.msra.mxu0 %v5591
  %5679 = vmatprep.subr.bf16.mxu0 0
  %5680 = vmatpush1.bf16.msra.mxu0 %v5592
  %5681 = vmatprep.subr.bf16.mxu0 0
  %5682 = vmatpush1.bf16.msra.mxu0 %v5593
  %5683 = vmatprep.subr.bf16.mxu0 0
  %5684 = vmatpush1.bf16.msra.mxu0 %v5594
  %5685 = vmatprep.subr.bf16.mxu0 0
  %5686 = vmatpush1.bf16.msra.mxu0 %v5595
  %5687 = vmatprep.subr.bf16.mxu0 0
  %5688 = vmatpush1.bf16.msra.mxu0 %v5596
  %5689 = vmatprep.subr.bf16.mxu0 0
  %5690 = vmatpush1.bf16.msra.mxu0 %v5597
  %5691 = vmatprep.subr.bf16.mxu0 0
  %5692 = vmatpush1.bf16.msra.mxu0 %v5598
  %5693 = vmatprep.subr.bf16.mxu0 0
  %5694 = vmatpush1.bf16.msra.mxu0 %v5599
  %5695 = vmatprep.subr.bf16.mxu0 0
  %5696 = vmatpush1.bf16.msra.mxu0 %v5600
  %5697 = vmatprep.subr.bf16.mxu0 0
  %5698 = vmatpush1.bf16.msra.mxu0 %v5601
  %5699 = vmatprep.subr.bf16.mxu0 0
  %5700 = vmatpush1.bf16.msra.mxu0 %v5602
  %5701 = vmatprep.subr.bf16.mxu0 0
  %5702 = vmatpush1.bf16.msra.mxu0 %v5673
  %5703 = vmatprep.subr.bf16.mxu0 0
  %5704 = vmatpush1.bf16.msra.mxu0 0
  %5705 = vmatprep.subr.bf16.mxu0 0
  %5706 = vmatpush1.bf16.msra.mxu0 0
  %5707 = vmatprep.mubr.bf16.mxu0 %v5619
  %5708 = vmatmul.mubr.bf16.gmra.mrb[0].mxu0 %v4394
  %v5709 = vpop.f32.mrb[0].mxu0
  %v5710 = vadd.f32 %v4328, %v5709
  %v5711 = vpop.f32.mrb[0].mxu0
  %v5712 = vpop.f32.mrb[0].mxu0
  %v5713 = vadd.f32 %v4328, %v5712
  %v5714 = vpop.f32.mrb[0].mxu0
  %5715 = vmatprep.mubr.bf16.mxu0 %v5622
  %5716 = vmatmul.mubr.bf16.gmra.mrb[0].mxu0 %v4460
  %v5717 = vpop.f32.mrb[0].mxu0
  %v5718 = vadd.f32 %v4328, %v5717
  %v5719 = vpop.f32.mrb[0].mxu0
  %v5720 = vpop.f32.mrb[0].mxu0
  %v5721 = vadd.f32 %v4328, %v5720
  %v5722 = vpop.f32.mrb[0].mxu0
  %5723 = vmatprep.mubr.bf16.mxu0 %v5625
  %5724 = vmatmul.mubr.bf16.gmra.mrb[0].mxu0 %v4526
  %v5725 = vpop.f32.mrb[0].mxu0
  %v5726 = vadd.f32 %v4328, %v5725
  %v5727 = vpop.f32.mrb[0].mxu0
  %v5728 = vpop.f32.mrb[0].mxu0
  %v5729 = vadd.f32 %v4328, %v5728
  %v5730 = vpop.f32.mrb[0].mxu0
  %5731 = vmatprep.mubr.bf16.mxu0 %v5628
  %5732 = vmatmul.mubr.bf16.gmra.mrb[0].mxu0 %v4592
  %v5733 = vpop.f32.mrb[0].mxu0
  %v5734 = vadd.f32 %v4328, %v5733
  %v5735 = vpop.f32.mrb[0].mxu0
  %v5736 = vpop.f32.mrb[0].mxu0
  %v5737 = vadd.f32 %v4328, %v5736
  %v5738 = vpop.f32.mrb[0].mxu0
  %5739 = vmatprep.mubr.bf16.mxu0 %v5631
  %5740 = vmatmul.mubr.bf16.gmra.mrb[0].mxu0 %v4658
  %v5741 = vpop.f32.mrb[0].mxu0
  %v5742 = vadd.f32 %v4328, %v5741
  %v5743 = vpop.f32.mrb[0].mxu0
  %v5744 = vpop.f32.mrb[0].mxu0
  %v5745 = vadd.f32 %v4328, %v5744
  %v5746 = vpop.f32.mrb[0].mxu0
  %5747 = vmatprep.mubr.bf16.mxu0 %v5634
  %5748 = vmatmul.mubr.bf16.gmra.mrb[0].mxu0 %v4724
  %v5749 = vpop.f32.mrb[0].mxu0
  %v5750 = vadd.f32 %v4328, %v5749
  %v5751 = vpop.f32.mrb[0].mxu0
  %v5752 = vpop.f32.mrb[0].mxu0
  %v5753 = vadd.f32 %v4328, %v5752
  %v5754 = vpop.f32.mrb[0].mxu0
  %5755 = vmatprep.mubr.bf16.mxu0 %v5637
  %5756 = vmatmul.mubr.bf16.gmra.mrb[0].mxu0 %v4790
  %v5757 = vpop.f32.mrb[0].mxu0
  %v5758 = vadd.f32 %v4328, %v5757
  %v5759 = vpop.f32.mrb[0].mxu0
  %v5760 = vpop.f32.mrb[0].mxu0
  %v5761 = vadd.f32 %v4328, %v5760
  %v5762 = vpop.f32.mrb[0].mxu0
  %5763 = vmatprep.mubr.bf16.mxu0 %v5640
  %5764 = vmatmul.mubr.bf16.gmra.mrb[0].mxu0 %v4856
  %v5765 = vpop.f32.mrb[0].mxu0
  %v5766 = vadd.f32 %v4328, %v5765
  %v5767 = vpop.f32.mrb[0].mxu0
  %v5768 = vpop.f32.mrb[0].mxu0
  %v5769 = vadd.f32 %v4328, %v5768
  %v5770 = vpop.f32.mrb[0].mxu0
  %5771 = vmatprep.mubr.bf16.mxu0 %v5643
  %5772 = vmatmul.mubr.bf16.gmra.mrb[0].mxu0 %v4922
  %v5773 = vpop.f32.mrb[0].mxu0
  %v5774 = vadd.f32 %v4328, %v5773
  %v5775 = vpop.f32.mrb[0].mxu0
  %v5776 = vpop.f32.mrb[0].mxu0
  %v5777 = vadd.f32 %v4328, %v5776
  %v5778 = vpop.f32.mrb[0].mxu0
  %5779 = vmatprep.mubr.bf16.mxu0 %v5646
  %5780 = vmatmul.mubr.bf16.gmra.mrb[0].mxu0 %v4988
  %v5781 = vpop.f32.mrb[0].mxu0
  %v5782 = vadd.f32 %v4328, %v5781
  %v5783 = vpop.f32.mrb[0].mxu0
  %v5784 = vpop.f32.mrb[0].mxu0
  %v5785 = vadd.f32 %v4328, %v5784
  %v5786 = vpop.f32.mrb[0].mxu0
  %5787 = vmatprep.mubr.bf16.mxu0 %v5649
  %5788 = vmatmul.mubr.bf16.gmra.mrb[0].mxu0 %v5054
  %v5789 = vpop.f32.mrb[0].mxu0
  %v5790 = vadd.f32 %v4328, %v5789
  %v5791 = vpop.f32.mrb[0].mxu0
  %v5792 = vpop.f32.mrb[0].mxu0
  %v5793 = vadd.f32 %v4328, %v5792
  %v5794 = vpop.f32.mrb[0].mxu0
  %5795 = vmatprep.mubr.bf16.mxu0 %v5652
  %5796 = vmatmul.mubr.bf16.gmra.mrb[0].mxu0 %v5120
  %v5797 = vpop.f32.mrb[0].mxu0
  %v5798 = vadd.f32 %v4328, %v5797
  %v5799 = vpop.f32.mrb[0].mxu0
  %v5800 = vpop.f32.mrb[0].mxu0
  %v5801 = vadd.f32 %v4328, %v5800
  %v5802 = vpop.f32.mrb[0].mxu0
  %5803 = vmatprep.mubr.bf16.mxu0 %v5655
  %5804 = vmatmul.mubr.bf16.gmra.mrb[0].mxu0 %v5186
  %v5805 = vpop.f32.mrb[0].mxu0
  %v5806 = vadd.f32 %v4328, %v5805
  %v5807 = vpop.f32.mrb[0].mxu0
  %v5808 = vpop.f32.mrb[0].mxu0
  %v5809 = vadd.f32 %v4328, %v5808
  %v5810 = vpop.f32.mrb[0].mxu0
  %5811 = vmatprep.mubr.bf16.mxu0 %v5658
  %5812 = vmatmul.mubr.bf16.gmra.mrb[0].mxu0 %v5252
  %v5813 = vpop.f32.mrb[0].mxu0
  %v5814 = vadd.f32 %v4328, %v5813
  %v5815 = vpop.f32.mrb[0].mxu0
  %v5816 = vpop.f32.mrb[0].mxu0
  %v5817 = vadd.f32 %v4328, %v5816
  %v5818 = vpop.f32.mrb[0].mxu0
  %5819 = vmatprep.mubr.bf16.mxu0 %v5661
  %5820 = vmatmul.mubr.bf16.gmra.mrb[0].mxu0 %v5318
  %v5821 = vpop.f32.mrb[0].mxu0
  %v5822 = vadd.f32 %v4328, %v5821
  %v5823 = vpop.f32.mrb[0].mxu0
  %v5824 = vpop.f32.mrb[0].mxu0
  %v5825 = vadd.f32 %v4328, %v5824
  %v5826 = vpop.f32.mrb[0].mxu0
  %5827 = vmatprep.mubr.bf16.mxu0 %v5664
  %5828 = vmatmul.mubr.bf16.gmra.mrb[0].mxu0 %v5384
  %v5829 = vpop.f32.mrb[0].mxu0
  %v5830 = vadd.f32 %v4328, %v5829
  %v5831 = vpop.f32.mrb[0].mxu0
  %v5832 = vpop.f32.mrb[0].mxu0
  %v5833 = vadd.f32 %v4328, %v5832
  %v5834 = vpop.f32.mrb[0].mxu0
  %5835 = vmatprep.mubr.bf16.mxu0 %v5667
  %5836 = vmatmul.mubr.bf16.gmra.mrb[0].mxu0 %v5450
  %v5837 = vpop.f32.mrb[0].mxu0
  %v5838 = vadd.f32 %v4328, %v5837
  %v5839 = vpop.f32.mrb[0].mxu0
  %v5840 = vpop.f32.mrb[0].mxu0
  %v5841 = vadd.f32 %v4328, %v5840
  %v5842 = vpop.f32.mrb[0].mxu0
  %5843 = vmatprep.mubr.bf16.mxu0 %v5670
  %5844 = vmatmul.mubr.bf16.gmra.mrb[0].mxu0 %v5516
  %v5845 = vpop.f32.mrb[0].mxu0
  %v5846 = vadd.f32 %v4328, %v5845
  %v5847 = vpop.f32.mrb[0].mxu0
  %v5848 = vpop.f32.mrb[0].mxu0
  %v5849 = vadd.f32 %v4328, %v5848
  %v5850 = vpop.f32.mrb[0].mxu0
  %5851 = vdwg.mxu0
  %v5852 = vmul.f32 %v5710, 0.01
  %v5853 = vmul.f32 %v5713, 0.01
  %v5854 = vmul.f32 %v5718, 0.01
  %v5855 = vmul.f32 %v5721, 0.01
  %v5856 = vmul.f32 %v5726, 0.01
  %v5857 = vmul.f32 %v5729, 0.01
  %v5858 = vmul.f32 %v5734, 0.01
  %v5859 = vmul.f32 %v5737, 0.01
  %v5860 = vmul.f32 %v5742, 0.01
  %v5861 = vmul.f32 %v5745, 0.01
  %v5862 = vmul.f32 %v5750, 0.01
  %v5863 = vmul.f32 %v5753, 0.01
  %v5864 = vmul.f32 %v5758, 0.01
  %v5865 = vmul.f32 %v5761, 0.01
  %v5866 = vmul.f32 %v5766, 0.01
  %v5867 = vmul.f32 %v5769, 0.01
  %v5868 = vmul.f32 %v5774, 0.01
  %v5869 = vmul.f32 %v5777, 0.01
  %v5870 = vmul.f32 %v5782, 0.01
  %v5871 = vmul.f32 %v5785, 0.01
  %v5872 = vmul.f32 %v5790, 0.01
  %v5873 = vmul.f32 %v5793, 0.01
  %v5874 = vmul.f32 %v5798, 0.01
  %v5875 = vmul.f32 %v5801, 0.01
  %v5876 = vmul.f32 %v5806, 0.01
  %v5877 = vmul.f32 %v5809, 0.01
  %v5878 = vmul.f32 %v5814, 0.01
  %v5879 = vmul.f32 %v5817, 0.01
  %v5880 = vmul.f32 %v5822, 0.01
  %v5881 = vmul.f32 %v5825, 0.01
  %v5882 = vmul.f32 %v5830, 0.01
  %v5883 = vmul.f32 %v5833, 0.01
  %v5884 = vmul.f32 %v5838, 0.01
  %v5885 = vmul.f32 %v5841, 0.01
  %v5886 = vmul.f32 %v5846, 0.01
  %v5887 = vmul.f32 %v5849, 0.01
  %v5888 = vmax.f32 %v5710, %v5852
  %v5889 = vmax.f32 %v5713, %v5853
  %v5890 = vmax.f32 %v5718, %v5854
  %v5891 = vmax.f32 %v5721, %v5855
  %v5892 = vmax.f32 %v5726, %v5856
  %v5893 = vmax.f32 %v5729, %v5857
  %v5894 = vmax.f32 %v5734, %v5858
  %v5895 = vmax.f32 %v5737, %v5859
  %v5896 = vmax.f32 %v5742, %v5860
  %v5897 = vmax.f32 %v5745, %v5861
  %v5898 = vmax.f32 %v5750, %v5862
  %v5899 = vmax.f32 %v5753, %v5863
  %v5900 = vmax.f32 %v5758, %v5864
  %v5901 = vmax.f32 %v5761, %v5865
  %v5902 = vmax.f32 %v5766, %v5866
  %v5903 = vmax.f32 %v5769, %v5867
  %v5904 = vmax.f32 %v5774, %v5868
  %v5905 = vmax.f32 %v5777, %v5869
  %v5906 = vmax.f32 %v5782, %v5870
  %v5907 = vmax.f32 %v5785, %v5871
  %v5908 = vmax.f32 %v5790, %v5872
  %v5909 = vmax.f32 %v5793, %v5873
  %v5910 = vmax.f32 %v5798, %v5874
  %v5911 = vmax.f32 %v5801, %v5875
  %v5912 = vmax.f32 %v5806, %v5876
  %v5913 = vmax.f32 %v5809, %v5877
  %v5914 = vmax.f32 %v5814, %v5878
  %v5915 = vmax.f32 %v5817, %v5879
  %v5916 = vmax.f32 %v5822, %v5880
  %v5917 = vmax.f32 %v5825, %v5881
  %v5918 = vmax.f32 %v5830, %v5882
  %v5919 = vmax.f32 %v5833, %v5883
  %v5920 = vmax.f32 %v5838, %v5884
  %v5921 = vmax.f32 %v5841, %v5885
  %v5922 = vmax.f32 %v5846, %v5886
  %v5923 = vmax.f32 %v5849, %v5887
  %v5924 = vpack.c.bf16 %v5889, %v5888
  %v5925 = vpack.c.bf16 %v5891, %v5890
  %v5926 = vpack.c.bf16 %v5893, %v5892
  %v5927 = vpack.c.bf16 %v5895, %v5894
  %v5928 = vpack.c.bf16 %v5897, %v5896
  %v5929 = vpack.c.bf16 %v5899, %v5898
  %v5930 = vpack.c.bf16 %v5901, %v5900
  %v5931 = vpack.c.bf16 %v5903, %v5902
  %v5932 = vpack.c.bf16 %v5905, %v5904
  %v5933 = vpack.c.bf16 %v5907, %v5906
  %v5934 = vpack.c.bf16 %v5909, %v5908
  %v5935 = vpack.c.bf16 %v5911, %v5910
  %v5936 = vpack.c.bf16 %v5913, %v5912
  %v5937 = vpack.c.bf16 %v5915, %v5914
  %v5938 = vpack.c.bf16 %v5917, %v5916
  %v5939 = vpack.c.bf16 %v5919, %v5918
  %v5940 = vpack.c.bf16 %v5921, %v5920
  %v5941 = vpack.c.bf16 %v5923, %v5922
  %v5960 = vcombine.high %v5924, %v5924
  %v5962 = vunpack.c.l.s4 1966171168
  %v5963 = vunpack.c.0.s8 %v5962
  %v5964 = vlaneseq
  %v5965 = vshrl.u32 %v5964, 7
  %v5966 = vsub.s32 %v5963, %v5965
  %v5967 = vrot.slane %v5924, %v5966
  %v5969 = vunpack.c.l.s4 1966171168
  %v5970 = vunpack.c.0.s8 %v5969
  %v5971 = vlaneseq
  %v5972 = vshrl.u32 %v5971, 7
  %v5973 = vsub.s32 %v5970, %v5972
  %v5974 = vrot.slane %v5960, %v5973
  %v5975 = vcombine.high %v5967, %v5967
  %v5976 = vcombine.high %v5974, %v5974
  %v5978 = vunpack.c.l.s4 1966171168
  %v5979 = vunpack.c.0.s8 %v5978
  %v5980 = vlaneseq
  %v5981 = vshrl.u32 %v5980, 7
  %v5982 = vsub.s32 %v5979, %v5981
  %v5983 = vrot.slane %v5967, %v5982
  %v5985 = vunpack.c.l.s4 1966171168
  %v5986 = vunpack.c.0.s8 %v5985
  %v5987 = vlaneseq
  %v5988 = vshrl.u32 %v5987, 7
  %v5989 = vsub.s32 %v5986, %v5988
  %v5990 = vrot.slane %v5974, %v5989
  %v5992 = vunpack.c.l.s4 1966171168
  %v5993 = vunpack.c.0.s8 %v5992
  %v5994 = vlaneseq
  %v5995 = vshrl.u32 %v5994, 7
  %v5996 = vsub.s32 %v5993, %v5995
  %v5997 = vrot.slane %v5975, %v5996
  %v5999 = vunpack.c.l.s4 1966171168
  %v6000 = vunpack.c.0.s8 %v5999
  %v6001 = vlaneseq
  %v6002 = vshrl.u32 %v6001, 7
  %v6003 = vsub.s32 %v6000, %v6002
  %v6004 = vrot.slane %v5976, %v6003
  %v6005 = vcombine.high %v5983, %v5983
  %v6006 = vcombine.high %v5990, %v5990
  %v6007 = vcombine.high %v5997, %v5997
  %v6008 = vcombine.high %v6004, %v6004
  %v6009 = vcombine.high %v5925, %v5925
  %v6011 = vunpack.c.l.s4 1966171168
  %v6012 = vunpack.c.0.s8 %v6011
  %v6013 = vlaneseq
  %v6014 = vshrl.u32 %v6013, 7
  %v6015 = vsub.s32 %v6012, %v6014
  %v6016 = vrot.slane %v5925, %v6015
  %v6018 = vunpack.c.l.s4 1966171168
  %v6019 = vunpack.c.0.s8 %v6018
  %v6020 = vlaneseq
  %v6021 = vshrl.u32 %v6020, 7
  %v6022 = vsub.s32 %v6019, %v6021
  %v6023 = vrot.slane %v6009, %v6022
  %v6024 = vcombine.high %v6016, %v6016
  %v6025 = vcombine.high %v6023, %v6023
  %v6027 = vunpack.c.l.s4 1966171168
  %v6028 = vunpack.c.0.s8 %v6027
  %v6029 = vlaneseq
  %v6030 = vshrl.u32 %v6029, 7
  %v6031 = vsub.s32 %v6028, %v6030
  %v6032 = vrot.slane %v6016, %v6031
  %v6034 = vunpack.c.l.s4 1966171168
  %v6035 = vunpack.c.0.s8 %v6034
  %v6036 = vlaneseq
  %v6037 = vshrl.u32 %v6036, 7
  %v6038 = vsub.s32 %v6035, %v6037
  %v6039 = vrot.slane %v6023, %v6038
  %v6041 = vunpack.c.l.s4 1966171168
  %v6042 = vunpack.c.0.s8 %v6041
  %v6043 = vlaneseq
  %v6044 = vshrl.u32 %v6043, 7
  %v6045 = vsub.s32 %v6042, %v6044
  %v6046 = vrot.slane %v6024, %v6045
  %v6048 = vunpack.c.l.s4 1966171168
  %v6049 = vunpack.c.0.s8 %v6048
  %v6050 = vlaneseq
  %v6051 = vshrl.u32 %v6050, 7
  %v6052 = vsub.s32 %v6049, %v6051
  %v6053 = vrot.slane %v6025, %v6052
  %v6054 = vcombine.high %v6032, %v6032
  %v6055 = vcombine.high %v6039, %v6039
  %v6056 = vcombine.high %v6046, %v6046
  %v6057 = vcombine.high %v6053, %v6053
  %v6058 = vcombine.high %v5926, %v5926
  %v6060 = vunpack.c.l.s4 1966171168
  %v6061 = vunpack.c.0.s8 %v6060
  %v6062 = vlaneseq
  %v6063 = vshrl.u32 %v6062, 7
  %v6064 = vsub.s32 %v6061, %v6063
  %v6065 = vrot.slane %v5926, %v6064
  %v6067 = vunpack.c.l.s4 1966171168
  %v6068 = vunpack.c.0.s8 %v6067
  %v6069 = vlaneseq
  %v6070 = vshrl.u32 %v6069, 7
  %v6071 = vsub.s32 %v6068, %v6070
  %v6072 = vrot.slane %v6058, %v6071
  %v6073 = vcombine.high %v6065, %v6065
  %v6074 = vcombine.high %v6072, %v6072
  %v6076 = vunpack.c.l.s4 1966171168
  %v6077 = vunpack.c.0.s8 %v6076
  %v6078 = vlaneseq
  %v6079 = vshrl.u32 %v6078, 7
  %v6080 = vsub.s32 %v6077, %v6079
  %v6081 = vrot.slane %v6065, %v6080
  %v6083 = vunpack.c.l.s4 1966171168
  %v6084 = vunpack.c.0.s8 %v6083
  %v6085 = vlaneseq
  %v6086 = vshrl.u32 %v6085, 7
  %v6087 = vsub.s32 %v6084, %v6086
  %v6088 = vrot.slane %v6072, %v6087
  %v6090 = vunpack.c.l.s4 1966171168
  %v6091 = vunpack.c.0.s8 %v6090
  %v6092 = vlaneseq
  %v6093 = vshrl.u32 %v6092, 7
  %v6094 = vsub.s32 %v6091, %v6093
  %v6095 = vrot.slane %v6073, %v6094
  %v6097 = vunpack.c.l.s4 1966171168
  %v6098 = vunpack.c.0.s8 %v6097
  %v6099 = vlaneseq
  %v6100 = vshrl.u32 %v6099, 7
  %v6101 = vsub.s32 %v6098, %v6100
  %v6102 = vrot.slane %v6074, %v6101
  %v6103 = vcombine.high %v6081, %v6081
  %v6104 = vcombine.high %v6088, %v6088
  %v6105 = vcombine.high %v6095, %v6095
  %v6106 = vcombine.high %v6102, %v6102
  %v6107 = vcombine.high %v5927, %v5927
  %v6109 = vunpack.c.l.s4 1966171168
  %v6110 = vunpack.c.0.s8 %v6109
  %v6111 = vlaneseq
  %v6112 = vshrl.u32 %v6111, 7
  %v6113 = vsub.s32 %v6110, %v6112
  %v6114 = vrot.slane %v5927, %v6113
  %v6116 = vunpack.c.l.s4 1966171168
  %v6117 = vunpack.c.0.s8 %v6116
  %v6118 = vlaneseq
  %v6119 = vshrl.u32 %v6118, 7
  %v6120 = vsub.s32 %v6117, %v6119
  %v6121 = vrot.slane %v6107, %v6120
  %v6122 = vcombine.high %v6114, %v6114
  %v6123 = vcombine.high %v6121, %v6121
  %v6125 = vunpack.c.l.s4 1966171168
  %v6126 = vunpack.c.0.s8 %v6125
  %v6127 = vlaneseq
  %v6128 = vshrl.u32 %v6127, 7
  %v6129 = vsub.s32 %v6126, %v6128
  %v6130 = vrot.slane %v6114, %v6129
  %v6132 = vunpack.c.l.s4 1966171168
  %v6133 = vunpack.c.0.s8 %v6132
  %v6134 = vlaneseq
  %v6135 = vshrl.u32 %v6134, 7
  %v6136 = vsub.s32 %v6133, %v6135
  %v6137 = vrot.slane %v6121, %v6136
  %v6139 = vunpack.c.l.s4 1966171168
  %v6140 = vunpack.c.0.s8 %v6139
  %v6141 = vlaneseq
  %v6142 = vshrl.u32 %v6141, 7
  %v6143 = vsub.s32 %v6140, %v6142
  %v6144 = vrot.slane %v6122, %v6143
  %v6146 = vunpack.c.l.s4 1966171168
  %v6147 = vunpack.c.0.s8 %v6146
  %v6148 = vlaneseq
  %v6149 = vshrl.u32 %v6148, 7
  %v6150 = vsub.s32 %v6147, %v6149
  %v6151 = vrot.slane %v6123, %v6150
  %v6152 = vcombine.high %v6130, %v6130
  %v6153 = vcombine.high %v6137, %v6137
  %v6154 = vcombine.high %v6144, %v6144
  %v6155 = vcombine.high %v6151, %v6151
  %v6156 = vcombine.high %v5928, %v5928
  %v6158 = vunpack.c.l.s4 1966171168
  %v6159 = vunpack.c.0.s8 %v6158
  %v6160 = vlaneseq
  %v6161 = vshrl.u32 %v6160, 7
  %v6162 = vsub.s32 %v6159, %v6161
  %v6163 = vrot.slane %v5928, %v6162
  %v6165 = vunpack.c.l.s4 1966171168
  %v6166 = vunpack.c.0.s8 %v6165
  %v6167 = vlaneseq
  %v6168 = vshrl.u32 %v6167, 7
  %v6169 = vsub.s32 %v6166, %v6168
  %v6170 = vrot.slane %v6156, %v6169
  %v6171 = vcombine.high %v6163, %v6163
  %v6172 = vcombine.high %v6170, %v6170
  %v6174 = vunpack.c.l.s4 1966171168
  %v6175 = vunpack.c.0.s8 %v6174
  %v6176 = vlaneseq
  %v6177 = vshrl.u32 %v6176, 7
  %v6178 = vsub.s32 %v6175, %v6177
  %v6179 = vrot.slane %v6163, %v6178
  %v6181 = vunpack.c.l.s4 1966171168
  %v6182 = vunpack.c.0.s8 %v6181
  %v6183 = vlaneseq
  %v6184 = vshrl.u32 %v6183, 7
  %v6185 = vsub.s32 %v6182, %v6184
  %v6186 = vrot.slane %v6170, %v6185
  %v6188 = vunpack.c.l.s4 1966171168
  %v6189 = vunpack.c.0.s8 %v6188
  %v6190 = vlaneseq
  %v6191 = vshrl.u32 %v6190, 7
  %v6192 = vsub.s32 %v6189, %v6191
  %v6193 = vrot.slane %v6171, %v6192
  %v6195 = vunpack.c.l.s4 1966171168
  %v6196 = vunpack.c.0.s8 %v6195
  %v6197 = vlaneseq
  %v6198 = vshrl.u32 %v6197, 7
  %v6199 = vsub.s32 %v6196, %v6198
  %v6200 = vrot.slane %v6172, %v6199
  %v6201 = vcombine.high %v6179, %v6179
  %v6202 = vcombine.high %v6186, %v6186
  %v6203 = vcombine.high %v6193, %v6193
  %v6204 = vcombine.high %v6200, %v6200
  %v6205 = vcombine.high %v5929, %v5929
  %v6207 = vunpack.c.l.s4 1966171168
  %v6208 = vunpack.c.0.s8 %v6207
  %v6209 = vlaneseq
  %v6210 = vshrl.u32 %v6209, 7
  %v6211 = vsub.s32 %v6208, %v6210
  %v6212 = vrot.slane %v5929, %v6211
  %v6214 = vunpack.c.l.s4 1966171168
  %v6215 = vunpack.c.0.s8 %v6214
  %v6216 = vlaneseq
  %v6217 = vshrl.u32 %v6216, 7
  %v6218 = vsub.s32 %v6215, %v6217
  %v6219 = vrot.slane %v6205, %v6218
  %v6220 = vcombine.high %v6212, %v6212
  %v6221 = vcombine.high %v6219, %v6219
  %v6223 = vunpack.c.l.s4 1966171168
  %v6224 = vunpack.c.0.s8 %v6223
  %v6225 = vlaneseq
  %v6226 = vshrl.u32 %v6225, 7
  %v6227 = vsub.s32 %v6224, %v6226
  %v6228 = vrot.slane %v6212, %v6227
  %v6230 = vunpack.c.l.s4 1966171168
  %v6231 = vunpack.c.0.s8 %v6230
  %v6232 = vlaneseq
  %v6233 = vshrl.u32 %v6232, 7
  %v6234 = vsub.s32 %v6231, %v6233
  %v6235 = vrot.slane %v6219, %v6234
  %v6237 = vunpack.c.l.s4 1966171168
  %v6238 = vunpack.c.0.s8 %v6237
  %v6239 = vlaneseq
  %v6240 = vshrl.u32 %v6239, 7
  %v6241 = vsub.s32 %v6238, %v6240
  %v6242 = vrot.slane %v6220, %v6241
  %v6244 = vunpack.c.l.s4 1966171168
  %v6245 = vunpack.c.0.s8 %v6244
  %v6246 = vlaneseq
  %v6247 = vshrl.u32 %v6246, 7
  %v6248 = vsub.s32 %v6245, %v6247
  %v6249 = vrot.slane %v6221, %v6248
  %v6250 = vcombine.high %v6228, %v6228
  %v6251 = vcombine.high %v6235, %v6235
  %v6252 = vcombine.high %v6242, %v6242
  %v6253 = vcombine.high %v6249, %v6249
  %v6254 = vcombine.high %v5930, %v5930
  %v6256 = vunpack.c.l.s4 1966171168
  %v6257 = vunpack.c.0.s8 %v6256
  %v6258 = vlaneseq
  %v6259 = vshrl.u32 %v6258, 7
  %v6260 = vsub.s32 %v6257, %v6259
  %v6261 = vrot.slane %v5930, %v6260
  %v6263 = vunpack.c.l.s4 1966171168
  %v6264 = vunpack.c.0.s8 %v6263
  %v6265 = vlaneseq
  %v6266 = vshrl.u32 %v6265, 7
  %v6267 = vsub.s32 %v6264, %v6266
  %v6268 = vrot.slane %v6254, %v6267
  %v6269 = vcombine.high %v6261, %v6261
  %v6270 = vcombine.high %v6268, %v6268
  %v6272 = vunpack.c.l.s4 1966171168
  %v6273 = vunpack.c.0.s8 %v6272
  %v6274 = vlaneseq
  %v6275 = vshrl.u32 %v6274, 7
  %v6276 = vsub.s32 %v6273, %v6275
  %v6277 = vrot.slane %v6261, %v6276
  %v6279 = vunpack.c.l.s4 1966171168
  %v6280 = vunpack.c.0.s8 %v6279
  %v6281 = vlaneseq
  %v6282 = vshrl.u32 %v6281, 7
  %v6283 = vsub.s32 %v6280, %v6282
  %v6284 = vrot.slane %v6268, %v6283
  %v6286 = vunpack.c.l.s4 1966171168
  %v6287 = vunpack.c.0.s8 %v6286
  %v6288 = vlaneseq
  %v6289 = vshrl.u32 %v6288, 7
  %v6290 = vsub.s32 %v6287, %v6289
  %v6291 = vrot.slane %v6269, %v6290
  %v6293 = vunpack.c.l.s4 1966171168
  %v6294 = vunpack.c.0.s8 %v6293
  %v6295 = vlaneseq
  %v6296 = vshrl.u32 %v6295, 7
  %v6297 = vsub.s32 %v6294, %v6296
  %v6298 = vrot.slane %v6270, %v6297
  %v6299 = vcombine.high %v6277, %v6277
  %v6300 = vcombine.high %v6284, %v6284
  %v6301 = vcombine.high %v6291, %v6291
  %v6302 = vcombine.high %v6298, %v6298
  %v6303 = vcombine.high %v5931, %v5931
  %v6305 = vunpack.c.l.s4 1966171168
  %v6306 = vunpack.c.0.s8 %v6305
  %v6307 = vlaneseq
  %v6308 = vshrl.u32 %v6307, 7
  %v6309 = vsub.s32 %v6306, %v6308
  %v6310 = vrot.slane %v5931, %v6309
  %v6312 = vunpack.c.l.s4 1966171168
  %v6313 = vunpack.c.0.s8 %v6312
  %v6314 = vlaneseq
  %v6315 = vshrl.u32 %v6314, 7
  %v6316 = vsub.s32 %v6313, %v6315
  %v6317 = vrot.slane %v6303, %v6316
  %v6318 = vcombine.high %v6310, %v6310
  %v6319 = vcombine.high %v6317, %v6317
  %v6321 = vunpack.c.l.s4 1966171168
  %v6322 = vunpack.c.0.s8 %v6321
  %v6323 = vlaneseq
  %v6324 = vshrl.u32 %v6323, 7
  %v6325 = vsub.s32 %v6322, %v6324
  %v6326 = vrot.slane %v6310, %v6325
  %v6328 = vunpack.c.l.s4 1966171168
  %v6329 = vunpack.c.0.s8 %v6328
  %v6330 = vlaneseq
  %v6331 = vshrl.u32 %v6330, 7
  %v6332 = vsub.s32 %v6329, %v6331
  %v6333 = vrot.slane %v6317, %v6332
  %v6335 = vunpack.c.l.s4 1966171168
  %v6336 = vunpack.c.0.s8 %v6335
  %v6337 = vlaneseq
  %v6338 = vshrl.u32 %v6337, 7
  %v6339 = vsub.s32 %v6336, %v6338
  %v6340 = vrot.slane %v6318, %v6339
  %v6342 = vunpack.c.l.s4 1966171168
  %v6343 = vunpack.c.0.s8 %v6342
  %v6344 = vlaneseq
  %v6345 = vshrl.u32 %v6344, 7
  %v6346 = vsub.s32 %v6343, %v6345
  %v6347 = vrot.slane %v6319, %v6346
  %v6348 = vcombine.high %v6326, %v6326
  %v6349 = vcombine.high %v6333, %v6333
  %v6350 = vcombine.high %v6340, %v6340
  %v6351 = vcombine.high %v6347, %v6347
  %v6352 = vcombine.high %v5932, %v5932
  %v6354 = vunpack.c.l.s4 1966171168
  %v6355 = vunpack.c.0.s8 %v6354
  %v6356 = vlaneseq
  %v6357 = vshrl.u32 %v6356, 7
  %v6358 = vsub.s32 %v6355, %v6357
  %v6359 = vrot.slane %v5932, %v6358
  %v6361 = vunpack.c.l.s4 1966171168
  %v6362 = vunpack.c.0.s8 %v6361
  %v6363 = vlaneseq
  %v6364 = vshrl.u32 %v6363, 7
  %v6365 = vsub.s32 %v6362, %v6364
  %v6366 = vrot.slane %v6352, %v6365
  %v6367 = vcombine.high %v6359, %v6359
  %v6368 = vcombine.high %v6366, %v6366
  %v6370 = vunpack.c.l.s4 1966171168
  %v6371 = vunpack.c.0.s8 %v6370
  %v6372 = vlaneseq
  %v6373 = vshrl.u32 %v6372, 7
  %v6374 = vsub.s32 %v6371, %v6373
  %v6375 = vrot.slane %v6359, %v6374
  %v6377 = vunpack.c.l.s4 1966171168
  %v6378 = vunpack.c.0.s8 %v6377
  %v6379 = vlaneseq
  %v6380 = vshrl.u32 %v6379, 7
  %v6381 = vsub.s32 %v6378, %v6380
  %v6382 = vrot.slane %v6366, %v6381
  %v6384 = vunpack.c.l.s4 1966171168
  %v6385 = vunpack.c.0.s8 %v6384
  %v6386 = vlaneseq
  %v6387 = vshrl.u32 %v6386, 7
  %v6388 = vsub.s32 %v6385, %v6387
  %v6389 = vrot.slane %v6367, %v6388
  %v6391 = vunpack.c.l.s4 1966171168
  %v6392 = vunpack.c.0.s8 %v6391
  %v6393 = vlaneseq
  %v6394 = vshrl.u32 %v6393, 7
  %v6395 = vsub.s32 %v6392, %v6394
  %v6396 = vrot.slane %v6368, %v6395
  %v6397 = vcombine.high %v6375, %v6375
  %v6398 = vcombine.high %v6382, %v6382
  %v6399 = vcombine.high %v6389, %v6389
  %v6400 = vcombine.high %v6396, %v6396
  %v6401 = vcombine.high %v5933, %v5933
  %v6403 = vunpack.c.l.s4 1966171168
  %v6404 = vunpack.c.0.s8 %v6403
  %v6405 = vlaneseq
  %v6406 = vshrl.u32 %v6405, 7
  %v6407 = vsub.s32 %v6404, %v6406
  %v6408 = vrot.slane %v5933, %v6407
  %v6410 = vunpack.c.l.s4 1966171168
  %v6411 = vunpack.c.0.s8 %v6410
  %v6412 = vlaneseq
  %v6413 = vshrl.u32 %v6412, 7
  %v6414 = vsub.s32 %v6411, %v6413
  %v6415 = vrot.slane %v6401, %v6414
  %v6416 = vcombine.high %v6408, %v6408
  %v6417 = vcombine.high %v6415, %v6415
  %v6419 = vunpack.c.l.s4 1966171168
  %v6420 = vunpack.c.0.s8 %v6419
  %v6421 = vlaneseq
  %v6422 = vshrl.u32 %v6421, 7
  %v6423 = vsub.s32 %v6420, %v6422
  %v6424 = vrot.slane %v6408, %v6423
  %v6426 = vunpack.c.l.s4 1966171168
  %v6427 = vunpack.c.0.s8 %v6426
  %v6428 = vlaneseq
  %v6429 = vshrl.u32 %v6428, 7
  %v6430 = vsub.s32 %v6427, %v6429
  %v6431 = vrot.slane %v6415, %v6430
  %v6433 = vunpack.c.l.s4 1966171168
  %v6434 = vunpack.c.0.s8 %v6433
  %v6435 = vlaneseq
  %v6436 = vshrl.u32 %v6435, 7
  %v6437 = vsub.s32 %v6434, %v6436
  %v6438 = vrot.slane %v6416, %v6437
  %v6440 = vunpack.c.l.s4 1966171168
  %v6441 = vunpack.c.0.s8 %v6440
  %v6442 = vlaneseq
  %v6443 = vshrl.u32 %v6442, 7
  %v6444 = vsub.s32 %v6441, %v6443
  %v6445 = vrot.slane %v6417, %v6444
  %v6446 = vcombine.high %v6424, %v6424
  %v6447 = vcombine.high %v6431, %v6431
  %v6448 = vcombine.high %v6438, %v6438
  %v6449 = vcombine.high %v6445, %v6445
  %v6450 = vcombine.high %v5934, %v5934
  %v6452 = vunpack.c.l.s4 1966171168
  %v6453 = vunpack.c.0.s8 %v6452
  %v6454 = vlaneseq
  %v6455 = vshrl.u32 %v6454, 7
  %v6456 = vsub.s32 %v6453, %v6455
  %v6457 = vrot.slane %v5934, %v6456
  %v6459 = vunpack.c.l.s4 1966171168
  %v6460 = vunpack.c.0.s8 %v6459
  %v6461 = vlaneseq
  %v6462 = vshrl.u32 %v6461, 7
  %v6463 = vsub.s32 %v6460, %v6462
  %v6464 = vrot.slane %v6450, %v6463
  %v6465 = vcombine.high %v6457, %v6457
  %v6466 = vcombine.high %v6464, %v6464
  %v6468 = vunpack.c.l.s4 1966171168
  %v6469 = vunpack.c.0.s8 %v6468
  %v6470 = vlaneseq
  %v6471 = vshrl.u32 %v6470, 7
  %v6472 = vsub.s32 %v6469, %v6471
  %v6473 = vrot.slane %v6457, %v6472
  %v6475 = vunpack.c.l.s4 1966171168
  %v6476 = vunpack.c.0.s8 %v6475
  %v6477 = vlaneseq
  %v6478 = vshrl.u32 %v6477, 7
  %v6479 = vsub.s32 %v6476, %v6478
  %v6480 = vrot.slane %v6464, %v6479
  %v6482 = vunpack.c.l.s4 1966171168
  %v6483 = vunpack.c.0.s8 %v6482
  %v6484 = vlaneseq
  %v6485 = vshrl.u32 %v6484, 7
  %v6486 = vsub.s32 %v6483, %v6485
  %v6487 = vrot.slane %v6465, %v6486
  %v6489 = vunpack.c.l.s4 1966171168
  %v6490 = vunpack.c.0.s8 %v6489
  %v6491 = vlaneseq
  %v6492 = vshrl.u32 %v6491, 7
  %v6493 = vsub.s32 %v6490, %v6492
  %v6494 = vrot.slane %v6466, %v6493
  %v6495 = vcombine.high %v6473, %v6473
  %v6496 = vcombine.high %v6480, %v6480
  %v6497 = vcombine.high %v6487, %v6487
  %v6498 = vcombine.high %v6494, %v6494
  %v6499 = vcombine.high %v5935, %v5935
  %v6501 = vunpack.c.l.s4 1966171168
  %v6502 = vunpack.c.0.s8 %v6501
  %v6503 = vlaneseq
  %v6504 = vshrl.u32 %v6503, 7
  %v6505 = vsub.s32 %v6502, %v6504
  %v6506 = vrot.slane %v5935, %v6505
  %v6508 = vunpack.c.l.s4 1966171168
  %v6509 = vunpack.c.0.s8 %v6508
  %v6510 = vlaneseq
  %v6511 = vshrl.u32 %v6510, 7
  %v6512 = vsub.s32 %v6509, %v6511
  %v6513 = vrot.slane %v6499, %v6512
  %v6514 = vcombine.high %v6506, %v6506
  %v6515 = vcombine.high %v6513, %v6513
  %v6517 = vunpack.c.l.s4 1966171168
  %v6518 = vunpack.c.0.s8 %v6517
  %v6519 = vlaneseq
  %v6520 = vshrl.u32 %v6519, 7
  %v6521 = vsub.s32 %v6518, %v6520
  %v6522 = vrot.slane %v6506, %v6521
  %v6524 = vunpack.c.l.s4 1966171168
  %v6525 = vunpack.c.0.s8 %v6524
  %v6526 = vlaneseq
  %v6527 = vshrl.u32 %v6526, 7
  %v6528 = vsub.s32 %v6525, %v6527
  %v6529 = vrot.slane %v6513, %v6528
  %v6531 = vunpack.c.l.s4 1966171168
  %v6532 = vunpack.c.0.s8 %v6531
  %v6533 = vlaneseq
  %v6534 = vshrl.u32 %v6533, 7
  %v6535 = vsub.s32 %v6532, %v6534
  %v6536 = vrot.slane %v6514, %v6535
  %v6538 = vunpack.c.l.s4 1966171168
  %v6539 = vunpack.c.0.s8 %v6538
  %v6540 = vlaneseq
  %v6541 = vshrl.u32 %v6540, 7
  %v6542 = vsub.s32 %v6539, %v6541
  %v6543 = vrot.slane %v6515, %v6542
  %v6544 = vcombine.high %v6522, %v6522
  %v6545 = vcombine.high %v6529, %v6529
  %v6546 = vcombine.high %v6536, %v6536
  %v6547 = vcombine.high %v6543, %v6543
  %v6548 = vcombine.high %v5936, %v5936
  %v6550 = vunpack.c.l.s4 1966171168
  %v6551 = vunpack.c.0.s8 %v6550
  %v6552 = vlaneseq
  %v6553 = vshrl.u32 %v6552, 7
  %v6554 = vsub.s32 %v6551, %v6553
  %v6555 = vrot.slane %v5936, %v6554
  %v6557 = vunpack.c.l.s4 1966171168
  %v6558 = vunpack.c.0.s8 %v6557
  %v6559 = vlaneseq
  %v6560 = vshrl.u32 %v6559, 7
  %v6561 = vsub.s32 %v6558, %v6560
  %v6562 = vrot.slane %v6548, %v6561
  %v6563 = vcombine.high %v6555, %v6555
  %v6564 = vcombine.high %v6562, %v6562
  %v6566 = vunpack.c.l.s4 1966171168
  %v6567 = vunpack.c.0.s8 %v6566
  %v6568 = vlaneseq
  %v6569 = vshrl.u32 %v6568, 7
  %v6570 = vsub.s32 %v6567, %v6569
  %v6571 = vrot.slane %v6555, %v6570
  %v6573 = vunpack.c.l.s4 1966171168
  %v6574 = vunpack.c.0.s8 %v6573
  %v6575 = vlaneseq
  %v6576 = vshrl.u32 %v6575, 7
  %v6577 = vsub.s32 %v6574, %v6576
  %v6578 = vrot.slane %v6562, %v6577
  %v6580 = vunpack.c.l.s4 1966171168
  %v6581 = vunpack.c.0.s8 %v6580
  %v6582 = vlaneseq
  %v6583 = vshrl.u32 %v6582, 7
  %v6584 = vsub.s32 %v6581, %v6583
  %v6585 = vrot.slane %v6563, %v6584
  %v6587 = vunpack.c.l.s4 1966171168
  %v6588 = vunpack.c.0.s8 %v6587
  %v6589 = vlaneseq
  %v6590 = vshrl.u32 %v6589, 7
  %v6591 = vsub.s32 %v6588, %v6590
  %v6592 = vrot.slane %v6564, %v6591
  %v6593 = vcombine.high %v6571, %v6571
  %v6594 = vcombine.high %v6578, %v6578
  %v6595 = vcombine.high %v6585, %v6585
  %v6596 = vcombine.high %v6592, %v6592
  %v6597 = vcombine.high %v5937, %v5937
  %v6599 = vunpack.c.l.s4 1966171168
  %v6600 = vunpack.c.0.s8 %v6599
  %v6601 = vlaneseq
  %v6602 = vshrl.u32 %v6601, 7
  %v6603 = vsub.s32 %v6600, %v6602
  %v6604 = vrot.slane %v5937, %v6603
  %v6606 = vunpack.c.l.s4 1966171168
  %v6607 = vunpack.c.0.s8 %v6606
  %v6608 = vlaneseq
  %v6609 = vshrl.u32 %v6608, 7
  %v6610 = vsub.s32 %v6607, %v6609
  %v6611 = vrot.slane %v6597, %v6610
  %v6612 = vcombine.high %v6604, %v6604
  %v6613 = vcombine.high %v6611, %v6611
  %v6615 = vunpack.c.l.s4 1966171168
  %v6616 = vunpack.c.0.s8 %v6615
  %v6617 = vlaneseq
  %v6618 = vshrl.u32 %v6617, 7
  %v6619 = vsub.s32 %v6616, %v6618
  %v6620 = vrot.slane %v6604, %v6619
  %v6622 = vunpack.c.l.s4 1966171168
  %v6623 = vunpack.c.0.s8 %v6622
  %v6624 = vlaneseq
  %v6625 = vshrl.u32 %v6624, 7
  %v6626 = vsub.s32 %v6623, %v6625
  %v6627 = vrot.slane %v6611, %v6626
  %v6629 = vunpack.c.l.s4 1966171168
  %v6630 = vunpack.c.0.s8 %v6629
  %v6631 = vlaneseq
  %v6632 = vshrl.u32 %v6631, 7
  %v6633 = vsub.s32 %v6630, %v6632
  %v6634 = vrot.slane %v6612, %v6633
  %v6636 = vunpack.c.l.s4 1966171168
  %v6637 = vunpack.c.0.s8 %v6636
  %v6638 = vlaneseq
  %v6639 = vshrl.u32 %v6638, 7
  %v6640 = vsub.s32 %v6637, %v6639
  %v6641 = vrot.slane %v6613, %v6640
  %v6642 = vcombine.high %v6620, %v6620
  %v6643 = vcombine.high %v6627, %v6627
  %v6644 = vcombine.high %v6634, %v6634
  %v6645 = vcombine.high %v6641, %v6641
  %v6646 = vcombine.high %v5938, %v5938
  %v6648 = vunpack.c.l.s4 1966171168
  %v6649 = vunpack.c.0.s8 %v6648
  %v6650 = vlaneseq
  %v6651 = vshrl.u32 %v6650, 7
  %v6652 = vsub.s32 %v6649, %v6651
  %v6653 = vrot.slane %v5938, %v6652
  %v6655 = vunpack.c.l.s4 1966171168
  %v6656 = vunpack.c.0.s8 %v6655
  %v6657 = vlaneseq
  %v6658 = vshrl.u32 %v6657, 7
  %v6659 = vsub.s32 %v6656, %v6658
  %v6660 = vrot.slane %v6646, %v6659
  %v6661 = vcombine.high %v6653, %v6653
  %v6662 = vcombine.high %v6660, %v6660
  %v6664 = vunpack.c.l.s4 1966171168
  %v6665 = vunpack.c.0.s8 %v6664
  %v6666 = vlaneseq
  %v6667 = vshrl.u32 %v6666, 7
  %v6668 = vsub.s32 %v6665, %v6667
  %v6669 = vrot.slane %v6653, %v6668
  %v6671 = vunpack.c.l.s4 1966171168
  %v6672 = vunpack.c.0.s8 %v6671
  %v6673 = vlaneseq
  %v6674 = vshrl.u32 %v6673, 7
  %v6675 = vsub.s32 %v6672, %v6674
  %v6676 = vrot.slane %v6660, %v6675
  %v6678 = vunpack.c.l.s4 1966171168
  %v6679 = vunpack.c.0.s8 %v6678
  %v6680 = vlaneseq
  %v6681 = vshrl.u32 %v6680, 7
  %v6682 = vsub.s32 %v6679, %v6681
  %v6683 = vrot.slane %v6661, %v6682
  %v6685 = vunpack.c.l.s4 1966171168
  %v6686 = vunpack.c.0.s8 %v6685
  %v6687 = vlaneseq
  %v6688 = vshrl.u32 %v6687, 7
  %v6689 = vsub.s32 %v6686, %v6688
  %v6690 = vrot.slane %v6662, %v6689
  %v6691 = vcombine.high %v6669, %v6669
  %v6692 = vcombine.high %v6676, %v6676
  %v6693 = vcombine.high %v6683, %v6683
  %v6694 = vcombine.high %v6690, %v6690
  %v6695 = vcombine.high %v5939, %v5939
  %v6697 = vunpack.c.l.s4 1966171168
  %v6698 = vunpack.c.0.s8 %v6697
  %v6699 = vlaneseq
  %v6700 = vshrl.u32 %v6699, 7
  %v6701 = vsub.s32 %v6698, %v6700
  %v6702 = vrot.slane %v5939, %v6701
  %v6704 = vunpack.c.l.s4 1966171168
  %v6705 = vunpack.c.0.s8 %v6704
  %v6706 = vlaneseq
  %v6707 = vshrl.u32 %v6706, 7
  %v6708 = vsub.s32 %v6705, %v6707
  %v6709 = vrot.slane %v6695, %v6708
  %v6710 = vcombine.high %v6702, %v6702
  %v6711 = vcombine.high %v6709, %v6709
  %v6713 = vunpack.c.l.s4 1966171168
  %v6714 = vunpack.c.0.s8 %v6713
  %v6715 = vlaneseq
  %v6716 = vshrl.u32 %v6715, 7
  %v6717 = vsub.s32 %v6714, %v6716
  %v6718 = vrot.slane %v6702, %v6717
  %v6720 = vunpack.c.l.s4 1966171168
  %v6721 = vunpack.c.0.s8 %v6720
  %v6722 = vlaneseq
  %v6723 = vshrl.u32 %v6722, 7
  %v6724 = vsub.s32 %v6721, %v6723
  %v6725 = vrot.slane %v6709, %v6724
  %v6727 = vunpack.c.l.s4 1966171168
  %v6728 = vunpack.c.0.s8 %v6727
  %v6729 = vlaneseq
  %v6730 = vshrl.u32 %v6729, 7
  %v6731 = vsub.s32 %v6728, %v6730
  %v6732 = vrot.slane %v6710, %v6731
  %v6734 = vunpack.c.l.s4 1966171168
  %v6735 = vunpack.c.0.s8 %v6734
  %v6736 = vlaneseq
  %v6737 = vshrl.u32 %v6736, 7
  %v6738 = vsub.s32 %v6735, %v6737
  %v6739 = vrot.slane %v6711, %v6738
  %v6740 = vcombine.high %v6718, %v6718
  %v6741 = vcombine.high %v6725, %v6725
  %v6742 = vcombine.high %v6732, %v6732
  %v6743 = vcombine.high %v6739, %v6739
  %v6744 = vcombine.high %v5940, %v5940
  %v6746 = vunpack.c.l.s4 1966171168
  %v6747 = vunpack.c.0.s8 %v6746
  %v6748 = vlaneseq
  %v6749 = vshrl.u32 %v6748, 7
  %v6750 = vsub.s32 %v6747, %v6749
  %v6751 = vrot.slane %v5940, %v6750
  %v6753 = vunpack.c.l.s4 1966171168
  %v6754 = vunpack.c.0.s8 %v6753
  %v6755 = vlaneseq
  %v6756 = vshrl.u32 %v6755, 7
  %v6757 = vsub.s32 %v6754, %v6756
  %v6758 = vrot.slane %v6744, %v6757
  %v6759 = vcombine.high %v6751, %v6751
  %v6760 = vcombine.high %v6758, %v6758
  %v6762 = vunpack.c.l.s4 1966171168
  %v6763 = vunpack.c.0.s8 %v6762
  %v6764 = vlaneseq
  %v6765 = vshrl.u32 %v6764, 7
  %v6766 = vsub.s32 %v6763, %v6765
  %v6767 = vrot.slane %v6751, %v6766
  %v6769 = vunpack.c.l.s4 1966171168
  %v6770 = vunpack.c.0.s8 %v6769
  %v6771 = vlaneseq
  %v6772 = vshrl.u32 %v6771, 7
  %v6773 = vsub.s32 %v6770, %v6772
  %v6774 = vrot.slane %v6758, %v6773
  %v6776 = vunpack.c.l.s4 1966171168
  %v6777 = vunpack.c.0.s8 %v6776
  %v6778 = vlaneseq
  %v6779 = vshrl.u32 %v6778, 7
  %v6780 = vsub.s32 %v6777, %v6779
  %v6781 = vrot.slane %v6759, %v6780
  %v6783 = vunpack.c.l.s4 1966171168
  %v6784 = vunpack.c.0.s8 %v6783
  %v6785 = vlaneseq
  %v6786 = vshrl.u32 %v6785, 7
  %v6787 = vsub.s32 %v6784, %v6786
  %v6788 = vrot.slane %v6760, %v6787
  %v6789 = vcombine.high %v6767, %v6767
  %v6790 = vcombine.high %v6774, %v6774
  %v6791 = vcombine.high %v6781, %v6781
  %v6792 = vcombine.high %v6788, %v6788
  %v6793 = vcombine.high %v5941, %v5941
  %v6795 = vunpack.c.l.s4 1966171168
  %v6796 = vunpack.c.0.s8 %v6795
  %v6797 = vlaneseq
  %v6798 = vshrl.u32 %v6797, 7
  %v6799 = vsub.s32 %v6796, %v6798
  %v6800 = vrot.slane %v5941, %v6799
  %v6802 = vunpack.c.l.s4 1966171168
  %v6803 = vunpack.c.0.s8 %v6802
  %v6804 = vlaneseq
  %v6805 = vshrl.u32 %v6804, 7
  %v6806 = vsub.s32 %v6803, %v6805
  %v6807 = vrot.slane %v6793, %v6806
  %v6808 = vcombine.high %v6800, %v6800
  %v6809 = vcombine.high %v6807, %v6807
  %v6811 = vunpack.c.l.s4 1966171168
  %v6812 = vunpack.c.0.s8 %v6811
  %v6813 = vlaneseq
  %v6814 = vshrl.u32 %v6813, 7
  %v6815 = vsub.s32 %v6812, %v6814
  %v6816 = vrot.slane %v6800, %v6815
  %v6818 = vunpack.c.l.s4 1966171168
  %v6819 = vunpack.c.0.s8 %v6818
  %v6820 = vlaneseq
  %v6821 = vshrl.u32 %v6820, 7
  %v6822 = vsub.s32 %v6819, %v6821
  %v6823 = vrot.slane %v6807, %v6822
  %v6825 = vunpack.c.l.s4 1966171168
  %v6826 = vunpack.c.0.s8 %v6825
  %v6827 = vlaneseq
  %v6828 = vshrl.u32 %v6827, 7
  %v6829 = vsub.s32 %v6826, %v6828
  %v6830 = vrot.slane %v6808, %v6829
  %v6832 = vunpack.c.l.s4 1966171168
  %v6833 = vunpack.c.0.s8 %v6832
  %v6834 = vlaneseq
  %v6835 = vshrl.u32 %v6834, 7
  %v6836 = vsub.s32 %v6833, %v6835
  %v6837 = vrot.slane %v6809, %v6836
  %v6838 = vcombine.high %v6816, %v6816
  %v6839 = vcombine.high %v6823, %v6823
  %v6840 = vcombine.high %v6830, %v6830
  %v6841 = vcombine.high %v6837, %v6837
  %v6842 = vcombine.low %v5983, %v5997
  %v6844 = vunpack.c.l.s4 1966171168
  %v6845 = vunpack.c.0.s8 %v6844
  %v6846 = vlaneseq
  %v6847 = vshrl.u32 %v6846, 7
  %v6848 = vsub.s32 %v6845, %v6847
  %v6849 = vrot.slane %v6842, %v6848
  %v6851 = vunpack.c.l.s4 1966171168
  %v6852 = vunpack.c.0.s8 %v6851
  %v6853 = vlaneseq
  %v6854 = vshrl.u32 %v6853, 7
  %v6855 = vsub.s32 %v6852, %v6854
  %v6856 = vrot.slane %v6849, %v6855
  %v6857 = vcombine.low %v6007, %v5990
  %v6859 = vunpack.c.l.s4 1966171168
  %v6860 = vunpack.c.0.s8 %v6859
  %v6861 = vlaneseq
  %v6862 = vshrl.u32 %v6861, 7
  %v6863 = vsub.s32 %v6860, %v6862
  %v6864 = vrot.slane %v6857, %v6863
  %v6866 = vunpack.c.l.s4 1966171168
  %v6867 = vunpack.c.0.s8 %v6866
  %v6868 = vlaneseq
  %v6869 = vshrl.u32 %v6868, 7
  %v6870 = vsub.s32 %v6867, %v6869
  %v6871 = vrot.slane %v6864, %v6870
  %v6872 = vcombine.low %v6006, %v6008
  %v6874 = vunpack.c.l.s4 1966171168
  %v6875 = vunpack.c.0.s8 %v6874
  %v6876 = vlaneseq
  %v6877 = vshrl.u32 %v6876, 7
  %v6878 = vsub.s32 %v6875, %v6877
  %v6879 = vrot.slane %v6872, %v6878
  %v6881 = vunpack.c.l.s4 1966171168
  %v6882 = vunpack.c.0.s8 %v6881
  %v6883 = vlaneseq
  %v6884 = vshrl.u32 %v6883, 7
  %v6885 = vsub.s32 %v6882, %v6884
  %v6886 = vrot.slane %v6879, %v6885
  %v6887 = vcombine.low %v6046, %v6054
  %v6889 = vunpack.c.l.s4 1966171168
  %v6890 = vunpack.c.0.s8 %v6889
  %v6891 = vlaneseq
  %v6892 = vshrl.u32 %v6891, 7
  %v6893 = vsub.s32 %v6890, %v6892
  %v6894 = vrot.slane %v6887, %v6893
  %v6896 = vunpack.c.l.s4 1966171168
  %v6897 = vunpack.c.0.s8 %v6896
  %v6898 = vlaneseq
  %v6899 = vshrl.u32 %v6898, 7
  %v6900 = vsub.s32 %v6897, %v6899
  %v6901 = vrot.slane %v6894, %v6900
  %v6902 = vcombine.low %v6103, %v6105
  %v6904 = vunpack.c.l.s4 1966171168
  %v6905 = vunpack.c.0.s8 %v6904
  %v6906 = vlaneseq
  %v6907 = vshrl.u32 %v6906, 7
  %v6908 = vsub.s32 %v6905, %v6907
  %v6909 = vrot.slane %v6902, %v6908
  %v6911 = vunpack.c.l.s4 1966171168
  %v6912 = vunpack.c.0.s8 %v6911
  %v6913 = vlaneseq
  %v6914 = vshrl.u32 %v6913, 7
  %v6915 = vsub.s32 %v6912, %v6914
  %v6916 = vrot.slane %v6909, %v6915
  %v6917 = vcombine.low %v6102, %v6104
  %v6919 = vunpack.c.l.s4 1966171168
  %v6920 = vunpack.c.0.s8 %v6919
  %v6921 = vlaneseq
  %v6922 = vshrl.u32 %v6921, 7
  %v6923 = vsub.s32 %v6920, %v6922
  %v6924 = vrot.slane %v6917, %v6923
  %v6926 = vunpack.c.l.s4 1966171168
  %v6927 = vunpack.c.0.s8 %v6926
  %v6928 = vlaneseq
  %v6929 = vshrl.u32 %v6928, 7
  %v6930 = vsub.s32 %v6927, %v6929
  %v6931 = vrot.slane %v6924, %v6930
  %v6932 = vcombine.low %v6130, %v6144
  %v6934 = vunpack.c.l.s4 1966171168
  %v6935 = vunpack.c.0.s8 %v6934
  %v6936 = vlaneseq
  %v6937 = vshrl.u32 %v6936, 7
  %v6938 = vsub.s32 %v6935, %v6937
  %v6939 = vrot.slane %v6932, %v6938
  %v6941 = vunpack.c.l.s4 1966171168
  %v6942 = vunpack.c.0.s8 %v6941
  %v6943 = vlaneseq
  %v6944 = vshrl.u32 %v6943, 7
  %v6945 = vsub.s32 %v6942, %v6944
  %v6946 = vrot.slane %v6939, %v6945
  %v6947 = vcombine.low %v6154, %v6137
  %v6949 = vunpack.c.l.s4 1966171168
  %v6950 = vunpack.c.0.s8 %v6949
  %v6951 = vlaneseq
  %v6952 = vshrl.u32 %v6951, 7
  %v6953 = vsub.s32 %v6950, %v6952
  %v6954 = vrot.slane %v6947, %v6953
  %v6956 = vunpack.c.l.s4 1966171168
  %v6957 = vunpack.c.0.s8 %v6956
  %v6958 = vlaneseq
  %v6959 = vshrl.u32 %v6958, 7
  %v6960 = vsub.s32 %v6957, %v6959
  %v6961 = vrot.slane %v6954, %v6960
  %v6962 = vcombine.low %v6186, %v6200
  %v6964 = vunpack.c.l.s4 1966171168
  %v6965 = vunpack.c.0.s8 %v6964
  %v6966 = vlaneseq
  %v6967 = vshrl.u32 %v6966, 7
  %v6968 = vsub.s32 %v6965, %v6967
  %v6969 = vrot.slane %v6962, %v6968
  %v6971 = vunpack.c.l.s4 1966171168
  %v6972 = vunpack.c.0.s8 %v6971
  %v6973 = vlaneseq
  %v6974 = vshrl.u32 %v6973, 7
  %v6975 = vsub.s32 %v6972, %v6974
  %v6976 = vrot.slane %v6969, %v6975
  %v6977 = vcombine.low %v6204, %v6228
  %v6979 = vunpack.c.l.s4 1966171168
  %v6980 = vunpack.c.0.s8 %v6979
  %v6981 = vlaneseq
  %v6982 = vshrl.u32 %v6981, 7
  %v6983 = vsub.s32 %v6980, %v6982
  %v6984 = vrot.slane %v6977, %v6983
  %v6986 = vunpack.c.l.s4 1966171168
  %v6987 = vunpack.c.0.s8 %v6986
  %v6988 = vlaneseq
  %v6989 = vshrl.u32 %v6988, 7
  %v6990 = vsub.s32 %v6987, %v6989
  %v6991 = vrot.slane %v6984, %v6990
  %v6992 = vcombine.low %v6250, %v6252
  %v6994 = vunpack.c.l.s4 1966171168
  %v6995 = vunpack.c.0.s8 %v6994
  %v6996 = vlaneseq
  %v6997 = vshrl.u32 %v6996, 7
  %v6998 = vsub.s32 %v6995, %v6997
  %v6999 = vrot.slane %v6992, %v6998
  %v7001 = vunpack.c.l.s4 1966171168
  %v7002 = vunpack.c.0.s8 %v7001
  %v7003 = vlaneseq
  %v7004 = vshrl.u32 %v7003, 7
  %v7005 = vsub.s32 %v7002, %v7004
  %v7006 = vrot.slane %v6999, %v7005
  %v7007 = vcombine.low %v6249, %v6251
  %v7009 = vunpack.c.l.s4 1966171168
  %v7010 = vunpack.c.0.s8 %v7009
  %v7011 = vlaneseq
  %v7012 = vshrl.u32 %v7011, 7
  %v7013 = vsub.s32 %v7010, %v7012
  %v7014 = vrot.slane %v7007, %v7013
  %v7016 = vunpack.c.l.s4 1966171168
  %v7017 = vunpack.c.0.s8 %v7016
  %v7018 = vlaneseq
  %v7019 = vshrl.u32 %v7018, 7
  %v7020 = vsub.s32 %v7017, %v7019
  %v7021 = vrot.slane %v7014, %v7020
  %v7022 = vcombine.low %v6300, %v6302
  %v7024 = vunpack.c.l.s4 1966171168
  %v7025 = vunpack.c.0.s8 %v7024
  %v7026 = vlaneseq
  %v7027 = vshrl.u32 %v7026, 7
  %v7028 = vsub.s32 %v7025, %v7027
  %v7029 = vrot.slane %v7022, %v7028
  %v7031 = vunpack.c.l.s4 1966171168
  %v7032 = vunpack.c.0.s8 %v7031
  %v7033 = vlaneseq
  %v7034 = vshrl.u32 %v7033, 7
  %v7035 = vsub.s32 %v7032, %v7034
  %v7036 = vrot.slane %v7029, %v7035
  %v7037 = vcombine.low %v6340, %v6348
  %v7039 = vunpack.c.l.s4 1966171168
  %v7040 = vunpack.c.0.s8 %v7039
  %v7041 = vlaneseq
  %v7042 = vshrl.u32 %v7041, 7
  %v7043 = vsub.s32 %v7040, %v7042
  %v7044 = vrot.slane %v7037, %v7043
  %v7046 = vunpack.c.l.s4 1966171168
  %v7047 = vunpack.c.0.s8 %v7046
  %v7048 = vlaneseq
  %v7049 = vshrl.u32 %v7048, 7
  %v7050 = vsub.s32 %v7047, %v7049
  %v7051 = vrot.slane %v7044, %v7050
  %v7052 = vcombine.low %v6333, %v6347
  %v7054 = vunpack.c.l.s4 1966171168
  %v7055 = vunpack.c.0.s8 %v7054
  %v7056 = vlaneseq
  %v7057 = vshrl.u32 %v7056, 7
  %v7058 = vsub.s32 %v7055, %v7057
  %v7059 = vrot.slane %v7052, %v7058
  %v7061 = vunpack.c.l.s4 1966171168
  %v7062 = vunpack.c.0.s8 %v7061
  %v7063 = vlaneseq
  %v7064 = vshrl.u32 %v7063, 7
  %v7065 = vsub.s32 %v7062, %v7064
  %v7066 = vrot.slane %v7059, %v7065
  %v7067 = vcombine.low %v6351, %v6375
  %v7069 = vunpack.c.l.s4 1966171168
  %v7070 = vunpack.c.0.s8 %v7069
  %v7071 = vlaneseq
  %v7072 = vshrl.u32 %v7071, 7
  %v7073 = vsub.s32 %v7070, %v7072
  %v7074 = vrot.slane %v7067, %v7073
  %v7076 = vunpack.c.l.s4 1966171168
  %v7077 = vunpack.c.0.s8 %v7076
  %v7078 = vlaneseq
  %v7079 = vshrl.u32 %v7078, 7
  %v7080 = vsub.s32 %v7077, %v7079
  %v7081 = vrot.slane %v7074, %v7080
  %v7082 = vcombine.low %v6424, %v6438
  %v7084 = vunpack.c.l.s4 1966171168
  %v7085 = vunpack.c.0.s8 %v7084
  %v7086 = vlaneseq
  %v7087 = vshrl.u32 %v7086, 7
  %v7088 = vsub.s32 %v7085, %v7087
  %v7089 = vrot.slane %v7082, %v7088
  %v7091 = vunpack.c.l.s4 1966171168
  %v7092 = vunpack.c.0.s8 %v7091
  %v7093 = vlaneseq
  %v7094 = vshrl.u32 %v7093, 7
  %v7095 = vsub.s32 %v7092, %v7094
  %v7096 = vrot.slane %v7089, %v7095
  %v7097 = vcombine.low %v6448, %v6431
  %v7099 = vunpack.c.l.s4 1966171168
  %v7100 = vunpack.c.0.s8 %v7099
  %v7101 = vlaneseq
  %v7102 = vshrl.u32 %v7101, 7
  %v7103 = vsub.s32 %v7100, %v7102
  %v7104 = vrot.slane %v7097, %v7103
  %v7106 = vunpack.c.l.s4 1966171168
  %v7107 = vunpack.c.0.s8 %v7106
  %v7108 = vlaneseq
  %v7109 = vshrl.u32 %v7108, 7
  %v7110 = vsub.s32 %v7107, %v7109
  %v7111 = vrot.slane %v7104, %v7110
  %v7112 = vcombine.low %v6447, %v6449
  %v7114 = vunpack.c.l.s4 1966171168
  %v7115 = vunpack.c.0.s8 %v7114
  %v7116 = vlaneseq
  %v7117 = vshrl.u32 %v7116, 7
  %v7118 = vsub.s32 %v7115, %v7117
  %v7119 = vrot.slane %v7112, %v7118
  %v7121 = vunpack.c.l.s4 1966171168
  %v7122 = vunpack.c.0.s8 %v7121
  %v7123 = vlaneseq
  %v7124 = vshrl.u32 %v7123, 7
  %v7125 = vsub.s32 %v7122, %v7124
  %v7126 = vrot.slane %v7119, %v7125
  %v7127 = vcombine.low %v6487, %v6495
  %v7129 = vunpack.c.l.s4 1966171168
  %v7130 = vunpack.c.0.s8 %v7129
  %v7131 = vlaneseq
  %v7132 = vshrl.u32 %v7131, 7
  %v7133 = vsub.s32 %v7130, %v7132
  %v7134 = vrot.slane %v7127, %v7133
  %v7136 = vunpack.c.l.s4 1966171168
  %v7137 = vunpack.c.0.s8 %v7136
  %v7138 = vlaneseq
  %v7139 = vshrl.u32 %v7138, 7
  %v7140 = vsub.s32 %v7137, %v7139
  %v7141 = vrot.slane %v7134, %v7140
  %v7142 = vcombine.low %v6544, %v6546
  %v7144 = vunpack.c.l.s4 1966171168
  %v7145 = vunpack.c.0.s8 %v7144
  %v7146 = vlaneseq
  %v7147 = vshrl.u32 %v7146, 7
  %v7148 = vsub.s32 %v7145, %v7147
  %v7149 = vrot.slane %v7142, %v7148
  %v7151 = vunpack.c.l.s4 1966171168
  %v7152 = vunpack.c.0.s8 %v7151
  %v7153 = vlaneseq
  %v7154 = vshrl.u32 %v7153, 7
  %v7155 = vsub.s32 %v7152, %v7154
  %v7156 = vrot.slane %v7149, %v7155
  %v7157 = vcombine.low %v6543, %v6545
  %v7159 = vunpack.c.l.s4 1966171168
  %v7160 = vunpack.c.0.s8 %v7159
  %v7161 = vlaneseq
  %v7162 = vshrl.u32 %v7161, 7
  %v7163 = vsub.s32 %v7160, %v7162
  %v7164 = vrot.slane %v7157, %v7163
  %v7166 = vunpack.c.l.s4 1966171168
  %v7167 = vunpack.c.0.s8 %v7166
  %v7168 = vlaneseq
  %v7169 = vshrl.u32 %v7168, 7
  %v7170 = vsub.s32 %v7167, %v7169
  %v7171 = vrot.slane %v7164, %v7170
  %v7172 = vcombine.low %v6571, %v6585
  %v7174 = vunpack.c.l.s4 1966171168
  %v7175 = vunpack.c.0.s8 %v7174
  %v7176 = vlaneseq
  %v7177 = vshrl.u32 %v7176, 7
  %v7178 = vsub.s32 %v7175, %v7177
  %v7179 = vrot.slane %v7172, %v7178
  %v7181 = vunpack.c.l.s4 1966171168
  %v7182 = vunpack.c.0.s8 %v7181
  %v7183 = vlaneseq
  %v7184 = vshrl.u32 %v7183, 7
  %v7185 = vsub.s32 %v7182, %v7184
  %v7186 = vrot.slane %v7179, %v7185
  %v7187 = vcombine.low %v6595, %v6578
  %v7189 = vunpack.c.l.s4 1966171168
  %v7190 = vunpack.c.0.s8 %v7189
  %v7191 = vlaneseq
  %v7192 = vshrl.u32 %v7191, 7
  %v7193 = vsub.s32 %v7190, %v7192
  %v7194 = vrot.slane %v7187, %v7193
  %v7196 = vunpack.c.l.s4 1966171168
  %v7197 = vunpack.c.0.s8 %v7196
  %v7198 = vlaneseq
  %v7199 = vshrl.u32 %v7198, 7
  %v7200 = vsub.s32 %v7197, %v7199
  %v7201 = vrot.slane %v7194, %v7200
  %v7202 = vcombine.low %v6627, %v6641
  %v7204 = vunpack.c.l.s4 1966171168
  %v7205 = vunpack.c.0.s8 %v7204
  %v7206 = vlaneseq
  %v7207 = vshrl.u32 %v7206, 7
  %v7208 = vsub.s32 %v7205, %v7207
  %v7209 = vrot.slane %v7202, %v7208
  %v7211 = vunpack.c.l.s4 1966171168
  %v7212 = vunpack.c.0.s8 %v7211
  %v7213 = vlaneseq
  %v7214 = vshrl.u32 %v7213, 7
  %v7215 = vsub.s32 %v7212, %v7214
  %v7216 = vrot.slane %v7209, %v7215
  %v7217 = vcombine.low %v6645, %v6669
  %v7219 = vunpack.c.l.s4 1966171168
  %v7220 = vunpack.c.0.s8 %v7219
  %v7221 = vlaneseq
  %v7222 = vshrl.u32 %v7221, 7
  %v7223 = vsub.s32 %v7220, %v7222
  %v7224 = vrot.slane %v7217, %v7223
  %v7226 = vunpack.c.l.s4 1966171168
  %v7227 = vunpack.c.0.s8 %v7226
  %v7228 = vlaneseq
  %v7229 = vshrl.u32 %v7228, 7
  %v7230 = vsub.s32 %v7227, %v7229
  %v7231 = vrot.slane %v7224, %v7230
  %v7232 = vcombine.low %v6691, %v6693
  %v7234 = vunpack.c.l.s4 1966171168
  %v7235 = vunpack.c.0.s8 %v7234
  %v7236 = vlaneseq
  %v7237 = vshrl.u32 %v7236, 7
  %v7238 = vsub.s32 %v7235, %v7237
  %v7239 = vrot.slane %v7232, %v7238
  %v7241 = vunpack.c.l.s4 1966171168
  %v7242 = vunpack.c.0.s8 %v7241
  %v7243 = vlaneseq
  %v7244 = vshrl.u32 %v7243, 7
  %v7245 = vsub.s32 %v7242, %v7244
  %v7246 = vrot.slane %v7239, %v7245
  %v7247 = vcombine.low %v6690, %v6692
  %v7249 = vunpack.c.l.s4 1966171168
  %v7250 = vunpack.c.0.s8 %v7249
  %v7251 = vlaneseq
  %v7252 = vshrl.u32 %v7251, 7
  %v7253 = vsub.s32 %v7250, %v7252
  %v7254 = vrot.slane %v7247, %v7253
  %v7256 = vunpack.c.l.s4 1966171168
  %v7257 = vunpack.c.0.s8 %v7256
  %v7258 = vlaneseq
  %v7259 = vshrl.u32 %v7258, 7
  %v7260 = vsub.s32 %v7257, %v7259
  %v7261 = vrot.slane %v7254, %v7260
  %v7262 = vcombine.low %v6741, %v6743
  %v7264 = vunpack.c.l.s4 1966171168
  %v7265 = vunpack.c.0.s8 %v7264
  %v7266 = vlaneseq
  %v7267 = vshrl.u32 %v7266, 7
  %v7268 = vsub.s32 %v7265, %v7267
  %v7269 = vrot.slane %v7262, %v7268
  %v7271 = vunpack.c.l.s4 1966171168
  %v7272 = vunpack.c.0.s8 %v7271
  %v7273 = vlaneseq
  %v7274 = vshrl.u32 %v7273, 7
  %v7275 = vsub.s32 %v7272, %v7274
  %v7276 = vrot.slane %v7269, %v7275
  %v7277 = vcombine.low %v6781, %v6789
  %v7279 = vunpack.c.l.s4 1966171168
  %v7280 = vunpack.c.0.s8 %v7279
  %v7281 = vlaneseq
  %v7282 = vshrl.u32 %v7281, 7
  %v7283 = vsub.s32 %v7280, %v7282
  %v7284 = vrot.slane %v7277, %v7283
  %v7286 = vunpack.c.l.s4 1966171168
  %v7287 = vunpack.c.0.s8 %v7286
  %v7288 = vlaneseq
  %v7289 = vshrl.u32 %v7288, 7
  %v7290 = vsub.s32 %v7287, %v7289
  %v7291 = vrot.slane %v7284, %v7290
  %v7292 = vcombine.low %v6774, %v6788
  %v7294 = vunpack.c.l.s4 1966171168
  %v7295 = vunpack.c.0.s8 %v7294
  %v7296 = vlaneseq
  %v7297 = vshrl.u32 %v7296, 7
  %v7298 = vsub.s32 %v7295, %v7297
  %v7299 = vrot.slane %v7292, %v7298
  %v7301 = vunpack.c.l.s4 1966171168
  %v7302 = vunpack.c.0.s8 %v7301
  %v7303 = vlaneseq
  %v7304 = vshrl.u32 %v7303, 7
  %v7305 = vsub.s32 %v7302, %v7304
  %v7306 = vrot.slane %v7299, %v7305
  %v7307 = vcombine.low %v6792, %v6816
  %v7309 = vunpack.c.l.s4 1966171168
  %v7310 = vunpack.c.0.s8 %v7309
  %v7311 = vlaneseq
  %v7312 = vshrl.u32 %v7311, 7
  %v7313 = vsub.s32 %v7310, %v7312
  %v7314 = vrot.slane %v7307, %v7313
  %v7316 = vunpack.c.l.s4 1966171168
  %v7317 = vunpack.c.0.s8 %v7316
  %v7318 = vlaneseq
  %v7319 = vshrl.u32 %v7318, 7
  %v7320 = vsub.s32 %v7317, %v7319
  %v7321 = vrot.slane %v7314, %v7320
  %v7323 = vunpack.c.l.s4 1966171168
  %v7324 = vunpack.c.0.s8 %v7323
  %v7325 = vlaneseq
  %v7326 = vshrl.u32 %v7325, 7
  %v7327 = vsub.s32 %v7324, %v7326
  %v7328 = vrot.slane %v6005, %v7327
  %v7329 = vcombine.low %v6849, %v7328
  %v7331 = vunpack.c.l.s4 1966171168
  %v7332 = vunpack.c.0.s8 %v7331
  %v7333 = vlaneseq
  %v7334 = vshrl.u32 %v7333, 7
  %v7335 = vsub.s32 %v7332, %v7334
  %v7336 = vrot.slane %v7329, %v7335
  %v7338 = vunpack.c.l.s4 1966171168
  %v7339 = vunpack.c.0.s8 %v7338
  %v7340 = vlaneseq
  %v7341 = vshrl.u32 %v7340, 7
  %v7342 = vsub.s32 %v7339, %v7341
  %v7343 = vrot.slane %v6004, %v7342
  %v7344 = vcombine.low %v6864, %v7343
  %v7346 = vunpack.c.l.s4 1966171168
  %v7347 = vunpack.c.0.s8 %v7346
  %v7348 = vlaneseq
  %v7349 = vshrl.u32 %v7348, 7
  %v7350 = vsub.s32 %v7347, %v7349
  %v7351 = vrot.slane %v7344, %v7350
  %v7353 = vunpack.c.l.s4 1966171168
  %v7354 = vunpack.c.0.s8 %v7353
  %v7355 = vlaneseq
  %v7356 = vshrl.u32 %v7355, 7
  %v7357 = vsub.s32 %v7354, %v7356
  %v7358 = vrot.slane %v6032, %v7357
  %v7359 = vcombine.low %v6879, %v7358
  %v7361 = vunpack.c.l.s4 1966171168
  %v7362 = vunpack.c.0.s8 %v7361
  %v7363 = vlaneseq
  %v7364 = vshrl.u32 %v7363, 7
  %v7365 = vsub.s32 %v7362, %v7364
  %v7366 = vrot.slane %v7359, %v7365
  %v7368 = vunpack.c.l.s4 1966171168
  %v7369 = vunpack.c.0.s8 %v7368
  %v7370 = vlaneseq
  %v7371 = vshrl.u32 %v7370, 7
  %v7372 = vsub.s32 %v7369, %v7371
  %v7373 = vrot.slane %v6056, %v7372
  %v7374 = vcombine.low %v6894, %v7373
  %v7376 = vunpack.c.l.s4 1966171168
  %v7377 = vunpack.c.0.s8 %v7376
  %v7378 = vlaneseq
  %v7379 = vshrl.u32 %v7378, 7
  %v7380 = vsub.s32 %v7377, %v7379
  %v7381 = vrot.slane %v7374, %v7380
  %v7383 = vunpack.c.l.s4 1966171168
  %v7384 = vunpack.c.0.s8 %v7383
  %v7385 = vlaneseq
  %v7386 = vshrl.u32 %v7385, 7
  %v7387 = vsub.s32 %v7384, %v7386
  %v7388 = vrot.slane %v6088, %v7387
  %v7389 = vcombine.low %v6909, %v7388
  %v7391 = vunpack.c.l.s4 1966171168
  %v7392 = vunpack.c.0.s8 %v7391
  %v7393 = vlaneseq
  %v7394 = vshrl.u32 %v7393, 7
  %v7395 = vsub.s32 %v7392, %v7394
  %v7396 = vrot.slane %v7389, %v7395
  %v7398 = vunpack.c.l.s4 1966171168
  %v7399 = vunpack.c.0.s8 %v7398
  %v7400 = vlaneseq
  %v7401 = vshrl.u32 %v7400, 7
  %v7402 = vsub.s32 %v7399, %v7401
  %v7403 = vrot.slane %v6106, %v7402
  %v7404 = vcombine.low %v6924, %v7403
  %v7406 = vunpack.c.l.s4 1966171168
  %v7407 = vunpack.c.0.s8 %v7406
  %v7408 = vlaneseq
  %v7409 = vshrl.u32 %v7408, 7
  %v7410 = vsub.s32 %v7407, %v7409
  %v7411 = vrot.slane %v7404, %v7410
  %v7413 = vunpack.c.l.s4 1966171168
  %v7414 = vunpack.c.0.s8 %v7413
  %v7415 = vlaneseq
  %v7416 = vshrl.u32 %v7415, 7
  %v7417 = vsub.s32 %v7414, %v7416
  %v7418 = vrot.slane %v6152, %v7417
  %v7419 = vcombine.low %v6939, %v7418
  %v7421 = vunpack.c.l.s4 1966171168
  %v7422 = vunpack.c.0.s8 %v7421
  %v7423 = vlaneseq
  %v7424 = vshrl.u32 %v7423, 7
  %v7425 = vsub.s32 %v7422, %v7424
  %v7426 = vrot.slane %v7419, %v7425
  %v7428 = vunpack.c.l.s4 1966171168
  %v7429 = vunpack.c.0.s8 %v7428
  %v7430 = vlaneseq
  %v7431 = vshrl.u32 %v7430, 7
  %v7432 = vsub.s32 %v7429, %v7431
  %v7433 = vrot.slane %v6151, %v7432
  %v7434 = vcombine.low %v6954, %v7433
  %v7436 = vunpack.c.l.s4 1966171168
  %v7437 = vunpack.c.0.s8 %v7436
  %v7438 = vlaneseq
  %v7439 = vshrl.u32 %v7438, 7
  %v7440 = vsub.s32 %v7437, %v7439
  %v7441 = vrot.slane %v7434, %v7440
  %v7443 = vunpack.c.l.s4 1966171168
  %v7444 = vunpack.c.0.s8 %v7443
  %v7445 = vlaneseq
  %v7446 = vshrl.u32 %v7445, 7
  %v7447 = vsub.s32 %v7444, %v7446
  %v7448 = vrot.slane %v6202, %v7447
  %v7449 = vcombine.low %v6969, %v7448
  %v7451 = vunpack.c.l.s4 1966171168
  %v7452 = vunpack.c.0.s8 %v7451
  %v7453 = vlaneseq
  %v7454 = vshrl.u32 %v7453, 7
  %v7455 = vsub.s32 %v7452, %v7454
  %v7456 = vrot.slane %v7449, %v7455
  %v7458 = vunpack.c.l.s4 1966171168
  %v7459 = vunpack.c.0.s8 %v7458
  %v7460 = vlaneseq
  %v7461 = vshrl.u32 %v7460, 7
  %v7462 = vsub.s32 %v7459, %v7461
  %v7463 = vrot.slane %v6242, %v7462
  %v7464 = vcombine.low %v6984, %v7463
  %v7466 = vunpack.c.l.s4 1966171168
  %v7467 = vunpack.c.0.s8 %v7466
  %v7468 = vlaneseq
  %v7469 = vshrl.u32 %v7468, 7
  %v7470 = vsub.s32 %v7467, %v7469
  %v7471 = vrot.slane %v7464, %v7470
  %v7473 = vunpack.c.l.s4 1966171168
  %v7474 = vunpack.c.0.s8 %v7473
  %v7475 = vlaneseq
  %v7476 = vshrl.u32 %v7475, 7
  %v7477 = vsub.s32 %v7474, %v7476
  %v7478 = vrot.slane %v6235, %v7477
  %v7479 = vcombine.low %v6999, %v7478
  %v7481 = vunpack.c.l.s4 1966171168
  %v7482 = vunpack.c.0.s8 %v7481
  %v7483 = vlaneseq
  %v7484 = vshrl.u32 %v7483, 7
  %v7485 = vsub.s32 %v7482, %v7484
  %v7486 = vrot.slane %v7479, %v7485
  %v7488 = vunpack.c.l.s4 1966171168
  %v7489 = vunpack.c.0.s8 %v7488
  %v7490 = vlaneseq
  %v7491 = vshrl.u32 %v7490, 7
  %v7492 = vsub.s32 %v7489, %v7491
  %v7493 = vrot.slane %v6253, %v7492
  %v7494 = vcombine.low %v7014, %v7493
  %v7496 = vunpack.c.l.s4 1966171168
  %v7497 = vunpack.c.0.s8 %v7496
  %v7498 = vlaneseq
  %v7499 = vshrl.u32 %v7498, 7
  %v7500 = vsub.s32 %v7497, %v7499
  %v7501 = vrot.slane %v7494, %v7500
  %v7503 = vunpack.c.l.s4 1966171168
  %v7504 = vunpack.c.0.s8 %v7503
  %v7505 = vlaneseq
  %v7506 = vshrl.u32 %v7505, 7
  %v7507 = vsub.s32 %v7504, %v7506
  %v7508 = vrot.slane %v6326, %v7507
  %v7509 = vcombine.low %v7029, %v7508
  %v7511 = vunpack.c.l.s4 1966171168
  %v7512 = vunpack.c.0.s8 %v7511
  %v7513 = vlaneseq
  %v7514 = vshrl.u32 %v7513, 7
  %v7515 = vsub.s32 %v7512, %v7514
  %v7516 = vrot.slane %v7509, %v7515
  %v7518 = vunpack.c.l.s4 1966171168
  %v7519 = vunpack.c.0.s8 %v7518
  %v7520 = vlaneseq
  %v7521 = vshrl.u32 %v7520, 7
  %v7522 = vsub.s32 %v7519, %v7521
  %v7523 = vrot.slane %v6350, %v7522
  %v7524 = vcombine.low %v7044, %v7523
  %v7526 = vunpack.c.l.s4 1966171168
  %v7527 = vunpack.c.0.s8 %v7526
  %v7528 = vlaneseq
  %v7529 = vshrl.u32 %v7528, 7
  %v7530 = vsub.s32 %v7527, %v7529
  %v7531 = vrot.slane %v7524, %v7530
  %v7533 = vunpack.c.l.s4 1966171168
  %v7534 = vunpack.c.0.s8 %v7533
  %v7535 = vlaneseq
  %v7536 = vshrl.u32 %v7535, 7
  %v7537 = vsub.s32 %v7534, %v7536
  %v7538 = vrot.slane %v6349, %v7537
  %v7539 = vcombine.low %v7059, %v7538
  %v7541 = vunpack.c.l.s4 1966171168
  %v7542 = vunpack.c.0.s8 %v7541
  %v7543 = vlaneseq
  %v7544 = vshrl.u32 %v7543, 7
  %v7545 = vsub.s32 %v7542, %v7544
  %v7546 = vrot.slane %v7539, %v7545
  %v7548 = vunpack.c.l.s4 1966171168
  %v7549 = vunpack.c.0.s8 %v7548
  %v7550 = vlaneseq
  %v7551 = vshrl.u32 %v7550, 7
  %v7552 = vsub.s32 %v7549, %v7551
  %v7553 = vrot.slane %v6389, %v7552
  %v7554 = vcombine.low %v7074, %v7553
  %v7556 = vunpack.c.l.s4 1966171168
  %v7557 = vunpack.c.0.s8 %v7556
  %v7558 = vlaneseq
  %v7559 = vshrl.u32 %v7558, 7
  %v7560 = vsub.s32 %v7557, %v7559
  %v7561 = vrot.slane %v7554, %v7560
  %v7563 = vunpack.c.l.s4 1966171168
  %v7564 = vunpack.c.0.s8 %v7563
  %v7565 = vlaneseq
  %v7566 = vshrl.u32 %v7565, 7
  %v7567 = vsub.s32 %v7564, %v7566
  %v7568 = vrot.slane %v6446, %v7567
  %v7569 = vcombine.low %v7089, %v7568
  %v7571 = vunpack.c.l.s4 1966171168
  %v7572 = vunpack.c.0.s8 %v7571
  %v7573 = vlaneseq
  %v7574 = vshrl.u32 %v7573, 7
  %v7575 = vsub.s32 %v7572, %v7574
  %v7576 = vrot.slane %v7569, %v7575
  %v7578 = vunpack.c.l.s4 1966171168
  %v7579 = vunpack.c.0.s8 %v7578
  %v7580 = vlaneseq
  %v7581 = vshrl.u32 %v7580, 7
  %v7582 = vsub.s32 %v7579, %v7581
  %v7583 = vrot.slane %v6445, %v7582
  %v7584 = vcombine.low %v7104, %v7583
  %v7586 = vunpack.c.l.s4 1966171168
  %v7587 = vunpack.c.0.s8 %v7586
  %v7588 = vlaneseq
  %v7589 = vshrl.u32 %v7588, 7
  %v7590 = vsub.s32 %v7587, %v7589
  %v7591 = vrot.slane %v7584, %v7590
  %v7593 = vunpack.c.l.s4 1966171168
  %v7594 = vunpack.c.0.s8 %v7593
  %v7595 = vlaneseq
  %v7596 = vshrl.u32 %v7595, 7
  %v7597 = vsub.s32 %v7594, %v7596
  %v7598 = vrot.slane %v6473, %v7597
  %v7599 = vcombine.low %v7119, %v7598
  %v7601 = vunpack.c.l.s4 1966171168
  %v7602 = vunpack.c.0.s8 %v7601
  %v7603 = vlaneseq
  %v7604 = vshrl.u32 %v7603, 7
  %v7605 = vsub.s32 %v7602, %v7604
  %v7606 = vrot.slane %v7599, %v7605
  %v7608 = vunpack.c.l.s4 1966171168
  %v7609 = vunpack.c.0.s8 %v7608
  %v7610 = vlaneseq
  %v7611 = vshrl.u32 %v7610, 7
  %v7612 = vsub.s32 %v7609, %v7611
  %v7613 = vrot.slane %v6497, %v7612
  %v7614 = vcombine.low %v7134, %v7613
  %v7616 = vunpack.c.l.s4 1966171168
  %v7617 = vunpack.c.0.s8 %v7616
  %v7618 = vlaneseq
  %v7619 = vshrl.u32 %v7618, 7
  %v7620 = vsub.s32 %v7617, %v7619
  %v7621 = vrot.slane %v7614, %v7620
  %v7623 = vunpack.c.l.s4 1966171168
  %v7624 = vunpack.c.0.s8 %v7623
  %v7625 = vlaneseq
  %v7626 = vshrl.u32 %v7625, 7
  %v7627 = vsub.s32 %v7624, %v7626
  %v7628 = vrot.slane %v6529, %v7627
  %v7629 = vcombine.low %v7149, %v7628
  %v7631 = vunpack.c.l.s4 1966171168
  %v7632 = vunpack.c.0.s8 %v7631
  %v7633 = vlaneseq
  %v7634 = vshrl.u32 %v7633, 7
  %v7635 = vsub.s32 %v7632, %v7634
  %v7636 = vrot.slane %v7629, %v7635
  %v7638 = vunpack.c.l.s4 1966171168
  %v7639 = vunpack.c.0.s8 %v7638
  %v7640 = vlaneseq
  %v7641 = vshrl.u32 %v7640, 7
  %v7642 = vsub.s32 %v7639, %v7641
  %v7643 = vrot.slane %v6547, %v7642
  %v7644 = vcombine.low %v7164, %v7643
  %v7646 = vunpack.c.l.s4 1966171168
  %v7647 = vunpack.c.0.s8 %v7646
  %v7648 = vlaneseq
  %v7649 = vshrl.u32 %v7648, 7
  %v7650 = vsub.s32 %v7647, %v7649
  %v7651 = vrot.slane %v7644, %v7650
  %v7653 = vunpack.c.l.s4 1966171168
  %v7654 = vunpack.c.0.s8 %v7653
  %v7655 = vlaneseq
  %v7656 = vshrl.u32 %v7655, 7
  %v7657 = vsub.s32 %v7654, %v7656
  %v7658 = vrot.slane %v6593, %v7657
  %v7659 = vcombine.low %v7179, %v7658
  %v7661 = vunpack.c.l.s4 1966171168
  %v7662 = vunpack.c.0.s8 %v7661
  %v7663 = vlaneseq
  %v7664 = vshrl.u32 %v7663, 7
  %v7665 = vsub.s32 %v7662, %v7664
  %v7666 = vrot.slane %v7659, %v7665
  %v7668 = vunpack.c.l.s4 1966171168
  %v7669 = vunpack.c.0.s8 %v7668
  %v7670 = vlaneseq
  %v7671 = vshrl.u32 %v7670, 7
  %v7672 = vsub.s32 %v7669, %v7671
  %v7673 = vrot.slane %v6592, %v7672
  %v7674 = vcombine.low %v7194, %v7673
  %v7676 = vunpack.c.l.s4 1966171168
  %v7677 = vunpack.c.0.s8 %v7676
  %v7678 = vlaneseq
  %v7679 = vshrl.u32 %v7678, 7
  %v7680 = vsub.s32 %v7677, %v7679
  %v7681 = vrot.slane %v7674, %v7680
  %v7683 = vunpack.c.l.s4 1966171168
  %v7684 = vunpack.c.0.s8 %v7683
  %v7685 = vlaneseq
  %v7686 = vshrl.u32 %v7685, 7
  %v7687 = vsub.s32 %v7684, %v7686
  %v7688 = vrot.slane %v6643, %v7687
  %v7689 = vcombine.low %v7209, %v7688
  %v7691 = vunpack.c.l.s4 1966171168
  %v7692 = vunpack.c.0.s8 %v7691
  %v7693 = vlaneseq
  %v7694 = vshrl.u32 %v7693, 7
  %v7695 = vsub.s32 %v7692, %v7694
  %v7696 = vrot.slane %v7689, %v7695
  %v7698 = vunpack.c.l.s4 1966171168
  %v7699 = vunpack.c.0.s8 %v7698
  %v7700 = vlaneseq
  %v7701 = vshrl.u32 %v7700, 7
  %v7702 = vsub.s32 %v7699, %v7701
  %v7703 = vrot.slane %v6683, %v7702
  %v7704 = vcombine.low %v7224, %v7703
  %v7706 = vunpack.c.l.s4 1966171168
  %v7707 = vunpack.c.0.s8 %v7706
  %v7708 = vlaneseq
  %v7709 = vshrl.u32 %v7708, 7
  %v7710 = vsub.s32 %v7707, %v7709
  %v7711 = vrot.slane %v7704, %v7710
  %v7713 = vunpack.c.l.s4 1966171168
  %v7714 = vunpack.c.0.s8 %v7713
  %v7715 = vlaneseq
  %v7716 = vshrl.u32 %v7715, 7
  %v7717 = vsub.s32 %v7714, %v7716
  %v7718 = vrot.slane %v6676, %v7717
  %v7719 = vcombine.low %v7239, %v7718
  %v7721 = vunpack.c.l.s4 1966171168
  %v7722 = vunpack.c.0.s8 %v7721
  %v7723 = vlaneseq
  %v7724 = vshrl.u32 %v7723, 7
  %v7725 = vsub.s32 %v7722, %v7724
  %v7726 = vrot.slane %v7719, %v7725
  %v7728 = vunpack.c.l.s4 1966171168
  %v7729 = vunpack.c.0.s8 %v7728
  %v7730 = vlaneseq
  %v7731 = vshrl.u32 %v7730, 7
  %v7732 = vsub.s32 %v7729, %v7731
  %v7733 = vrot.slane %v6694, %v7732
  %v7734 = vcombine.low %v7254, %v7733
  %v7736 = vunpack.c.l.s4 1966171168
  %v7737 = vunpack.c.0.s8 %v7736
  %v7738 = vlaneseq
  %v7739 = vshrl.u32 %v7738, 7
  %v7740 = vsub.s32 %v7737, %v7739
  %v7741 = vrot.slane %v7734, %v7740
  %v7743 = vunpack.c.l.s4 1966171168
  %v7744 = vunpack.c.0.s8 %v7743
  %v7745 = vlaneseq
  %v7746 = vshrl.u32 %v7745, 7
  %v7747 = vsub.s32 %v7744, %v7746
  %v7748 = vrot.slane %v6767, %v7747
  %v7749 = vcombine.low %v7269, %v7748
  %v7751 = vunpack.c.l.s4 1966171168
  %v7752 = vunpack.c.0.s8 %v7751
  %v7753 = vlaneseq
  %v7754 = vshrl.u32 %v7753, 7
  %v7755 = vsub.s32 %v7752, %v7754
  %v7756 = vrot.slane %v7749, %v7755
  %v7758 = vunpack.c.l.s4 1966171168
  %v7759 = vunpack.c.0.s8 %v7758
  %v7760 = vlaneseq
  %v7761 = vshrl.u32 %v7760, 7
  %v7762 = vsub.s32 %v7759, %v7761
  %v7763 = vrot.slane %v6791, %v7762
  %v7764 = vcombine.low %v7284, %v7763
  %v7766 = vunpack.c.l.s4 1966171168
  %v7767 = vunpack.c.0.s8 %v7766
  %v7768 = vlaneseq
  %v7769 = vshrl.u32 %v7768, 7
  %v7770 = vsub.s32 %v7767, %v7769
  %v7771 = vrot.slane %v7764, %v7770
  %v7773 = vunpack.c.l.s4 1966171168
  %v7774 = vunpack.c.0.s8 %v7773
  %v7775 = vlaneseq
  %v7776 = vshrl.u32 %v7775, 7
  %v7777 = vsub.s32 %v7774, %v7776
  %v7778 = vrot.slane %v6790, %v7777
  %v7779 = vcombine.low %v7299, %v7778
  %v7781 = vunpack.c.l.s4 1966171168
  %v7782 = vunpack.c.0.s8 %v7781
  %v7783 = vlaneseq
  %v7784 = vshrl.u32 %v7783, 7
  %v7785 = vsub.s32 %v7782, %v7784
  %v7786 = vrot.slane %v7779, %v7785
  %v7788 = vunpack.c.l.s4 1966171168
  %v7789 = vunpack.c.0.s8 %v7788
  %v7790 = vlaneseq
  %v7791 = vshrl.u32 %v7790, 7
  %v7792 = vsub.s32 %v7789, %v7791
  %v7793 = vrot.slane %v6830, %v7792
  %v7794 = vcombine.low %v7314, %v7793
  %v7796 = vunpack.c.l.s4 1966171168
  %v7797 = vunpack.c.0.s8 %v7796
  %v7798 = vlaneseq
  %v7799 = vshrl.u32 %v7798, 7
  %v7800 = vsub.s32 %v7797, %v7799
  %v7801 = vrot.slane %v7794, %v7800
  %v7803 = vshrl.u32 %v7336, 16
  %v7805 = vshll.u32 %v7336, 16
  %v7807 = vrot.slane %v7805, 1
  %v7808 = vor.u32 %v7803, %v7807
  %v7810 = vshrl.u32 %v7351, 16
  %v7812 = vshll.u32 %v7351, 16
  %v7814 = vrot.slane %v7812, 1
  %v7815 = vor.u32 %v7810, %v7814
  %v7817 = vshrl.u32 %v7366, 16
  %v7819 = vshll.u32 %v7366, 16
  %v7821 = vrot.slane %v7819, 1
  %v7822 = vor.u32 %v7817, %v7821
  %v7824 = vshrl.u32 %v7381, 16
  %v7826 = vshll.u32 %v7381, 16
  %v7828 = vrot.slane %v7826, 1
  %v7829 = vor.u32 %v7824, %v7828
  %v7831 = vshrl.u32 %v7396, 16
  %v7833 = vshll.u32 %v7396, 16
  %v7835 = vrot.slane %v7833, 1
  %v7836 = vor.u32 %v7831, %v7835
  %v7838 = vshrl.u32 %v7411, 16
  %v7840 = vshll.u32 %v7411, 16
  %v7842 = vrot.slane %v7840, 1
  %v7843 = vor.u32 %v7838, %v7842
  %v7845 = vshrl.u32 %v7426, 16
  %v7847 = vshll.u32 %v7426, 16
  %v7849 = vrot.slane %v7847, 1
  %v7850 = vor.u32 %v7845, %v7849
  %v7852 = vshrl.u32 %v7441, 16
  %v7854 = vshll.u32 %v7441, 16
  %v7856 = vrot.slane %v7854, 1
  %v7857 = vor.u32 %v7852, %v7856
  %v7859 = vshrl.u32 %v7456, 16
  %v7861 = vshll.u32 %v7456, 16
  %v7863 = vrot.slane %v7861, 1
  %v7864 = vor.u32 %v7859, %v7863
  %v7866 = vshrl.u32 %v7471, 16
  %v7868 = vshll.u32 %v7471, 16
  %v7870 = vrot.slane %v7868, 1
  %v7871 = vor.u32 %v7866, %v7870
  %v7873 = vshrl.u32 %v7486, 16
  %v7875 = vshll.u32 %v7486, 16
  %v7877 = vrot.slane %v7875, 1
  %v7878 = vor.u32 %v7873, %v7877
  %v7880 = vshrl.u32 %v7501, 16
  %v7882 = vshll.u32 %v7501, 16
  %v7884 = vrot.slane %v7882, 1
  %v7885 = vor.u32 %v7880, %v7884
  %v7887 = vshrl.u32 %v7516, 16
  %v7889 = vshll.u32 %v7516, 16
  %v7891 = vrot.slane %v7889, 1
  %v7892 = vor.u32 %v7887, %v7891
  %v7894 = vshrl.u32 %v7531, 16
  %v7896 = vshll.u32 %v7531, 16
  %v7898 = vrot.slane %v7896, 1
  %v7899 = vor.u32 %v7894, %v7898
  %v7901 = vshrl.u32 %v7546, 16
  %v7903 = vshll.u32 %v7546, 16
  %v7905 = vrot.slane %v7903, 1
  %v7906 = vor.u32 %v7901, %v7905
  %v7908 = vshrl.u32 %v7561, 16
  %v7910 = vshll.u32 %v7561, 16
  %v7912 = vrot.slane %v7910, 1
  %v7913 = vor.u32 %v7908, %v7912
  %v7915 = vshrl.u32 %v7576, 16
  %v7917 = vshll.u32 %v7576, 16
  %v7919 = vrot.slane %v7917, 1
  %v7920 = vor.u32 %v7915, %v7919
  %v7922 = vshrl.u32 %v7591, 16
  %v7924 = vshll.u32 %v7591, 16
  %v7926 = vrot.slane %v7924, 1
  %v7927 = vor.u32 %v7922, %v7926
  %v7929 = vshrl.u32 %v7606, 16
  %v7931 = vshll.u32 %v7606, 16
  %v7933 = vrot.slane %v7931, 1
  %v7934 = vor.u32 %v7929, %v7933
  %v7936 = vshrl.u32 %v7621, 16
  %v7938 = vshll.u32 %v7621, 16
  %v7940 = vrot.slane %v7938, 1
  %v7941 = vor.u32 %v7936, %v7940
  %v7943 = vshrl.u32 %v7636, 16
  %v7945 = vshll.u32 %v7636, 16
  %v7947 = vrot.slane %v7945, 1
  %v7948 = vor.u32 %v7943, %v7947
  %v7950 = vshrl.u32 %v7651, 16
  %v7952 = vshll.u32 %v7651, 16
  %v7954 = vrot.slane %v7952, 1
  %v7955 = vor.u32 %v7950, %v7954
  %v7957 = vshrl.u32 %v7666, 16
  %v7959 = vshll.u32 %v7666, 16
  %v7961 = vrot.slane %v7959, 1
  %v7962 = vor.u32 %v7957, %v7961
  %v7964 = vshrl.u32 %v7681, 16
  %v7966 = vshll.u32 %v7681, 16
  %v7968 = vrot.slane %v7966, 1
  %v7969 = vor.u32 %v7964, %v7968
  %v7971 = vshrl.u32 %v7696, 16
  %v7973 = vshll.u32 %v7696, 16
  %v7975 = vrot.slane %v7973, 1
  %v7976 = vor.u32 %v7971, %v7975
  %v7978 = vshrl.u32 %v7711, 16
  %v7980 = vshll.u32 %v7711, 16
  %v7982 = vrot.slane %v7980, 1
  %v7983 = vor.u32 %v7978, %v7982
  %v7985 = vshrl.u32 %v7726, 16
  %v7987 = vshll.u32 %v7726, 16
  %v7989 = vrot.slane %v7987, 1
  %v7990 = vor.u32 %v7985, %v7989
  %v7992 = vshrl.u32 %v7741, 16
  %v7994 = vshll.u32 %v7741, 16
  %v7996 = vrot.slane %v7994, 1
  %v7997 = vor.u32 %v7992, %v7996
  %v7999 = vshrl.u32 %v7756, 16
  %v8001 = vshll.u32 %v7756, 16
  %v8003 = vrot.slane %v8001, 1
  %v8004 = vor.u32 %v7999, %v8003
  %v8006 = vshrl.u32 %v7771, 16
  %v8008 = vshll.u32 %v7771, 16
  %v8010 = vrot.slane %v8008, 1
  %v8011 = vor.u32 %v8006, %v8010
  %v8013 = vshrl.u32 %v7786, 16
  %v8015 = vshll.u32 %v7786, 16
  %v8017 = vrot.slane %v8015, 1
  %v8018 = vor.u32 %v8013, %v8017
  %v8020 = vshrl.u32 %v7801, 16
  %v8022 = vshll.u32 %v7801, 16
  %v8024 = vrot.slane %v8022, 1
  %v8025 = vor.u32 %v8020, %v8024
  %8026 = vrot.lane.b32.xlu0 %v7808, 64
  %v8027 = vpop.permute.xlu0 %8026
  %8028 = vrot.lane.b32.xlu0 %v7815, 64
  %v8029 = vpop.permute.xlu0 %8028
  %8030 = vrot.lane.b32.xlu0 %v7822, 64
  %v8031 = vpop.permute.xlu0 %8030
  %8032 = vrot.lane.b32.xlu0 %v7829, 64
  %v8033 = vpop.permute.xlu0 %8032
  %8034 = vrot.lane.b32.xlu0 %v7836, 64
  %v8035 = vpop.permute.xlu0 %8034
  %8036 = vrot.lane.b32.xlu0 %v7843, 64
  %v8037 = vpop.permute.xlu0 %8036
  %8038 = vrot.lane.b32.xlu0 %v7850, 64
  %v8039 = vpop.permute.xlu0 %8038
  %8040 = vrot.lane.b32.xlu0 %v7857, 64
  %v8041 = vpop.permute.xlu0 %8040
  %8042 = vrot.lane.b32.xlu0 %v7864, 64
  %v8043 = vpop.permute.xlu0 %8042
  %8044 = vrot.lane.b32.xlu0 %v7871, 64
  %v8045 = vpop.permute.xlu0 %8044
  %8046 = vrot.lane.b32.xlu0 %v7878, 64
  %v8047 = vpop.permute.xlu0 %8046
  %8048 = vrot.lane.b32.xlu0 %v7885, 64
  %v8049 = vpop.permute.xlu0 %8048
  %8050 = vrot.lane.b32.xlu0 %v7892, 64
  %v8051 = vpop.permute.xlu0 %8050
  %8052 = vrot.lane.b32.xlu0 %v7899, 64
  %v8053 = vpop.permute.xlu0 %8052
  %8054 = vrot.lane.b32.xlu0 %v7906, 64
  %v8055 = vpop.permute.xlu0 %8054
  %8056 = vrot.lane.b32.xlu0 %v7913, 64
  %v8057 = vpop.permute.xlu0 %8056
  %8058 = vrot.lane.b32.xlu0 %v7920, 64
  %v8059 = vpop.permute.xlu0 %8058
  %8060 = vrot.lane.b32.xlu0 %v7927, 64
  %v8061 = vpop.permute.xlu0 %8060
  %8062 = vrot.lane.b32.xlu0 %v7934, 64
  %v8063 = vpop.permute.xlu0 %8062
  %8064 = vrot.lane.b32.xlu0 %v7941, 64
  %v8065 = vpop.permute.xlu0 %8064
  %8066 = vrot.lane.b32.xlu0 %v7948, 64
  %v8067 = vpop.permute.xlu0 %8066
  %8068 = vrot.lane.b32.xlu0 %v7955, 64
  %v8069 = vpop.permute.xlu0 %8068
  %8070 = vrot.lane.b32.xlu0 %v7962, 64
  %v8071 = vpop.permute.xlu0 %8070
  %8072 = vrot.lane.b32.xlu0 %v7969, 64
  %v8073 = vpop.permute.xlu0 %8072
  %8074 = vrot.lane.b32.xlu0 %v7976, 64
  %v8075 = vpop.permute.xlu0 %8074
  %8076 = vrot.lane.b32.xlu0 %v7983, 64
  %v8077 = vpop.permute.xlu0 %8076
  %8078 = vrot.lane.b32.xlu0 %v7990, 64
  %v8079 = vpop.permute.xlu0 %8078
  %8080 = vrot.lane.b32.xlu0 %v7997, 64
  %v8081 = vpop.permute.xlu0 %8080
  %8082 = vrot.lane.b32.xlu0 %v8004, 64
  %v8083 = vpop.permute.xlu0 %8082
  %8084 = vrot.lane.b32.xlu0 %v8011, 64
  %v8085 = vpop.permute.xlu0 %8084
  %8086 = vrot.lane.b32.xlu0 %v8018, 64
  %v8087 = vpop.permute.xlu0 %8086
  %8088 = vrot.lane.b32.xlu0 %v8025, 64
  %v8089 = vpop.permute.xlu0 %8088
  %v8090 = vcombine.low %v5997, %v6005
  %v8092 = vunpack.c.l.s4 1966171168
  %v8093 = vunpack.c.0.s8 %v8092
  %v8094 = vlaneseq
  %v8095 = vshrl.u32 %v8094, 7
  %v8096 = vsub.s32 %v8093, %v8095
  %v8097 = vrot.slane %v8090, %v8096
  %v8099 = vunpack.c.l.s4 1966171168
  %v8100 = vunpack.c.0.s8 %v8099
  %v8101 = vlaneseq
  %v8102 = vshrl.u32 %v8101, 7
  %v8103 = vsub.s32 %v8100, %v8102
  %v8104 = vrot.slane %v8097, %v8103
  %v8105 = vcombine.low %v5990, %v6004
  %v8107 = vunpack.c.l.s4 1966171168
  %v8108 = vunpack.c.0.s8 %v8107
  %v8109 = vlaneseq
  %v8110 = vshrl.u32 %v8109, 7
  %v8111 = vsub.s32 %v8108, %v8110
  %v8112 = vrot.slane %v8105, %v8111
  %v8114 = vunpack.c.l.s4 1966171168
  %v8115 = vunpack.c.0.s8 %v8114
  %v8116 = vlaneseq
  %v8117 = vshrl.u32 %v8116, 7
  %v8118 = vsub.s32 %v8115, %v8117
  %v8119 = vrot.slane %v8112, %v8118
  %v8120 = vcombine.low %v6008, %v6032
  %v8122 = vunpack.c.l.s4 1966171168
  %v8123 = vunpack.c.0.s8 %v8122
  %v8124 = vlaneseq
  %v8125 = vshrl.u32 %v8124, 7
  %v8126 = vsub.s32 %v8123, %v8125
  %v8127 = vrot.slane %v8120, %v8126
  %v8129 = vunpack.c.l.s4 1966171168
  %v8130 = vunpack.c.0.s8 %v8129
  %v8131 = vlaneseq
  %v8132 = vshrl.u32 %v8131, 7
  %v8133 = vsub.s32 %v8130, %v8132
  %v8134 = vrot.slane %v8127, %v8133
  %v8135 = vcombine.low %v6054, %v6056
  %v8137 = vunpack.c.l.s4 1966171168
  %v8138 = vunpack.c.0.s8 %v8137
  %v8139 = vlaneseq
  %v8140 = vshrl.u32 %v8139, 7
  %v8141 = vsub.s32 %v8138, %v8140
  %v8142 = vrot.slane %v8135, %v8141
  %v8144 = vunpack.c.l.s4 1966171168
  %v8145 = vunpack.c.0.s8 %v8144
  %v8146 = vlaneseq
  %v8147 = vshrl.u32 %v8146, 7
  %v8148 = vsub.s32 %v8145, %v8147
  %v8149 = vrot.slane %v8142, %v8148
  %v8150 = vcombine.low %v6105, %v6088
  %v8152 = vunpack.c.l.s4 1966171168
  %v8153 = vunpack.c.0.s8 %v8152
  %v8154 = vlaneseq
  %v8155 = vshrl.u32 %v8154, 7
  %v8156 = vsub.s32 %v8153, %v8155
  %v8157 = vrot.slane %v8150, %v8156
  %v8159 = vunpack.c.l.s4 1966171168
  %v8160 = vunpack.c.0.s8 %v8159
  %v8161 = vlaneseq
  %v8162 = vshrl.u32 %v8161, 7
  %v8163 = vsub.s32 %v8160, %v8162
  %v8164 = vrot.slane %v8157, %v8163
  %v8165 = vcombine.low %v6104, %v6106
  %v8167 = vunpack.c.l.s4 1966171168
  %v8168 = vunpack.c.0.s8 %v8167
  %v8169 = vlaneseq
  %v8170 = vshrl.u32 %v8169, 7
  %v8171 = vsub.s32 %v8168, %v8170
  %v8172 = vrot.slane %v8165, %v8171
  %v8174 = vunpack.c.l.s4 1966171168
  %v8175 = vunpack.c.0.s8 %v8174
  %v8176 = vlaneseq
  %v8177 = vshrl.u32 %v8176, 7
  %v8178 = vsub.s32 %v8175, %v8177
  %v8179 = vrot.slane %v8172, %v8178
  %v8180 = vcombine.low %v6144, %v6152
  %v8182 = vunpack.c.l.s4 1966171168
  %v8183 = vunpack.c.0.s8 %v8182
  %v8184 = vlaneseq
  %v8185 = vshrl.u32 %v8184, 7
  %v8186 = vsub.s32 %v8183, %v8185
  %v8187 = vrot.slane %v8180, %v8186
  %v8189 = vunpack.c.l.s4 1966171168
  %v8190 = vunpack.c.0.s8 %v8189
  %v8191 = vlaneseq
  %v8192 = vshrl.u32 %v8191, 7
  %v8193 = vsub.s32 %v8190, %v8192
  %v8194 = vrot.slane %v8187, %v8193
  %v8195 = vcombine.low %v6137, %v6151
  %v8197 = vunpack.c.l.s4 1966171168
  %v8198 = vunpack.c.0.s8 %v8197
  %v8199 = vlaneseq
  %v8200 = vshrl.u32 %v8199, 7
  %v8201 = vsub.s32 %v8198, %v8200
  %v8202 = vrot.slane %v8195, %v8201
  %v8204 = vunpack.c.l.s4 1966171168
  %v8205 = vunpack.c.0.s8 %v8204
  %v8206 = vlaneseq
  %v8207 = vshrl.u32 %v8206, 7
  %v8208 = vsub.s32 %v8205, %v8207
  %v8209 = vrot.slane %v8202, %v8208
  %v8210 = vcombine.low %v6200, %v6202
  %v8212 = vunpack.c.l.s4 1966171168
  %v8213 = vunpack.c.0.s8 %v8212
  %v8214 = vlaneseq
  %v8215 = vshrl.u32 %v8214, 7
  %v8216 = vsub.s32 %v8213, %v8215
  %v8217 = vrot.slane %v8210, %v8216
  %v8219 = vunpack.c.l.s4 1966171168
  %v8220 = vunpack.c.0.s8 %v8219
  %v8221 = vlaneseq
  %v8222 = vshrl.u32 %v8221, 7
  %v8223 = vsub.s32 %v8220, %v8222
  %v8224 = vrot.slane %v8217, %v8223
  %v8225 = vcombine.low %v6228, %v6242
  %v8227 = vunpack.c.l.s4 1966171168
  %v8228 = vunpack.c.0.s8 %v8227
  %v8229 = vlaneseq
  %v8230 = vshrl.u32 %v8229, 7
  %v8231 = vsub.s32 %v8228, %v8230
  %v8232 = vrot.slane %v8225, %v8231
  %v8234 = vunpack.c.l.s4 1966171168
  %v8235 = vunpack.c.0.s8 %v8234
  %v8236 = vlaneseq
  %v8237 = vshrl.u32 %v8236, 7
  %v8238 = vsub.s32 %v8235, %v8237
  %v8239 = vrot.slane %v8232, %v8238
  %v8240 = vcombine.low %v6252, %v6235
  %v8242 = vunpack.c.l.s4 1966171168
  %v8243 = vunpack.c.0.s8 %v8242
  %v8244 = vlaneseq
  %v8245 = vshrl.u32 %v8244, 7
  %v8246 = vsub.s32 %v8243, %v8245
  %v8247 = vrot.slane %v8240, %v8246
  %v8249 = vunpack.c.l.s4 1966171168
  %v8250 = vunpack.c.0.s8 %v8249
  %v8251 = vlaneseq
  %v8252 = vshrl.u32 %v8251, 7
  %v8253 = vsub.s32 %v8250, %v8252
  %v8254 = vrot.slane %v8247, %v8253
  %v8255 = vcombine.low %v6251, %v6253
  %v8257 = vunpack.c.l.s4 1966171168
  %v8258 = vunpack.c.0.s8 %v8257
  %v8259 = vlaneseq
  %v8260 = vshrl.u32 %v8259, 7
  %v8261 = vsub.s32 %v8258, %v8260
  %v8262 = vrot.slane %v8255, %v8261
  %v8264 = vunpack.c.l.s4 1966171168
  %v8265 = vunpack.c.0.s8 %v8264
  %v8266 = vlaneseq
  %v8267 = vshrl.u32 %v8266, 7
  %v8268 = vsub.s32 %v8265, %v8267
  %v8269 = vrot.slane %v8262, %v8268
  %v8270 = vcombine.low %v6302, %v6326
  %v8272 = vunpack.c.l.s4 1966171168
  %v8273 = vunpack.c.0.s8 %v8272
  %v8274 = vlaneseq
  %v8275 = vshrl.u32 %v8274, 7
  %v8276 = vsub.s32 %v8273, %v8275
  %v8277 = vrot.slane %v8270, %v8276
  %v8279 = vunpack.c.l.s4 1966171168
  %v8280 = vunpack.c.0.s8 %v8279
  %v8281 = vlaneseq
  %v8282 = vshrl.u32 %v8281, 7
  %v8283 = vsub.s32 %v8280, %v8282
  %v8284 = vrot.slane %v8277, %v8283
  %v8285 = vcombine.low %v6348, %v6350
  %v8287 = vunpack.c.l.s4 1966171168
  %v8288 = vunpack.c.0.s8 %v8287
  %v8289 = vlaneseq
  %v8290 = vshrl.u32 %v8289, 7
  %v8291 = vsub.s32 %v8288, %v8290
  %v8292 = vrot.slane %v8285, %v8291
  %v8294 = vunpack.c.l.s4 1966171168
  %v8295 = vunpack.c.0.s8 %v8294
  %v8296 = vlaneseq
  %v8297 = vshrl.u32 %v8296, 7
  %v8298 = vsub.s32 %v8295, %v8297
  %v8299 = vrot.slane %v8292, %v8298
  %v8300 = vcombine.low %v6347, %v6349
  %v8302 = vunpack.c.l.s4 1966171168
  %v8303 = vunpack.c.0.s8 %v8302
  %v8304 = vlaneseq
  %v8305 = vshrl.u32 %v8304, 7
  %v8306 = vsub.s32 %v8303, %v8305
  %v8307 = vrot.slane %v8300, %v8306
  %v8309 = vunpack.c.l.s4 1966171168
  %v8310 = vunpack.c.0.s8 %v8309
  %v8311 = vlaneseq
  %v8312 = vshrl.u32 %v8311, 7
  %v8313 = vsub.s32 %v8310, %v8312
  %v8314 = vrot.slane %v8307, %v8313
  %v8315 = vcombine.low %v6375, %v6389
  %v8317 = vunpack.c.l.s4 1966171168
  %v8318 = vunpack.c.0.s8 %v8317
  %v8319 = vlaneseq
  %v8320 = vshrl.u32 %v8319, 7
  %v8321 = vsub.s32 %v8318, %v8320
  %v8322 = vrot.slane %v8315, %v8321
  %v8324 = vunpack.c.l.s4 1966171168
  %v8325 = vunpack.c.0.s8 %v8324
  %v8326 = vlaneseq
  %v8327 = vshrl.u32 %v8326, 7
  %v8328 = vsub.s32 %v8325, %v8327
  %v8329 = vrot.slane %v8322, %v8328
  %v8330 = vcombine.low %v6438, %v6446
  %v8332 = vunpack.c.l.s4 1966171168
  %v8333 = vunpack.c.0.s8 %v8332
  %v8334 = vlaneseq
  %v8335 = vshrl.u32 %v8334, 7
  %v8336 = vsub.s32 %v8333, %v8335
  %v8337 = vrot.slane %v8330, %v8336
  %v8339 = vunpack.c.l.s4 1966171168
  %v8340 = vunpack.c.0.s8 %v8339
  %v8341 = vlaneseq
  %v8342 = vshrl.u32 %v8341, 7
  %v8343 = vsub.s32 %v8340, %v8342
  %v8344 = vrot.slane %v8337, %v8343
  %v8345 = vcombine.low %v6431, %v6445
  %v8347 = vunpack.c.l.s4 1966171168
  %v8348 = vunpack.c.0.s8 %v8347
  %v8349 = vlaneseq
  %v8350 = vshrl.u32 %v8349, 7
  %v8351 = vsub.s32 %v8348, %v8350
  %v8352 = vrot.slane %v8345, %v8351
  %v8354 = vunpack.c.l.s4 1966171168
  %v8355 = vunpack.c.0.s8 %v8354
  %v8356 = vlaneseq
  %v8357 = vshrl.u32 %v8356, 7
  %v8358 = vsub.s32 %v8355, %v8357
  %v8359 = vrot.slane %v8352, %v8358
  %v8360 = vcombine.low %v6449, %v6473
  %v8362 = vunpack.c.l.s4 1966171168
  %v8363 = vunpack.c.0.s8 %v8362
  %v8364 = vlaneseq
  %v8365 = vshrl.u32 %v8364, 7
  %v8366 = vsub.s32 %v8363, %v8365
  %v8367 = vrot.slane %v8360, %v8366
  %v8369 = vunpack.c.l.s4 1966171168
  %v8370 = vunpack.c.0.s8 %v8369
  %v8371 = vlaneseq
  %v8372 = vshrl.u32 %v8371, 7
  %v8373 = vsub.s32 %v8370, %v8372
  %v8374 = vrot.slane %v8367, %v8373
  %v8375 = vcombine.low %v6495, %v6497
  %v8377 = vunpack.c.l.s4 1966171168
  %v8378 = vunpack.c.0.s8 %v8377
  %v8379 = vlaneseq
  %v8380 = vshrl.u32 %v8379, 7
  %v8381 = vsub.s32 %v8378, %v8380
  %v8382 = vrot.slane %v8375, %v8381
  %v8384 = vunpack.c.l.s4 1966171168
  %v8385 = vunpack.c.0.s8 %v8384
  %v8386 = vlaneseq
  %v8387 = vshrl.u32 %v8386, 7
  %v8388 = vsub.s32 %v8385, %v8387
  %v8389 = vrot.slane %v8382, %v8388
  %v8390 = vcombine.low %v6546, %v6529
  %v8392 = vunpack.c.l.s4 1966171168
  %v8393 = vunpack.c.0.s8 %v8392
  %v8394 = vlaneseq
  %v8395 = vshrl.u32 %v8394, 7
  %v8396 = vsub.s32 %v8393, %v8395
  %v8397 = vrot.slane %v8390, %v8396
  %v8399 = vunpack.c.l.s4 1966171168
  %v8400 = vunpack.c.0.s8 %v8399
  %v8401 = vlaneseq
  %v8402 = vshrl.u32 %v8401, 7
  %v8403 = vsub.s32 %v8400, %v8402
  %v8404 = vrot.slane %v8397, %v8403
  %v8405 = vcombine.low %v6545, %v6547
  %v8407 = vunpack.c.l.s4 1966171168
  %v8408 = vunpack.c.0.s8 %v8407
  %v8409 = vlaneseq
  %v8410 = vshrl.u32 %v8409, 7
  %v8411 = vsub.s32 %v8408, %v8410
  %v8412 = vrot.slane %v8405, %v8411
  %v8414 = vunpack.c.l.s4 1966171168
  %v8415 = vunpack.c.0.s8 %v8414
  %v8416 = vlaneseq
  %v8417 = vshrl.u32 %v8416, 7
  %v8418 = vsub.s32 %v8415, %v8417
  %v8419 = vrot.slane %v8412, %v8418
  %v8420 = vcombine.low %v6585, %v6593
  %v8422 = vunpack.c.l.s4 1966171168
  %v8423 = vunpack.c.0.s8 %v8422
  %v8424 = vlaneseq
  %v8425 = vshrl.u32 %v8424, 7
  %v8426 = vsub.s32 %v8423, %v8425
  %v8427 = vrot.slane %v8420, %v8426
  %v8429 = vunpack.c.l.s4 1966171168
  %v8430 = vunpack.c.0.s8 %v8429
  %v8431 = vlaneseq
  %v8432 = vshrl.u32 %v8431, 7
  %v8433 = vsub.s32 %v8430, %v8432
  %v8434 = vrot.slane %v8427, %v8433
  %v8435 = vcombine.low %v6578, %v6592
  %v8437 = vunpack.c.l.s4 1966171168
  %v8438 = vunpack.c.0.s8 %v8437
  %v8439 = vlaneseq
  %v8440 = vshrl.u32 %v8439, 7
  %v8441 = vsub.s32 %v8438, %v8440
  %v8442 = vrot.slane %v8435, %v8441
  %v8444 = vunpack.c.l.s4 1966171168
  %v8445 = vunpack.c.0.s8 %v8444
  %v8446 = vlaneseq
  %v8447 = vshrl.u32 %v8446, 7
  %v8448 = vsub.s32 %v8445, %v8447
  %v8449 = vrot.slane %v8442, %v8448
  %v8450 = vcombine.low %v6641, %v6643
  %v8452 = vunpack.c.l.s4 1966171168
  %v8453 = vunpack.c.0.s8 %v8452
  %v8454 = vlaneseq
  %v8455 = vshrl.u32 %v8454, 7
  %v8456 = vsub.s32 %v8453, %v8455
  %v8457 = vrot.slane %v8450, %v8456
  %v8459 = vunpack.c.l.s4 1966171168
  %v8460 = vunpack.c.0.s8 %v8459
  %v8461 = vlaneseq
  %v8462 = vshrl.u32 %v8461, 7
  %v8463 = vsub.s32 %v8460, %v8462
  %v8464 = vrot.slane %v8457, %v8463
  %v8465 = vcombine.low %v6669, %v6683
  %v8467 = vunpack.c.l.s4 1966171168
  %v8468 = vunpack.c.0.s8 %v8467
  %v8469 = vlaneseq
  %v8470 = vshrl.u32 %v8469, 7
  %v8471 = vsub.s32 %v8468, %v8470
  %v8472 = vrot.slane %v8465, %v8471
  %v8474 = vunpack.c.l.s4 1966171168
  %v8475 = vunpack.c.0.s8 %v8474
  %v8476 = vlaneseq
  %v8477 = vshrl.u32 %v8476, 7
  %v8478 = vsub.s32 %v8475, %v8477
  %v8479 = vrot.slane %v8472, %v8478
  %v8480 = vcombine.low %v6693, %v6676
  %v8482 = vunpack.c.l.s4 1966171168
  %v8483 = vunpack.c.0.s8 %v8482
  %v8484 = vlaneseq
  %v8485 = vshrl.u32 %v8484, 7
  %v8486 = vsub.s32 %v8483, %v8485
  %v8487 = vrot.slane %v8480, %v8486
  %v8489 = vunpack.c.l.s4 1966171168
  %v8490 = vunpack.c.0.s8 %v8489
  %v8491 = vlaneseq
  %v8492 = vshrl.u32 %v8491, 7
  %v8493 = vsub.s32 %v8490, %v8492
  %v8494 = vrot.slane %v8487, %v8493
  %v8495 = vcombine.low %v6692, %v6694
  %v8497 = vunpack.c.l.s4 1966171168
  %v8498 = vunpack.c.0.s8 %v8497
  %v8499 = vlaneseq
  %v8500 = vshrl.u32 %v8499, 7
  %v8501 = vsub.s32 %v8498, %v8500
  %v8502 = vrot.slane %v8495, %v8501
  %v8504 = vunpack.c.l.s4 1966171168
  %v8505 = vunpack.c.0.s8 %v8504
  %v8506 = vlaneseq
  %v8507 = vshrl.u32 %v8506, 7
  %v8508 = vsub.s32 %v8505, %v8507
  %v8509 = vrot.slane %v8502, %v8508
  %v8510 = vcombine.low %v6743, %v6767
  %v8512 = vunpack.c.l.s4 1966171168
  %v8513 = vunpack.c.0.s8 %v8512
  %v8514 = vlaneseq
  %v8515 = vshrl.u32 %v8514, 7
  %v8516 = vsub.s32 %v8513, %v8515
  %v8517 = vrot.slane %v8510, %v8516
  %v8519 = vunpack.c.l.s4 1966171168
  %v8520 = vunpack.c.0.s8 %v8519
  %v8521 = vlaneseq
  %v8522 = vshrl.u32 %v8521, 7
  %v8523 = vsub.s32 %v8520, %v8522
  %v8524 = vrot.slane %v8517, %v8523
  %v8525 = vcombine.low %v6789, %v6791
  %v8527 = vunpack.c.l.s4 1966171168
  %v8528 = vunpack.c.0.s8 %v8527
  %v8529 = vlaneseq
  %v8530 = vshrl.u32 %v8529, 7
  %v8531 = vsub.s32 %v8528, %v8530
  %v8532 = vrot.slane %v8525, %v8531
  %v8534 = vunpack.c.l.s4 1966171168
  %v8535 = vunpack.c.0.s8 %v8534
  %v8536 = vlaneseq
  %v8537 = vshrl.u32 %v8536, 7
  %v8538 = vsub.s32 %v8535, %v8537
  %v8539 = vrot.slane %v8532, %v8538
  %v8540 = vcombine.low %v6788, %v6790
  %v8542 = vunpack.c.l.s4 1966171168
  %v8543 = vunpack.c.0.s8 %v8542
  %v8544 = vlaneseq
  %v8545 = vshrl.u32 %v8544, 7
  %v8546 = vsub.s32 %v8543, %v8545
  %v8547 = vrot.slane %v8540, %v8546
  %v8549 = vunpack.c.l.s4 1966171168
  %v8550 = vunpack.c.0.s8 %v8549
  %v8551 = vlaneseq
  %v8552 = vshrl.u32 %v8551, 7
  %v8553 = vsub.s32 %v8550, %v8552
  %v8554 = vrot.slane %v8547, %v8553
  %v8555 = vcombine.low %v6816, %v6830
  %v8557 = vunpack.c.l.s4 1966171168
  %v8558 = vunpack.c.0.s8 %v8557
  %v8559 = vlaneseq
  %v8560 = vshrl.u32 %v8559, 7
  %v8561 = vsub.s32 %v8558, %v8560
  %v8562 = vrot.slane %v8555, %v8561
  %v8564 = vunpack.c.l.s4 1966171168
  %v8565 = vunpack.c.0.s8 %v8564
  %v8566 = vlaneseq
  %v8567 = vshrl.u32 %v8566, 7
  %v8568 = vsub.s32 %v8565, %v8567
  %v8569 = vrot.slane %v8562, %v8568
  %v8570 = vcombine.low %v6039, %v6053
  %v8572 = vunpack.c.l.s4 1966171168
  %v8573 = vunpack.c.0.s8 %v8572
  %v8574 = vlaneseq
  %v8575 = vshrl.u32 %v8574, 7
  %v8576 = vsub.s32 %v8573, %v8575
  %v8577 = vrot.slane %v8570, %v8576
  %v8579 = vunpack.c.l.s4 1966171168
  %v8580 = vunpack.c.0.s8 %v8579
  %v8581 = vlaneseq
  %v8582 = vshrl.u32 %v8581, 7
  %v8583 = vsub.s32 %v8580, %v8582
  %v8584 = vrot.slane %v8577, %v8583
  %v8585 = vcombine.low %v6153, %v6155
  %v8587 = vunpack.c.l.s4 1966171168
  %v8588 = vunpack.c.0.s8 %v8587
  %v8589 = vlaneseq
  %v8590 = vshrl.u32 %v8589, 7
  %v8591 = vsub.s32 %v8588, %v8590
  %v8592 = vrot.slane %v8585, %v8591
  %v8594 = vunpack.c.l.s4 1966171168
  %v8595 = vunpack.c.0.s8 %v8594
  %v8596 = vlaneseq
  %v8597 = vshrl.u32 %v8596, 7
  %v8598 = vsub.s32 %v8595, %v8597
  %v8599 = vrot.slane %v8592, %v8598
  %v8600 = vcombine.low %v6277, %v6291
  %v8602 = vunpack.c.l.s4 1966171168
  %v8603 = vunpack.c.0.s8 %v8602
  %v8604 = vlaneseq
  %v8605 = vshrl.u32 %v8604, 7
  %v8606 = vsub.s32 %v8603, %v8605
  %v8607 = vrot.slane %v8600, %v8606
  %v8609 = vunpack.c.l.s4 1966171168
  %v8610 = vunpack.c.0.s8 %v8609
  %v8611 = vlaneseq
  %v8612 = vshrl.u32 %v8611, 7
  %v8613 = vsub.s32 %v8610, %v8612
  %v8614 = vrot.slane %v8607, %v8613
  %v8615 = vcombine.low %v6397, %v6399
  %v8617 = vunpack.c.l.s4 1966171168
  %v8618 = vunpack.c.0.s8 %v8617
  %v8619 = vlaneseq
  %v8620 = vshrl.u32 %v8619, 7
  %v8621 = vsub.s32 %v8618, %v8620
  %v8622 = vrot.slane %v8615, %v8621
  %v8624 = vunpack.c.l.s4 1966171168
  %v8625 = vunpack.c.0.s8 %v8624
  %v8626 = vlaneseq
  %v8627 = vshrl.u32 %v8626, 7
  %v8628 = vsub.s32 %v8625, %v8627
  %v8629 = vrot.slane %v8622, %v8628
  %v8630 = vcombine.low %v6480, %v6494
  %v8632 = vunpack.c.l.s4 1966171168
  %v8633 = vunpack.c.0.s8 %v8632
  %v8634 = vlaneseq
  %v8635 = vshrl.u32 %v8634, 7
  %v8636 = vsub.s32 %v8633, %v8635
  %v8637 = vrot.slane %v8630, %v8636
  %v8639 = vunpack.c.l.s4 1966171168
  %v8640 = vunpack.c.0.s8 %v8639
  %v8641 = vlaneseq
  %v8642 = vshrl.u32 %v8641, 7
  %v8643 = vsub.s32 %v8640, %v8642
  %v8644 = vrot.slane %v8637, %v8643
  %v8645 = vcombine.low %v6594, %v6596
  %v8647 = vunpack.c.l.s4 1966171168
  %v8648 = vunpack.c.0.s8 %v8647
  %v8649 = vlaneseq
  %v8650 = vshrl.u32 %v8649, 7
  %v8651 = vsub.s32 %v8648, %v8650
  %v8652 = vrot.slane %v8645, %v8651
  %v8654 = vunpack.c.l.s4 1966171168
  %v8655 = vunpack.c.0.s8 %v8654
  %v8656 = vlaneseq
  %v8657 = vshrl.u32 %v8656, 7
  %v8658 = vsub.s32 %v8655, %v8657
  %v8659 = vrot.slane %v8652, %v8658
  %v8660 = vcombine.low %v6718, %v6732
  %v8662 = vunpack.c.l.s4 1966171168
  %v8663 = vunpack.c.0.s8 %v8662
  %v8664 = vlaneseq
  %v8665 = vshrl.u32 %v8664, 7
  %v8666 = vsub.s32 %v8663, %v8665
  %v8667 = vrot.slane %v8660, %v8666
  %v8669 = vunpack.c.l.s4 1966171168
  %v8670 = vunpack.c.0.s8 %v8669
  %v8671 = vlaneseq
  %v8672 = vshrl.u32 %v8671, 7
  %v8673 = vsub.s32 %v8670, %v8672
  %v8674 = vrot.slane %v8667, %v8673
  %v8675 = vcombine.low %v6838, %v6840
  %v8677 = vunpack.c.l.s4 1966171168
  %v8678 = vunpack.c.0.s8 %v8677
  %v8679 = vlaneseq
  %v8680 = vshrl.u32 %v8679, 7
  %v8681 = vsub.s32 %v8678, %v8680
  %v8682 = vrot.slane %v8675, %v8681
  %v8684 = vunpack.c.l.s4 1966171168
  %v8685 = vunpack.c.0.s8 %v8684
  %v8686 = vlaneseq
  %v8687 = vshrl.u32 %v8686, 7
  %v8688 = vsub.s32 %v8685, %v8687
  %v8689 = vrot.slane %v8682, %v8688
  %8690 = vrot.lane.b32.xlu0 %v6871, 64
  %v8691 = vpop.permute.xlu0 %8690
  %8692 = vrot.lane.b32.xlu0 %v6886, 64
  %v8693 = vpop.permute.xlu0 %8692
  %8694 = vrot.lane.b32.xlu0 %v6901, 64
  %v8695 = vpop.permute.xlu0 %8694
  %8696 = vrot.lane.b32.xlu0 %v8584, 64
  %v8697 = vpop.permute.xlu0 %8696
  %8698 = vrot.lane.b32.xlu0 %v6931, 64
  %v8699 = vpop.permute.xlu0 %8698
  %8700 = vrot.lane.b32.xlu0 %v6946, 64
  %v8701 = vpop.permute.xlu0 %8700
  %8702 = vrot.lane.b32.xlu0 %v6961, 64
  %v8703 = vpop.permute.xlu0 %8702
  %8704 = vrot.lane.b32.xlu0 %v8599, 64
  %v8705 = vpop.permute.xlu0 %8704
  %8706 = vrot.lane.b32.xlu0 %v6991, 64
  %v8707 = vpop.permute.xlu0 %8706
  %8708 = vrot.lane.b32.xlu0 %v7006, 64
  %v8709 = vpop.permute.xlu0 %8708
  %8710 = vrot.lane.b32.xlu0 %v7021, 64
  %v8711 = vpop.permute.xlu0 %8710
  %8712 = vrot.lane.b32.xlu0 %v8614, 64
  %v8713 = vpop.permute.xlu0 %8712
  %8714 = vrot.lane.b32.xlu0 %v7051, 64
  %v8715 = vpop.permute.xlu0 %8714
  %8716 = vrot.lane.b32.xlu0 %v7066, 64
  %v8717 = vpop.permute.xlu0 %8716
  %8718 = vrot.lane.b32.xlu0 %v7081, 64
  %v8719 = vpop.permute.xlu0 %8718
  %8720 = vrot.lane.b32.xlu0 %v8629, 64
  %v8721 = vpop.permute.xlu0 %8720
  %8722 = vrot.lane.b32.xlu0 %v7111, 64
  %v8723 = vpop.permute.xlu0 %8722
  %8724 = vrot.lane.b32.xlu0 %v7126, 64
  %v8725 = vpop.permute.xlu0 %8724
  %8726 = vrot.lane.b32.xlu0 %v7141, 64
  %v8727 = vpop.permute.xlu0 %8726
  %8728 = vrot.lane.b32.xlu0 %v8644, 64
  %v8729 = vpop.permute.xlu0 %8728
  %8730 = vrot.lane.b32.xlu0 %v7171, 64
  %v8731 = vpop.permute.xlu0 %8730
  %8732 = vrot.lane.b32.xlu0 %v7186, 64
  %v8733 = vpop.permute.xlu0 %8732
  %8734 = vrot.lane.b32.xlu0 %v7201, 64
  %v8735 = vpop.permute.xlu0 %8734
  %8736 = vrot.lane.b32.xlu0 %v8659, 64
  %v8737 = vpop.permute.xlu0 %8736
  %8738 = vrot.lane.b32.xlu0 %v7231, 64
  %v8739 = vpop.permute.xlu0 %8738
  %8740 = vrot.lane.b32.xlu0 %v7246, 64
  %v8741 = vpop.permute.xlu0 %8740
  %8742 = vrot.lane.b32.xlu0 %v7261, 64
  %v8743 = vpop.permute.xlu0 %8742
  %8744 = vrot.lane.b32.xlu0 %v8674, 64
  %v8745 = vpop.permute.xlu0 %8744
  %8746 = vrot.lane.b32.xlu0 %v7291, 64
  %v8747 = vpop.permute.xlu0 %8746
  %8748 = vrot.lane.b32.xlu0 %v7306, 64
  %v8749 = vpop.permute.xlu0 %8748
  %8750 = vrot.lane.b32.xlu0 %v7321, 64
  %v8751 = vpop.permute.xlu0 %8750
  %8752 = vrot.lane.b32.xlu0 %v8689, 64
  %v8753 = vpop.permute.xlu0 %8752
  %v8755 = vunpack.c.l.s4 1966171168
  %v8756 = vunpack.c.0.s8 %v8755
  %v8757 = vlaneseq
  %v8758 = vshrl.u32 %v8757, 7
  %v8759 = vsub.s32 %v8756, %v8758
  %v8760 = vrot.slane %v6055, %v8759
  %v8761 = vcombine.low %v8577, %v8760
  %v8763 = vunpack.c.l.s4 1966171168
  %v8764 = vunpack.c.0.s8 %v8763
  %v8765 = vlaneseq
  %v8766 = vshrl.u32 %v8765, 7
  %v8767 = vsub.s32 %v8764, %v8766
  %v8768 = vrot.slane %v8761, %v8767
  %v8770 = vunpack.c.l.s4 1966171168
  %v8771 = vunpack.c.0.s8 %v8770
  %v8772 = vlaneseq
  %v8773 = vshrl.u32 %v8772, 7
  %v8774 = vsub.s32 %v8771, %v8773
  %v8775 = vrot.slane %v6179, %v8774
  %v8776 = vcombine.low %v8592, %v8775
  %v8778 = vunpack.c.l.s4 1966171168
  %v8779 = vunpack.c.0.s8 %v8778
  %v8780 = vlaneseq
  %v8781 = vshrl.u32 %v8780, 7
  %v8782 = vsub.s32 %v8779, %v8781
  %v8783 = vrot.slane %v8776, %v8782
  %v8785 = vunpack.c.l.s4 1966171168
  %v8786 = vunpack.c.0.s8 %v8785
  %v8787 = vlaneseq
  %v8788 = vshrl.u32 %v8787, 7
  %v8789 = vsub.s32 %v8786, %v8788
  %v8790 = vrot.slane %v6299, %v8789
  %v8791 = vcombine.low %v8607, %v8790
  %v8793 = vunpack.c.l.s4 1966171168
  %v8794 = vunpack.c.0.s8 %v8793
  %v8795 = vlaneseq
  %v8796 = vshrl.u32 %v8795, 7
  %v8797 = vsub.s32 %v8794, %v8796
  %v8798 = vrot.slane %v8791, %v8797
  %v8800 = vunpack.c.l.s4 1966171168
  %v8801 = vunpack.c.0.s8 %v8800
  %v8802 = vlaneseq
  %v8803 = vshrl.u32 %v8802, 7
  %v8804 = vsub.s32 %v8801, %v8803
  %v8805 = vrot.slane %v6382, %v8804
  %v8806 = vcombine.low %v8622, %v8805
  %v8808 = vunpack.c.l.s4 1966171168
  %v8809 = vunpack.c.0.s8 %v8808
  %v8810 = vlaneseq
  %v8811 = vshrl.u32 %v8810, 7
  %v8812 = vsub.s32 %v8809, %v8811
  %v8813 = vrot.slane %v8806, %v8812
  %v8815 = vunpack.c.l.s4 1966171168
  %v8816 = vunpack.c.0.s8 %v8815
  %v8817 = vlaneseq
  %v8818 = vshrl.u32 %v8817, 7
  %v8819 = vsub.s32 %v8816, %v8818
  %v8820 = vrot.slane %v6496, %v8819
  %v8821 = vcombine.low %v8637, %v8820
  %v8823 = vunpack.c.l.s4 1966171168
  %v8824 = vunpack.c.0.s8 %v8823
  %v8825 = vlaneseq
  %v8826 = vshrl.u32 %v8825, 7
  %v8827 = vsub.s32 %v8824, %v8826
  %v8828 = vrot.slane %v8821, %v8827
  %v8830 = vunpack.c.l.s4 1966171168
  %v8831 = vunpack.c.0.s8 %v8830
  %v8832 = vlaneseq
  %v8833 = vshrl.u32 %v8832, 7
  %v8834 = vsub.s32 %v8831, %v8833
  %v8835 = vrot.slane %v6620, %v8834
  %v8836 = vcombine.low %v8652, %v8835
  %v8838 = vunpack.c.l.s4 1966171168
  %v8839 = vunpack.c.0.s8 %v8838
  %v8840 = vlaneseq
  %v8841 = vshrl.u32 %v8840, 7
  %v8842 = vsub.s32 %v8839, %v8841
  %v8843 = vrot.slane %v8836, %v8842
  %v8845 = vunpack.c.l.s4 1966171168
  %v8846 = vunpack.c.0.s8 %v8845
  %v8847 = vlaneseq
  %v8848 = vshrl.u32 %v8847, 7
  %v8849 = vsub.s32 %v8846, %v8848
  %v8850 = vrot.slane %v6740, %v8849
  %v8851 = vcombine.low %v8667, %v8850
  %v8853 = vunpack.c.l.s4 1966171168
  %v8854 = vunpack.c.0.s8 %v8853
  %v8855 = vlaneseq
  %v8856 = vshrl.u32 %v8855, 7
  %v8857 = vsub.s32 %v8854, %v8856
  %v8858 = vrot.slane %v8851, %v8857
  %v8860 = vunpack.c.l.s4 1966171168
  %v8861 = vunpack.c.0.s8 %v8860
  %v8862 = vlaneseq
  %v8863 = vshrl.u32 %v8862, 7
  %v8864 = vsub.s32 %v8861, %v8863
  %v8865 = vrot.slane %v6823, %v8864
  %v8866 = vcombine.low %v8682, %v8865
  %v8868 = vunpack.c.l.s4 1966171168
  %v8869 = vunpack.c.0.s8 %v8868
  %v8870 = vlaneseq
  %v8871 = vshrl.u32 %v8870, 7
  %v8872 = vsub.s32 %v8869, %v8871
  %v8873 = vrot.slane %v8866, %v8872
  %v8875 = vshrl.u32 %v8768, 16
  %v8877 = vshll.u32 %v8768, 16
  %v8879 = vrot.slane %v8877, 1
  %v8880 = vor.u32 %v8875, %v8879
  %v8882 = vshrl.u32 %v8783, 16
  %v8884 = vshll.u32 %v8783, 16
  %v8886 = vrot.slane %v8884, 1
  %v8887 = vor.u32 %v8882, %v8886
  %v8889 = vshrl.u32 %v8798, 16
  %v8891 = vshll.u32 %v8798, 16
  %v8893 = vrot.slane %v8891, 1
  %v8894 = vor.u32 %v8889, %v8893
  %v8896 = vshrl.u32 %v8813, 16
  %v8898 = vshll.u32 %v8813, 16
  %v8900 = vrot.slane %v8898, 1
  %v8901 = vor.u32 %v8896, %v8900
  %v8903 = vshrl.u32 %v8828, 16
  %v8905 = vshll.u32 %v8828, 16
  %v8907 = vrot.slane %v8905, 1
  %v8908 = vor.u32 %v8903, %v8907
  %v8910 = vshrl.u32 %v8843, 16
  %v8912 = vshll.u32 %v8843, 16
  %v8914 = vrot.slane %v8912, 1
  %v8915 = vor.u32 %v8910, %v8914
  %v8917 = vshrl.u32 %v8858, 16
  %v8919 = vshll.u32 %v8858, 16
  %v8921 = vrot.slane %v8919, 1
  %v8922 = vor.u32 %v8917, %v8921
  %v8924 = vshrl.u32 %v8873, 16
  %v8926 = vshll.u32 %v8873, 16
  %v8928 = vrot.slane %v8926, 1
  %v8929 = vor.u32 %v8924, %v8928
  %v8930 = vcombine.low %v6053, %v6055
  %v8932 = vunpack.c.l.s4 1966171168
  %v8933 = vunpack.c.0.s8 %v8932
  %v8934 = vlaneseq
  %v8935 = vshrl.u32 %v8934, 7
  %v8936 = vsub.s32 %v8933, %v8935
  %v8937 = vrot.slane %v8930, %v8936
  %v8939 = vunpack.c.l.s4 1966171168
  %v8940 = vunpack.c.0.s8 %v8939
  %v8941 = vlaneseq
  %v8942 = vshrl.u32 %v8941, 7
  %v8943 = vsub.s32 %v8940, %v8942
  %v8944 = vrot.slane %v8937, %v8943
  %v8945 = vcombine.low %v6155, %v6179
  %v8947 = vunpack.c.l.s4 1966171168
  %v8948 = vunpack.c.0.s8 %v8947
  %v8949 = vlaneseq
  %v8950 = vshrl.u32 %v8949, 7
  %v8951 = vsub.s32 %v8948, %v8950
  %v8952 = vrot.slane %v8945, %v8951
  %v8954 = vunpack.c.l.s4 1966171168
  %v8955 = vunpack.c.0.s8 %v8954
  %v8956 = vlaneseq
  %v8957 = vshrl.u32 %v8956, 7
  %v8958 = vsub.s32 %v8955, %v8957
  %v8959 = vrot.slane %v8952, %v8958
  %v8960 = vcombine.low %v6291, %v6299
  %v8962 = vunpack.c.l.s4 1966171168
  %v8963 = vunpack.c.0.s8 %v8962
  %v8964 = vlaneseq
  %v8965 = vshrl.u32 %v8964, 7
  %v8966 = vsub.s32 %v8963, %v8965
  %v8967 = vrot.slane %v8960, %v8966
  %v8969 = vunpack.c.l.s4 1966171168
  %v8970 = vunpack.c.0.s8 %v8969
  %v8971 = vlaneseq
  %v8972 = vshrl.u32 %v8971, 7
  %v8973 = vsub.s32 %v8970, %v8972
  %v8974 = vrot.slane %v8967, %v8973
  %v8975 = vcombine.low %v6399, %v6382
  %v8977 = vunpack.c.l.s4 1966171168
  %v8978 = vunpack.c.0.s8 %v8977
  %v8979 = vlaneseq
  %v8980 = vshrl.u32 %v8979, 7
  %v8981 = vsub.s32 %v8978, %v8980
  %v8982 = vrot.slane %v8975, %v8981
  %v8984 = vunpack.c.l.s4 1966171168
  %v8985 = vunpack.c.0.s8 %v8984
  %v8986 = vlaneseq
  %v8987 = vshrl.u32 %v8986, 7
  %v8988 = vsub.s32 %v8985, %v8987
  %v8989 = vrot.slane %v8982, %v8988
  %v8990 = vcombine.low %v6494, %v6496
  %v8992 = vunpack.c.l.s4 1966171168
  %v8993 = vunpack.c.0.s8 %v8992
  %v8994 = vlaneseq
  %v8995 = vshrl.u32 %v8994, 7
  %v8996 = vsub.s32 %v8993, %v8995
  %v8997 = vrot.slane %v8990, %v8996
  %v8999 = vunpack.c.l.s4 1966171168
  %v9000 = vunpack.c.0.s8 %v8999
  %v9001 = vlaneseq
  %v9002 = vshrl.u32 %v9001, 7
  %v9003 = vsub.s32 %v9000, %v9002
  %v9004 = vrot.slane %v8997, %v9003
  %v9005 = vcombine.low %v6596, %v6620
  %v9007 = vunpack.c.l.s4 1966171168
  %v9008 = vunpack.c.0.s8 %v9007
  %v9009 = vlaneseq
  %v9010 = vshrl.u32 %v9009, 7
  %v9011 = vsub.s32 %v9008, %v9010
  %v9012 = vrot.slane %v9005, %v9011
  %v9014 = vunpack.c.l.s4 1966171168
  %v9015 = vunpack.c.0.s8 %v9014
  %v9016 = vlaneseq
  %v9017 = vshrl.u32 %v9016, 7
  %v9018 = vsub.s32 %v9015, %v9017
  %v9019 = vrot.slane %v9012, %v9018
  %v9020 = vcombine.low %v6732, %v6740
  %v9022 = vunpack.c.l.s4 1966171168
  %v9023 = vunpack.c.0.s8 %v9022
  %v9024 = vlaneseq
  %v9025 = vshrl.u32 %v9024, 7
  %v9026 = vsub.s32 %v9023, %v9025
  %v9027 = vrot.slane %v9020, %v9026
  %v9029 = vunpack.c.l.s4 1966171168
  %v9030 = vunpack.c.0.s8 %v9029
  %v9031 = vlaneseq
  %v9032 = vshrl.u32 %v9031, 7
  %v9033 = vsub.s32 %v9030, %v9032
  %v9034 = vrot.slane %v9027, %v9033
  %v9035 = vcombine.low %v6840, %v6823
  %v9037 = vunpack.c.l.s4 1966171168
  %v9038 = vunpack.c.0.s8 %v9037
  %v9039 = vlaneseq
  %v9040 = vshrl.u32 %v9039, 7
  %v9041 = vsub.s32 %v9038, %v9040
  %v9042 = vrot.slane %v9035, %v9041
  %v9044 = vunpack.c.l.s4 1966171168
  %v9045 = vunpack.c.0.s8 %v9044
  %v9046 = vlaneseq
  %v9047 = vshrl.u32 %v9046, 7
  %v9048 = vsub.s32 %v9045, %v9047
  %v9049 = vrot.slane %v9042, %v9048
  %9050 = vrot.lane.b32.xlu0 %v8119, 64
  %v9051 = vpop.permute.xlu0 %9050
  %9052 = vrot.lane.b32.xlu0 %v8134, 64
  %v9053 = vpop.permute.xlu0 %9052
  %9054 = vrot.lane.b32.xlu0 %v8149, 64
  %v9055 = vpop.permute.xlu0 %9054
  %9056 = vrot.lane.b32.xlu0 %v8944, 64
  %v9057 = vpop.permute.xlu0 %9056
  %9058 = vrot.lane.b32.xlu0 %v8179, 64
  %v9059 = vpop.permute.xlu0 %9058
  %9060 = vrot.lane.b32.xlu0 %v8194, 64
  %v9061 = vpop.permute.xlu0 %9060
  %9062 = vrot.lane.b32.xlu0 %v8209, 64
  %v9063 = vpop.permute.xlu0 %9062
  %9064 = vrot.lane.b32.xlu0 %v8959, 64
  %v9065 = vpop.permute.xlu0 %9064
  %9066 = vrot.lane.b32.xlu0 %v8239, 64
  %v9067 = vpop.permute.xlu0 %9066
  %9068 = vrot.lane.b32.xlu0 %v8254, 64
  %v9069 = vpop.permute.xlu0 %9068
  %9070 = vrot.lane.b32.xlu0 %v8269, 64
  %v9071 = vpop.permute.xlu0 %9070
  %9072 = vrot.lane.b32.xlu0 %v8974, 64
  %v9073 = vpop.permute.xlu0 %9072
  %9074 = vrot.lane.b32.xlu0 %v8299, 64
  %v9075 = vpop.permute.xlu0 %9074
  %9076 = vrot.lane.b32.xlu0 %v8314, 64
  %v9077 = vpop.permute.xlu0 %9076
  %9078 = vrot.lane.b32.xlu0 %v8329, 64
  %v9079 = vpop.permute.xlu0 %9078
  %9080 = vrot.lane.b32.xlu0 %v8989, 64
  %v9081 = vpop.permute.xlu0 %9080
  %9082 = vrot.lane.b32.xlu0 %v8359, 64
  %v9083 = vpop.permute.xlu0 %9082
  %9084 = vrot.lane.b32.xlu0 %v8374, 64
  %v9085 = vpop.permute.xlu0 %9084
  %9086 = vrot.lane.b32.xlu0 %v8389, 64
  %v9087 = vpop.permute.xlu0 %9086
  %9088 = vrot.lane.b32.xlu0 %v9004, 64
  %v9089 = vpop.permute.xlu0 %9088
  %9090 = vrot.lane.b32.xlu0 %v8419, 64
  %v9091 = vpop.permute.xlu0 %9090
  %9092 = vrot.lane.b32.xlu0 %v8434, 64
  %v9093 = vpop.permute.xlu0 %9092
  %9094 = vrot.lane.b32.xlu0 %v8449, 64
  %v9095 = vpop.permute.xlu0 %9094
  %9096 = vrot.lane.b32.xlu0 %v9019, 64
  %v9097 = vpop.permute.xlu0 %9096
  %9098 = vrot.lane.b32.xlu0 %v8479, 64
  %v9099 = vpop.permute.xlu0 %9098
  %9100 = vrot.lane.b32.xlu0 %v8494, 64
  %v9101 = vpop.permute.xlu0 %9100
  %9102 = vrot.lane.b32.xlu0 %v8509, 64
  %v9103 = vpop.permute.xlu0 %9102
  %9104 = vrot.lane.b32.xlu0 %v9034, 64
  %v9105 = vpop.permute.xlu0 %9104
  %9106 = vrot.lane.b32.xlu0 %v8539, 64
  %v9107 = vpop.permute.xlu0 %9106
  %9108 = vrot.lane.b32.xlu0 %v8554, 64
  %v9109 = vpop.permute.xlu0 %9108
  %9110 = vrot.lane.b32.xlu0 %v8569, 64
  %v9111 = vpop.permute.xlu0 %9110
  %9112 = vrot.lane.b32.xlu0 %v9049, 64
  %v9113 = vpop.permute.xlu0 %9112
  %v9114 = vcombine.low %v6057, %v6081
  %v9116 = vunpack.c.l.s4 1966171168
  %v9117 = vunpack.c.0.s8 %v9116
  %v9118 = vlaneseq
  %v9119 = vshrl.u32 %v9118, 7
  %v9120 = vsub.s32 %v9117, %v9119
  %v9121 = vrot.slane %v9114, %v9120
  %v9123 = vunpack.c.l.s4 1966171168
  %v9124 = vunpack.c.0.s8 %v9123
  %v9125 = vlaneseq
  %v9126 = vshrl.u32 %v9125, 7
  %v9127 = vsub.s32 %v9124, %v9126
  %v9128 = vrot.slane %v9121, %v9127
  %v9129 = vcombine.low %v6193, %v6201
  %v9131 = vunpack.c.l.s4 1966171168
  %v9132 = vunpack.c.0.s8 %v9131
  %v9133 = vlaneseq
  %v9134 = vshrl.u32 %v9133, 7
  %v9135 = vsub.s32 %v9132, %v9134
  %v9136 = vrot.slane %v9129, %v9135
  %v9138 = vunpack.c.l.s4 1966171168
  %v9139 = vunpack.c.0.s8 %v9138
  %v9140 = vlaneseq
  %v9141 = vshrl.u32 %v9140, 7
  %v9142 = vsub.s32 %v9139, %v9141
  %v9143 = vrot.slane %v9136, %v9142
  %v9144 = vcombine.low %v6301, %v6284
  %v9146 = vunpack.c.l.s4 1966171168
  %v9147 = vunpack.c.0.s8 %v9146
  %v9148 = vlaneseq
  %v9149 = vshrl.u32 %v9148, 7
  %v9150 = vsub.s32 %v9147, %v9149
  %v9151 = vrot.slane %v9144, %v9150
  %v9153 = vunpack.c.l.s4 1966171168
  %v9154 = vunpack.c.0.s8 %v9153
  %v9155 = vlaneseq
  %v9156 = vshrl.u32 %v9155, 7
  %v9157 = vsub.s32 %v9154, %v9156
  %v9158 = vrot.slane %v9151, %v9157
  %v9159 = vcombine.low %v6396, %v6398
  %v9161 = vunpack.c.l.s4 1966171168
  %v9162 = vunpack.c.0.s8 %v9161
  %v9163 = vlaneseq
  %v9164 = vshrl.u32 %v9163, 7
  %v9165 = vsub.s32 %v9162, %v9164
  %v9166 = vrot.slane %v9159, %v9165
  %v9168 = vunpack.c.l.s4 1966171168
  %v9169 = vunpack.c.0.s8 %v9168
  %v9170 = vlaneseq
  %v9171 = vshrl.u32 %v9170, 7
  %v9172 = vsub.s32 %v9169, %v9171
  %v9173 = vrot.slane %v9166, %v9172
  %v9174 = vcombine.low %v6498, %v6522
  %v9176 = vunpack.c.l.s4 1966171168
  %v9177 = vunpack.c.0.s8 %v9176
  %v9178 = vlaneseq
  %v9179 = vshrl.u32 %v9178, 7
  %v9180 = vsub.s32 %v9177, %v9179
  %v9181 = vrot.slane %v9174, %v9180
  %v9183 = vunpack.c.l.s4 1966171168
  %v9184 = vunpack.c.0.s8 %v9183
  %v9185 = vlaneseq
  %v9186 = vshrl.u32 %v9185, 7
  %v9187 = vsub.s32 %v9184, %v9186
  %v9188 = vrot.slane %v9181, %v9187
  %v9189 = vcombine.low %v6634, %v6642
  %v9191 = vunpack.c.l.s4 1966171168
  %v9192 = vunpack.c.0.s8 %v9191
  %v9193 = vlaneseq
  %v9194 = vshrl.u32 %v9193, 7
  %v9195 = vsub.s32 %v9192, %v9194
  %v9196 = vrot.slane %v9189, %v9195
  %v9198 = vunpack.c.l.s4 1966171168
  %v9199 = vunpack.c.0.s8 %v9198
  %v9200 = vlaneseq
  %v9201 = vshrl.u32 %v9200, 7
  %v9202 = vsub.s32 %v9199, %v9201
  %v9203 = vrot.slane %v9196, %v9202
  %v9204 = vcombine.low %v6742, %v6725
  %v9206 = vunpack.c.l.s4 1966171168
  %v9207 = vunpack.c.0.s8 %v9206
  %v9208 = vlaneseq
  %v9209 = vshrl.u32 %v9208, 7
  %v9210 = vsub.s32 %v9207, %v9209
  %v9211 = vrot.slane %v9204, %v9210
  %v9213 = vunpack.c.l.s4 1966171168
  %v9214 = vunpack.c.0.s8 %v9213
  %v9215 = vlaneseq
  %v9216 = vshrl.u32 %v9215, 7
  %v9217 = vsub.s32 %v9214, %v9216
  %v9218 = vrot.slane %v9211, %v9217
  %v9219 = vcombine.low %v6837, %v6839
  %v9221 = vunpack.c.l.s4 1966171168
  %v9222 = vunpack.c.0.s8 %v9221
  %v9223 = vlaneseq
  %v9224 = vshrl.u32 %v9223, 7
  %v9225 = vsub.s32 %v9222, %v9224
  %v9226 = vrot.slane %v9219, %v9225
  %v9228 = vunpack.c.l.s4 1966171168
  %v9229 = vunpack.c.0.s8 %v9228
  %v9230 = vlaneseq
  %v9231 = vshrl.u32 %v9230, 7
  %v9232 = vsub.s32 %v9229, %v9231
  %v9233 = vrot.slane %v9226, %v9232
  %v9235 = vunpack.c.l.s4 1966171168
  %v9236 = vunpack.c.0.s8 %v9235
  %v9237 = vlaneseq
  %v9238 = vshrl.u32 %v9237, 7
  %v9239 = vsub.s32 %v9236, %v9238
  %v9240 = vrot.slane %v6095, %v9239
  %v9241 = vcombine.low %v9121, %v9240
  %v9243 = vunpack.c.l.s4 1966171168
  %v9244 = vunpack.c.0.s8 %v9243
  %v9245 = vlaneseq
  %v9246 = vshrl.u32 %v9245, 7
  %v9247 = vsub.s32 %v9244, %v9246
  %v9248 = vrot.slane %v9241, %v9247
  %v9250 = vunpack.c.l.s4 1966171168
  %v9251 = vunpack.c.0.s8 %v9250
  %v9252 = vlaneseq
  %v9253 = vshrl.u32 %v9252, 7
  %v9254 = vsub.s32 %v9251, %v9253
  %v9255 = vrot.slane %v6203, %v9254
  %v9256 = vcombine.low %v9136, %v9255
  %v9258 = vunpack.c.l.s4 1966171168
  %v9259 = vunpack.c.0.s8 %v9258
  %v9260 = vlaneseq
  %v9261 = vshrl.u32 %v9260, 7
  %v9262 = vsub.s32 %v9259, %v9261
  %v9263 = vrot.slane %v9256, %v9262
  %v9265 = vunpack.c.l.s4 1966171168
  %v9266 = vunpack.c.0.s8 %v9265
  %v9267 = vlaneseq
  %v9268 = vshrl.u32 %v9267, 7
  %v9269 = vsub.s32 %v9266, %v9268
  %v9270 = vrot.slane %v6298, %v9269
  %v9271 = vcombine.low %v9151, %v9270
  %v9273 = vunpack.c.l.s4 1966171168
  %v9274 = vunpack.c.0.s8 %v9273
  %v9275 = vlaneseq
  %v9276 = vshrl.u32 %v9275, 7
  %v9277 = vsub.s32 %v9274, %v9276
  %v9278 = vrot.slane %v9271, %v9277
  %v9280 = vunpack.c.l.s4 1966171168
  %v9281 = vunpack.c.0.s8 %v9280
  %v9282 = vlaneseq
  %v9283 = vshrl.u32 %v9282, 7
  %v9284 = vsub.s32 %v9281, %v9283
  %v9285 = vrot.slane %v6400, %v9284
  %v9286 = vcombine.low %v9166, %v9285
  %v9288 = vunpack.c.l.s4 1966171168
  %v9289 = vunpack.c.0.s8 %v9288
  %v9290 = vlaneseq
  %v9291 = vshrl.u32 %v9290, 7
  %v9292 = vsub.s32 %v9289, %v9291
  %v9293 = vrot.slane %v9286, %v9292
  %v9295 = vunpack.c.l.s4 1966171168
  %v9296 = vunpack.c.0.s8 %v9295
  %v9297 = vlaneseq
  %v9298 = vshrl.u32 %v9297, 7
  %v9299 = vsub.s32 %v9296, %v9298
  %v9300 = vrot.slane %v6536, %v9299
  %v9301 = vcombine.low %v9181, %v9300
  %v9303 = vunpack.c.l.s4 1966171168
  %v9304 = vunpack.c.0.s8 %v9303
  %v9305 = vlaneseq
  %v9306 = vshrl.u32 %v9305, 7
  %v9307 = vsub.s32 %v9304, %v9306
  %v9308 = vrot.slane %v9301, %v9307
  %v9310 = vunpack.c.l.s4 1966171168
  %v9311 = vunpack.c.0.s8 %v9310
  %v9312 = vlaneseq
  %v9313 = vshrl.u32 %v9312, 7
  %v9314 = vsub.s32 %v9311, %v9313
  %v9315 = vrot.slane %v6644, %v9314
  %v9316 = vcombine.low %v9196, %v9315
  %v9318 = vunpack.c.l.s4 1966171168
  %v9319 = vunpack.c.0.s8 %v9318
  %v9320 = vlaneseq
  %v9321 = vshrl.u32 %v9320, 7
  %v9322 = vsub.s32 %v9319, %v9321
  %v9323 = vrot.slane %v9316, %v9322
  %v9325 = vunpack.c.l.s4 1966171168
  %v9326 = vunpack.c.0.s8 %v9325
  %v9327 = vlaneseq
  %v9328 = vshrl.u32 %v9327, 7
  %v9329 = vsub.s32 %v9326, %v9328
  %v9330 = vrot.slane %v6739, %v9329
  %v9331 = vcombine.low %v9211, %v9330
  %v9333 = vunpack.c.l.s4 1966171168
  %v9334 = vunpack.c.0.s8 %v9333
  %v9335 = vlaneseq
  %v9336 = vshrl.u32 %v9335, 7
  %v9337 = vsub.s32 %v9334, %v9336
  %v9338 = vrot.slane %v9331, %v9337
  %v9340 = vunpack.c.l.s4 1966171168
  %v9341 = vunpack.c.0.s8 %v9340
  %v9342 = vlaneseq
  %v9343 = vshrl.u32 %v9342, 7
  %v9344 = vsub.s32 %v9341, %v9343
  %v9345 = vrot.slane %v6841, %v9344
  %v9346 = vcombine.low %v9226, %v9345
  %v9348 = vunpack.c.l.s4 1966171168
  %v9349 = vunpack.c.0.s8 %v9348
  %v9350 = vlaneseq
  %v9351 = vshrl.u32 %v9350, 7
  %v9352 = vsub.s32 %v9349, %v9351
  %v9353 = vrot.slane %v9346, %v9352
  %v9355 = vshrl.u32 %v9248, 16
  %v9357 = vshll.u32 %v9248, 16
  %v9359 = vrot.slane %v9357, 1
  %v9360 = vor.u32 %v9355, %v9359
  %v9362 = vshrl.u32 %v9263, 16
  %v9364 = vshll.u32 %v9263, 16
  %v9366 = vrot.slane %v9364, 1
  %v9367 = vor.u32 %v9362, %v9366
  %v9369 = vshrl.u32 %v9278, 16
  %v9371 = vshll.u32 %v9278, 16
  %v9373 = vrot.slane %v9371, 1
  %v9374 = vor.u32 %v9369, %v9373
  %v9376 = vshrl.u32 %v9293, 16
  %v9378 = vshll.u32 %v9293, 16
  %v9380 = vrot.slane %v9378, 1
  %v9381 = vor.u32 %v9376, %v9380
  %v9383 = vshrl.u32 %v9308, 16
  %v9385 = vshll.u32 %v9308, 16
  %v9387 = vrot.slane %v9385, 1
  %v9388 = vor.u32 %v9383, %v9387
  %v9390 = vshrl.u32 %v9323, 16
  %v9392 = vshll.u32 %v9323, 16
  %v9394 = vrot.slane %v9392, 1
  %v9395 = vor.u32 %v9390, %v9394
  %v9397 = vshrl.u32 %v9338, 16
  %v9399 = vshll.u32 %v9338, 16
  %v9401 = vrot.slane %v9399, 1
  %v9402 = vor.u32 %v9397, %v9401
  %v9404 = vshrl.u32 %v9353, 16
  %v9406 = vshll.u32 %v9353, 16
  %v9408 = vrot.slane %v9406, 1
  %v9409 = vor.u32 %v9404, %v9408
  %9410 = vrot.lane.b32.xlu0 %v8880, 64
  %v9411 = vpop.permute.xlu0 %9410
  %9412 = vrot.lane.b32.xlu0 %v9360, 64
  %v9413 = vpop.permute.xlu0 %9412
  %9414 = vrot.lane.b32.xlu0 %v8887, 64
  %v9415 = vpop.permute.xlu0 %9414
  %9416 = vrot.lane.b32.xlu0 %v9367, 64
  %v9417 = vpop.permute.xlu0 %9416
  %9418 = vrot.lane.b32.xlu0 %v8894, 64
  %v9419 = vpop.permute.xlu0 %9418
  %9420 = vrot.lane.b32.xlu0 %v9374, 64
  %v9421 = vpop.permute.xlu0 %9420
  %9422 = vrot.lane.b32.xlu0 %v8901, 64
  %v9423 = vpop.permute.xlu0 %9422
  %9424 = vrot.lane.b32.xlu0 %v9381, 64
  %v9425 = vpop.permute.xlu0 %9424
  %9426 = vrot.lane.b32.xlu0 %v8908, 64
  %v9427 = vpop.permute.xlu0 %9426
  %9428 = vrot.lane.b32.xlu0 %v9388, 64
  %v9429 = vpop.permute.xlu0 %9428
  %9430 = vrot.lane.b32.xlu0 %v8915, 64
  %v9431 = vpop.permute.xlu0 %9430
  %9432 = vrot.lane.b32.xlu0 %v9395, 64
  %v9433 = vpop.permute.xlu0 %9432
  %9434 = vrot.lane.b32.xlu0 %v8922, 64
  %v9435 = vpop.permute.xlu0 %9434
  %9436 = vrot.lane.b32.xlu0 %v9402, 64
  %v9437 = vpop.permute.xlu0 %9436
  %9438 = vrot.lane.b32.xlu0 %v8929, 64
  %v9439 = vpop.permute.xlu0 %9438
  %9440 = vrot.lane.b32.xlu0 %v9409, 64
  %v9441 = vpop.permute.xlu0 %9440
  %v9442 = vcombine.low %v6081, %v6095
  %v9444 = vunpack.c.l.s4 1966171168
  %v9445 = vunpack.c.0.s8 %v9444
  %v9446 = vlaneseq
  %v9447 = vshrl.u32 %v9446, 7
  %v9448 = vsub.s32 %v9445, %v9447
  %v9449 = vrot.slane %v9442, %v9448
  %v9451 = vunpack.c.l.s4 1966171168
  %v9452 = vunpack.c.0.s8 %v9451
  %v9453 = vlaneseq
  %v9454 = vshrl.u32 %v9453, 7
  %v9455 = vsub.s32 %v9452, %v9454
  %v9456 = vrot.slane %v9449, %v9455
  %v9457 = vcombine.low %v6201, %v6203
  %v9459 = vunpack.c.l.s4 1966171168
  %v9460 = vunpack.c.0.s8 %v9459
  %v9461 = vlaneseq
  %v9462 = vshrl.u32 %v9461, 7
  %v9463 = vsub.s32 %v9460, %v9462
  %v9464 = vrot.slane %v9457, %v9463
  %v9466 = vunpack.c.l.s4 1966171168
  %v9467 = vunpack.c.0.s8 %v9466
  %v9468 = vlaneseq
  %v9469 = vshrl.u32 %v9468, 7
  %v9470 = vsub.s32 %v9467, %v9469
  %v9471 = vrot.slane %v9464, %v9470
  %v9472 = vcombine.low %v6284, %v6298
  %v9474 = vunpack.c.l.s4 1966171168
  %v9475 = vunpack.c.0.s8 %v9474
  %v9476 = vlaneseq
  %v9477 = vshrl.u32 %v9476, 7
  %v9478 = vsub.s32 %v9475, %v9477
  %v9479 = vrot.slane %v9472, %v9478
  %v9481 = vunpack.c.l.s4 1966171168
  %v9482 = vunpack.c.0.s8 %v9481
  %v9483 = vlaneseq
  %v9484 = vshrl.u32 %v9483, 7
  %v9485 = vsub.s32 %v9482, %v9484
  %v9486 = vrot.slane %v9479, %v9485
  %v9487 = vcombine.low %v6398, %v6400
  %v9489 = vunpack.c.l.s4 1966171168
  %v9490 = vunpack.c.0.s8 %v9489
  %v9491 = vlaneseq
  %v9492 = vshrl.u32 %v9491, 7
  %v9493 = vsub.s32 %v9490, %v9492
  %v9494 = vrot.slane %v9487, %v9493
  %v9496 = vunpack.c.l.s4 1966171168
  %v9497 = vunpack.c.0.s8 %v9496
  %v9498 = vlaneseq
  %v9499 = vshrl.u32 %v9498, 7
  %v9500 = vsub.s32 %v9497, %v9499
  %v9501 = vrot.slane %v9494, %v9500
  %v9502 = vcombine.low %v6522, %v6536
  %v9504 = vunpack.c.l.s4 1966171168
  %v9505 = vunpack.c.0.s8 %v9504
  %v9506 = vlaneseq
  %v9507 = vshrl.u32 %v9506, 7
  %v9508 = vsub.s32 %v9505, %v9507
  %v9509 = vrot.slane %v9502, %v9508
  %v9511 = vunpack.c.l.s4 1966171168
  %v9512 = vunpack.c.0.s8 %v9511
  %v9513 = vlaneseq
  %v9514 = vshrl.u32 %v9513, 7
  %v9515 = vsub.s32 %v9512, %v9514
  %v9516 = vrot.slane %v9509, %v9515
  %v9517 = vcombine.low %v6642, %v6644
  %v9519 = vunpack.c.l.s4 1966171168
  %v9520 = vunpack.c.0.s8 %v9519
  %v9521 = vlaneseq
  %v9522 = vshrl.u32 %v9521, 7
  %v9523 = vsub.s32 %v9520, %v9522
  %v9524 = vrot.slane %v9517, %v9523
  %v9526 = vunpack.c.l.s4 1966171168
  %v9527 = vunpack.c.0.s8 %v9526
  %v9528 = vlaneseq
  %v9529 = vshrl.u32 %v9528, 7
  %v9530 = vsub.s32 %v9527, %v9529
  %v9531 = vrot.slane %v9524, %v9530
  %v9532 = vcombine.low %v6725, %v6739
  %v9534 = vunpack.c.l.s4 1966171168
  %v9535 = vunpack.c.0.s8 %v9534
  %v9536 = vlaneseq
  %v9537 = vshrl.u32 %v9536, 7
  %v9538 = vsub.s32 %v9535, %v9537
  %v9539 = vrot.slane %v9532, %v9538
  %v9541 = vunpack.c.l.s4 1966171168
  %v9542 = vunpack.c.0.s8 %v9541
  %v9543 = vlaneseq
  %v9544 = vshrl.u32 %v9543, 7
  %v9545 = vsub.s32 %v9542, %v9544
  %v9546 = vrot.slane %v9539, %v9545
  %v9547 = vcombine.low %v6839, %v6841
  %v9549 = vunpack.c.l.s4 1966171168
  %v9550 = vunpack.c.0.s8 %v9549
  %v9551 = vlaneseq
  %v9552 = vshrl.u32 %v9551, 7
  %v9553 = vsub.s32 %v9550, %v9552
  %v9554 = vrot.slane %v9547, %v9553
  %v9556 = vunpack.c.l.s4 1966171168
  %v9557 = vunpack.c.0.s8 %v9556
  %v9558 = vlaneseq
  %v9559 = vshrl.u32 %v9558, 7
  %v9560 = vsub.s32 %v9557, %v9559
  %v9561 = vrot.slane %v9554, %v9560
  %v9564 = vsel %vm2951, %v6856, %v8027
  %v9567 = vsel %vm2951, %v6871, %v8029
  %v9570 = vsel %vm2951, %v6886, %v8031
  %v9573 = vsel %vm2951, %v6901, %v8033
  %v9576 = vsel %vm2951, %v6916, %v8035
  %v9579 = vsel %vm2951, %v6931, %v8037
  %v9582 = vsel %vm2951, %v6946, %v8039
  %v9585 = vsel %vm2951, %v6961, %v8041
  %v9588 = vsel %vm2951, %v6976, %v8043
  %v9591 = vsel %vm2951, %v6991, %v8045
  %v9594 = vsel %vm2951, %v7006, %v8047
  %v9597 = vsel %vm2951, %v7021, %v8049
  %v9600 = vsel %vm2951, %v7036, %v8051
  %v9603 = vsel %vm2951, %v7051, %v8053
  %v9606 = vsel %vm2951, %v7066, %v8055
  %v9609 = vsel %vm2951, %v7081, %v8057
  %v9612 = vsel %vm2951, %v7096, %v8059
  %v9615 = vsel %vm2951, %v7111, %v8061
  %v9618 = vsel %vm2951, %v7126, %v8063
  %v9621 = vsel %vm2951, %v7141, %v8065
  %v9624 = vsel %vm2951, %v7156, %v8067
  %v9627 = vsel %vm2951, %v7171, %v8069
  %v9630 = vsel %vm2951, %v7186, %v8071
  %v9633 = vsel %vm2951, %v7201, %v8073
  %v9636 = vsel %vm2951, %v7216, %v8075
  %v9639 = vsel %vm2951, %v7231, %v8077
  %v9642 = vsel %vm2951, %v7246, %v8079
  %v9645 = vsel %vm2951, %v7261, %v8081
  %v9648 = vsel %vm2951, %v7276, %v8083
  %v9651 = vsel %vm2951, %v7291, %v8085
  %v9654 = vsel %vm2951, %v7306, %v8087
  %v9657 = vsel %vm2951, %v7321, %v8089
  %v9660 = vsel %vm2951, %v8104, %v8691
  %v9663 = vsel %vm2951, %v8119, %v8693
  %v9666 = vsel %vm2951, %v8134, %v8695
  %v9669 = vsel %vm2951, %v8149, %v8697
  %v9672 = vsel %vm2951, %v8164, %v8699
  %v9675 = vsel %vm2951, %v8179, %v8701
  %v9678 = vsel %vm2951, %v8194, %v8703
  %v9681 = vsel %vm2951, %v8209, %v8705
  %v9684 = vsel %vm2951, %v8224, %v8707
  %v9687 = vsel %vm2951, %v8239, %v8709
  %v9690 = vsel %vm2951, %v8254, %v8711
  %v9693 = vsel %vm2951, %v8269, %v8713
  %v9696 = vsel %vm2951, %v8284, %v8715
  %v9699 = vsel %vm2951, %v8299, %v8717
  %v9702 = vsel %vm2951, %v8314, %v8719
  %v9705 = vsel %vm2951, %v8329, %v8721
  %v9708 = vsel %vm2951, %v8344, %v8723
  %v9711 = vsel %vm2951, %v8359, %v8725
  %v9714 = vsel %vm2951, %v8374, %v8727
  %v9717 = vsel %vm2951, %v8389, %v8729
  %v9720 = vsel %vm2951, %v8404, %v8731
  %v9723 = vsel %vm2951, %v8419, %v8733
  %v9726 = vsel %vm2951, %v8434, %v8735
  %v9729 = vsel %vm2951, %v8449, %v8737
  %v9732 = vsel %vm2951, %v8464, %v8739
  %v9735 = vsel %vm2951, %v8479, %v8741
  %v9738 = vsel %vm2951, %v8494, %v8743
  %v9741 = vsel %vm2951, %v8509, %v8745
  %v9744 = vsel %vm2951, %v8524, %v8747
  %v9747 = vsel %vm2951, %v8539, %v8749
  %v9750 = vsel %vm2951, %v8554, %v8751
  %v9753 = vsel %vm2951, %v8569, %v8753
  %v9756 = vsel %vm2951, %v7815, %v9051
  %v9759 = vsel %vm2951, %v7822, %v9053
  %v9762 = vsel %vm2951, %v7829, %v9055
  %v9765 = vsel %vm2951, %v8880, %v9057
  %v9768 = vsel %vm2951, %v7843, %v9059
  %v9771 = vsel %vm2951, %v7850, %v9061
  %v9774 = vsel %vm2951, %v7857, %v9063
  %v9777 = vsel %vm2951, %v8887, %v9065
  %v9780 = vsel %vm2951, %v7871, %v9067
  %v9783 = vsel %vm2951, %v7878, %v9069
  %v9786 = vsel %vm2951, %v7885, %v9071
  %v9789 = vsel %vm2951, %v8894, %v9073
  %v9792 = vsel %vm2951, %v7899, %v9075
  %v9795 = vsel %vm2951, %v7906, %v9077
  %v9798 = vsel %vm2951, %v7913, %v9079
  %v9801 = vsel %vm2951, %v8901, %v9081
  %v9804 = vsel %vm2951, %v7927, %v9083
  %v9807 = vsel %vm2951, %v7934, %v9085
  %v9810 = vsel %vm2951, %v7941, %v9087
  %v9813 = vsel %vm2951, %v8908, %v9089
  %v9816 = vsel %vm2951, %v7955, %v9091
  %v9819 = vsel %vm2951, %v7962, %v9093
  %v9822 = vsel %vm2951, %v7969, %v9095
  %v9825 = vsel %vm2951, %v8915, %v9097
  %v9828 = vsel %vm2951, %v7983, %v9099
  %v9831 = vsel %vm2951, %v7990, %v9101
  %v9834 = vsel %vm2951, %v7997, %v9103
  %v9837 = vsel %vm2951, %v8922, %v9105
  %v9840 = vsel %vm2951, %v8011, %v9107
  %v9843 = vsel %vm2951, %v8018, %v9109
  %v9846 = vsel %vm2951, %v8025, %v9111
  %v9849 = vsel %vm2951, %v8929, %v9113
  %v9852 = vsel %vm2951, %v8584, %v9411
  %v9855 = vsel %vm2951, %v9128, %v9413
  %v9858 = vsel %vm2951, %v8599, %v9415
  %v9861 = vsel %vm2951, %v9143, %v9417
  %v9864 = vsel %vm2951, %v8614, %v9419
  %v9867 = vsel %vm2951, %v9158, %v9421
  %v9870 = vsel %vm2951, %v8629, %v9423
  %v9873 = vsel %vm2951, %v9173, %v9425
  %v9876 = vsel %vm2951, %v8644, %v9427
  %v9879 = vsel %vm2951, %v9188, %v9429
  %v9882 = vsel %vm2951, %v8659, %v9431
  %v9885 = vsel %vm2951, %v9203, %v9433
  %v9888 = vsel %vm2951, %v8674, %v9435
  %v9891 = vsel %vm2951, %v9218, %v9437
  %v9894 = vsel %vm2951, %v8689, %v9439
  %v9897 = vsel %vm2951, %v9233, %v9441
  %v10010 = vcombine.low %v9564, %v9660
  %v10011 = vcombine.low %v9756, %v9570
  %v10013 = vunpack.c.l.s4 1983009808
  %v10014 = vunpack.c.0.s8 %v10013
  %v10015 = vlaneseq
  %v10016 = vshrl.u32 %v10015, 7
  %v10017 = vsub.s32 %v10014, %v10016
  %v10018 = vrot.slane %v10010, %v10017
  %v10020 = vunpack.c.l.s4 1983009808
  %v10021 = vunpack.c.0.s8 %v10020
  %v10022 = vlaneseq
  %v10023 = vshrl.u32 %v10022, 7
  %v10024 = vsub.s32 %v10021, %v10023
  %v10025 = vrot.slane %v10011, %v10024
  %v10026 = vcombine.low %v10018, %v10025
  %v10028 = vunpack.c.l.s4 1983009808
  %v10029 = vunpack.c.0.s8 %v10028
  %v10030 = vlaneseq
  %v10031 = vshrl.u32 %v10030, 7
  %v10032 = vsub.s32 %v10029, %v10031
  %v10033 = vrot.slane %v8134, %v10032
  %v10034 = vcombine.low %v9567, %v9663
  %v10035 = vcombine.low %v9759, %v9573
  %v10037 = vunpack.c.l.s4 1983009808
  %v10038 = vunpack.c.0.s8 %v10037
  %v10039 = vlaneseq
  %v10040 = vshrl.u32 %v10039, 7
  %v10041 = vsub.s32 %v10038, %v10040
  %v10042 = vrot.slane %v10034, %v10041
  %v10044 = vunpack.c.l.s4 1983009808
  %v10045 = vunpack.c.0.s8 %v10044
  %v10046 = vlaneseq
  %v10047 = vshrl.u32 %v10046, 7
  %v10048 = vsub.s32 %v10045, %v10047
  %v10049 = vrot.slane %v10035, %v10048
  %v10050 = vcombine.low %v10042, %v10049
  %v10052 = vunpack.c.l.s4 1983009808
  %v10053 = vunpack.c.0.s8 %v10052
  %v10054 = vlaneseq
  %v10055 = vshrl.u32 %v10054, 7
  %v10056 = vsub.s32 %v10053, %v10055
  %v10057 = vrot.slane %v8149, %v10056
  %v10058 = vcombine.low %v9570, %v9666
  %v10059 = vcombine.low %v9762, %v9852
  %v10061 = vunpack.c.l.s4 1983009808
  %v10062 = vunpack.c.0.s8 %v10061
  %v10063 = vlaneseq
  %v10064 = vshrl.u32 %v10063, 7
  %v10065 = vsub.s32 %v10062, %v10064
  %v10066 = vrot.slane %v10058, %v10065
  %v10068 = vunpack.c.l.s4 1983009808
  %v10069 = vunpack.c.0.s8 %v10068
  %v10070 = vlaneseq
  %v10071 = vshrl.u32 %v10070, 7
  %v10072 = vsub.s32 %v10069, %v10071
  %v10073 = vrot.slane %v10059, %v10072
  %v10074 = vcombine.low %v10066, %v10073
  %v10076 = vunpack.c.l.s4 1983009808
  %v10077 = vunpack.c.0.s8 %v10076
  %v10078 = vlaneseq
  %v10079 = vshrl.u32 %v10078, 7
  %v10080 = vsub.s32 %v10077, %v10079
  %v10081 = vrot.slane %v8944, %v10080
  %v10082 = vcombine.low %v9573, %v9669
  %v10083 = vcombine.low %v9765, %v9855
  %v10085 = vunpack.c.l.s4 1983009808
  %v10086 = vunpack.c.0.s8 %v10085
  %v10087 = vlaneseq
  %v10088 = vshrl.u32 %v10087, 7
  %v10089 = vsub.s32 %v10086, %v10088
  %v10090 = vrot.slane %v10082, %v10089
  %v10092 = vunpack.c.l.s4 1983009808
  %v10093 = vunpack.c.0.s8 %v10092
  %v10094 = vlaneseq
  %v10095 = vshrl.u32 %v10094, 7
  %v10096 = vsub.s32 %v10093, %v10095
  %v10097 = vrot.slane %v10083, %v10096
  %v10098 = vcombine.low %v10090, %v10097
  %v10100 = vunpack.c.l.s4 1983009808
  %v10101 = vunpack.c.0.s8 %v10100
  %v10102 = vlaneseq
  %v10103 = vshrl.u32 %v10102, 7
  %v10104 = vsub.s32 %v10101, %v10103
  %v10105 = vrot.slane %v9456, %v10104
  %v10106 = vcombine.low %v9576, %v9672
  %v10107 = vcombine.low %v9768, %v9582
  %v10109 = vunpack.c.l.s4 1983009808
  %v10110 = vunpack.c.0.s8 %v10109
  %v10111 = vlaneseq
  %v10112 = vshrl.u32 %v10111, 7
  %v10113 = vsub.s32 %v10110, %v10112
  %v10114 = vrot.slane %v10106, %v10113
  %v10116 = vunpack.c.l.s4 1983009808
  %v10117 = vunpack.c.0.s8 %v10116
  %v10118 = vlaneseq
  %v10119 = vshrl.u32 %v10118, 7
  %v10120 = vsub.s32 %v10117, %v10119
  %v10121 = vrot.slane %v10107, %v10120
  %v10122 = vcombine.low %v10114, %v10121
  %v10124 = vunpack.c.l.s4 1983009808
  %v10125 = vunpack.c.0.s8 %v10124
  %v10126 = vlaneseq
  %v10127 = vshrl.u32 %v10126, 7
  %v10128 = vsub.s32 %v10125, %v10127
  %v10129 = vrot.slane %v8194, %v10128
  %v10130 = vcombine.low %v9579, %v9675
  %v10131 = vcombine.low %v9771, %v9585
  %v10133 = vunpack.c.l.s4 1983009808
  %v10134 = vunpack.c.0.s8 %v10133
  %v10135 = vlaneseq
  %v10136 = vshrl.u32 %v10135, 7
  %v10137 = vsub.s32 %v10134, %v10136
  %v10138 = vrot.slane %v10130, %v10137
  %v10140 = vunpack.c.l.s4 1983009808
  %v10141 = vunpack.c.0.s8 %v10140
  %v10142 = vlaneseq
  %v10143 = vshrl.u32 %v10142, 7
  %v10144 = vsub.s32 %v10141, %v10143
  %v10145 = vrot.slane %v10131, %v10144
  %v10146 = vcombine.low %v10138, %v10145
  %v10148 = vunpack.c.l.s4 1983009808
  %v10149 = vunpack.c.0.s8 %v10148
  %v10150 = vlaneseq
  %v10151 = vshrl.u32 %v10150, 7
  %v10152 = vsub.s32 %v10149, %v10151
  %v10153 = vrot.slane %v8209, %v10152
  %v10154 = vcombine.low %v9582, %v9678
  %v10155 = vcombine.low %v9774, %v9858
  %v10157 = vunpack.c.l.s4 1983009808
  %v10158 = vunpack.c.0.s8 %v10157
  %v10159 = vlaneseq
  %v10160 = vshrl.u32 %v10159, 7
  %v10161 = vsub.s32 %v10158, %v10160
  %v10162 = vrot.slane %v10154, %v10161
  %v10164 = vunpack.c.l.s4 1983009808
  %v10165 = vunpack.c.0.s8 %v10164
  %v10166 = vlaneseq
  %v10167 = vshrl.u32 %v10166, 7
  %v10168 = vsub.s32 %v10165, %v10167
  %v10169 = vrot.slane %v10155, %v10168
  %v10170 = vcombine.low %v10162, %v10169
  %v10172 = vunpack.c.l.s4 1983009808
  %v10173 = vunpack.c.0.s8 %v10172
  %v10174 = vlaneseq
  %v10175 = vshrl.u32 %v10174, 7
  %v10176 = vsub.s32 %v10173, %v10175
  %v10177 = vrot.slane %v8959, %v10176
  %v10178 = vcombine.low %v9585, %v9681
  %v10179 = vcombine.low %v9777, %v9861
  %v10181 = vunpack.c.l.s4 1983009808
  %v10182 = vunpack.c.0.s8 %v10181
  %v10183 = vlaneseq
  %v10184 = vshrl.u32 %v10183, 7
  %v10185 = vsub.s32 %v10182, %v10184
  %v10186 = vrot.slane %v10178, %v10185
  %v10188 = vunpack.c.l.s4 1983009808
  %v10189 = vunpack.c.0.s8 %v10188
  %v10190 = vlaneseq
  %v10191 = vshrl.u32 %v10190, 7
  %v10192 = vsub.s32 %v10189, %v10191
  %v10193 = vrot.slane %v10179, %v10192
  %v10194 = vcombine.low %v10186, %v10193
  %v10196 = vunpack.c.l.s4 1983009808
  %v10197 = vunpack.c.0.s8 %v10196
  %v10198 = vlaneseq
  %v10199 = vshrl.u32 %v10198, 7
  %v10200 = vsub.s32 %v10197, %v10199
  %v10201 = vrot.slane %v9471, %v10200
  %v10202 = vcombine.low %v9588, %v9684
  %v10203 = vcombine.low %v9780, %v9594
  %v10205 = vunpack.c.l.s4 1983009808
  %v10206 = vunpack.c.0.s8 %v10205
  %v10207 = vlaneseq
  %v10208 = vshrl.u32 %v10207, 7
  %v10209 = vsub.s32 %v10206, %v10208
  %v10210 = vrot.slane %v10202, %v10209
  %v10212 = vunpack.c.l.s4 1983009808
  %v10213 = vunpack.c.0.s8 %v10212
  %v10214 = vlaneseq
  %v10215 = vshrl.u32 %v10214, 7
  %v10216 = vsub.s32 %v10213, %v10215
  %v10217 = vrot.slane %v10203, %v10216
  %v10218 = vcombine.low %v10210, %v10217
  %v10220 = vunpack.c.l.s4 1983009808
  %v10221 = vunpack.c.0.s8 %v10220
  %v10222 = vlaneseq
  %v10223 = vshrl.u32 %v10222, 7
  %v10224 = vsub.s32 %v10221, %v10223
  %v10225 = vrot.slane %v8254, %v10224
  %v10226 = vcombine.low %v9591, %v9687
  %v10227 = vcombine.low %v9783, %v9597
  %v10229 = vunpack.c.l.s4 1983009808
  %v10230 = vunpack.c.0.s8 %v10229
  %v10231 = vlaneseq
  %v10232 = vshrl.u32 %v10231, 7
  %v10233 = vsub.s32 %v10230, %v10232
  %v10234 = vrot.slane %v10226, %v10233
  %v10236 = vunpack.c.l.s4 1983009808
  %v10237 = vunpack.c.0.s8 %v10236
  %v10238 = vlaneseq
  %v10239 = vshrl.u32 %v10238, 7
  %v10240 = vsub.s32 %v10237, %v10239
  %v10241 = vrot.slane %v10227, %v10240
  %v10242 = vcombine.low %v10234, %v10241
  %v10244 = vunpack.c.l.s4 1983009808
  %v10245 = vunpack.c.0.s8 %v10244
  %v10246 = vlaneseq
  %v10247 = vshrl.u32 %v10246, 7
  %v10248 = vsub.s32 %v10245, %v10247
  %v10249 = vrot.slane %v8269, %v10248
  %v10250 = vcombine.low %v9594, %v9690
  %v10251 = vcombine.low %v9786, %v9864
  %v10253 = vunpack.c.l.s4 1983009808
  %v10254 = vunpack.c.0.s8 %v10253
  %v10255 = vlaneseq
  %v10256 = vshrl.u32 %v10255, 7
  %v10257 = vsub.s32 %v10254, %v10256
  %v10258 = vrot.slane %v10250, %v10257
  %v10260 = vunpack.c.l.s4 1983009808
  %v10261 = vunpack.c.0.s8 %v10260
  %v10262 = vlaneseq
  %v10263 = vshrl.u32 %v10262, 7
  %v10264 = vsub.s32 %v10261, %v10263
  %v10265 = vrot.slane %v10251, %v10264
  %v10266 = vcombine.low %v10258, %v10265
  %v10268 = vunpack.c.l.s4 1983009808
  %v10269 = vunpack.c.0.s8 %v10268
  %v10270 = vlaneseq
  %v10271 = vshrl.u32 %v10270, 7
  %v10272 = vsub.s32 %v10269, %v10271
  %v10273 = vrot.slane %v8974, %v10272
  %v10274 = vcombine.low %v9597, %v9693
  %v10275 = vcombine.low %v9789, %v9867
  %v10277 = vunpack.c.l.s4 1983009808
  %v10278 = vunpack.c.0.s8 %v10277
  %v10279 = vlaneseq
  %v10280 = vshrl.u32 %v10279, 7
  %v10281 = vsub.s32 %v10278, %v10280
  %v10282 = vrot.slane %v10274, %v10281
  %v10284 = vunpack.c.l.s4 1983009808
  %v10285 = vunpack.c.0.s8 %v10284
  %v10286 = vlaneseq
  %v10287 = vshrl.u32 %v10286, 7
  %v10288 = vsub.s32 %v10285, %v10287
  %v10289 = vrot.slane %v10275, %v10288
  %v10290 = vcombine.low %v10282, %v10289
  %v10292 = vunpack.c.l.s4 1983009808
  %v10293 = vunpack.c.0.s8 %v10292
  %v10294 = vlaneseq
  %v10295 = vshrl.u32 %v10294, 7
  %v10296 = vsub.s32 %v10293, %v10295
  %v10297 = vrot.slane %v9486, %v10296
  %v10298 = vcombine.low %v9600, %v9696
  %v10299 = vcombine.low %v9792, %v9606
  %v10301 = vunpack.c.l.s4 1983009808
  %v10302 = vunpack.c.0.s8 %v10301
  %v10303 = vlaneseq
  %v10304 = vshrl.u32 %v10303, 7
  %v10305 = vsub.s32 %v10302, %v10304
  %v10306 = vrot.slane %v10298, %v10305
  %v10308 = vunpack.c.l.s4 1983009808
  %v10309 = vunpack.c.0.s8 %v10308
  %v10310 = vlaneseq
  %v10311 = vshrl.u32 %v10310, 7
  %v10312 = vsub.s32 %v10309, %v10311
  %v10313 = vrot.slane %v10299, %v10312
  %v10314 = vcombine.low %v10306, %v10313
  %v10316 = vunpack.c.l.s4 1983009808
  %v10317 = vunpack.c.0.s8 %v10316
  %v10318 = vlaneseq
  %v10319 = vshrl.u32 %v10318, 7
  %v10320 = vsub.s32 %v10317, %v10319
  %v10321 = vrot.slane %v8314, %v10320
  %v10322 = vcombine.low %v9603, %v9699
  %v10323 = vcombine.low %v9795, %v9609
  %v10325 = vunpack.c.l.s4 1983009808
  %v10326 = vunpack.c.0.s8 %v10325
  %v10327 = vlaneseq
  %v10328 = vshrl.u32 %v10327, 7
  %v10329 = vsub.s32 %v10326, %v10328
  %v10330 = vrot.slane %v10322, %v10329
  %v10332 = vunpack.c.l.s4 1983009808
  %v10333 = vunpack.c.0.s8 %v10332
  %v10334 = vlaneseq
  %v10335 = vshrl.u32 %v10334, 7
  %v10336 = vsub.s32 %v10333, %v10335
  %v10337 = vrot.slane %v10323, %v10336
  %v10338 = vcombine.low %v10330, %v10337
  %v10340 = vunpack.c.l.s4 1983009808
  %v10341 = vunpack.c.0.s8 %v10340
  %v10342 = vlaneseq
  %v10343 = vshrl.u32 %v10342, 7
  %v10344 = vsub.s32 %v10341, %v10343
  %v10345 = vrot.slane %v8329, %v10344
  %v10346 = vcombine.low %v9606, %v9702
  %v10347 = vcombine.low %v9798, %v9870
  %v10349 = vunpack.c.l.s4 1983009808
  %v10350 = vunpack.c.0.s8 %v10349
  %v10351 = vlaneseq
  %v10352 = vshrl.u32 %v10351, 7
  %v10353 = vsub.s32 %v10350, %v10352
  %v10354 = vrot.slane %v10346, %v10353
  %v10356 = vunpack.c.l.s4 1983009808
  %v10357 = vunpack.c.0.s8 %v10356
  %v10358 = vlaneseq
  %v10359 = vshrl.u32 %v10358, 7
  %v10360 = vsub.s32 %v10357, %v10359
  %v10361 = vrot.slane %v10347, %v10360
  %v10362 = vcombine.low %v10354, %v10361
  %v10364 = vunpack.c.l.s4 1983009808
  %v10365 = vunpack.c.0.s8 %v10364
  %v10366 = vlaneseq
  %v10367 = vshrl.u32 %v10366, 7
  %v10368 = vsub.s32 %v10365, %v10367
  %v10369 = vrot.slane %v8989, %v10368
  %v10370 = vcombine.low %v9609, %v9705
  %v10371 = vcombine.low %v9801, %v9873
  %v10373 = vunpack.c.l.s4 1983009808
  %v10374 = vunpack.c.0.s8 %v10373
  %v10375 = vlaneseq
  %v10376 = vshrl.u32 %v10375, 7
  %v10377 = vsub.s32 %v10374, %v10376
  %v10378 = vrot.slane %v10370, %v10377
  %v10380 = vunpack.c.l.s4 1983009808
  %v10381 = vunpack.c.0.s8 %v10380
  %v10382 = vlaneseq
  %v10383 = vshrl.u32 %v10382, 7
  %v10384 = vsub.s32 %v10381, %v10383
  %v10385 = vrot.slane %v10371, %v10384
  %v10386 = vcombine.low %v10378, %v10385
  %v10388 = vunpack.c.l.s4 1983009808
  %v10389 = vunpack.c.0.s8 %v10388
  %v10390 = vlaneseq
  %v10391 = vshrl.u32 %v10390, 7
  %v10392 = vsub.s32 %v10389, %v10391
  %v10393 = vrot.slane %v9501, %v10392
  %v10394 = vcombine.low %v9612, %v9708
  %v10395 = vcombine.low %v9804, %v9618
  %v10397 = vunpack.c.l.s4 1983009808
  %v10398 = vunpack.c.0.s8 %v10397
  %v10399 = vlaneseq
  %v10400 = vshrl.u32 %v10399, 7
  %v10401 = vsub.s32 %v10398, %v10400
  %v10402 = vrot.slane %v10394, %v10401
  %v10404 = vunpack.c.l.s4 1983009808
  %v10405 = vunpack.c.0.s8 %v10404
  %v10406 = vlaneseq
  %v10407 = vshrl.u32 %v10406, 7
  %v10408 = vsub.s32 %v10405, %v10407
  %v10409 = vrot.slane %v10395, %v10408
  %v10410 = vcombine.low %v10402, %v10409
  %v10412 = vunpack.c.l.s4 1983009808
  %v10413 = vunpack.c.0.s8 %v10412
  %v10414 = vlaneseq
  %v10415 = vshrl.u32 %v10414, 7
  %v10416 = vsub.s32 %v10413, %v10415
  %v10417 = vrot.slane %v8374, %v10416
  %v10418 = vcombine.low %v9615, %v9711
  %v10419 = vcombine.low %v9807, %v9621
  %v10421 = vunpack.c.l.s4 1983009808
  %v10422 = vunpack.c.0.s8 %v10421
  %v10423 = vlaneseq
  %v10424 = vshrl.u32 %v10423, 7
  %v10425 = vsub.s32 %v10422, %v10424
  %v10426 = vrot.slane %v10418, %v10425
  %v10428 = vunpack.c.l.s4 1983009808
  %v10429 = vunpack.c.0.s8 %v10428
  %v10430 = vlaneseq
  %v10431 = vshrl.u32 %v10430, 7
  %v10432 = vsub.s32 %v10429, %v10431
  %v10433 = vrot.slane %v10419, %v10432
  %v10434 = vcombine.low %v10426, %v10433
  %v10436 = vunpack.c.l.s4 1983009808
  %v10437 = vunpack.c.0.s8 %v10436
  %v10438 = vlaneseq
  %v10439 = vshrl.u32 %v10438, 7
  %v10440 = vsub.s32 %v10437, %v10439
  %v10441 = vrot.slane %v8389, %v10440
  %v10442 = vcombine.low %v9618, %v9714
  %v10443 = vcombine.low %v9810, %v9876
  %v10445 = vunpack.c.l.s4 1983009808
  %v10446 = vunpack.c.0.s8 %v10445
  %v10447 = vlaneseq
  %v10448 = vshrl.u32 %v10447, 7
  %v10449 = vsub.s32 %v10446, %v10448
  %v10450 = vrot.slane %v10442, %v10449
  %v10452 = vunpack.c.l.s4 1983009808
  %v10453 = vunpack.c.0.s8 %v10452
  %v10454 = vlaneseq
  %v10455 = vshrl.u32 %v10454, 7
  %v10456 = vsub.s32 %v10453, %v10455
  %v10457 = vrot.slane %v10443, %v10456
  %v10458 = vcombine.low %v10450, %v10457
  %v10460 = vunpack.c.l.s4 1983009808
  %v10461 = vunpack.c.0.s8 %v10460
  %v10462 = vlaneseq
  %v10463 = vshrl.u32 %v10462, 7
  %v10464 = vsub.s32 %v10461, %v10463
  %v10465 = vrot.slane %v9004, %v10464
  %v10466 = vcombine.low %v9621, %v9717
  %v10467 = vcombine.low %v9813, %v9879
  %v10469 = vunpack.c.l.s4 1983009808
  %v10470 = vunpack.c.0.s8 %v10469
  %v10471 = vlaneseq
  %v10472 = vshrl.u32 %v10471, 7
  %v10473 = vsub.s32 %v10470, %v10472
  %v10474 = vrot.slane %v10466, %v10473
  %v10476 = vunpack.c.l.s4 1983009808
  %v10477 = vunpack.c.0.s8 %v10476
  %v10478 = vlaneseq
  %v10479 = vshrl.u32 %v10478, 7
  %v10480 = vsub.s32 %v10477, %v10479
  %v10481 = vrot.slane %v10467, %v10480
  %v10482 = vcombine.low %v10474, %v10481
  %v10484 = vunpack.c.l.s4 1983009808
  %v10485 = vunpack.c.0.s8 %v10484
  %v10486 = vlaneseq
  %v10487 = vshrl.u32 %v10486, 7
  %v10488 = vsub.s32 %v10485, %v10487
  %v10489 = vrot.slane %v9516, %v10488
  %v10490 = vcombine.low %v9624, %v9720
  %v10491 = vcombine.low %v9816, %v9630
  %v10493 = vunpack.c.l.s4 1983009808
  %v10494 = vunpack.c.0.s8 %v10493
  %v10495 = vlaneseq
  %v10496 = vshrl.u32 %v10495, 7
  %v10497 = vsub.s32 %v10494, %v10496
  %v10498 = vrot.slane %v10490, %v10497
  %v10500 = vunpack.c.l.s4 1983009808
  %v10501 = vunpack.c.0.s8 %v10500
  %v10502 = vlaneseq
  %v10503 = vshrl.u32 %v10502, 7
  %v10504 = vsub.s32 %v10501, %v10503
  %v10505 = vrot.slane %v10491, %v10504
  %v10506 = vcombine.low %v10498, %v10505
  %v10508 = vunpack.c.l.s4 1983009808
  %v10509 = vunpack.c.0.s8 %v10508
  %v10510 = vlaneseq
  %v10511 = vshrl.u32 %v10510, 7
  %v10512 = vsub.s32 %v10509, %v10511
  %v10513 = vrot.slane %v8434, %v10512
  %v10514 = vcombine.low %v9627, %v9723
  %v10515 = vcombine.low %v9819, %v9633
  %v10517 = vunpack.c.l.s4 1983009808
  %v10518 = vunpack.c.0.s8 %v10517
  %v10519 = vlaneseq
  %v10520 = vshrl.u32 %v10519, 7
  %v10521 = vsub.s32 %v10518, %v10520
  %v10522 = vrot.slane %v10514, %v10521
  %v10524 = vunpack.c.l.s4 1983009808
  %v10525 = vunpack.c.0.s8 %v10524
  %v10526 = vlaneseq
  %v10527 = vshrl.u32 %v10526, 7
  %v10528 = vsub.s32 %v10525, %v10527
  %v10529 = vrot.slane %v10515, %v10528
  %v10530 = vcombine.low %v10522, %v10529
  %v10532 = vunpack.c.l.s4 1983009808
  %v10533 = vunpack.c.0.s8 %v10532
  %v10534 = vlaneseq
  %v10535 = vshrl.u32 %v10534, 7
  %v10536 = vsub.s32 %v10533, %v10535
  %v10537 = vrot.slane %v8449, %v10536
  %v10538 = vcombine.low %v9630, %v9726
  %v10539 = vcombine.low %v9822, %v9882
  %v10541 = vunpack.c.l.s4 1983009808
  %v10542 = vunpack.c.0.s8 %v10541
  %v10543 = vlaneseq
  %v10544 = vshrl.u32 %v10543, 7
  %v10545 = vsub.s32 %v10542, %v10544
  %v10546 = vrot.slane %v10538, %v10545
  %v10548 = vunpack.c.l.s4 1983009808
  %v10549 = vunpack.c.0.s8 %v10548
  %v10550 = vlaneseq
  %v10551 = vshrl.u32 %v10550, 7
  %v10552 = vsub.s32 %v10549, %v10551
  %v10553 = vrot.slane %v10539, %v10552
  %v10554 = vcombine.low %v10546, %v10553
  %v10556 = vunpack.c.l.s4 1983009808
  %v10557 = vunpack.c.0.s8 %v10556
  %v10558 = vlaneseq
  %v10559 = vshrl.u32 %v10558, 7
  %v10560 = vsub.s32 %v10557, %v10559
  %v10561 = vrot.slane %v9019, %v10560
  %v10562 = vcombine.low %v9633, %v9729
  %v10563 = vcombine.low %v9825, %v9885
  %v10565 = vunpack.c.l.s4 1983009808
  %v10566 = vunpack.c.0.s8 %v10565
  %v10567 = vlaneseq
  %v10568 = vshrl.u32 %v10567, 7
  %v10569 = vsub.s32 %v10566, %v10568
  %v10570 = vrot.slane %v10562, %v10569
  %v10572 = vunpack.c.l.s4 1983009808
  %v10573 = vunpack.c.0.s8 %v10572
  %v10574 = vlaneseq
  %v10575 = vshrl.u32 %v10574, 7
  %v10576 = vsub.s32 %v10573, %v10575
  %v10577 = vrot.slane %v10563, %v10576
  %v10578 = vcombine.low %v10570, %v10577
  %v10580 = vunpack.c.l.s4 1983009808
  %v10581 = vunpack.c.0.s8 %v10580
  %v10582 = vlaneseq
  %v10583 = vshrl.u32 %v10582, 7
  %v10584 = vsub.s32 %v10581, %v10583
  %v10585 = vrot.slane %v9531, %v10584
  %v10586 = vcombine.low %v9636, %v9732
  %v10587 = vcombine.low %v9828, %v9642
  %v10589 = vunpack.c.l.s4 1983009808
  %v10590 = vunpack.c.0.s8 %v10589
  %v10591 = vlaneseq
  %v10592 = vshrl.u32 %v10591, 7
  %v10593 = vsub.s32 %v10590, %v10592
  %v10594 = vrot.slane %v10586, %v10593
  %v10596 = vunpack.c.l.s4 1983009808
  %v10597 = vunpack.c.0.s8 %v10596
  %v10598 = vlaneseq
  %v10599 = vshrl.u32 %v10598, 7
  %v10600 = vsub.s32 %v10597, %v10599
  %v10601 = vrot.slane %v10587, %v10600
  %v10602 = vcombine.low %v10594, %v10601
  %v10604 = vunpack.c.l.s4 1983009808
  %v10605 = vunpack.c.0.s8 %v10604
  %v10606 = vlaneseq
  %v10607 = vshrl.u32 %v10606, 7
  %v10608 = vsub.s32 %v10605, %v10607
  %v10609 = vrot.slane %v8494, %v10608
  %v10610 = vcombine.low %v9639, %v9735
  %v10611 = vcombine.low %v9831, %v9645
  %v10613 = vunpack.c.l.s4 1983009808
  %v10614 = vunpack.c.0.s8 %v10613
  %v10615 = vlaneseq
  %v10616 = vshrl.u32 %v10615, 7
  %v10617 = vsub.s32 %v10614, %v10616
  %v10618 = vrot.slane %v10610, %v10617
  %v10620 = vunpack.c.l.s4 1983009808
  %v10621 = vunpack.c.0.s8 %v10620
  %v10622 = vlaneseq
  %v10623 = vshrl.u32 %v10622, 7
  %v10624 = vsub.s32 %v10621, %v10623
  %v10625 = vrot.slane %v10611, %v10624
  %v10626 = vcombine.low %v10618, %v10625
  %v10628 = vunpack.c.l.s4 1983009808
  %v10629 = vunpack.c.0.s8 %v10628
  %v10630 = vlaneseq
  %v10631 = vshrl.u32 %v10630, 7
  %v10632 = vsub.s32 %v10629, %v10631
  %v10633 = vrot.slane %v8509, %v10632
  %v10634 = vcombine.low %v9642, %v9738
  %v10635 = vcombine.low %v9834, %v9888
  %v10637 = vunpack.c.l.s4 1983009808
  %v10638 = vunpack.c.0.s8 %v10637
  %v10639 = vlaneseq
  %v10640 = vshrl.u32 %v10639, 7
  %v10641 = vsub.s32 %v10638, %v10640
  %v10642 = vrot.slane %v10634, %v10641
  %v10644 = vunpack.c.l.s4 1983009808
  %v10645 = vunpack.c.0.s8 %v10644
  %v10646 = vlaneseq
  %v10647 = vshrl.u32 %v10646, 7
  %v10648 = vsub.s32 %v10645, %v10647
  %v10649 = vrot.slane %v10635, %v10648
  %v10650 = vcombine.low %v10642, %v10649
  %v10652 = vunpack.c.l.s4 1983009808
  %v10653 = vunpack.c.0.s8 %v10652
  %v10654 = vlaneseq
  %v10655 = vshrl.u32 %v10654, 7
  %v10656 = vsub.s32 %v10653, %v10655
  %v10657 = vrot.slane %v9034, %v10656
  %v10658 = vcombine.low %v9645, %v9741
  %v10659 = vcombine.low %v9837, %v9891
  %v10661 = vunpack.c.l.s4 1983009808
  %v10662 = vunpack.c.0.s8 %v10661
  %v10663 = vlaneseq
  %v10664 = vshrl.u32 %v10663, 7
  %v10665 = vsub.s32 %v10662, %v10664
  %v10666 = vrot.slane %v10658, %v10665
  %v10668 = vunpack.c.l.s4 1983009808
  %v10669 = vunpack.c.0.s8 %v10668
  %v10670 = vlaneseq
  %v10671 = vshrl.u32 %v10670, 7
  %v10672 = vsub.s32 %v10669, %v10671
  %v10673 = vrot.slane %v10659, %v10672
  %v10674 = vcombine.low %v10666, %v10673
  %v10676 = vunpack.c.l.s4 1983009808
  %v10677 = vunpack.c.0.s8 %v10676
  %v10678 = vlaneseq
  %v10679 = vshrl.u32 %v10678, 7
  %v10680 = vsub.s32 %v10677, %v10679
  %v10681 = vrot.slane %v9546, %v10680
  %v10682 = vcombine.low %v9648, %v9744
  %v10683 = vcombine.low %v9840, %v9654
  %v10685 = vunpack.c.l.s4 1983009808
  %v10686 = vunpack.c.0.s8 %v10685
  %v10687 = vlaneseq
  %v10688 = vshrl.u32 %v10687, 7
  %v10689 = vsub.s32 %v10686, %v10688
  %v10690 = vrot.slane %v10682, %v10689
  %v10692 = vunpack.c.l.s4 1983009808
  %v10693 = vunpack.c.0.s8 %v10692
  %v10694 = vlaneseq
  %v10695 = vshrl.u32 %v10694, 7
  %v10696 = vsub.s32 %v10693, %v10695
  %v10697 = vrot.slane %v10683, %v10696
  %v10698 = vcombine.low %v10690, %v10697
  %v10700 = vunpack.c.l.s4 1983009808
  %v10701 = vunpack.c.0.s8 %v10700
  %v10702 = vlaneseq
  %v10703 = vshrl.u32 %v10702, 7
  %v10704 = vsub.s32 %v10701, %v10703
  %v10705 = vrot.slane %v8554, %v10704
  %v10706 = vcombine.low %v9651, %v9747
  %v10707 = vcombine.low %v9843, %v9657
  %v10709 = vunpack.c.l.s4 1983009808
  %v10710 = vunpack.c.0.s8 %v10709
  %v10711 = vlaneseq
  %v10712 = vshrl.u32 %v10711, 7
  %v10713 = vsub.s32 %v10710, %v10712
  %v10714 = vrot.slane %v10706, %v10713
  %v10716 = vunpack.c.l.s4 1983009808
  %v10717 = vunpack.c.0.s8 %v10716
  %v10718 = vlaneseq
  %v10719 = vshrl.u32 %v10718, 7
  %v10720 = vsub.s32 %v10717, %v10719
  %v10721 = vrot.slane %v10707, %v10720
  %v10722 = vcombine.low %v10714, %v10721
  %v10724 = vunpack.c.l.s4 1983009808
  %v10725 = vunpack.c.0.s8 %v10724
  %v10726 = vlaneseq
  %v10727 = vshrl.u32 %v10726, 7
  %v10728 = vsub.s32 %v10725, %v10727
  %v10729 = vrot.slane %v8569, %v10728
  %v10730 = vcombine.low %v9654, %v9750
  %v10731 = vcombine.low %v9846, %v9894
  %v10733 = vunpack.c.l.s4 1983009808
  %v10734 = vunpack.c.0.s8 %v10733
  %v10735 = vlaneseq
  %v10736 = vshrl.u32 %v10735, 7
  %v10737 = vsub.s32 %v10734, %v10736
  %v10738 = vrot.slane %v10730, %v10737
  %v10740 = vunpack.c.l.s4 1983009808
  %v10741 = vunpack.c.0.s8 %v10740
  %v10742 = vlaneseq
  %v10743 = vshrl.u32 %v10742, 7
  %v10744 = vsub.s32 %v10741, %v10743
  %v10745 = vrot.slane %v10731, %v10744
  %v10746 = vcombine.low %v10738, %v10745
  %v10748 = vunpack.c.l.s4 1983009808
  %v10749 = vunpack.c.0.s8 %v10748
  %v10750 = vlaneseq
  %v10751 = vshrl.u32 %v10750, 7
  %v10752 = vsub.s32 %v10749, %v10751
  %v10753 = vrot.slane %v9049, %v10752
  %v10754 = vcombine.low %v9657, %v9753
  %v10755 = vcombine.low %v9849, %v9897
  %v10757 = vunpack.c.l.s4 1983009808
  %v10758 = vunpack.c.0.s8 %v10757
  %v10759 = vlaneseq
  %v10760 = vshrl.u32 %v10759, 7
  %v10761 = vsub.s32 %v10758, %v10760
  %v10762 = vrot.slane %v10754, %v10761
  %v10764 = vunpack.c.l.s4 1983009808
  %v10765 = vunpack.c.0.s8 %v10764
  %v10766 = vlaneseq
  %v10767 = vshrl.u32 %v10766, 7
  %v10768 = vsub.s32 %v10765, %v10767
  %v10769 = vrot.slane %v10755, %v10768
  %v10770 = vcombine.low %v10762, %v10769
  %v10772 = vunpack.c.l.s4 1983009808
  %v10773 = vunpack.c.0.s8 %v10772
  %v10774 = vlaneseq
  %v10775 = vshrl.u32 %v10774, 7
  %v10776 = vsub.s32 %v10773, %v10775
  %v10777 = vrot.slane %v9561, %v10776
  %v10778 = vld [vmem:[%s5] sm:$0xf]
  %v10779 = vld [vmem:[%s5 + $0x4] sm:$0xf]
  %v10780 = vld [vmem:[%s5 + $0x8] sm:$0xf]
  %v10781 = vld [vmem:[%s5 + $0xc] sm:$0xf]
  %v10782 = vld [vmem:[%s5 + $0x10] sm:$0xf]
  %v10783 = vld [vmem:[%s5 + $0x14] sm:$0xf]
  %v10784 = vld [vmem:[%s5 + $0x18] sm:$0xf]
  %v10785 = vld [vmem:[%s5 + $0x1c] sm:$0xf]
  %v10786 = vld [vmem:[%s5 + $0x20] sm:$0xf]
  %v10787 = vld [vmem:[%s5 + $0x24] sm:$0xf]
  %v10788 = vld [vmem:[%s5 + $0x28] sm:$0xf]
  %v10789 = vld [vmem:[%s5 + $0x2c] sm:$0xf]
  %v10790 = vld [vmem:[%s5 + $0x30] sm:$0xf]
  %v10791 = vld [vmem:[%s5 + $0x34] sm:$0xf]
  %v10792 = vld [vmem:[%s5 + $0x38] sm:$0xf]
  %v10793 = vld [vmem:[%s5 + $0x3c] sm:$0xf]
  %v10794 = vld [vmem:[%s5 + $0x40] sm:$0xf]
  %v10795 = vld [vmem:[%s5 + $0x44] sm:$0xf]
  %v10796 = vld [vmem:[%s5 + $0x48] sm:$0xf]
  %v10797 = vld [vmem:[%s5 + $0x4c] sm:$0xf]
  %v10798 = vld [vmem:[%s5 + $0x50] sm:$0xf]
  %v10799 = vld [vmem:[%s5 + $0x54] sm:$0xf]
  %v10800 = vld [vmem:[%s5 + $0x58] sm:$0xf]
  %v10801 = vld [vmem:[%s5 + $0x5c] sm:$0xf]
  %v10802 = vld [vmem:[%s5 + $0x60] sm:$0xf]
  %v10803 = vld [vmem:[%s5 + $0x64] sm:$0xf]
  %v10804 = vld [vmem:[%s5 + $0x68] sm:$0xf]
  %v10805 = vld [vmem:[%s5 + $0x6c] sm:$0xf]
  %v10806 = vld [vmem:[%s5 + $0x70] sm:$0xf]
  %v10807 = vld [vmem:[%s5 + $0x74] sm:$0xf]
  %v10808 = vld [vmem:[%s5 + $0x78] sm:$0xf]
  %v10809 = vld [vmem:[%s5 + $0x7c] sm:$0xf]
  %v10810 = vld [vmem:[%s5 + $0x80] sm:$0xf]
  %v10811 = vld [vmem:[%s5 + $0x84] sm:$0xf]
  %v10812 = vld [vmem:[%s5 + $0x88] sm:$0xf]
  %v10813 = vld [vmem:[%s5 + $0x8c] sm:$0xf]
  %v10814 = vld [vmem:[%s5 + $0x90] sm:$0xf]
  %v10815 = vld [vmem:[%s5 + $0x94] sm:$0xf]
  %v10816 = vld [vmem:[%s5 + $0x98] sm:$0xf]
  %v10817 = vld [vmem:[%s5 + $0x9c] sm:$0xf]
  %v10818 = vld [vmem:[%s5 + $0xa0] sm:$0xf]
  %v10819 = vld [vmem:[%s5 + $0xa4] sm:$0xf]
  %v10820 = vld [vmem:[%s5 + $0xa8] sm:$0xf]
  %v10821 = vld [vmem:[%s5 + $0xac] sm:$0xf]
  %v10822 = vld [vmem:[%s5 + $0xb0] sm:$0xf]
  %v10823 = vld [vmem:[%s5 + $0xb4] sm:$0xf]
  %v10824 = vld [vmem:[%s5 + $0xb8] sm:$0xf]
  %v10825 = vld [vmem:[%s5 + $0xbc] sm:$0xf]
  %v10826 = vld [vmem:[%s5 + $0xc0] sm:$0xf]
  %v10827 = vld [vmem:[%s5 + $0xc4] sm:$0xf]
  %v10828 = vld [vmem:[%s5 + $0xc8] sm:$0xf]
  %v10829 = vld [vmem:[%s5 + $0xcc] sm:$0xf]
  %v10830 = vld [vmem:[%s5 + $0xd0] sm:$0xf]
  %v10831 = vld [vmem:[%s5 + $0xd4] sm:$0xf]
  %v10832 = vld [vmem:[%s5 + $0xd8] sm:$0xf]
  %v10833 = vld [vmem:[%s5 + $0xdc] sm:$0xf]
  %v10834 = vld [vmem:[%s5 + $0xe0] sm:$0xf]
  %v10835 = vld [vmem:[%s5 + $0xe4] sm:$0xf]
  %v10836 = vld [vmem:[%s5 + $0xe8] sm:$0xf]
  %v10837 = vld [vmem:[%s5 + $0xec] sm:$0xf]
  %v10838 = vld [vmem:[%s5 + $0xf0] sm:$0xf]
  %v10839 = vld [vmem:[%s5 + $0xf4] sm:$0xf]
  %v10840 = vld [vmem:[%s5 + $0xf8] sm:$0xf]
  %v10841 = vld [vmem:[%s5 + $0xfc] sm:$0xf]
  %v10842 = vld [vmem:[%s5 + $0x100] sm:$0xf]
  %v10843 = vld [vmem:[%s5 + $0x104] sm:$0xf]
  %v10844 = vld [vmem:[%s5 + $0x108] sm:$0xf]
  %v10845 = vld [vmem:[%s5 + $0x10c] sm:$0xf]
  %v10846 = vld [vmem:[%s5 + $0x110] sm:$0xf]
  %v10847 = vld [vmem:[%s5 + $0x114] sm:$0xf]
  %v10848 = vld [vmem:[%s5 + $0x118] sm:$0xf]
  %v10849 = vld [vmem:[%s5 + $0x11c] sm:$0xf]
  %v10850 = vld [vmem:[%s6] sm:$0x1]
  %v10852 = vlaneseq
  %v10853 = vshrl.u32 %v10852, 7
  %v10854 = vsub.s32 0, %v10853
  %v10855 = vrot.slane %v10850, %v10854
  %v10857 = vcombine.low %v10026, %v10050
  %v10858 = vcombine.high %v10026, %v10050
  %v10859 = vcombine.low %v10074, %v10098
  %v10860 = vcombine.high %v10074, %v10098
  %v10862 = vunpack.c.l.s4 1983009808
  %v10863 = vunpack.c.0.s8 %v10862
  %v10864 = vlaneseq
  %v10865 = vshrl.u32 %v10864, 7
  %v10866 = vsub.s32 %v10863, %v10865
  %v10867 = vrot.slane %v10857, %v10866
  %v10869 = vunpack.c.l.s4 1983009808
  %v10870 = vunpack.c.0.s8 %v10869
  %v10871 = vlaneseq
  %v10872 = vshrl.u32 %v10871, 7
  %v10873 = vsub.s32 %v10870, %v10872
  %v10874 = vrot.slane %v10858, %v10873
  %v10876 = vunpack.c.l.s4 1983009808
  %v10877 = vunpack.c.0.s8 %v10876
  %v10878 = vlaneseq
  %v10879 = vshrl.u32 %v10878, 7
  %v10880 = vsub.s32 %v10877, %v10879
  %v10881 = vrot.slane %v10859, %v10880
  %v10883 = vunpack.c.l.s4 1983009808
  %v10884 = vunpack.c.0.s8 %v10883
  %v10885 = vlaneseq
  %v10886 = vshrl.u32 %v10885, 7
  %v10887 = vsub.s32 %v10884, %v10886
  %v10888 = vrot.slane %v10860, %v10887
  %v10889 = vcombine.low %v10867, %v10881
  %v10890 = vcombine.high %v10867, %v10881
  %v10891 = vcombine.low %v10874, %v10888
  %v10892 = vcombine.high %v10874, %v10888
  %v10893 = vcombine.low %v10033, %v10057
  %v10894 = vcombine.low %v10081, %v10105
  %v10896 = vunpack.c.l.s4 1983009808
  %v10897 = vunpack.c.0.s8 %v10896
  %v10898 = vlaneseq
  %v10899 = vshrl.u32 %v10898, 7
  %v10900 = vsub.s32 %v10897, %v10899
  %v10901 = vrot.slane %v10893, %v10900
  %v10903 = vunpack.c.l.s4 1983009808
  %v10904 = vunpack.c.0.s8 %v10903
  %v10905 = vlaneseq
  %v10906 = vshrl.u32 %v10905, 7
  %v10907 = vsub.s32 %v10904, %v10906
  %v10908 = vrot.slane %v10894, %v10907
  %v10909 = vcombine.low %v10901, %v10908
  %v10910 = vcombine.low %v10122, %v10146
  %v10911 = vcombine.high %v10122, %v10146
  %v10912 = vcombine.low %v10170, %v10194
  %v10913 = vcombine.high %v10170, %v10194
  %v10915 = vunpack.c.l.s4 1983009808
  %v10916 = vunpack.c.0.s8 %v10915
  %v10917 = vlaneseq
  %v10918 = vshrl.u32 %v10917, 7
  %v10919 = vsub.s32 %v10916, %v10918
  %v10920 = vrot.slane %v10910, %v10919
  %v10922 = vunpack.c.l.s4 1983009808
  %v10923 = vunpack.c.0.s8 %v10922
  %v10924 = vlaneseq
  %v10925 = vshrl.u32 %v10924, 7
  %v10926 = vsub.s32 %v10923, %v10925
  %v10927 = vrot.slane %v10911, %v10926
  %v10929 = vunpack.c.l.s4 1983009808
  %v10930 = vunpack.c.0.s8 %v10929
  %v10931 = vlaneseq
  %v10932 = vshrl.u32 %v10931, 7
  %v10933 = vsub.s32 %v10930, %v10932
  %v10934 = vrot.slane %v10912, %v10933
  %v10936 = vunpack.c.l.s4 1983009808
  %v10937 = vunpack.c.0.s8 %v10936
  %v10938 = vlaneseq
  %v10939 = vshrl.u32 %v10938, 7
  %v10940 = vsub.s32 %v10937, %v10939
  %v10941 = vrot.slane %v10913, %v10940
  %v10942 = vcombine.low %v10920, %v10934
  %v10943 = vcombine.high %v10920, %v10934
  %v10944 = vcombine.low %v10927, %v10941
  %v10945 = vcombine.high %v10927, %v10941
  %v10946 = vcombine.low %v10129, %v10153
  %v10947 = vcombine.low %v10177, %v10201
  %v10949 = vunpack.c.l.s4 1983009808
  %v10950 = vunpack.c.0.s8 %v10949
  %v10951 = vlaneseq
  %v10952 = vshrl.u32 %v10951, 7
  %v10953 = vsub.s32 %v10950, %v10952
  %v10954 = vrot.slane %v10946, %v10953
  %v10956 = vunpack.c.l.s4 1983009808
  %v10957 = vunpack.c.0.s8 %v10956
  %v10958 = vlaneseq
  %v10959 = vshrl.u32 %v10958, 7
  %v10960 = vsub.s32 %v10957, %v10959
  %v10961 = vrot.slane %v10947, %v10960
  %v10962 = vcombine.low %v10954, %v10961
  %v10963 = vcombine.low %v10218, %v10242
  %v10964 = vcombine.high %v10218, %v10242
  %v10965 = vcombine.low %v10266, %v10290
  %v10966 = vcombine.high %v10266, %v10290
  %v10968 = vunpack.c.l.s4 1983009808
  %v10969 = vunpack.c.0.s8 %v10968
  %v10970 = vlaneseq
  %v10971 = vshrl.u32 %v10970, 7
  %v10972 = vsub.s32 %v10969, %v10971
  %v10973 = vrot.slane %v10963, %v10972
  %v10975 = vunpack.c.l.s4 1983009808
  %v10976 = vunpack.c.0.s8 %v10975
  %v10977 = vlaneseq
  %v10978 = vshrl.u32 %v10977, 7
  %v10979 = vsub.s32 %v10976, %v10978
  %v10980 = vrot.slane %v10964, %v10979
  %v10982 = vunpack.c.l.s4 1983009808
  %v10983 = vunpack.c.0.s8 %v10982
  %v10984 = vlaneseq
  %v10985 = vshrl.u32 %v10984, 7
  %v10986 = vsub.s32 %v10983, %v10985
  %v10987 = vrot.slane %v10965, %v10986
  %v10989 = vunpack.c.l.s4 1983009808
  %v10990 = vunpack.c.0.s8 %v10989
  %v10991 = vlaneseq
  %v10992 = vshrl.u32 %v10991, 7
  %v10993 = vsub.s32 %v10990, %v10992
  %v10994 = vrot.slane %v10966, %v10993
  %v10995 = vcombine.low %v10973, %v10987
  %v10996 = vcombine.high %v10973, %v10987
  %v10997 = vcombine.low %v10980, %v10994
  %v10998 = vcombine.high %v10980, %v10994
  %v10999 = vcombine.low %v10225, %v10249
  %v11000 = vcombine.low %v10273, %v10297
  %v11002 = vunpack.c.l.s4 1983009808
  %v11003 = vunpack.c.0.s8 %v11002
  %v11004 = vlaneseq
  %v11005 = vshrl.u32 %v11004, 7
  %v11006 = vsub.s32 %v11003, %v11005
  %v11007 = vrot.slane %v10999, %v11006
  %v11009 = vunpack.c.l.s4 1983009808
  %v11010 = vunpack.c.0.s8 %v11009
  %v11011 = vlaneseq
  %v11012 = vshrl.u32 %v11011, 7
  %v11013 = vsub.s32 %v11010, %v11012
  %v11014 = vrot.slane %v11000, %v11013
  %v11015 = vcombine.low %v11007, %v11014
  %v11016 = vcombine.low %v10314, %v10338
  %v11017 = vcombine.high %v10314, %v10338
  %v11018 = vcombine.low %v10362, %v10386
  %v11019 = vcombine.high %v10362, %v10386
  %v11021 = vunpack.c.l.s4 1983009808
  %v11022 = vunpack.c.0.s8 %v11021
  %v11023 = vlaneseq
  %v11024 = vshrl.u32 %v11023, 7
  %v11025 = vsub.s32 %v11022, %v11024
  %v11026 = vrot.slane %v11016, %v11025
  %v11028 = vunpack.c.l.s4 1983009808
  %v11029 = vunpack.c.0.s8 %v11028
  %v11030 = vlaneseq
  %v11031 = vshrl.u32 %v11030, 7
  %v11032 = vsub.s32 %v11029, %v11031
  %v11033 = vrot.slane %v11017, %v11032
  %v11035 = vunpack.c.l.s4 1983009808
  %v11036 = vunpack.c.0.s8 %v11035
  %v11037 = vlaneseq
  %v11038 = vshrl.u32 %v11037, 7
  %v11039 = vsub.s32 %v11036, %v11038
  %v11040 = vrot.slane %v11018, %v11039
  %v11042 = vunpack.c.l.s4 1983009808
  %v11043 = vunpack.c.0.s8 %v11042
  %v11044 = vlaneseq
  %v11045 = vshrl.u32 %v11044, 7
  %v11046 = vsub.s32 %v11043, %v11045
  %v11047 = vrot.slane %v11019, %v11046
  %v11048 = vcombine.low %v11026, %v11040
  %v11049 = vcombine.high %v11026, %v11040
  %v11050 = vcombine.low %v11033, %v11047
  %v11051 = vcombine.high %v11033, %v11047
  %v11052 = vcombine.low %v10321, %v10345
  %v11053 = vcombine.low %v10369, %v10393
  %v11055 = vunpack.c.l.s4 1983009808
  %v11056 = vunpack.c.0.s8 %v11055
  %v11057 = vlaneseq
  %v11058 = vshrl.u32 %v11057, 7
  %v11059 = vsub.s32 %v11056, %v11058
  %v11060 = vrot.slane %v11052, %v11059
  %v11062 = vunpack.c.l.s4 1983009808
  %v11063 = vunpack.c.0.s8 %v11062
  %v11064 = vlaneseq
  %v11065 = vshrl.u32 %v11064, 7
  %v11066 = vsub.s32 %v11063, %v11065
  %v11067 = vrot.slane %v11053, %v11066
  %v11068 = vcombine.low %v11060, %v11067
  %v11069 = vcombine.low %v10410, %v10434
  %v11070 = vcombine.high %v10410, %v10434
  %v11071 = vcombine.low %v10458, %v10482
  %v11072 = vcombine.high %v10458, %v10482
  %v11074 = vunpack.c.l.s4 1983009808
  %v11075 = vunpack.c.0.s8 %v11074
  %v11076 = vlaneseq
  %v11077 = vshrl.u32 %v11076, 7
  %v11078 = vsub.s32 %v11075, %v11077
  %v11079 = vrot.slane %v11069, %v11078
  %v11081 = vunpack.c.l.s4 1983009808
  %v11082 = vunpack.c.0.s8 %v11081
  %v11083 = vlaneseq
  %v11084 = vshrl.u32 %v11083, 7
  %v11085 = vsub.s32 %v11082, %v11084
  %v11086 = vrot.slane %v11070, %v11085
  %v11088 = vunpack.c.l.s4 1983009808
  %v11089 = vunpack.c.0.s8 %v11088
  %v11090 = vlaneseq
  %v11091 = vshrl.u32 %v11090, 7
  %v11092 = vsub.s32 %v11089, %v11091
  %v11093 = vrot.slane %v11071, %v11092
  %v11095 = vunpack.c.l.s4 1983009808
  %v11096 = vunpack.c.0.s8 %v11095
  %v11097 = vlaneseq
  %v11098 = vshrl.u32 %v11097, 7
  %v11099 = vsub.s32 %v11096, %v11098
  %v11100 = vrot.slane %v11072, %v11099
  %v11101 = vcombine.low %v11079, %v11093
  %v11102 = vcombine.high %v11079, %v11093
  %v11103 = vcombine.low %v11086, %v11100
  %v11104 = vcombine.high %v11086, %v11100
  %v11105 = vcombine.low %v10417, %v10441
  %v11106 = vcombine.low %v10465, %v10489
  %v11108 = vunpack.c.l.s4 1983009808
  %v11109 = vunpack.c.0.s8 %v11108
  %v11110 = vlaneseq
  %v11111 = vshrl.u32 %v11110, 7
  %v11112 = vsub.s32 %v11109, %v11111
  %v11113 = vrot.slane %v11105, %v11112
  %v11115 = vunpack.c.l.s4 1983009808
  %v11116 = vunpack.c.0.s8 %v11115
  %v11117 = vlaneseq
  %v11118 = vshrl.u32 %v11117, 7
  %v11119 = vsub.s32 %v11116, %v11118
  %v11120 = vrot.slane %v11106, %v11119
  %v11121 = vcombine.low %v11113, %v11120
  %v11122 = vcombine.low %v10506, %v10530
  %v11123 = vcombine.high %v10506, %v10530
  %v11124 = vcombine.low %v10554, %v10578
  %v11125 = vcombine.high %v10554, %v10578
  %v11127 = vunpack.c.l.s4 1983009808
  %v11128 = vunpack.c.0.s8 %v11127
  %v11129 = vlaneseq
  %v11130 = vshrl.u32 %v11129, 7
  %v11131 = vsub.s32 %v11128, %v11130
  %v11132 = vrot.slane %v11122, %v11131
  %v11134 = vunpack.c.l.s4 1983009808
  %v11135 = vunpack.c.0.s8 %v11134
  %v11136 = vlaneseq
  %v11137 = vshrl.u32 %v11136, 7
  %v11138 = vsub.s32 %v11135, %v11137
  %v11139 = vrot.slane %v11123, %v11138
  %v11141 = vunpack.c.l.s4 1983009808
  %v11142 = vunpack.c.0.s8 %v11141
  %v11143 = vlaneseq
  %v11144 = vshrl.u32 %v11143, 7
  %v11145 = vsub.s32 %v11142, %v11144
  %v11146 = vrot.slane %v11124, %v11145
  %v11148 = vunpack.c.l.s4 1983009808
  %v11149 = vunpack.c.0.s8 %v11148
  %v11150 = vlaneseq
  %v11151 = vshrl.u32 %v11150, 7
  %v11152 = vsub.s32 %v11149, %v11151
  %v11153 = vrot.slane %v11125, %v11152
  %v11154 = vcombine.low %v11132, %v11146
  %v11155 = vcombine.high %v11132, %v11146
  %v11156 = vcombine.low %v11139, %v11153
  %v11157 = vcombine.high %v11139, %v11153
  %v11158 = vcombine.low %v10513, %v10537
  %v11159 = vcombine.low %v10561, %v10585
  %v11161 = vunpack.c.l.s4 1983009808
  %v11162 = vunpack.c.0.s8 %v11161
  %v11163 = vlaneseq
  %v11164 = vshrl.u32 %v11163, 7
  %v11165 = vsub.s32 %v11162, %v11164
  %v11166 = vrot.slane %v11158, %v11165
  %v11168 = vunpack.c.l.s4 1983009808
  %v11169 = vunpack.c.0.s8 %v11168
  %v11170 = vlaneseq
  %v11171 = vshrl.u32 %v11170, 7
  %v11172 = vsub.s32 %v11169, %v11171
  %v11173 = vrot.slane %v11159, %v11172
  %v11174 = vcombine.low %v11166, %v11173
  %v11175 = vcombine.low %v10602, %v10626
  %v11176 = vcombine.high %v10602, %v10626
  %v11177 = vcombine.low %v10650, %v10674
  %v11178 = vcombine.high %v10650, %v10674
  %v11180 = vunpack.c.l.s4 1983009808
  %v11181 = vunpack.c.0.s8 %v11180
  %v11182 = vlaneseq
  %v11183 = vshrl.u32 %v11182, 7
  %v11184 = vsub.s32 %v11181, %v11183
  %v11185 = vrot.slane %v11175, %v11184
  %v11187 = vunpack.c.l.s4 1983009808
  %v11188 = vunpack.c.0.s8 %v11187
  %v11189 = vlaneseq
  %v11190 = vshrl.u32 %v11189, 7
  %v11191 = vsub.s32 %v11188, %v11190
  %v11192 = vrot.slane %v11176, %v11191
  %v11194 = vunpack.c.l.s4 1983009808
  %v11195 = vunpack.c.0.s8 %v11194
  %v11196 = vlaneseq
  %v11197 = vshrl.u32 %v11196, 7
  %v11198 = vsub.s32 %v11195, %v11197
  %v11199 = vrot.slane %v11177, %v11198
  %v11201 = vunpack.c.l.s4 1983009808
  %v11202 = vunpack.c.0.s8 %v11201
  %v11203 = vlaneseq
  %v11204 = vshrl.u32 %v11203, 7
  %v11205 = vsub.s32 %v11202, %v11204
  %v11206 = vrot.slane %v11178, %v11205
  %v11207 = vcombine.low %v11185, %v11199
  %v11208 = vcombine.high %v11185, %v11199
  %v11209 = vcombine.low %v11192, %v11206
  %v11210 = vcombine.high %v11192, %v11206
  %v11211 = vcombine.low %v10609, %v10633
  %v11212 = vcombine.low %v10657, %v10681
  %v11214 = vunpack.c.l.s4 1983009808
  %v11215 = vunpack.c.0.s8 %v11214
  %v11216 = vlaneseq
  %v11217 = vshrl.u32 %v11216, 7
  %v11218 = vsub.s32 %v11215, %v11217
  %v11219 = vrot.slane %v11211, %v11218
  %v11221 = vunpack.c.l.s4 1983009808
  %v11222 = vunpack.c.0.s8 %v11221
  %v11223 = vlaneseq
  %v11224 = vshrl.u32 %v11223, 7
  %v11225 = vsub.s32 %v11222, %v11224
  %v11226 = vrot.slane %v11212, %v11225
  %v11227 = vcombine.low %v11219, %v11226
  %v11228 = vcombine.low %v10698, %v10722
  %v11229 = vcombine.high %v10698, %v10722
  %v11230 = vcombine.low %v10746, %v10770
  %v11231 = vcombine.high %v10746, %v10770
  %v11233 = vunpack.c.l.s4 1983009808
  %v11234 = vunpack.c.0.s8 %v11233
  %v11235 = vlaneseq
  %v11236 = vshrl.u32 %v11235, 7
  %v11237 = vsub.s32 %v11234, %v11236
  %v11238 = vrot.slane %v11228, %v11237
  %v11240 = vunpack.c.l.s4 1983009808
  %v11241 = vunpack.c.0.s8 %v11240
  %v11242 = vlaneseq
  %v11243 = vshrl.u32 %v11242, 7
  %v11244 = vsub.s32 %v11241, %v11243
  %v11245 = vrot.slane %v11229, %v11244
  %v11247 = vunpack.c.l.s4 1983009808
  %v11248 = vunpack.c.0.s8 %v11247
  %v11249 = vlaneseq
  %v11250 = vshrl.u32 %v11249, 7
  %v11251 = vsub.s32 %v11248, %v11250
  %v11252 = vrot.slane %v11230, %v11251
  %v11254 = vunpack.c.l.s4 1983009808
  %v11255 = vunpack.c.0.s8 %v11254
  %v11256 = vlaneseq
  %v11257 = vshrl.u32 %v11256, 7
  %v11258 = vsub.s32 %v11255, %v11257
  %v11259 = vrot.slane %v11231, %v11258
  %v11260 = vcombine.low %v11238, %v11252
  %v11261 = vcombine.high %v11238, %v11252
  %v11262 = vcombine.low %v11245, %v11259
  %v11263 = vcombine.high %v11245, %v11259
  %v11264 = vcombine.low %v10705, %v10729
  %v11265 = vcombine.low %v10753, %v10777
  %v11267 = vunpack.c.l.s4 1983009808
  %v11268 = vunpack.c.0.s8 %v11267
  %v11269 = vlaneseq
  %v11270 = vshrl.u32 %v11269, 7
  %v11271 = vsub.s32 %v11268, %v11270
  %v11272 = vrot.slane %v11264, %v11271
  %v11274 = vunpack.c.l.s4 1983009808
  %v11275 = vunpack.c.0.s8 %v11274
  %v11276 = vlaneseq
  %v11277 = vshrl.u32 %v11276, 7
  %v11278 = vsub.s32 %v11275, %v11277
  %v11279 = vrot.slane %v11265, %v11278
  %v11280 = vcombine.low %v11272, %v11279
  %v11385 = vunpack.c.l.b16 %v10778
  %v11386 = vunpack.c.l.b16 %v10779
  %v11387 = vunpack.c.l.b16 %v10780
  %v11388 = vunpack.c.l.b16 %v10781
  %v11389 = vunpack.c.l.b16 %v10782
  %v11390 = vunpack.c.l.b16 %v10783
  %v11391 = vunpack.c.l.b16 %v10784
  %v11392 = vunpack.c.l.b16 %v10785
  %v11393 = vunpack.c.l.b16 %v10786
  %v11394 = vunpack.c.l.b16 %v10787
  %v11395 = vunpack.c.l.b16 %v10788
  %v11396 = vunpack.c.l.b16 %v10789
  %v11397 = vunpack.c.l.b16 %v10790
  %v11398 = vunpack.c.l.b16 %v10791
  %v11399 = vunpack.c.l.b16 %v10792
  %v11400 = vunpack.c.l.b16 %v10793
  %v11401 = vunpack.c.l.b16 %v10794
  %v11402 = vunpack.c.l.b16 %v10795
  %v11403 = vunpack.c.l.b16 %v10796
  %v11404 = vunpack.c.l.b16 %v10797
  %v11405 = vunpack.c.l.b16 %v10798
  %v11406 = vunpack.c.l.b16 %v10799
  %v11407 = vunpack.c.l.b16 %v10800
  %v11408 = vunpack.c.l.b16 %v10801
  %v11409 = vunpack.c.l.b16 %v10802
  %v11410 = vunpack.c.l.b16 %v10803
  %v11411 = vunpack.c.l.b16 %v10804
  %v11412 = vunpack.c.l.b16 %v10805
  %v11413 = vunpack.c.l.b16 %v10806
  %v11414 = vunpack.c.l.b16 %v10807
  %v11415 = vunpack.c.l.b16 %v10808
  %v11416 = vunpack.c.l.b16 %v10809
  %v11417 = vunpack.c.l.b16 %v10810
  %v11418 = vunpack.c.l.b16 %v10811
  %v11419 = vunpack.c.l.b16 %v10812
  %v11420 = vunpack.c.l.b16 %v10813
  %v11421 = vunpack.c.l.b16 %v10814
  %v11422 = vunpack.c.l.b16 %v10815
  %v11423 = vunpack.c.l.b16 %v10816
  %v11424 = vunpack.c.l.b16 %v10817
  %v11425 = vunpack.c.l.b16 %v10818
  %v11426 = vunpack.c.l.b16 %v10819
  %v11427 = vunpack.c.l.b16 %v10820
  %v11428 = vunpack.c.l.b16 %v10821
  %v11429 = vunpack.c.l.b16 %v10822
  %v11430 = vunpack.c.l.b16 %v10823
  %v11431 = vunpack.c.l.b16 %v10824
  %v11432 = vunpack.c.l.b16 %v10825
  %v11433 = vunpack.c.l.b16 %v10826
  %v11434 = vunpack.c.l.b16 %v10827
  %v11435 = vunpack.c.l.b16 %v10828
  %v11436 = vunpack.c.l.b16 %v10829
  %v11437 = vunpack.c.l.b16 %v10830
  %v11438 = vunpack.c.l.b16 %v10831
  %v11439 = vunpack.c.l.b16 %v10832
  %v11440 = vunpack.c.l.b16 %v10833
  %v11441 = vunpack.c.l.b16 %v10834
  %v11442 = vunpack.c.l.b16 %v10835
  %v11443 = vunpack.c.l.b16 %v10836
  %v11444 = vunpack.c.l.b16 %v10837
  %v11445 = vunpack.c.l.b16 %v10838
  %v11446 = vunpack.c.l.b16 %v10839
  %v11447 = vunpack.c.l.b16 %v10840
  %v11448 = vunpack.c.l.b16 %v10841
  %v11449 = vunpack.c.l.b16 %v10842
  %v11450 = vunpack.c.l.b16 %v10843
  %v11451 = vunpack.c.l.b16 %v10844
  %v11452 = vunpack.c.l.b16 %v10845
  %v11453 = vunpack.c.l.b16 %v10846
  %v11454 = vunpack.c.l.b16 %v10847
  %v11455 = vunpack.c.l.b16 %v10848
  %v11456 = vunpack.c.l.b16 %v10849
  %v11457 = vpack.c.b16 %v11386, %v11385
  %v11458 = vpack.c.b16 %v11388, %v11387
  %v11459 = vpack.c.b16 %v11390, %v11389
  %v11460 = vpack.c.b16 %v11392, %v11391
  %v11461 = vpack.c.b16 %v11394, %v11393
  %v11462 = vpack.c.b16 %v11396, %v11395
  %v11463 = vpack.c.b16 %v11398, %v11397
  %v11464 = vpack.c.b16 %v11400, %v11399
  %v11465 = vpack.c.b16 %v11402, %v11401
  %v11466 = vpack.c.b16 %v11404, %v11403
  %v11467 = vpack.c.b16 %v11406, %v11405
  %v11468 = vpack.c.b16 %v11408, %v11407
  %v11469 = vpack.c.b16 %v11410, %v11409
  %v11470 = vpack.c.b16 %v11412, %v11411
  %v11471 = vpack.c.b16 %v11414, %v11413
  %v11472 = vpack.c.b16 %v11416, %v11415
  %v11473 = vpack.c.b16 %v11418, %v11417
  %v11474 = vpack.c.b16 %v11420, %v11419
  %v11475 = vpack.c.b16 %v11422, %v11421
  %v11476 = vpack.c.b16 %v11424, %v11423
  %v11477 = vpack.c.b16 %v11426, %v11425
  %v11478 = vpack.c.b16 %v11428, %v11427
  %v11479 = vpack.c.b16 %v11430, %v11429
  %v11480 = vpack.c.b16 %v11432, %v11431
  %v11481 = vpack.c.b16 %v11434, %v11433
  %v11482 = vpack.c.b16 %v11436, %v11435
  %v11483 = vpack.c.b16 %v11438, %v11437
  %v11484 = vpack.c.b16 %v11440, %v11439
  %v11485 = vpack.c.b16 %v11442, %v11441
  %v11486 = vpack.c.b16 %v11444, %v11443
  %v11487 = vpack.c.b16 %v11446, %v11445
  %v11488 = vpack.c.b16 %v11448, %v11447
  %v11489 = vpack.c.b16 %v11450, %v11449
  %v11490 = vpack.c.b16 %v11452, %v11451
  %v11491 = vpack.c.b16 %v11454, %v11453
  %v11492 = vpack.c.b16 %v11456, %v11455
  %v11530 = vsel %vm2951, %v10909, 0
  %v11533 = vsel %vm2951, %v10962, 0
  %v11536 = vsel %vm2951, %v11015, 0
  %v11539 = vsel %vm2951, %v11068, 0
  %v11542 = vsel %vm2951, %v11121, 0
  %v11545 = vsel %vm2951, %v11174, 0
  %v11548 = vsel %vm2951, %v11227, 0
  %v11551 = vsel %vm2951, %v11280, 0
  %11553 = vmatprep.subr.bf16.mxu0 0
  %11554 = vmatpush1.bf16.msra.mxu0 %v11457
  %11555 = vmatprep.subr.bf16.mxu0 0
  %11556 = vmatpush1.bf16.msra.mxu0 %v11458
  %11557 = vmatprep.subr.bf16.mxu0 0
  %11558 = vmatpush1.bf16.msra.mxu0 %v11459
  %11559 = vmatprep.subr.bf16.mxu0 0
  %11560 = vmatpush1.bf16.msra.mxu0 %v11460
  %11561 = vmatprep.subr.bf16.mxu0 0
  %11562 = vmatpush1.bf16.msra.mxu0 %v11461
  %11563 = vmatprep.subr.bf16.mxu0 0
  %11564 = vmatpush1.bf16.msra.mxu0 %v11462
  %11565 = vmatprep.subr.bf16.mxu0 0
  %11566 = vmatpush1.bf16.msra.mxu0 %v11463
  %11567 = vmatprep.subr.bf16.mxu0 0
  %11568 = vmatpush1.bf16.msra.mxu0 %v11464
  %11569 = vmatprep.subr.bf16.mxu0 0
  %11570 = vmatpush1.bf16.msra.mxu0 %v11465
  %11571 = vmatprep.subr.bf16.mxu0 0
  %11572 = vmatpush1.bf16.msra.mxu0 %v11466
  %11573 = vmatprep.subr.bf16.mxu0 0
  %11574 = vmatpush1.bf16.msra.mxu0 %v11467
  %11575 = vmatprep.subr.bf16.mxu0 0
  %11576 = vmatpush1.bf16.msra.mxu0 %v11468
  %11577 = vmatprep.subr.bf16.mxu0 0
  %11578 = vmatpush1.bf16.msra.mxu0 %v11469
  %11579 = vmatprep.subr.bf16.mxu0 0
  %11580 = vmatpush1.bf16.msra.mxu0 %v11470
  %11581 = vmatprep.subr.bf16.mxu0 0
  %11582 = vmatpush1.bf16.msra.mxu0 %v11471
  %11583 = vmatprep.subr.bf16.mxu0 0
  %11584 = vmatpush1.bf16.msra.mxu0 %v11472
  %11585 = vmatprep.mubr.bf16.mxu0 %v10890
  %11586 = vmatmul.mubr.bf16.gmra.mrb[0].mxu0 %v10889
  %v11587 = vpop.f32.mrb[0].mxu0
  %v11588 = vadd.f32 %v10855, %v11587
  %v11589 = vpop.f32.mrb[0].mxu0
  %v11590 = vpop.f32.mrb[0].mxu0
  %v11591 = vadd.f32 %v10855, %v11590
  %v11592 = vpop.f32.mrb[0].mxu0
  %11593 = vmatprep.mubr.bf16.mxu0 %v10943
  %11594 = vmatmul.mubr.bf16.gmra.mrb[0].mxu0 %v10942
  %v11595 = vpop.f32.mrb[0].mxu0
  %v11596 = vadd.f32 %v10855, %v11595
  %v11597 = vpop.f32.mrb[0].mxu0
  %v11598 = vpop.f32.mrb[0].mxu0
  %v11599 = vadd.f32 %v10855, %v11598
  %v11600 = vpop.f32.mrb[0].mxu0
  %11601 = vmatprep.mubr.bf16.mxu0 %v10996
  %11602 = vmatmul.mubr.bf16.gmra.mrb[0].mxu0 %v10995
  %v11603 = vpop.f32.mrb[0].mxu0
  %v11604 = vadd.f32 %v10855, %v11603
  %v11605 = vpop.f32.mrb[0].mxu0
  %v11606 = vpop.f32.mrb[0].mxu0
  %v11607 = vadd.f32 %v10855, %v11606
  %v11608 = vpop.f32.mrb[0].mxu0
  %11609 = vmatprep.mubr.bf16.mxu0 %v11049
  %11610 = vmatmul.mubr.bf16.gmra.mrb[0].mxu0 %v11048
  %v11611 = vpop.f32.mrb[0].mxu0
  %v11612 = vadd.f32 %v10855, %v11611
  %v11613 = vpop.f32.mrb[0].mxu0
  %v11614 = vpop.f32.mrb[0].mxu0
  %v11615 = vadd.f32 %v10855, %v11614
  %v11616 = vpop.f32.mrb[0].mxu0
  %11617 = vmatprep.mubr.bf16.mxu0 %v11102
  %11618 = vmatmul.mubr.bf16.gmra.mrb[0].mxu0 %v11101
  %v11619 = vpop.f32.mrb[0].mxu0
  %v11620 = vadd.f32 %v10855, %v11619
  %v11621 = vpop.f32.mrb[0].mxu0
  %v11622 = vpop.f32.mrb[0].mxu0
  %v11623 = vadd.f32 %v10855, %v11622
  %v11624 = vpop.f32.mrb[0].mxu0
  %11625 = vmatprep.mubr.bf16.mxu0 %v11155
  %11626 = vmatmul.mubr.bf16.gmra.mrb[0].mxu0 %v11154
  %v11627 = vpop.f32.mrb[0].mxu0
  %v11628 = vadd.f32 %v10855, %v11627
  %v11629 = vpop.f32.mrb[0].mxu0
  %v11630 = vpop.f32.mrb[0].mxu0
  %v11631 = vadd.f32 %v10855, %v11630
  %v11632 = vpop.f32.mrb[0].mxu0
  %11633 = vmatprep.mubr.bf16.mxu0 %v11208
  %11634 = vmatmul.mubr.bf16.gmra.mrb[0].mxu0 %v11207
  %v11635 = vpop.f32.mrb[0].mxu0
  %v11636 = vadd.f32 %v10855, %v11635
  %v11637 = vpop.f32.mrb[0].mxu0
  %v11638 = vpop.f32.mrb[0].mxu0
  %v11639 = vadd.f32 %v10855, %v11638
  %v11640 = vpop.f32.mrb[0].mxu0
  %11641 = vmatprep.mubr.bf16.mxu0 %v11261
  %11642 = vmatmul.mubr.bf16.gmra.mrb[0].mxu0 %v11260
  %v11643 = vpop.f32.mrb[0].mxu0
  %v11644 = vadd.f32 %v10855, %v11643
  %v11645 = vpop.f32.mrb[0].mxu0
  %v11646 = vpop.f32.mrb[0].mxu0
  %v11647 = vadd.f32 %v10855, %v11646
  %v11648 = vpop.f32.mrb[0].mxu0
  %11649 = vdwg.mxu0
  %11650 = vmatprep.subr.bf16.mxu0 0
  %11651 = vmatpush1.bf16.msra.mxu0 %v11473
  %11652 = vmatprep.subr.bf16.mxu0 0
  %11653 = vmatpush1.bf16.msra.mxu0 %v11474
  %11654 = vmatprep.subr.bf16.mxu0 0
  %11655 = vmatpush1.bf16.msra.mxu0 %v11475
  %11656 = vmatprep.subr.bf16.mxu0 0
  %11657 = vmatpush1.bf16.msra.mxu0 %v11476
  %11658 = vmatprep.subr.bf16.mxu0 0
  %11659 = vmatpush1.bf16.msra.mxu0 %v11477
  %11660 = vmatprep.subr.bf16.mxu0 0
  %11661 = vmatpush1.bf16.msra.mxu0 %v11478
  %11662 = vmatprep.subr.bf16.mxu0 0
  %11663 = vmatpush1.bf16.msra.mxu0 %v11479
  %11664 = vmatprep.subr.bf16.mxu0 0
  %11665 = vmatpush1.bf16.msra.mxu0 %v11480
  %11666 = vmatprep.subr.bf16.mxu0 0
  %11667 = vmatpush1.bf16.msra.mxu0 %v11481
  %11668 = vmatprep.subr.bf16.mxu0 0
  %11669 = vmatpush1.bf16.msra.mxu0 %v11482
  %11670 = vmatprep.subr.bf16.mxu0 0
  %11671 = vmatpush1.bf16.msra.mxu0 %v11483
  %11672 = vmatprep.subr.bf16.mxu0 0
  %11673 = vmatpush1.bf16.msra.mxu0 %v11484
  %11674 = vmatprep.subr.bf16.mxu0 0
  %11675 = vmatpush1.bf16.msra.mxu0 %v11485
  %11676 = vmatprep.subr.bf16.mxu0 0
  %11677 = vmatpush1.bf16.msra.mxu0 %v11486
  %11678 = vmatprep.subr.bf16.mxu0 0
  %11679 = vmatpush1.bf16.msra.mxu0 %v11487
  %11680 = vmatprep.subr.bf16.mxu0 0
  %11681 = vmatpush1.bf16.msra.mxu0 %v11488
  %11682 = vmatprep.mubr.bf16.mxu0 %v10892
  %11683 = vmatmul.mubr.bf16.gmra.mrb[0].mxu0 %v10891
  %v11684 = vpop.f32.mrb[0].mxu0
  %v11685 = vadd.f32 %v11588, %v11684
  %v11686 = vpop.f32.mrb[0].mxu0
  %v11687 = vpop.f32.mrb[0].mxu0
  %v11688 = vadd.f32 %v11591, %v11687
  %v11689 = vpop.f32.mrb[0].mxu0
  %11690 = vmatprep.mubr.bf16.mxu0 %v10945
  %11691 = vmatmul.mubr.bf16.gmra.mrb[0].mxu0 %v10944
  %v11692 = vpop.f32.mrb[0].mxu0
  %v11693 = vadd.f32 %v11596, %v11692
  %v11694 = vpop.f32.mrb[0].mxu0
  %v11695 = vpop.f32.mrb[0].mxu0
  %v11696 = vadd.f32 %v11599, %v11695
  %v11697 = vpop.f32.mrb[0].mxu0
  %11698 = vmatprep.mubr.bf16.mxu0 %v10998
  %11699 = vmatmul.mubr.bf16.gmra.mrb[0].mxu0 %v10997
  %v11700 = vpop.f32.mrb[0].mxu0
  %v11701 = vadd.f32 %v11604, %v11700
  %v11702 = vpop.f32.mrb[0].mxu0
  %v11703 = vpop.f32.mrb[0].mxu0
  %v11704 = vadd.f32 %v11607, %v11703
  %v11705 = vpop.f32.mrb[0].mxu0
  %11706 = vmatprep.mubr.bf16.mxu0 %v11051
  %11707 = vmatmul.mubr.bf16.gmra.mrb[0].mxu0 %v11050
  %v11708 = vpop.f32.mrb[0].mxu0
  %v11709 = vadd.f32 %v11612, %v11708
  %v11710 = vpop.f32.mrb[0].mxu0
  %v11711 = vpop.f32.mrb[0].mxu0
  %v11712 = vadd.f32 %v11615, %v11711
  %v11713 = vpop.f32.mrb[0].mxu0
  %11714 = vmatprep.mubr.bf16.mxu0 %v11104
  %11715 = vmatmul.mubr.bf16.gmra.mrb[0].mxu0 %v11103
  %v11716 = vpop.f32.mrb[0].mxu0
  %v11717 = vadd.f32 %v11620, %v11716
  %v11718 = vpop.f32.mrb[0].mxu0
  %v11719 = vpop.f32.mrb[0].mxu0
  %v11720 = vadd.f32 %v11623, %v11719
  %v11721 = vpop.f32.mrb[0].mxu0
  %11722 = vmatprep.mubr.bf16.mxu0 %v11157
  %11723 = vmatmul.mubr.bf16.gmra.mrb[0].mxu0 %v11156
  %v11724 = vpop.f32.mrb[0].mxu0
  %v11725 = vadd.f32 %v11628, %v11724
  %v11726 = vpop.f32.mrb[0].mxu0
  %v11727 = vpop.f32.mrb[0].mxu0
  %v11728 = vadd.f32 %v11631, %v11727
  %v11729 = vpop.f32.mrb[0].mxu0
  %11730 = vmatprep.mubr.bf16.mxu0 %v11210
  %11731 = vmatmul.mubr.bf16.gmra.mrb[0].mxu0 %v11209
  %v11732 = vpop.f32.mrb[0].mxu0
  %v11733 = vadd.f32 %v11636, %v11732
  %v11734 = vpop.f32.mrb[0].mxu0
  %v11735 = vpop.f32.mrb[0].mxu0
  %v11736 = vadd.f32 %v11639, %v11735
  %v11737 = vpop.f32.mrb[0].mxu0
  %11738 = vmatprep.mubr.bf16.mxu0 %v11263
  %11739 = vmatmul.mubr.bf16.gmra.mrb[0].mxu0 %v11262
  %v11740 = vpop.f32.mrb[0].mxu0
  %v11741 = vadd.f32 %v11644, %v11740
  %v11742 = vpop.f32.mrb[0].mxu0
  %v11743 = vpop.f32.mrb[0].mxu0
  %v11744 = vadd.f32 %v11647, %v11743
  %v11745 = vpop.f32.mrb[0].mxu0
  %11746 = vdwg.mxu0
  %11747 = vmatprep.subr.bf16.mxu0 0
  %11748 = vmatpush1.bf16.msra.mxu0 %v11489
  %11749 = vmatprep.subr.bf16.mxu0 0
  %11750 = vmatpush1.bf16.msra.mxu0 %v11490
  %11751 = vmatprep.subr.bf16.mxu0 0
  %11752 = vmatpush1.bf16.msra.mxu0 %v11491
  %11753 = vmatprep.subr.bf16.mxu0 0
  %11754 = vmatpush1.bf16.msra.mxu0 %v11492
  %11755 = vmatprep.subr.bf16.mxu0 0
  %11756 = vmatpush1.bf16.msra.mxu0 0
  %11757 = vmatprep.subr.bf16.mxu0 0
  %11758 = vmatpush1.bf16.msra.mxu0 0
  %11759 = vmatprep.subr.bf16.mxu0 0
  %11760 = vmatpush1.bf16.msra.mxu0 0
  %11761 = vmatprep.subr.bf16.mxu0 0
  %11762 = vmatpush1.bf16.msra.mxu0 0
  %11763 = vmatprep.subr.bf16.mxu0 0
  %11764 = vmatpush1.bf16.msra.mxu0 0
  %11765 = vmatprep.subr.bf16.mxu0 0
  %11766 = vmatpush1.bf16.msra.mxu0 0
  %11767 = vmatprep.subr.bf16.mxu0 0
  %11768 = vmatpush1.bf16.msra.mxu0 0
  %11769 = vmatprep.subr.bf16.mxu0 0
  %11770 = vmatpush1.bf16.msra.mxu0 0
  %11771 = vmatprep.subr.bf16.mxu0 0
  %11772 = vmatpush1.bf16.msra.mxu0 0
  %11773 = vmatprep.subr.bf16.mxu0 0
  %11774 = vmatpush1.bf16.msra.mxu0 0
  %11775 = vmatprep.subr.bf16.mxu0 0
  %11776 = vmatpush1.bf16.msra.mxu0 0
  %11777 = vmatprep.subr.bf16.mxu0 0
  %11778 = vmatpush1.bf16.msra.mxu0 0
  %11779 = vmatprep.mubr.bf16.mxu0 0
  %11780 = vmatmul.mubr.bf16.gmra.mrb[0].mxu0 %v11530
  %v11781 = vpop.f32.mrb[0].mxu0
  %v11782 = vadd.f32 %v11685, %v11781
  %v11783 = vpop.f32.mrb[0].mxu0
  %v11784 = vpop.f32.mrb[0].mxu0
  %v11785 = vadd.f32 %v11688, %v11784
  %v11786 = vpop.f32.mrb[0].mxu0
  %11787 = vmatprep.mubr.bf16.mxu0 0
  %11788 = vmatmul.mubr.bf16.gmra.mrb[0].mxu0 %v11533
  %v11789 = vpop.f32.mrb[0].mxu0
  %v11790 = vadd.f32 %v11693, %v11789
  %v11791 = vpop.f32.mrb[0].mxu0
  %v11792 = vpop.f32.mrb[0].mxu0
  %v11793 = vadd.f32 %v11696, %v11792
  %v11794 = vpop.f32.mrb[0].mxu0
  %11795 = vmatprep.mubr.bf16.mxu0 0
  %11796 = vmatmul.mubr.bf16.gmra.mrb[0].mxu0 %v11536
  %v11797 = vpop.f32.mrb[0].mxu0
  %v11798 = vadd.f32 %v11701, %v11797
  %v11799 = vpop.f32.mrb[0].mxu0
  %v11800 = vpop.f32.mrb[0].mxu0
  %v11801 = vadd.f32 %v11704, %v11800
  %v11802 = vpop.f32.mrb[0].mxu0
  %11803 = vmatprep.mubr.bf16.mxu0 0
  %11804 = vmatmul.mubr.bf16.gmra.mrb[0].mxu0 %v11539
  %v11805 = vpop.f32.mrb[0].mxu0
  %v11806 = vadd.f32 %v11709, %v11805
  %v11807 = vpop.f32.mrb[0].mxu0
  %v11808 = vpop.f32.mrb[0].mxu0
  %v11809 = vadd.f32 %v11712, %v11808
  %v11810 = vpop.f32.mrb[0].mxu0
  %11811 = vmatprep.mubr.bf16.mxu0 0
  %11812 = vmatmul.mubr.bf16.gmra.mrb[0].mxu0 %v11542
  %v11813 = vpop.f32.mrb[0].mxu0
  %v11814 = vadd.f32 %v11717, %v11813
  %v11815 = vpop.f32.mrb[0].mxu0
  %v11816 = vpop.f32.mrb[0].mxu0
  %v11817 = vadd.f32 %v11720, %v11816
  %v11818 = vpop.f32.mrb[0].mxu0
  %11819 = vmatprep.mubr.bf16.mxu0 0
  %11820 = vmatmul.mubr.bf16.gmra.mrb[0].mxu0 %v11545
  %v11821 = vpop.f32.mrb[0].mxu0
  %v11822 = vadd.f32 %v11725, %v11821
  %v11823 = vpop.f32.mrb[0].mxu0
  %v11824 = vpop.f32.mrb[0].mxu0
  %v11825 = vadd.f32 %v11728, %v11824
  %v11826 = vpop.f32.mrb[0].mxu0
  %11827 = vmatprep.mubr.bf16.mxu0 0
  %11828 = vmatmul.mubr.bf16.gmra.mrb[0].mxu0 %v11548
  %v11829 = vpop.f32.mrb[0].mxu0
  %v11830 = vadd.f32 %v11733, %v11829
  %v11831 = vpop.f32.mrb[0].mxu0
  %v11832 = vpop.f32.mrb[0].mxu0
  %v11833 = vadd.f32 %v11736, %v11832
  %v11834 = vpop.f32.mrb[0].mxu0
  %11835 = vmatprep.mubr.bf16.mxu0 0
  %11836 = vmatmul.mubr.bf16.gmra.mrb[0].mxu0 %v11551
  %v11837 = vpop.f32.mrb[0].mxu0
  %v11838 = vadd.f32 %v11741, %v11837
  %v11839 = vpop.f32.mrb[0].mxu0
  %v11840 = vpop.f32.mrb[0].mxu0
  %v11841 = vadd.f32 %v11744, %v11840
  %v11842 = vpop.f32.mrb[0].mxu0
  %11843 = vdwg.mxu0
  %v11844 = vmul.f32 %v11782, 0.01
  %v11845 = vmul.f32 %v11785, 0.01
  %v11846 = vmul.f32 %v11790, 0.01
  %v11847 = vmul.f32 %v11793, 0.01
  %v11848 = vmul.f32 %v11798, 0.01
  %v11849 = vmul.f32 %v11801, 0.01
  %v11850 = vmul.f32 %v11806, 0.01
  %v11851 = vmul.f32 %v11809, 0.01
  %v11852 = vmul.f32 %v11814, 0.01
  %v11853 = vmul.f32 %v11817, 0.01
  %v11854 = vmul.f32 %v11822, 0.01
  %v11855 = vmul.f32 %v11825, 0.01
  %v11856 = vmul.f32 %v11830, 0.01
  %v11857 = vmul.f32 %v11833, 0.01
  %v11858 = vmul.f32 %v11838, 0.01
  %v11859 = vmul.f32 %v11841, 0.01
  %v11860 = vmax.f32 %v11782, %v11844
  %v11861 = vmax.f32 %v11785, %v11845
  %v11862 = vmax.f32 %v11790, %v11846
  %v11863 = vmax.f32 %v11793, %v11847
  %v11864 = vmax.f32 %v11798, %v11848
  %v11865 = vmax.f32 %v11801, %v11849
  %v11866 = vmax.f32 %v11806, %v11850
  %v11867 = vmax.f32 %v11809, %v11851
  %v11868 = vmax.f32 %v11814, %v11852
  %v11869 = vmax.f32 %v11817, %v11853
  %v11870 = vmax.f32 %v11822, %v11854
  %v11871 = vmax.f32 %v11825, %v11855
  %v11872 = vmax.f32 %v11830, %v11856
  %v11873 = vmax.f32 %v11833, %v11857
  %v11874 = vmax.f32 %v11838, %v11858
  %v11875 = vmax.f32 %v11841, %v11859
  %v11876 = vpack.c.bf16 %v11861, %v11860
  %v11877 = vpack.c.bf16 %v11863, %v11862
  %v11878 = vpack.c.bf16 %v11865, %v11864
  %v11879 = vpack.c.bf16 %v11867, %v11866
  %v11880 = vpack.c.bf16 %v11869, %v11868
  %v11881 = vpack.c.bf16 %v11871, %v11870
  %v11882 = vpack.c.bf16 %v11873, %v11872
  %v11883 = vpack.c.bf16 %v11875, %v11874
  %v11884 = vld [vmem:[%s7] sm:$0xff]
  %v11885 = vld [vmem:[%s7 + $0x8] sm:$0xff]
  %v11886 = vld [vmem:[%s7 + $0x10] sm:$0xff]
  %v11887 = vld [vmem:[%s7 + $0x18] sm:$0xff]
  %v11888 = vld [vmem:[%s7 + $0x20] sm:$0xff]
  %v11889 = vld [vmem:[%s7 + $0x28] sm:$0xff]
  %v11890 = vld [vmem:[%s7 + $0x30] sm:$0xff]
  %v11891 = vld [vmem:[%s7 + $0x38] sm:$0xff]
  %v11892 = vld [vmem:[%s7 + $0x40] sm:$0xff]
  %v11893 = vld [vmem:[%s7 + $0x48] sm:$0xff]
  %v11894 = vld [vmem:[%s7 + $0x50] sm:$0xff]
  %v11895 = vld [vmem:[%s7 + $0x58] sm:$0xff]
  %v11896 = vld [vmem:[%s7 + $0x60] sm:$0xff]
  %v11897 = vld [vmem:[%s7 + $0x68] sm:$0xff]
  %v11898 = vld [vmem:[%s7 + $0x70] sm:$0xff]
  %v11899 = vld [vmem:[%s7 + $0x78] sm:$0xff]
  %v11900 = vld [vmem:[%s7 + $0x80] sm:$0xff]
  %v11901 = vld [vmem:[%s7 + $0x88] sm:$0xff]
  %v11902 = vld [vmem:[%s7 + $0x90] sm:$0xff]
  %v11903 = vld [vmem:[%s7 + $0x98] sm:$0xff]
  %v11904 = vld [vmem:[%s7 + $0xa0] sm:$0xff]
  %v11905 = vld [vmem:[%s7 + $0xa8] sm:$0xff]
  %v11906 = vld [vmem:[%s7 + $0xb0] sm:$0xff]
  %v11907 = vld [vmem:[%s7 + $0xb8] sm:$0xff]
  %v11908 = vld [vmem:[%s7 + $0xc0] sm:$0xff]
  %v11909 = vld [vmem:[%s7 + $0xc8] sm:$0xff]
  %v11910 = vld [vmem:[%s7 + $0xd0] sm:$0xff]
  %v11911 = vld [vmem:[%s7 + $0xd8] sm:$0xff]
  %v11912 = vld [vmem:[%s7 + $0xe0] sm:$0xff]
  %v11913 = vld [vmem:[%s7 + $0xe8] sm:$0xff]
  %v11914 = vld [vmem:[%s7 + $0xf0] sm:$0xff]
  %v11915 = vld [vmem:[%s7 + $0xf8] sm:$0xff]
  %v11916 = vld [vmem:[%s7 + $0x100] sm:$0xff]
  %v11917 = vld [vmem:[%s7 + $0x108] sm:$0xff]
  %v11918 = vld [vmem:[%s7 + $0x110] sm:$0xff]
  %v11919 = vld [vmem:[%s7 + $0x118] sm:$0xff]
  %v11920 = vld [vmem:[%s7 + $0x120] sm:$0xff]
  %v11921 = vld [vmem:[%s7 + $0x128] sm:$0xff]
  %v11922 = vld [vmem:[%s7 + $0x130] sm:$0xff]
  %v11923 = vld [vmem:[%s7 + $0x138] sm:$0xff]
  %v11924 = vld [vmem:[%s7 + $0x140] sm:$0xff]
  %v11925 = vld [vmem:[%s7 + $0x148] sm:$0xff]
  %v11926 = vld [vmem:[%s7 + $0x150] sm:$0xff]
  %v11927 = vld [vmem:[%s7 + $0x158] sm:$0xff]
  %v11928 = vld [vmem:[%s7 + $0x160] sm:$0xff]
  %v11929 = vld [vmem:[%s7 + $0x168] sm:$0xff]
  %v11930 = vld [vmem:[%s7 + $0x170] sm:$0xff]
  %v11931 = vld [vmem:[%s7 + $0x178] sm:$0xff]
  %v11932 = vld [vmem:[%s7 + $0x180] sm:$0xff]
  %v11933 = vld [vmem:[%s7 + $0x188] sm:$0xff]
  %v11934 = vld [vmem:[%s7 + $0x190] sm:$0xff]
  %v11935 = vld [vmem:[%s7 + $0x198] sm:$0xff]
  %v11936 = vld [vmem:[%s7 + $0x1a0] sm:$0xff]
  %v11937 = vld [vmem:[%s7 + $0x1a8] sm:$0xff]
  %v11938 = vld [vmem:[%s7 + $0x1b0] sm:$0xff]
  %v11939 = vld [vmem:[%s7 + $0x1b8] sm:$0xff]
  %v11940 = vld [vmem:[%s7 + $0x1c0] sm:$0xff]
  %v11941 = vld [vmem:[%s7 + $0x1c8] sm:$0xff]
  %v11942 = vld [vmem:[%s7 + $0x1d0] sm:$0xff]
  %v11943 = vld [vmem:[%s7 + $0x1d8] sm:$0xff]
  %v11944 = vld [vmem:[%s7 + $0x1e0] sm:$0xff]
  %v11945 = vld [vmem:[%s7 + $0x1e8] sm:$0xff]
  %v11946 = vld [vmem:[%s7 + $0x1f0] sm:$0xff]
  %v11947 = vld [vmem:[%s7 + $0x1f8] sm:$0xff]
  %v11948 = vld [vmem:[%s7 + $0x200] sm:$0xff]
  %v11949 = vld [vmem:[%s7 + $0x208] sm:$0xff]
  %v11950 = vld [vmem:[%s7 + $0x210] sm:$0xff]
  %v11951 = vld [vmem:[%s7 + $0x218] sm:$0xff]
  %v11952 = vld [vmem:[%s7 + $0x220] sm:$0xff]
  %v11953 = vld [vmem:[%s7 + $0x228] sm:$0xff]
  %v11954 = vld [vmem:[%s7 + $0x230] sm:$0xff]
  %v11955 = vld [vmem:[%s7 + $0x238] sm:$0xff]
  %v11956 = vld [vmem:[%s7 + $0x240] sm:$0xff]
  %v11957 = vld [vmem:[%s7 + $0x248] sm:$0xff]
  %v11958 = vld [vmem:[%s7 + $0x250] sm:$0xff]
  %v11959 = vld [vmem:[%s7 + $0x258] sm:$0xff]
  %v11960 = vld [vmem:[%s7 + $0x260] sm:$0xff]
  %v11961 = vld [vmem:[%s7 + $0x268] sm:$0xff]
  %v11962 = vld [vmem:[%s7 + $0x270] sm:$0xff]
  %v11963 = vld [vmem:[%s7 + $0x278] sm:$0xff]
  %v11964 = vld [vmem:[%s7 + $0x280] sm:$0xff]
  %v11965 = vld [vmem:[%s7 + $0x288] sm:$0xff]
  %v11966 = vld [vmem:[%s7 + $0x290] sm:$0xff]
  %v11967 = vld [vmem:[%s7 + $0x298] sm:$0xff]
  %v11968 = vld [vmem:[%s7 + $0x2a0] sm:$0xff]
  %v11969 = vld [vmem:[%s7 + $0x2a8] sm:$0xff]
  %v11970 = vld [vmem:[%s7 + $0x2b0] sm:$0xff]
  %v11971 = vld [vmem:[%s7 + $0x2b8] sm:$0xff]
  %v11972 = vld [vmem:[%s7 + $0x2c0] sm:$0xff]
  %v11973 = vld [vmem:[%s7 + $0x2c8] sm:$0xff]
  %v11974 = vld [vmem:[%s7 + $0x2d0] sm:$0xff]
  %v11975 = vld [vmem:[%s7 + $0x2d8] sm:$0xff]
  %v11976 = vld [vmem:[%s7 + $0x2e0] sm:$0xff]
  %v11977 = vld [vmem:[%s7 + $0x2e8] sm:$0xff]
  %v11978 = vld [vmem:[%s7 + $0x2f0] sm:$0xff]
  %v11979 = vld [vmem:[%s7 + $0x2f8] sm:$0xff]
  %v11980 = vld [vmem:[%s7 + $0x300] sm:$0xff]
  %v11981 = vld [vmem:[%s7 + $0x308] sm:$0xff]
  %v11982 = vld [vmem:[%s7 + $0x310] sm:$0xff]
  %v11983 = vld [vmem:[%s7 + $0x318] sm:$0xff]
  %v11984 = vld [vmem:[%s7 + $0x320] sm:$0xff]
  %v11985 = vld [vmem:[%s7 + $0x328] sm:$0xff]
  %v11986 = vld [vmem:[%s7 + $0x330] sm:$0xff]
  %v11987 = vld [vmem:[%s7 + $0x338] sm:$0xff]
  %v11988 = vld [vmem:[%s7 + $0x340] sm:$0xff]
  %v11989 = vld [vmem:[%s7 + $0x348] sm:$0xff]
  %v11990 = vld [vmem:[%s7 + $0x350] sm:$0xff]
  %v11991 = vld [vmem:[%s7 + $0x358] sm:$0xff]
  %v11992 = vld [vmem:[%s7 + $0x360] sm:$0xff]
  %v11993 = vld [vmem:[%s7 + $0x368] sm:$0xff]
  %v11994 = vld [vmem:[%s7 + $0x370] sm:$0xff]
  %v11995 = vld [vmem:[%s7 + $0x378] sm:$0xff]
  %v11996 = vld [vmem:[%s7 + $0x380] sm:$0xff]
  %v11997 = vld [vmem:[%s7 + $0x388] sm:$0xff]
  %v11998 = vld [vmem:[%s7 + $0x390] sm:$0xff]
  %v11999 = vld [vmem:[%s7 + $0x398] sm:$0xff]
  %v12000 = vld [vmem:[%s7 + $0x3a0] sm:$0xff]
  %v12001 = vld [vmem:[%s7 + $0x3a8] sm:$0xff]
  %v12002 = vld [vmem:[%s7 + $0x3b0] sm:$0xff]
  %v12003 = vld [vmem:[%s7 + $0x3b8] sm:$0xff]
  %v12004 = vld [vmem:[%s7 + $0x3c0] sm:$0xff]
  %v12005 = vld [vmem:[%s7 + $0x3c8] sm:$0xff]
  %v12006 = vld [vmem:[%s7 + $0x3d0] sm:$0xff]
  %v12007 = vld [vmem:[%s7 + $0x3d8] sm:$0xff]
  %v12008 = vld [vmem:[%s7 + $0x3e0] sm:$0xff]
  %v12009 = vld [vmem:[%s7 + $0x3e8] sm:$0xff]
  %v12010 = vld [vmem:[%s7 + $0x3f0] sm:$0xff]
  %v12011 = vld [vmem:[%s7 + $0x3f8] sm:$0xff]
  %v12012 = vld [vmem:[%s7 + $0x400] sm:$0xff]
  %v12013 = vld [vmem:[%s7 + $0x408] sm:$0xff]
  %v12014 = vld [vmem:[%s7 + $0x410] sm:$0xff]
  %v12015 = vld [vmem:[%s7 + $0x418] sm:$0xff]
  %v12016 = vld [vmem:[%s7 + $0x420] sm:$0xff]
  %v12017 = vld [vmem:[%s7 + $0x428] sm:$0xff]
  %v12018 = vld [vmem:[%s7 + $0x430] sm:$0xff]
  %v12019 = vld [vmem:[%s7 + $0x438] sm:$0xff]
  %v12020 = vld [vmem:[%s7 + $0x440] sm:$0xff]
  %v12021 = vld [vmem:[%s7 + $0x448] sm:$0xff]
  %v12022 = vld [vmem:[%s7 + $0x450] sm:$0xff]
  %v12023 = vld [vmem:[%s7 + $0x458] sm:$0xff]
  %v12024 = vld [vmem:[%s7 + $0x460] sm:$0xff]
  %v12025 = vld [vmem:[%s7 + $0x468] sm:$0xff]
  %v12026 = vld [vmem:[%s7 + $0x470] sm:$0xff]
  %v12027 = vld [vmem:[%s7 + $0x478] sm:$0xff]
  %v12028 = vld [vmem:[%s7 + $0x480] sm:$0xff]
  %v12029 = vld [vmem:[%s7 + $0x488] sm:$0xff]
  %v12030 = vld [vmem:[%s7 + $0x490] sm:$0xff]
  %v12031 = vld [vmem:[%s7 + $0x498] sm:$0xff]
  %v12032 = vld [vmem:[%s7 + $0x4a0] sm:$0xff]
  %v12033 = vld [vmem:[%s7 + $0x4a8] sm:$0xff]
  %v12034 = vld [vmem:[%s7 + $0x4b0] sm:$0xff]
  %v12035 = vld [vmem:[%s7 + $0x4b8] sm:$0xff]
  %v12036 = vld [vmem:[%s7 + $0x4c0] sm:$0xff]
  %v12037 = vld [vmem:[%s7 + $0x4c8] sm:$0xff]
  %v12038 = vld [vmem:[%s7 + $0x4d0] sm:$0xff]
  %v12039 = vld [vmem:[%s7 + $0x4d8] sm:$0xff]
  %v12040 = vld [vmem:[%s7 + $0x4e0] sm:$0xff]
  %v12041 = vld [vmem:[%s7 + $0x4e8] sm:$0xff]
  %v12042 = vld [vmem:[%s7 + $0x4f0] sm:$0xff]
  %v12043 = vld [vmem:[%s7 + $0x4f8] sm:$0xff]
  %v12044 = vld [vmem:[%s7 + $0x500] sm:$0xff]
  %v12045 = vld [vmem:[%s7 + $0x508] sm:$0xff]
  %v12046 = vld [vmem:[%s7 + $0x510] sm:$0xff]
  %v12047 = vld [vmem:[%s7 + $0x518] sm:$0xff]
  %v12048 = vld [vmem:[%s7 + $0x520] sm:$0xff]
  %v12049 = vld [vmem:[%s7 + $0x528] sm:$0xff]
  %v12050 = vld [vmem:[%s7 + $0x530] sm:$0xff]
  %v12051 = vld [vmem:[%s7 + $0x538] sm:$0xff]
  %v12052 = vld [vmem:[%s7 + $0x540] sm:$0xff]
  %v12053 = vld [vmem:[%s7 + $0x548] sm:$0xff]
  %v12054 = vld [vmem:[%s7 + $0x550] sm:$0xff]
  %v12055 = vld [vmem:[%s7 + $0x558] sm:$0xff]
  %v12056 = vld [vmem:[%s7 + $0x560] sm:$0xff]
  %v12057 = vld [vmem:[%s7 + $0x568] sm:$0xff]
  %v12058 = vld [vmem:[%s7 + $0x570] sm:$0xff]
  %v12059 = vld [vmem:[%s7 + $0x578] sm:$0xff]
  %v12060 = vld [vmem:[%s7 + $0x580] sm:$0xff]
  %v12061 = vld [vmem:[%s7 + $0x588] sm:$0xff]
  %v12062 = vld [vmem:[%s7 + $0x590] sm:$0xff]
  %v12063 = vld [vmem:[%s7 + $0x598] sm:$0xff]
  %v12064 = vld [vmem:[%s7 + $0x5a0] sm:$0xff]
  %v12065 = vld [vmem:[%s7 + $0x5a8] sm:$0xff]
  %v12066 = vld [vmem:[%s7 + $0x5b0] sm:$0xff]
  %v12067 = vld [vmem:[%s7 + $0x5b8] sm:$0xff]
  %v12068 = vld [vmem:[%s7 + $0x5c0] sm:$0xff]
  %v12069 = vld [vmem:[%s7 + $0x5c8] sm:$0xff]
  %v12070 = vld [vmem:[%s7 + $0x5d0] sm:$0xff]
  %v12071 = vld [vmem:[%s7 + $0x5d8] sm:$0xff]
  %v12072 = vld [vmem:[%s7 + $0x5e0] sm:$0xff]
  %v12073 = vld [vmem:[%s7 + $0x5e8] sm:$0xff]
  %v12074 = vld [vmem:[%s7 + $0x5f0] sm:$0xff]
  %v12075 = vld [vmem:[%s7 + $0x5f8] sm:$0xff]
  %v12076 = vld [vmem:[%s7 + $0x600] sm:$0xff]
  %v12077 = vld [vmem:[%s7 + $0x608] sm:$0xff]
  %v12078 = vld [vmem:[%s7 + $0x610] sm:$0xff]
  %v12079 = vld [vmem:[%s7 + $0x618] sm:$0xff]
  %v12080 = vld [vmem:[%s7 + $0x620] sm:$0xff]
  %v12081 = vld [vmem:[%s7 + $0x628] sm:$0xff]
  %v12082 = vld [vmem:[%s7 + $0x630] sm:$0xff]
  %v12083 = vld [vmem:[%s7 + $0x638] sm:$0xff]
  %v12084 = vld [vmem:[%s7 + $0x640] sm:$0xff]
  %v12085 = vld [vmem:[%s7 + $0x648] sm:$0xff]
  %v12086 = vld [vmem:[%s7 + $0x650] sm:$0xff]
  %v12087 = vld [vmem:[%s7 + $0x658] sm:$0xff]
  %v12088 = vld [vmem:[%s7 + $0x660] sm:$0xff]
  %v12089 = vld [vmem:[%s7 + $0x668] sm:$0xff]
  %v12090 = vld [vmem:[%s7 + $0x670] sm:$0xff]
  %v12091 = vld [vmem:[%s7 + $0x678] sm:$0xff]
  %v12092 = vld [vmem:[%s7 + $0x680] sm:$0xff]
  %v12093 = vld [vmem:[%s7 + $0x688] sm:$0xff]
  %v12094 = vld [vmem:[%s7 + $0x690] sm:$0xff]
  %v12095 = vld [vmem:[%s7 + $0x698] sm:$0xff]
  %v12096 = vld [vmem:[%s7 + $0x6a0] sm:$0xff]
  %v12097 = vld [vmem:[%s7 + $0x6a8] sm:$0xff]
  %v12098 = vld [vmem:[%s7 + $0x6b0] sm:$0xff]
  %v12099 = vld [vmem:[%s7 + $0x6b8] sm:$0xff]
  %v12100 = vld [vmem:[%s7 + $0x6c0] sm:$0xff]
  %v12101 = vld [vmem:[%s7 + $0x6c8] sm:$0xff]
  %v12102 = vld [vmem:[%s7 + $0x6d0] sm:$0xff]
  %v12103 = vld [vmem:[%s7 + $0x6d8] sm:$0xff]
  %v12104 = vld [vmem:[%s7 + $0x6e0] sm:$0xff]
  %v12105 = vld [vmem:[%s7 + $0x6e8] sm:$0xff]
  %v12106 = vld [vmem:[%s7 + $0x6f0] sm:$0xff]
  %v12107 = vld [vmem:[%s7 + $0x6f8] sm:$0xff]
  %v12108 = vld [vmem:[%s7 + $0x700] sm:$0xff]
  %v12109 = vld [vmem:[%s7 + $0x708] sm:$0xff]
  %v12110 = vld [vmem:[%s7 + $0x710] sm:$0xff]
  %v12111 = vld [vmem:[%s7 + $0x718] sm:$0xff]
  %v12112 = vld [vmem:[%s7 + $0x720] sm:$0xff]
  %v12113 = vld [vmem:[%s7 + $0x728] sm:$0xff]
  %v12114 = vld [vmem:[%s7 + $0x730] sm:$0xff]
  %v12115 = vld [vmem:[%s7 + $0x738] sm:$0xff]
  %v12116 = vld [vmem:[%s7 + $0x740] sm:$0xff]
  %v12117 = vld [vmem:[%s7 + $0x748] sm:$0xff]
  %v12118 = vld [vmem:[%s7 + $0x750] sm:$0xff]
  %v12119 = vld [vmem:[%s7 + $0x758] sm:$0xff]
  %v12120 = vld [vmem:[%s7 + $0x760] sm:$0xff]
  %v12121 = vld [vmem:[%s7 + $0x768] sm:$0xff]
  %v12122 = vld [vmem:[%s7 + $0x770] sm:$0xff]
  %v12123 = vld [vmem:[%s7 + $0x778] sm:$0xff]
  %v12124 = vld [vmem:[%s7 + $0x780] sm:$0xff]
  %v12125 = vld [vmem:[%s7 + $0x788] sm:$0xff]
  %v12126 = vld [vmem:[%s7 + $0x790] sm:$0xff]
  %v12127 = vld [vmem:[%s7 + $0x798] sm:$0xff]
  %v12128 = vld [vmem:[%s7 + $0x7a0] sm:$0xff]
  %v12129 = vld [vmem:[%s7 + $0x7a8] sm:$0xff]
  %v12130 = vld [vmem:[%s7 + $0x7b0] sm:$0xff]
  %v12131 = vld [vmem:[%s7 + $0x7b8] sm:$0xff]
  %v12132 = vld [vmem:[%s7 + $0x7c0] sm:$0xff]
  %v12133 = vld [vmem:[%s7 + $0x7c8] sm:$0xff]
  %v12134 = vld [vmem:[%s7 + $0x7d0] sm:$0xff]
  %v12135 = vld [vmem:[%s7 + $0x7d8] sm:$0xff]
  %v12136 = vld [vmem:[%s7 + $0x7e0] sm:$0xff]
  %v12137 = vld [vmem:[%s7 + $0x7e8] sm:$0xff]
  %v12138 = vld [vmem:[%s7 + $0x7f0] sm:$0xff]
  %v12139 = vld [vmem:[%s7 + $0x7f8] sm:$0xff]
  %v12140 = vld [vmem:[%s8] sm:$0x3]
  %v12142 = vlaneseq
  %v12143 = vshrl.u32 %v12142, 7
  %v12144 = vsub.s32 0, %v12143
  %v12145 = vrot.slane %v12140, %v12144
  %v12146 = vlaneseq
  %v12147 = vshrl.u32 %v12146, 7
  %v12148 = vsub.s32 1, %v12147
  %v12149 = vrot.slane %v12140, %v12148
  %v12160 = vunpack.c.l.b16 %v11876
  %v12161 = vunpack.c.h.b16 %v11876
  %v12162 = vunpack.c.l.b16 %v11877
  %v12163 = vunpack.c.h.b16 %v11877
  %v12164 = vunpack.c.l.b16 %v11878
  %v12165 = vunpack.c.h.b16 %v11878
  %v12166 = vunpack.c.l.b16 %v11879
  %v12167 = vunpack.c.h.b16 %v11879
  %v12168 = vunpack.c.l.b16 %v11880
  %v12169 = vunpack.c.h.b16 %v11880
  %v12170 = vunpack.c.l.b16 %v11881
  %v12171 = vunpack.c.h.b16 %v11881
  %v12172 = vunpack.c.l.b16 %v11882
  %v12173 = vunpack.c.h.b16 %v11882
  %v12174 = vunpack.c.l.b16 %v11883
  %v12175 = vunpack.c.h.b16 %v11883
  %v12176 = vpack.i.b16 %v12162, %v12160
  %v12177 = vpack.i.b16 %v12163, %v12161
  %v12178 = vpack.i.b16 %v12166, %v12164
  %v12179 = vpack.i.b16 %v12167, %v12165
  %v12180 = vpack.i.b16 %v12170, %v12168
  %v12181 = vpack.i.b16 %v12171, %v12169
  %v12182 = vpack.i.b16 %v12174, %v12172
  %v12183 = vpack.i.b16 %v12175, %v12173
  %v12184 = vcombine.low %v12176, %v12178
  %v12185 = vcombine.high %v12176, %v12178
  %v12186 = vcombine.low %v12180, %v12182
  %v12187 = vcombine.high %v12180, %v12182
  %v12189 = vunpack.c.l.s4 1966171168
  %v12190 = vunpack.c.0.s8 %v12189
  %v12191 = vlaneseq
  %v12192 = vshrl.u32 %v12191, 7
  %v12193 = vsub.s32 %v12190, %v12192
  %v12194 = vrot.slane %v12184, %v12193
  %v12196 = vunpack.c.l.s4 1966171168
  %v12197 = vunpack.c.0.s8 %v12196
  %v12198 = vlaneseq
  %v12199 = vshrl.u32 %v12198, 7
  %v12200 = vsub.s32 %v12197, %v12199
  %v12201 = vrot.slane %v12185, %v12200
  %v12203 = vunpack.c.l.s4 1966171168
  %v12204 = vunpack.c.0.s8 %v12203
  %v12205 = vlaneseq
  %v12206 = vshrl.u32 %v12205, 7
  %v12207 = vsub.s32 %v12204, %v12206
  %v12208 = vrot.slane %v12186, %v12207
  %v12210 = vunpack.c.l.s4 1966171168
  %v12211 = vunpack.c.0.s8 %v12210
  %v12212 = vlaneseq
  %v12213 = vshrl.u32 %v12212, 7
  %v12214 = vsub.s32 %v12211, %v12213
  %v12215 = vrot.slane %v12187, %v12214
  %v12216 = vcombine.low %v12194, %v12208
  %v12217 = vcombine.high %v12194, %v12208
  %v12218 = vcombine.low %v12201, %v12215
  %v12219 = vcombine.high %v12201, %v12215
  %v12221 = vunpack.c.l.s4 1966171168
  %v12222 = vunpack.c.0.s8 %v12221
  %v12223 = vlaneseq
  %v12224 = vshrl.u32 %v12223, 7
  %v12225 = vsub.s32 %v12222, %v12224
  %v12226 = vrot.slane %v12216, %v12225
  %v12228 = vunpack.c.l.s4 1966171168
  %v12229 = vunpack.c.0.s8 %v12228
  %v12230 = vlaneseq
  %v12231 = vshrl.u32 %v12230, 7
  %v12232 = vsub.s32 %v12229, %v12231
  %v12233 = vrot.slane %v12218, %v12232
  %v12235 = vunpack.c.l.s4 1966171168
  %v12236 = vunpack.c.0.s8 %v12235
  %v12237 = vlaneseq
  %v12238 = vshrl.u32 %v12237, 7
  %v12239 = vsub.s32 %v12236, %v12238
  %v12240 = vrot.slane %v12217, %v12239
  %v12242 = vunpack.c.l.s4 1966171168
  %v12243 = vunpack.c.0.s8 %v12242
  %v12244 = vlaneseq
  %v12245 = vshrl.u32 %v12244, 7
  %v12246 = vsub.s32 %v12243, %v12245
  %v12247 = vrot.slane %v12219, %v12246
  %v12248 = vcombine.high %v12226, %v12226
  %v12249 = vcombine.high %v12233, %v12233
  %v12250 = vcombine.high %v12240, %v12240
  %v12251 = vcombine.high %v12247, %v12247
  %v12252 = vcombine.low %v12177, %v12179
  %v12253 = vcombine.high %v12177, %v12179
  %v12254 = vcombine.low %v12181, %v12183
  %v12255 = vcombine.high %v12181, %v12183
  %v12257 = vunpack.c.l.s4 1966171168
  %v12258 = vunpack.c.0.s8 %v12257
  %v12259 = vlaneseq
  %v12260 = vshrl.u32 %v12259, 7
  %v12261 = vsub.s32 %v12258, %v12260
  %v12262 = vrot.slane %v12252, %v12261
  %v12264 = vunpack.c.l.s4 1966171168
  %v12265 = vunpack.c.0.s8 %v12264
  %v12266 = vlaneseq
  %v12267 = vshrl.u32 %v12266, 7
  %v12268 = vsub.s32 %v12265, %v12267
  %v12269 = vrot.slane %v12253, %v12268
  %v12271 = vunpack.c.l.s4 1966171168
  %v12272 = vunpack.c.0.s8 %v12271
  %v12273 = vlaneseq
  %v12274 = vshrl.u32 %v12273, 7
  %v12275 = vsub.s32 %v12272, %v12274
  %v12276 = vrot.slane %v12254, %v12275
  %v12278 = vunpack.c.l.s4 1966171168
  %v12279 = vunpack.c.0.s8 %v12278
  %v12280 = vlaneseq
  %v12281 = vshrl.u32 %v12280, 7
  %v12282 = vsub.s32 %v12279, %v12281
  %v12283 = vrot.slane %v12255, %v12282
  %v12284 = vcombine.low %v12262, %v12276
  %v12285 = vcombine.high %v12262, %v12276
  %v12286 = vcombine.low %v12269, %v12283
  %v12287 = vcombine.high %v12269, %v12283
  %v12289 = vunpack.c.l.s4 1966171168
  %v12290 = vunpack.c.0.s8 %v12289
  %v12291 = vlaneseq
  %v12292 = vshrl.u32 %v12291, 7
  %v12293 = vsub.s32 %v12290, %v12292
  %v12294 = vrot.slane %v12284, %v12293
  %v12296 = vunpack.c.l.s4 1966171168
  %v12297 = vunpack.c.0.s8 %v12296
  %v12298 = vlaneseq
  %v12299 = vshrl.u32 %v12298, 7
  %v12300 = vsub.s32 %v12297, %v12299
  %v12301 = vrot.slane %v12286, %v12300
  %v12303 = vunpack.c.l.s4 1966171168
  %v12304 = vunpack.c.0.s8 %v12303
  %v12305 = vlaneseq
  %v12306 = vshrl.u32 %v12305, 7
  %v12307 = vsub.s32 %v12304, %v12306
  %v12308 = vrot.slane %v12285, %v12307
  %v12310 = vunpack.c.l.s4 1966171168
  %v12311 = vunpack.c.0.s8 %v12310
  %v12312 = vlaneseq
  %v12313 = vshrl.u32 %v12312, 7
  %v12314 = vsub.s32 %v12311, %v12313
  %v12315 = vrot.slane %v12287, %v12314
  %v12316 = vcombine.high %v12294, %v12294
  %v12317 = vcombine.high %v12301, %v12301
  %v12318 = vcombine.high %v12308, %v12308
  %v12319 = vcombine.high %v12315, %v12315
  %v12592 = vunpack.c.l.b16 %v11884
  %v12593 = vunpack.c.h.b16 %v11884
  %v12594 = vunpack.c.l.b16 %v11885
  %v12595 = vunpack.c.h.b16 %v11885
  %v12596 = vunpack.c.l.b16 %v11886
  %v12597 = vunpack.c.h.b16 %v11886
  %v12598 = vunpack.c.l.b16 %v11887
  %v12599 = vunpack.c.h.b16 %v11887
  %v12600 = vunpack.c.l.b16 %v11888
  %v12601 = vunpack.c.h.b16 %v11888
  %v12602 = vunpack.c.l.b16 %v11889
  %v12603 = vunpack.c.h.b16 %v11889
  %v12604 = vunpack.c.l.b16 %v11890
  %v12605 = vunpack.c.h.b16 %v11890
  %v12606 = vunpack.c.l.b16 %v11891
  %v12607 = vunpack.c.h.b16 %v11891
  %v12608 = vunpack.c.l.b16 %v11892
  %v12609 = vunpack.c.h.b16 %v11892
  %v12610 = vunpack.c.l.b16 %v11893
  %v12611 = vunpack.c.h.b16 %v11893
  %v12612 = vunpack.c.l.b16 %v11894
  %v12613 = vunpack.c.h.b16 %v11894
  %v12614 = vunpack.c.l.b16 %v11895
  %v12615 = vunpack.c.h.b16 %v11895
  %v12616 = vunpack.c.l.b16 %v11896
  %v12617 = vunpack.c.h.b16 %v11896
  %v12618 = vunpack.c.l.b16 %v11897
  %v12619 = vunpack.c.h.b16 %v11897
  %v12620 = vunpack.c.l.b16 %v11898
  %v12621 = vunpack.c.h.b16 %v11898
  %v12622 = vunpack.c.l.b16 %v11899
  %v12623 = vunpack.c.h.b16 %v11899
  %v12624 = vunpack.c.l.b16 %v11900
  %v12625 = vunpack.c.h.b16 %v11900
  %v12626 = vunpack.c.l.b16 %v11901
  %v12627 = vunpack.c.h.b16 %v11901
  %v12628 = vunpack.c.l.b16 %v11902
  %v12629 = vunpack.c.h.b16 %v11902
  %v12630 = vunpack.c.l.b16 %v11903
  %v12631 = vunpack.c.h.b16 %v11903
  %v12632 = vunpack.c.l.b16 %v11904
  %v12633 = vunpack.c.h.b16 %v11904
  %v12634 = vunpack.c.l.b16 %v11905
  %v12635 = vunpack.c.h.b16 %v11905
  %v12636 = vunpack.c.l.b16 %v11906
  %v12637 = vunpack.c.h.b16 %v11906
  %v12638 = vunpack.c.l.b16 %v11907
  %v12639 = vunpack.c.h.b16 %v11907
  %v12640 = vunpack.c.l.b16 %v11908
  %v12641 = vunpack.c.h.b16 %v11908
  %v12642 = vunpack.c.l.b16 %v11909
  %v12643 = vunpack.c.h.b16 %v11909
  %v12644 = vunpack.c.l.b16 %v11910
  %v12645 = vunpack.c.h.b16 %v11910
  %v12646 = vunpack.c.l.b16 %v11911
  %v12647 = vunpack.c.h.b16 %v11911
  %v12648 = vunpack.c.l.b16 %v11912
  %v12649 = vunpack.c.h.b16 %v11912
  %v12650 = vunpack.c.l.b16 %v11913
  %v12651 = vunpack.c.h.b16 %v11913
  %v12652 = vunpack.c.l.b16 %v11914
  %v12653 = vunpack.c.h.b16 %v11914
  %v12654 = vunpack.c.l.b16 %v11915
  %v12655 = vunpack.c.h.b16 %v11915
  %v12656 = vunpack.c.l.b16 %v11916
  %v12657 = vunpack.c.h.b16 %v11916
  %v12658 = vunpack.c.l.b16 %v11917
  %v12659 = vunpack.c.h.b16 %v11917
  %v12660 = vunpack.c.l.b16 %v11918
  %v12661 = vunpack.c.h.b16 %v11918
  %v12662 = vunpack.c.l.b16 %v11919
  %v12663 = vunpack.c.h.b16 %v11919
  %v12664 = vunpack.c.l.b16 %v11920
  %v12665 = vunpack.c.h.b16 %v11920
  %v12666 = vunpack.c.l.b16 %v11921
  %v12667 = vunpack.c.h.b16 %v11921
  %v12668 = vunpack.c.l.b16 %v11922
  %v12669 = vunpack.c.h.b16 %v11922
  %v12670 = vunpack.c.l.b16 %v11923
  %v12671 = vunpack.c.h.b16 %v11923
  %v12672 = vunpack.c.l.b16 %v11924
  %v12673 = vunpack.c.h.b16 %v11924
  %v12674 = vunpack.c.l.b16 %v11925
  %v12675 = vunpack.c.h.b16 %v11925
  %v12676 = vunpack.c.l.b16 %v11926
  %v12677 = vunpack.c.h.b16 %v11926
  %v12678 = vunpack.c.l.b16 %v11927
  %v12679 = vunpack.c.h.b16 %v11927
  %v12680 = vunpack.c.l.b16 %v11928
  %v12681 = vunpack.c.h.b16 %v11928
  %v12682 = vunpack.c.l.b16 %v11929
  %v12683 = vunpack.c.h.b16 %v11929
  %v12684 = vunpack.c.l.b16 %v11930
  %v12685 = vunpack.c.h.b16 %v11930
  %v12686 = vunpack.c.l.b16 %v11931
  %v12687 = vunpack.c.h.b16 %v11931
  %v12688 = vunpack.c.l.b16 %v11932
  %v12689 = vunpack.c.h.b16 %v11932
  %v12690 = vunpack.c.l.b16 %v11933
  %v12691 = vunpack.c.h.b16 %v11933
  %v12692 = vunpack.c.l.b16 %v11934
  %v12693 = vunpack.c.h.b16 %v11934
  %v12694 = vunpack.c.l.b16 %v11935
  %v12695 = vunpack.c.h.b16 %v11935
  %v12696 = vunpack.c.l.b16 %v11936
  %v12697 = vunpack.c.h.b16 %v11936
  %v12698 = vunpack.c.l.b16 %v11937
  %v12699 = vunpack.c.h.b16 %v11937
  %v12700 = vunpack.c.l.b16 %v11938
  %v12701 = vunpack.c.h.b16 %v11938
  %v12702 = vunpack.c.l.b16 %v11939
  %v12703 = vunpack.c.h.b16 %v11939
  %v12704 = vunpack.c.l.b16 %v11940
  %v12705 = vunpack.c.h.b16 %v11940
  %v12706 = vunpack.c.l.b16 %v11941
  %v12707 = vunpack.c.h.b16 %v11941
  %v12708 = vunpack.c.l.b16 %v11942
  %v12709 = vunpack.c.h.b16 %v11942
  %v12710 = vunpack.c.l.b16 %v11943
  %v12711 = vunpack.c.h.b16 %v11943
  %v12712 = vunpack.c.l.b16 %v11944
  %v12713 = vunpack.c.h.b16 %v11944
  %v12714 = vunpack.c.l.b16 %v11945
  %v12715 = vunpack.c.h.b16 %v11945
  %v12716 = vunpack.c.l.b16 %v11946
  %v12717 = vunpack.c.h.b16 %v11946
  %v12718 = vunpack.c.l.b16 %v11947
  %v12719 = vunpack.c.h.b16 %v11947
  %v12720 = vunpack.c.l.b16 %v11948
  %v12721 = vunpack.c.h.b16 %v11948
  %v12722 = vunpack.c.l.b16 %v11949
  %v12723 = vunpack.c.h.b16 %v11949
  %v12724 = vunpack.c.l.b16 %v11950
  %v12725 = vunpack.c.h.b16 %v11950
  %v12726 = vunpack.c.l.b16 %v11951
  %v12727 = vunpack.c.h.b16 %v11951
  %v12728 = vunpack.c.l.b16 %v11952
  %v12729 = vunpack.c.h.b16 %v11952
  %v12730 = vunpack.c.l.b16 %v11953
  %v12731 = vunpack.c.h.b16 %v11953
  %v12732 = vunpack.c.l.b16 %v11954
  %v12733 = vunpack.c.h.b16 %v11954
  %v12734 = vunpack.c.l.b16 %v11955
  %v12735 = vunpack.c.h.b16 %v11955
  %v12736 = vunpack.c.l.b16 %v11956
  %v12737 = vunpack.c.h.b16 %v11956
  %v12738 = vunpack.c.l.b16 %v11957
  %v12739 = vunpack.c.h.b16 %v11957
  %v12740 = vunpack.c.l.b16 %v11958
  %v12741 = vunpack.c.h.b16 %v11958
  %v12742 = vunpack.c.l.b16 %v11959
  %v12743 = vunpack.c.h.b16 %v11959
  %v12744 = vunpack.c.l.b16 %v11960
  %v12745 = vunpack.c.h.b16 %v11960
  %v12746 = vunpack.c.l.b16 %v11961
  %v12747 = vunpack.c.h.b16 %v11961
  %v12748 = vunpack.c.l.b16 %v11962
  %v12749 = vunpack.c.h.b16 %v11962
  %v12750 = vunpack.c.l.b16 %v11963
  %v12751 = vunpack.c.h.b16 %v11963
  %v12752 = vunpack.c.l.b16 %v11964
  %v12753 = vunpack.c.h.b16 %v11964
  %v12754 = vunpack.c.l.b16 %v11965
  %v12755 = vunpack.c.h.b16 %v11965
  %v12756 = vunpack.c.l.b16 %v11966
  %v12757 = vunpack.c.h.b16 %v11966
  %v12758 = vunpack.c.l.b16 %v11967
  %v12759 = vunpack.c.h.b16 %v11967
  %v12760 = vunpack.c.l.b16 %v11968
  %v12761 = vunpack.c.h.b16 %v11968
  %v12762 = vunpack.c.l.b16 %v11969
  %v12763 = vunpack.c.h.b16 %v11969
  %v12764 = vunpack.c.l.b16 %v11970
  %v12765 = vunpack.c.h.b16 %v11970
  %v12766 = vunpack.c.l.b16 %v11971
  %v12767 = vunpack.c.h.b16 %v11971
  %v12768 = vunpack.c.l.b16 %v11972
  %v12769 = vunpack.c.h.b16 %v11972
  %v12770 = vunpack.c.l.b16 %v11973
  %v12771 = vunpack.c.h.b16 %v11973
  %v12772 = vunpack.c.l.b16 %v11974
  %v12773 = vunpack.c.h.b16 %v11974
  %v12774 = vunpack.c.l.b16 %v11975
  %v12775 = vunpack.c.h.b16 %v11975
  %v12776 = vunpack.c.l.b16 %v11976
  %v12777 = vunpack.c.h.b16 %v11976
  %v12778 = vunpack.c.l.b16 %v11977
  %v12779 = vunpack.c.h.b16 %v11977
  %v12780 = vunpack.c.l.b16 %v11978
  %v12781 = vunpack.c.h.b16 %v11978
  %v12782 = vunpack.c.l.b16 %v11979
  %v12783 = vunpack.c.h.b16 %v11979
  %v12784 = vunpack.c.l.b16 %v11980
  %v12785 = vunpack.c.h.b16 %v11980
  %v12786 = vunpack.c.l.b16 %v11981
  %v12787 = vunpack.c.h.b16 %v11981
  %v12788 = vunpack.c.l.b16 %v11982
  %v12789 = vunpack.c.h.b16 %v11982
  %v12790 = vunpack.c.l.b16 %v11983
  %v12791 = vunpack.c.h.b16 %v11983
  %v12792 = vunpack.c.l.b16 %v11984
  %v12793 = vunpack.c.h.b16 %v11984
  %v12794 = vunpack.c.l.b16 %v11985
  %v12795 = vunpack.c.h.b16 %v11985
  %v12796 = vunpack.c.l.b16 %v11986
  %v12797 = vunpack.c.h.b16 %v11986
  %v12798 = vunpack.c.l.b16 %v11987
  %v12799 = vunpack.c.h.b16 %v11987
  %v12800 = vunpack.c.l.b16 %v11988
  %v12801 = vunpack.c.h.b16 %v11988
  %v12802 = vunpack.c.l.b16 %v11989
  %v12803 = vunpack.c.h.b16 %v11989
  %v12804 = vunpack.c.l.b16 %v11990
  %v12805 = vunpack.c.h.b16 %v11990
  %v12806 = vunpack.c.l.b16 %v11991
  %v12807 = vunpack.c.h.b16 %v11991
  %v12808 = vunpack.c.l.b16 %v11992
  %v12809 = vunpack.c.h.b16 %v11992
  %v12810 = vunpack.c.l.b16 %v11993
  %v12811 = vunpack.c.h.b16 %v11993
  %v12812 = vunpack.c.l.b16 %v11994
  %v12813 = vunpack.c.h.b16 %v11994
  %v12814 = vunpack.c.l.b16 %v11995
  %v12815 = vunpack.c.h.b16 %v11995
  %v12816 = vunpack.c.l.b16 %v11996
  %v12817 = vunpack.c.h.b16 %v11996
  %v12818 = vunpack.c.l.b16 %v11997
  %v12819 = vunpack.c.h.b16 %v11997
  %v12820 = vunpack.c.l.b16 %v11998
  %v12821 = vunpack.c.h.b16 %v11998
  %v12822 = vunpack.c.l.b16 %v11999
  %v12823 = vunpack.c.h.b16 %v11999
  %v12824 = vunpack.c.l.b16 %v12000
  %v12825 = vunpack.c.h.b16 %v12000
  %v12826 = vunpack.c.l.b16 %v12001
  %v12827 = vunpack.c.h.b16 %v12001
  %v12828 = vunpack.c.l.b16 %v12002
  %v12829 = vunpack.c.h.b16 %v12002
  %v12830 = vunpack.c.l.b16 %v12003
  %v12831 = vunpack.c.h.b16 %v12003
  %v12832 = vunpack.c.l.b16 %v12004
  %v12833 = vunpack.c.h.b16 %v12004
  %v12834 = vunpack.c.l.b16 %v12005
  %v12835 = vunpack.c.h.b16 %v12005
  %v12836 = vunpack.c.l.b16 %v12006
  %v12837 = vunpack.c.h.b16 %v12006
  %v12838 = vunpack.c.l.b16 %v12007
  %v12839 = vunpack.c.h.b16 %v12007
  %v12840 = vunpack.c.l.b16 %v12008
  %v12841 = vunpack.c.h.b16 %v12008
  %v12842 = vunpack.c.l.b16 %v12009
  %v12843 = vunpack.c.h.b16 %v12009
  %v12844 = vunpack.c.l.b16 %v12010
  %v12845 = vunpack.c.h.b16 %v12010
  %v12846 = vunpack.c.l.b16 %v12011
  %v12847 = vunpack.c.h.b16 %v12011
  %v12848 = vunpack.c.l.b16 %v12012
  %v12849 = vunpack.c.h.b16 %v12012
  %v12850 = vunpack.c.l.b16 %v12013
  %v12851 = vunpack.c.h.b16 %v12013
  %v12852 = vunpack.c.l.b16 %v12014
  %v12853 = vunpack.c.h.b16 %v12014
  %v12854 = vunpack.c.l.b16 %v12015
  %v12855 = vunpack.c.h.b16 %v12015
  %v12856 = vunpack.c.l.b16 %v12016
  %v12857 = vunpack.c.h.b16 %v12016
  %v12858 = vunpack.c.l.b16 %v12017
  %v12859 = vunpack.c.h.b16 %v12017
  %v12860 = vunpack.c.l.b16 %v12018
  %v12861 = vunpack.c.h.b16 %v12018
  %v12862 = vunpack.c.l.b16 %v12019
  %v12863 = vunpack.c.h.b16 %v12019
  %v12864 = vunpack.c.l.b16 %v12020
  %v12865 = vunpack.c.h.b16 %v12020
  %v12866 = vunpack.c.l.b16 %v12021
  %v12867 = vunpack.c.h.b16 %v12021
  %v12868 = vunpack.c.l.b16 %v12022
  %v12869 = vunpack.c.h.b16 %v12022
  %v12870 = vunpack.c.l.b16 %v12023
  %v12871 = vunpack.c.h.b16 %v12023
  %v12872 = vunpack.c.l.b16 %v12024
  %v12873 = vunpack.c.h.b16 %v12024
  %v12874 = vunpack.c.l.b16 %v12025
  %v12875 = vunpack.c.h.b16 %v12025
  %v12876 = vunpack.c.l.b16 %v12026
  %v12877 = vunpack.c.h.b16 %v12026
  %v12878 = vunpack.c.l.b16 %v12027
  %v12879 = vunpack.c.h.b16 %v12027
  %v12880 = vunpack.c.l.b16 %v12028
  %v12881 = vunpack.c.h.b16 %v12028
  %v12882 = vunpack.c.l.b16 %v12029
  %v12883 = vunpack.c.h.b16 %v12029
  %v12884 = vunpack.c.l.b16 %v12030
  %v12885 = vunpack.c.h.b16 %v12030
  %v12886 = vunpack.c.l.b16 %v12031
  %v12887 = vunpack.c.h.b16 %v12031
  %v12888 = vunpack.c.l.b16 %v12032
  %v12889 = vunpack.c.h.b16 %v12032
  %v12890 = vunpack.c.l.b16 %v12033
  %v12891 = vunpack.c.h.b16 %v12033
  %v12892 = vunpack.c.l.b16 %v12034
  %v12893 = vunpack.c.h.b16 %v12034
  %v12894 = vunpack.c.l.b16 %v12035
  %v12895 = vunpack.c.h.b16 %v12035
  %v12896 = vunpack.c.l.b16 %v12036
  %v12897 = vunpack.c.h.b16 %v12036
  %v12898 = vunpack.c.l.b16 %v12037
  %v12899 = vunpack.c.h.b16 %v12037
  %v12900 = vunpack.c.l.b16 %v12038
  %v12901 = vunpack.c.h.b16 %v12038
  %v12902 = vunpack.c.l.b16 %v12039
  %v12903 = vunpack.c.h.b16 %v12039
  %v12904 = vunpack.c.l.b16 %v12040
  %v12905 = vunpack.c.h.b16 %v12040
  %v12906 = vunpack.c.l.b16 %v12041
  %v12907 = vunpack.c.h.b16 %v12041
  %v12908 = vunpack.c.l.b16 %v12042
  %v12909 = vunpack.c.h.b16 %v12042
  %v12910 = vunpack.c.l.b16 %v12043
  %v12911 = vunpack.c.h.b16 %v12043
  %v12912 = vunpack.c.l.b16 %v12044
  %v12913 = vunpack.c.h.b16 %v12044
  %v12914 = vunpack.c.l.b16 %v12045
  %v12915 = vunpack.c.h.b16 %v12045
  %v12916 = vunpack.c.l.b16 %v12046
  %v12917 = vunpack.c.h.b16 %v12046
  %v12918 = vunpack.c.l.b16 %v12047
  %v12919 = vunpack.c.h.b16 %v12047
  %v12920 = vunpack.c.l.b16 %v12048
  %v12921 = vunpack.c.h.b16 %v12048
  %v12922 = vunpack.c.l.b16 %v12049
  %v12923 = vunpack.c.h.b16 %v12049
  %v12924 = vunpack.c.l.b16 %v12050
  %v12925 = vunpack.c.h.b16 %v12050
  %v12926 = vunpack.c.l.b16 %v12051
  %v12927 = vunpack.c.h.b16 %v12051
  %v12928 = vunpack.c.l.b16 %v12052
  %v12929 = vunpack.c.h.b16 %v12052
  %v12930 = vunpack.c.l.b16 %v12053
  %v12931 = vunpack.c.h.b16 %v12053
  %v12932 = vunpack.c.l.b16 %v12054
  %v12933 = vunpack.c.h.b16 %v12054
  %v12934 = vunpack.c.l.b16 %v12055
  %v12935 = vunpack.c.h.b16 %v12055
  %v12936 = vunpack.c.l.b16 %v12056
  %v12937 = vunpack.c.h.b16 %v12056
  %v12938 = vunpack.c.l.b16 %v12057
  %v12939 = vunpack.c.h.b16 %v12057
  %v12940 = vunpack.c.l.b16 %v12058
  %v12941 = vunpack.c.h.b16 %v12058
  %v12942 = vunpack.c.l.b16 %v12059
  %v12943 = vunpack.c.h.b16 %v12059
  %v12944 = vunpack.c.l.b16 %v12060
  %v12945 = vunpack.c.h.b16 %v12060
  %v12946 = vunpack.c.l.b16 %v12061
  %v12947 = vunpack.c.h.b16 %v12061
  %v12948 = vunpack.c.l.b16 %v12062
  %v12949 = vunpack.c.h.b16 %v12062
  %v12950 = vunpack.c.l.b16 %v12063
  %v12951 = vunpack.c.h.b16 %v12063
  %v12952 = vunpack.c.l.b16 %v12064
  %v12953 = vunpack.c.h.b16 %v12064
  %v12954 = vunpack.c.l.b16 %v12065
  %v12955 = vunpack.c.h.b16 %v12065
  %v12956 = vunpack.c.l.b16 %v12066
  %v12957 = vunpack.c.h.b16 %v12066
  %v12958 = vunpack.c.l.b16 %v12067
  %v12959 = vunpack.c.h.b16 %v12067
  %v12960 = vunpack.c.l.b16 %v12068
  %v12961 = vunpack.c.h.b16 %v12068
  %v12962 = vunpack.c.l.b16 %v12069
  %v12963 = vunpack.c.h.b16 %v12069
  %v12964 = vunpack.c.l.b16 %v12070
  %v12965 = vunpack.c.h.b16 %v12070
  %v12966 = vunpack.c.l.b16 %v12071
  %v12967 = vunpack.c.h.b16 %v12071
  %v12968 = vunpack.c.l.b16 %v12072
  %v12969 = vunpack.c.h.b16 %v12072
  %v12970 = vunpack.c.l.b16 %v12073
  %v12971 = vunpack.c.h.b16 %v12073
  %v12972 = vunpack.c.l.b16 %v12074
  %v12973 = vunpack.c.h.b16 %v12074
  %v12974 = vunpack.c.l.b16 %v12075
  %v12975 = vunpack.c.h.b16 %v12075
  %v12976 = vunpack.c.l.b16 %v12076
  %v12977 = vunpack.c.h.b16 %v12076
  %v12978 = vunpack.c.l.b16 %v12077
  %v12979 = vunpack.c.h.b16 %v12077
  %v12980 = vunpack.c.l.b16 %v12078
  %v12981 = vunpack.c.h.b16 %v12078
  %v12982 = vunpack.c.l.b16 %v12079
  %v12983 = vunpack.c.h.b16 %v12079
  %v12984 = vunpack.c.l.b16 %v12080
  %v12985 = vunpack.c.h.b16 %v12080
  %v12986 = vunpack.c.l.b16 %v12081
  %v12987 = vunpack.c.h.b16 %v12081
  %v12988 = vunpack.c.l.b16 %v12082
  %v12989 = vunpack.c.h.b16 %v12082
  %v12990 = vunpack.c.l.b16 %v12083
  %v12991 = vunpack.c.h.b16 %v12083
  %v12992 = vunpack.c.l.b16 %v12084
  %v12993 = vunpack.c.h.b16 %v12084
  %v12994 = vunpack.c.l.b16 %v12085
  %v12995 = vunpack.c.h.b16 %v12085
  %v12996 = vunpack.c.l.b16 %v12086
  %v12997 = vunpack.c.h.b16 %v12086
  %v12998 = vunpack.c.l.b16 %v12087
  %v12999 = vunpack.c.h.b16 %v12087
  %v13000 = vunpack.c.l.b16 %v12088
  %v13001 = vunpack.c.h.b16 %v12088
  %v13002 = vunpack.c.l.b16 %v12089
  %v13003 = vunpack.c.h.b16 %v12089
  %v13004 = vunpack.c.l.b16 %v12090
  %v13005 = vunpack.c.h.b16 %v12090
  %v13006 = vunpack.c.l.b16 %v12091
  %v13007 = vunpack.c.h.b16 %v12091
  %v13008 = vunpack.c.l.b16 %v12092
  %v13009 = vunpack.c.h.b16 %v12092
  %v13010 = vunpack.c.l.b16 %v12093
  %v13011 = vunpack.c.h.b16 %v12093
  %v13012 = vunpack.c.l.b16 %v12094
  %v13013 = vunpack.c.h.b16 %v12094
  %v13014 = vunpack.c.l.b16 %v12095
  %v13015 = vunpack.c.h.b16 %v12095
  %v13016 = vunpack.c.l.b16 %v12096
  %v13017 = vunpack.c.h.b16 %v12096
  %v13018 = vunpack.c.l.b16 %v12097
  %v13019 = vunpack.c.h.b16 %v12097
  %v13020 = vunpack.c.l.b16 %v12098
  %v13021 = vunpack.c.h.b16 %v12098
  %v13022 = vunpack.c.l.b16 %v12099
  %v13023 = vunpack.c.h.b16 %v12099
  %v13024 = vunpack.c.l.b16 %v12100
  %v13025 = vunpack.c.h.b16 %v12100
  %v13026 = vunpack.c.l.b16 %v12101
  %v13027 = vunpack.c.h.b16 %v12101
  %v13028 = vunpack.c.l.b16 %v12102
  %v13029 = vunpack.c.h.b16 %v12102
  %v13030 = vunpack.c.l.b16 %v12103
  %v13031 = vunpack.c.h.b16 %v12103
  %v13032 = vunpack.c.l.b16 %v12104
  %v13033 = vunpack.c.h.b16 %v12104
  %v13034 = vunpack.c.l.b16 %v12105
  %v13035 = vunpack.c.h.b16 %v12105
  %v13036 = vunpack.c.l.b16 %v12106
  %v13037 = vunpack.c.h.b16 %v12106
  %v13038 = vunpack.c.l.b16 %v12107
  %v13039 = vunpack.c.h.b16 %v12107
  %v13040 = vunpack.c.l.b16 %v12108
  %v13041 = vunpack.c.h.b16 %v12108
  %v13042 = vunpack.c.l.b16 %v12109
  %v13043 = vunpack.c.h.b16 %v12109
  %v13044 = vunpack.c.l.b16 %v12110
  %v13045 = vunpack.c.h.b16 %v12110
  %v13046 = vunpack.c.l.b16 %v12111
  %v13047 = vunpack.c.h.b16 %v12111
  %v13048 = vunpack.c.l.b16 %v12112
  %v13049 = vunpack.c.h.b16 %v12112
  %v13050 = vunpack.c.l.b16 %v12113
  %v13051 = vunpack.c.h.b16 %v12113
  %v13052 = vunpack.c.l.b16 %v12114
  %v13053 = vunpack.c.h.b16 %v12114
  %v13054 = vunpack.c.l.b16 %v12115
  %v13055 = vunpack.c.h.b16 %v12115
  %v13056 = vunpack.c.l.b16 %v12116
  %v13057 = vunpack.c.h.b16 %v12116
  %v13058 = vunpack.c.l.b16 %v12117
  %v13059 = vunpack.c.h.b16 %v12117
  %v13060 = vunpack.c.l.b16 %v12118
  %v13061 = vunpack.c.h.b16 %v12118
  %v13062 = vunpack.c.l.b16 %v12119
  %v13063 = vunpack.c.h.b16 %v12119
  %v13064 = vunpack.c.l.b16 %v12120
  %v13065 = vunpack.c.h.b16 %v12120
  %v13066 = vunpack.c.l.b16 %v12121
  %v13067 = vunpack.c.h.b16 %v12121
  %v13068 = vunpack.c.l.b16 %v12122
  %v13069 = vunpack.c.h.b16 %v12122
  %v13070 = vunpack.c.l.b16 %v12123
  %v13071 = vunpack.c.h.b16 %v12123
  %v13072 = vunpack.c.l.b16 %v12124
  %v13073 = vunpack.c.h.b16 %v12124
  %v13074 = vunpack.c.l.b16 %v12125
  %v13075 = vunpack.c.h.b16 %v12125
  %v13076 = vunpack.c.l.b16 %v12126
  %v13077 = vunpack.c.h.b16 %v12126
  %v13078 = vunpack.c.l.b16 %v12127
  %v13079 = vunpack.c.h.b16 %v12127
  %v13080 = vunpack.c.l.b16 %v12128
  %v13081 = vunpack.c.h.b16 %v12128
  %v13082 = vunpack.c.l.b16 %v12129
  %v13083 = vunpack.c.h.b16 %v12129
  %v13084 = vunpack.c.l.b16 %v12130
  %v13085 = vunpack.c.h.b16 %v12130
  %v13086 = vunpack.c.l.b16 %v12131
  %v13087 = vunpack.c.h.b16 %v12131
  %v13088 = vunpack.c.l.b16 %v12132
  %v13089 = vunpack.c.h.b16 %v12132
  %v13090 = vunpack.c.l.b16 %v12133
  %v13091 = vunpack.c.h.b16 %v12133
  %v13092 = vunpack.c.l.b16 %v12134
  %v13093 = vunpack.c.h.b16 %v12134
  %v13094 = vunpack.c.l.b16 %v12135
  %v13095 = vunpack.c.h.b16 %v12135
  %v13096 = vunpack.c.l.b16 %v12136
  %v13097 = vunpack.c.h.b16 %v12136
  %v13098 = vunpack.c.l.b16 %v12137
  %v13099 = vunpack.c.h.b16 %v12137
  %v13100 = vunpack.c.l.b16 %v12138
  %v13101 = vunpack.c.h.b16 %v12138
  %v13102 = vunpack.c.l.b16 %v12139
  %v13103 = vunpack.c.h.b16 %v12139
  %v13104 = vpack.c.b16 %v12594, %v12592
  %v13105 = vpack.c.b16 %v12595, %v12593
  %v13106 = vpack.c.b16 %v12598, %v12596
  %v13107 = vpack.c.b16 %v12599, %v12597
  %v13108 = vpack.c.b16 %v12602, %v12600
  %v13109 = vpack.c.b16 %v12603, %v12601
  %v13110 = vpack.c.b16 %v12606, %v12604
  %v13111 = vpack.c.b16 %v12607, %v12605
  %v13112 = vpack.c.b16 %v12610, %v12608
  %v13113 = vpack.c.b16 %v12611, %v12609
  %v13114 = vpack.c.b16 %v12614, %v12612
  %v13115 = vpack.c.b16 %v12615, %v12613
  %v13116 = vpack.c.b16 %v12618, %v12616
  %v13117 = vpack.c.b16 %v12619, %v12617
  %v13118 = vpack.c.b16 %v12622, %v12620
  %v13119 = vpack.c.b16 %v12623, %v12621
  %v13120 = vpack.c.b16 %v12626, %v12624
  %v13121 = vpack.c.b16 %v12627, %v12625
  %v13122 = vpack.c.b16 %v12630, %v12628
  %v13123 = vpack.c.b16 %v12631, %v12629
  %v13124 = vpack.c.b16 %v12634, %v12632
  %v13125 = vpack.c.b16 %v12635, %v12633
  %v13126 = vpack.c.b16 %v12638, %v12636
  %v13127 = vpack.c.b16 %v12639, %v12637
  %v13128 = vpack.c.b16 %v12642, %v12640
  %v13129 = vpack.c.b16 %v12643, %v12641
  %v13130 = vpack.c.b16 %v12646, %v12644
  %v13131 = vpack.c.b16 %v12647, %v12645
  %v13132 = vpack.c.b16 %v12650, %v12648
  %v13133 = vpack.c.b16 %v12651, %v12649
  %v13134 = vpack.c.b16 %v12654, %v12652
  %v13135 = vpack.c.b16 %v12655, %v12653
  %v13136 = vpack.c.b16 %v12658, %v12656
  %v13137 = vpack.c.b16 %v12659, %v12657
  %v13138 = vpack.c.b16 %v12662, %v12660
  %v13139 = vpack.c.b16 %v12663, %v12661
  %v13140 = vpack.c.b16 %v12666, %v12664
  %v13141 = vpack.c.b16 %v12667, %v12665
  %v13142 = vpack.c.b16 %v12670, %v12668
  %v13143 = vpack.c.b16 %v12671, %v12669
  %v13144 = vpack.c.b16 %v12674, %v12672
  %v13145 = vpack.c.b16 %v12675, %v12673
  %v13146 = vpack.c.b16 %v12678, %v12676
  %v13147 = vpack.c.b16 %v12679, %v12677
  %v13148 = vpack.c.b16 %v12682, %v12680
  %v13149 = vpack.c.b16 %v12683, %v12681
  %v13150 = vpack.c.b16 %v12686, %v12684
  %v13151 = vpack.c.b16 %v12687, %v12685
  %v13152 = vpack.c.b16 %v12690, %v12688
  %v13153 = vpack.c.b16 %v12691, %v12689
  %v13154 = vpack.c.b16 %v12694, %v12692
  %v13155 = vpack.c.b16 %v12695, %v12693
  %v13156 = vpack.c.b16 %v12698, %v12696
  %v13157 = vpack.c.b16 %v12699, %v12697
  %v13158 = vpack.c.b16 %v12702, %v12700
  %v13159 = vpack.c.b16 %v12703, %v12701
  %v13160 = vpack.c.b16 %v12706, %v12704
  %v13161 = vpack.c.b16 %v12707, %v12705
  %v13162 = vpack.c.b16 %v12710, %v12708
  %v13163 = vpack.c.b16 %v12711, %v12709
  %v13164 = vpack.c.b16 %v12714, %v12712
  %v13165 = vpack.c.b16 %v12715, %v12713
  %v13166 = vpack.c.b16 %v12718, %v12716
  %v13167 = vpack.c.b16 %v12719, %v12717
  %v13168 = vpack.c.b16 %v12722, %v12720
  %v13169 = vpack.c.b16 %v12723, %v12721
  %v13170 = vpack.c.b16 %v12726, %v12724
  %v13171 = vpack.c.b16 %v12727, %v12725
  %v13172 = vpack.c.b16 %v12730, %v12728
  %v13173 = vpack.c.b16 %v12731, %v12729
  %v13174 = vpack.c.b16 %v12734, %v12732
  %v13175 = vpack.c.b16 %v12735, %v12733
  %v13176 = vpack.c.b16 %v12738, %v12736
  %v13177 = vpack.c.b16 %v12739, %v12737
  %v13178 = vpack.c.b16 %v12742, %v12740
  %v13179 = vpack.c.b16 %v12743, %v12741
  %v13180 = vpack.c.b16 %v12746, %v12744
  %v13181 = vpack.c.b16 %v12747, %v12745
  %v13182 = vpack.c.b16 %v12750, %v12748
  %v13183 = vpack.c.b16 %v12751, %v12749
  %v13184 = vpack.c.b16 %v12754, %v12752
  %v13185 = vpack.c.b16 %v12755, %v12753
  %v13186 = vpack.c.b16 %v12758, %v12756
  %v13187 = vpack.c.b16 %v12759, %v12757
  %v13188 = vpack.c.b16 %v12762, %v12760
  %v13189 = vpack.c.b16 %v12763, %v12761
  %v13190 = vpack.c.b16 %v12766, %v12764
  %v13191 = vpack.c.b16 %v12767, %v12765
  %v13192 = vpack.c.b16 %v12770, %v12768
  %v13193 = vpack.c.b16 %v12771, %v12769
  %v13194 = vpack.c.b16 %v12774, %v12772
  %v13195 = vpack.c.b16 %v12775, %v12773
  %v13196 = vpack.c.b16 %v12778, %v12776
  %v13197 = vpack.c.b16 %v12779, %v12777
  %v13198 = vpack.c.b16 %v12782, %v12780
  %v13199 = vpack.c.b16 %v12783, %v12781
  %v13200 = vpack.c.b16 %v12786, %v12784
  %v13201 = vpack.c.b16 %v12787, %v12785
  %v13202 = vpack.c.b16 %v12790, %v12788
  %v13203 = vpack.c.b16 %v12791, %v12789
  %v13204 = vpack.c.b16 %v12794, %v12792
  %v13205 = vpack.c.b16 %v12795, %v12793
  %v13206 = vpack.c.b16 %v12798, %v12796
  %v13207 = vpack.c.b16 %v12799, %v12797
  %v13208 = vpack.c.b16 %v12802, %v12800
  %v13209 = vpack.c.b16 %v12803, %v12801
  %v13210 = vpack.c.b16 %v12806, %v12804
  %v13211 = vpack.c.b16 %v12807, %v12805
  %v13212 = vpack.c.b16 %v12810, %v12808
  %v13213 = vpack.c.b16 %v12811, %v12809
  %v13214 = vpack.c.b16 %v12814, %v12812
  %v13215 = vpack.c.b16 %v12815, %v12813
  %v13216 = vpack.c.b16 %v12818, %v12816
  %v13217 = vpack.c.b16 %v12819, %v12817
  %v13218 = vpack.c.b16 %v12822, %v12820
  %v13219 = vpack.c.b16 %v12823, %v12821
  %v13220 = vpack.c.b16 %v12826, %v12824
  %v13221 = vpack.c.b16 %v12827, %v12825
  %v13222 = vpack.c.b16 %v12830, %v12828
  %v13223 = vpack.c.b16 %v12831, %v12829
  %v13224 = vpack.c.b16 %v12834, %v12832
  %v13225 = vpack.c.b16 %v12835, %v12833
  %v13226 = vpack.c.b16 %v12838, %v12836
  %v13227 = vpack.c.b16 %v12839, %v12837
  %v13228 = vpack.c.b16 %v12842, %v12840
  %v13229 = vpack.c.b16 %v12843, %v12841
  %v13230 = vpack.c.b16 %v12846, %v12844
  %v13231 = vpack.c.b16 %v12847, %v12845
  %v13232 = vpack.c.b16 %v12850, %v12848
  %v13233 = vpack.c.b16 %v12851, %v12849
  %v13234 = vpack.c.b16 %v12854, %v12852
  %v13235 = vpack.c.b16 %v12855, %v12853
  %v13236 = vpack.c.b16 %v12858, %v12856
  %v13237 = vpack.c.b16 %v12859, %v12857
  %v13238 = vpack.c.b16 %v12862, %v12860
  %v13239 = vpack.c.b16 %v12863, %v12861
  %v13240 = vpack.c.b16 %v12866, %v12864
  %v13241 = vpack.c.b16 %v12867, %v12865
  %v13242 = vpack.c.b16 %v12870, %v12868
  %v13243 = vpack.c.b16 %v12871, %v12869
  %v13244 = vpack.c.b16 %v12874, %v12872
  %v13245 = vpack.c.b16 %v12875, %v12873
  %v13246 = vpack.c.b16 %v12878, %v12876
  %v13247 = vpack.c.b16 %v12879, %v12877
  %v13248 = vpack.c.b16 %v12882, %v12880
  %v13249 = vpack.c.b16 %v12883, %v12881
  %v13250 = vpack.c.b16 %v12886, %v12884
  %v13251 = vpack.c.b16 %v12887, %v12885
  %v13252 = vpack.c.b16 %v12890, %v12888
  %v13253 = vpack.c.b16 %v12891, %v12889
  %v13254 = vpack.c.b16 %v12894, %v12892
  %v13255 = vpack.c.b16 %v12895, %v12893
  %v13256 = vpack.c.b16 %v12898, %v12896
  %v13257 = vpack.c.b16 %v12899, %v12897
  %v13258 = vpack.c.b16 %v12902, %v12900
  %v13259 = vpack.c.b16 %v12903, %v12901
  %v13260 = vpack.c.b16 %v12906, %v12904
  %v13261 = vpack.c.b16 %v12907, %v12905
  %v13262 = vpack.c.b16 %v12910, %v12908
  %v13263 = vpack.c.b16 %v12911, %v12909
  %v13264 = vpack.c.b16 %v12914, %v12912
  %v13265 = vpack.c.b16 %v12915, %v12913
  %v13266 = vpack.c.b16 %v12918, %v12916
  %v13267 = vpack.c.b16 %v12919, %v12917
  %v13268 = vpack.c.b16 %v12922, %v12920
  %v13269 = vpack.c.b16 %v12923, %v12921
  %v13270 = vpack.c.b16 %v12926, %v12924
  %v13271 = vpack.c.b16 %v12927, %v12925
  %v13272 = vpack.c.b16 %v12930, %v12928
  %v13273 = vpack.c.b16 %v12931, %v12929
  %v13274 = vpack.c.b16 %v12934, %v12932
  %v13275 = vpack.c.b16 %v12935, %v12933
  %v13276 = vpack.c.b16 %v12938, %v12936
  %v13277 = vpack.c.b16 %v12939, %v12937
  %v13278 = vpack.c.b16 %v12942, %v12940
  %v13279 = vpack.c.b16 %v12943, %v12941
  %v13280 = vpack.c.b16 %v12946, %v12944
  %v13281 = vpack.c.b16 %v12947, %v12945
  %v13282 = vpack.c.b16 %v12950, %v12948
  %v13283 = vpack.c.b16 %v12951, %v12949
  %v13284 = vpack.c.b16 %v12954, %v12952
  %v13285 = vpack.c.b16 %v12955, %v12953
  %v13286 = vpack.c.b16 %v12958, %v12956
  %v13287 = vpack.c.b16 %v12959, %v12957
  %v13288 = vpack.c.b16 %v12962, %v12960
  %v13289 = vpack.c.b16 %v12963, %v12961
  %v13290 = vpack.c.b16 %v12966, %v12964
  %v13291 = vpack.c.b16 %v12967, %v12965
  %v13292 = vpack.c.b16 %v12970, %v12968
  %v13293 = vpack.c.b16 %v12971, %v12969
  %v13294 = vpack.c.b16 %v12974, %v12972
  %v13295 = vpack.c.b16 %v12975, %v12973
  %v13296 = vpack.c.b16 %v12978, %v12976
  %v13297 = vpack.c.b16 %v12979, %v12977
  %v13298 = vpack.c.b16 %v12982, %v12980
  %v13299 = vpack.c.b16 %v12983, %v12981
  %v13300 = vpack.c.b16 %v12986, %v12984
  %v13301 = vpack.c.b16 %v12987, %v12985
  %v13302 = vpack.c.b16 %v12990, %v12988
  %v13303 = vpack.c.b16 %v12991, %v12989
  %v13304 = vpack.c.b16 %v12994, %v12992
  %v13305 = vpack.c.b16 %v12995, %v12993
  %v13306 = vpack.c.b16 %v12998, %v12996
  %v13307 = vpack.c.b16 %v12999, %v12997
  %v13308 = vpack.c.b16 %v13002, %v13000
  %v13309 = vpack.c.b16 %v13003, %v13001
  %v13310 = vpack.c.b16 %v13006, %v13004
  %v13311 = vpack.c.b16 %v13007, %v13005
  %v13312 = vpack.c.b16 %v13010, %v13008
  %v13313 = vpack.c.b16 %v13011, %v13009
  %v13314 = vpack.c.b16 %v13014, %v13012
  %v13315 = vpack.c.b16 %v13015, %v13013
  %v13316 = vpack.c.b16 %v13018, %v13016
  %v13317 = vpack.c.b16 %v13019, %v13017
  %v13318 = vpack.c.b16 %v13022, %v13020
  %v13319 = vpack.c.b16 %v13023, %v13021
  %v13320 = vpack.c.b16 %v13026, %v13024
  %v13321 = vpack.c.b16 %v13027, %v13025
  %v13322 = vpack.c.b16 %v13030, %v13028
  %v13323 = vpack.c.b16 %v13031, %v13029
  %v13324 = vpack.c.b16 %v13034, %v13032
  %v13325 = vpack.c.b16 %v13035, %v13033
  %v13326 = vpack.c.b16 %v13038, %v13036
  %v13327 = vpack.c.b16 %v13039, %v13037
  %v13328 = vpack.c.b16 %v13042, %v13040
  %v13329 = vpack.c.b16 %v13043, %v13041
  %v13330 = vpack.c.b16 %v13046, %v13044
  %v13331 = vpack.c.b16 %v13047, %v13045
  %v13332 = vpack.c.b16 %v13050, %v13048
  %v13333 = vpack.c.b16 %v13051, %v13049
  %v13334 = vpack.c.b16 %v13054, %v13052
  %v13335 = vpack.c.b16 %v13055, %v13053
  %v13336 = vpack.c.b16 %v13058, %v13056
  %v13337 = vpack.c.b16 %v13059, %v13057
  %v13338 = vpack.c.b16 %v13062, %v13060
  %v13339 = vpack.c.b16 %v13063, %v13061
  %v13340 = vpack.c.b16 %v13066, %v13064
  %v13341 = vpack.c.b16 %v13067, %v13065
  %v13342 = vpack.c.b16 %v13070, %v13068
  %v13343 = vpack.c.b16 %v13071, %v13069
  %v13344 = vpack.c.b16 %v13074, %v13072
  %v13345 = vpack.c.b16 %v13075, %v13073
  %v13346 = vpack.c.b16 %v13078, %v13076
  %v13347 = vpack.c.b16 %v13079, %v13077
  %v13348 = vpack.c.b16 %v13082, %v13080
  %v13349 = vpack.c.b16 %v13083, %v13081
  %v13350 = vpack.c.b16 %v13086, %v13084
  %v13351 = vpack.c.b16 %v13087, %v13085
  %v13352 = vpack.c.b16 %v13090, %v13088
  %v13353 = vpack.c.b16 %v13091, %v13089
  %v13354 = vpack.c.b16 %v13094, %v13092
  %v13355 = vpack.c.b16 %v13095, %v13093
  %v13356 = vpack.c.b16 %v13098, %v13096
  %v13357 = vpack.c.b16 %v13099, %v13097
  %v13358 = vpack.c.b16 %v13102, %v13100
  %v13359 = vpack.c.b16 %v13103, %v13101
  %13616 = vmatprep.subr.bf16.mxu0 %v13105
  %13617 = vmatpush1.bf16.msra.mxu0 %v13104
  %13618 = vmatprep.subr.bf16.mxu0 %v13107
  %13619 = vmatpush1.bf16.msra.mxu0 %v13106
  %13620 = vmatprep.subr.bf16.mxu0 %v13109
  %13621 = vmatpush1.bf16.msra.mxu0 %v13108
  %13622 = vmatprep.subr.bf16.mxu0 %v13111
  %13623 = vmatpush1.bf16.msra.mxu0 %v13110
  %13624 = vmatprep.subr.bf16.mxu0 %v13113
  %13625 = vmatpush1.bf16.msra.mxu0 %v13112
  %13626 = vmatprep.subr.bf16.mxu0 %v13115
  %13627 = vmatpush1.bf16.msra.mxu0 %v13114
  %13628 = vmatprep.subr.bf16.mxu0 %v13117
  %13629 = vmatpush1.bf16.msra.mxu0 %v13116
  %13630 = vmatprep.subr.bf16.mxu0 %v13119
  %13631 = vmatpush1.bf16.msra.mxu0 %v13118
  %13632 = vmatprep.subr.bf16.mxu0 %v13121
  %13633 = vmatpush1.bf16.msra.mxu0 %v13120
  %13634 = vmatprep.subr.bf16.mxu0 %v13123
  %13635 = vmatpush1.bf16.msra.mxu0 %v13122
  %13636 = vmatprep.subr.bf16.mxu0 %v13125
  %13637 = vmatpush1.bf16.msra.mxu0 %v13124
  %13638 = vmatprep.subr.bf16.mxu0 %v13127
  %13639 = vmatpush1.bf16.msra.mxu0 %v13126
  %13640 = vmatprep.subr.bf16.mxu0 %v13129
  %13641 = vmatpush1.bf16.msra.mxu0 %v13128
  %13642 = vmatprep.subr.bf16.mxu0 %v13131
  %13643 = vmatpush1.bf16.msra.mxu0 %v13130
  %13644 = vmatprep.subr.bf16.mxu0 %v13133
  %13645 = vmatpush1.bf16.msra.mxu0 %v13132
  %13646 = vmatprep.subr.bf16.mxu0 %v13135
  %13647 = vmatpush1.bf16.msra.mxu0 %v13134
  %13648 = vmatprep.mubr.bf16.mxu0 %v12240
  %13649 = vmatmul.mubr.bf16.gmra.mrb[0].mxu0 %v12226
  %v13650 = vpop.f32.mrb[0].mxu0
  %v13651 = vadd.f32 %v12145, %v13650
  %v13652 = vpop.f32.mrb[0].mxu0
  %v13653 = vadd.f32 %v12149, %v13652
  %v13654 = vpop.f32.mrb[0].mxu0
  %v13655 = vpop.f32.mrb[0].mxu0
  %13656 = vdwg.mxu0
  %13657 = vmatprep.subr.bf16.mxu0 %v13137
  %13658 = vmatpush1.bf16.msra.mxu0 %v13136
  %13659 = vmatprep.subr.bf16.mxu0 %v13139
  %13660 = vmatpush1.bf16.msra.mxu0 %v13138
  %13661 = vmatprep.subr.bf16.mxu0 %v13141
  %13662 = vmatpush1.bf16.msra.mxu0 %v13140
  %13663 = vmatprep.subr.bf16.mxu0 %v13143
  %13664 = vmatpush1.bf16.msra.mxu0 %v13142
  %13665 = vmatprep.subr.bf16.mxu0 %v13145
  %13666 = vmatpush1.bf16.msra.mxu0 %v13144
  %13667 = vmatprep.subr.bf16.mxu0 %v13147
  %13668 = vmatpush1.bf16.msra.mxu0 %v13146
  %13669 = vmatprep.subr.bf16.mxu0 %v13149
  %13670 = vmatpush1.bf16.msra.mxu0 %v13148
  %13671 = vmatprep.subr.bf16.mxu0 %v13151
  %13672 = vmatpush1.bf16.msra.mxu0 %v13150
  %13673 = vmatprep.subr.bf16.mxu0 %v13153
  %13674 = vmatpush1.bf16.msra.mxu0 %v13152
  %13675 = vmatprep.subr.bf16.mxu0 %v13155
  %13676 = vmatpush1.bf16.msra.mxu0 %v13154
  %13677 = vmatprep.subr.bf16.mxu0 %v13157
  %13678 = vmatpush1.bf16.msra.mxu0 %v13156
  %13679 = vmatprep.subr.bf16.mxu0 %v13159
  %13680 = vmatpush1.bf16.msra.mxu0 %v13158
  %13681 = vmatprep.subr.bf16.mxu0 %v13161
  %13682 = vmatpush1.bf16.msra.mxu0 %v13160
  %13683 = vmatprep.subr.bf16.mxu0 %v13163
  %13684 = vmatpush1.bf16.msra.mxu0 %v13162
  %13685 = vmatprep.subr.bf16.mxu0 %v13165
  %13686 = vmatpush1.bf16.msra.mxu0 %v13164
  %13687 = vmatprep.subr.bf16.mxu0 %v13167
  %13688 = vmatpush1.bf16.msra.mxu0 %v13166
  %13689 = vmatprep.mubr.bf16.mxu0 %v12250
  %13690 = vmatmul.mubr.bf16.gmra.mrb[0].mxu0 %v12248
  %v13691 = vpop.f32.mrb[0].mxu0
  %v13692 = vadd.f32 %v13651, %v13691
  %v13693 = vpop.f32.mrb[0].mxu0
  %v13694 = vadd.f32 %v13653, %v13693
  %v13695 = vpop.f32.mrb[0].mxu0
  %v13696 = vpop.f32.mrb[0].mxu0
  %13697 = vdwg.mxu0
  %13698 = vmatprep.subr.bf16.mxu0 %v13169
  %13699 = vmatpush1.bf16.msra.mxu0 %v13168
  %13700 = vmatprep.subr.bf16.mxu0 %v13171
  %13701 = vmatpush1.bf16.msra.mxu0 %v13170
  %13702 = vmatprep.subr.bf16.mxu0 %v13173
  %13703 = vmatpush1.bf16.msra.mxu0 %v13172
  %13704 = vmatprep.subr.bf16.mxu0 %v13175
  %13705 = vmatpush1.bf16.msra.mxu0 %v13174
  %13706 = vmatprep.subr.bf16.mxu0 %v13177
  %13707 = vmatpush1.bf16.msra.mxu0 %v13176
  %13708 = vmatprep.subr.bf16.mxu0 %v13179
  %13709 = vmatpush1.bf16.msra.mxu0 %v13178
  %13710 = vmatprep.subr.bf16.mxu0 %v13181
  %13711 = vmatpush1.bf16.msra.mxu0 %v13180
  %13712 = vmatprep.subr.bf16.mxu0 %v13183
  %13713 = vmatpush1.bf16.msra.mxu0 %v13182
  %13714 = vmatprep.subr.bf16.mxu0 %v13185
  %13715 = vmatpush1.bf16.msra.mxu0 %v13184
  %13716 = vmatprep.subr.bf16.mxu0 %v13187
  %13717 = vmatpush1.bf16.msra.mxu0 %v13186
  %13718 = vmatprep.subr.bf16.mxu0 %v13189
  %13719 = vmatpush1.bf16.msra.mxu0 %v13188
  %13720 = vmatprep.subr.bf16.mxu0 %v13191
  %13721 = vmatpush1.bf16.msra.mxu0 %v13190
  %13722 = vmatprep.subr.bf16.mxu0 %v13193
  %13723 = vmatpush1.bf16.msra.mxu0 %v13192
  %13724 = vmatprep.subr.bf16.mxu0 %v13195
  %13725 = vmatpush1.bf16.msra.mxu0 %v13194
  %13726 = vmatprep.subr.bf16.mxu0 %v13197
  %13727 = vmatpush1.bf16.msra.mxu0 %v13196
  %13728 = vmatprep.subr.bf16.mxu0 %v13199
  %13729 = vmatpush1.bf16.msra.mxu0 %v13198
  %13730 = vmatprep.mubr.bf16.mxu0 %v12247
  %13731 = vmatmul.mubr.bf16.gmra.mrb[0].mxu0 %v12233
  %v13732 = vpop.f32.mrb[0].mxu0
  %v13733 = vadd.f32 %v13692, %v13732
  %v13734 = vpop.f32.mrb[0].mxu0
  %v13735 = vadd.f32 %v13694, %v13734
  %v13736 = vpop.f32.mrb[0].mxu0
  %v13737 = vpop.f32.mrb[0].mxu0
  %13738 = vdwg.mxu0
  %13739 = vmatprep.subr.bf16.mxu0 %v13201
  %13740 = vmatpush1.bf16.msra.mxu0 %v13200
  %13741 = vmatprep.subr.bf16.mxu0 %v13203
  %13742 = vmatpush1.bf16.msra.mxu0 %v13202
  %13743 = vmatprep.subr.bf16.mxu0 %v13205
  %13744 = vmatpush1.bf16.msra.mxu0 %v13204
  %13745 = vmatprep.subr.bf16.mxu0 %v13207
  %13746 = vmatpush1.bf16.msra.mxu0 %v13206
  %13747 = vmatprep.subr.bf16.mxu0 %v13209
  %13748 = vmatpush1.bf16.msra.mxu0 %v13208
  %13749 = vmatprep.subr.bf16.mxu0 %v13211
  %13750 = vmatpush1.bf16.msra.mxu0 %v13210
  %13751 = vmatprep.subr.bf16.mxu0 %v13213
  %13752 = vmatpush1.bf16.msra.mxu0 %v13212
  %13753 = vmatprep.subr.bf16.mxu0 %v13215
  %13754 = vmatpush1.bf16.msra.mxu0 %v13214
  %13755 = vmatprep.subr.bf16.mxu0 %v13217
  %13756 = vmatpush1.bf16.msra.mxu0 %v13216
  %13757 = vmatprep.subr.bf16.mxu0 %v13219
  %13758 = vmatpush1.bf16.msra.mxu0 %v13218
  %13759 = vmatprep.subr.bf16.mxu0 %v13221
  %13760 = vmatpush1.bf16.msra.mxu0 %v13220
  %13761 = vmatprep.subr.bf16.mxu0 %v13223
  %13762 = vmatpush1.bf16.msra.mxu0 %v13222
  %13763 = vmatprep.subr.bf16.mxu0 %v13225
  %13764 = vmatpush1.bf16.msra.mxu0 %v13224
  %13765 = vmatprep.subr.bf16.mxu0 %v13227
  %13766 = vmatpush1.bf16.msra.mxu0 %v13226
  %13767 = vmatprep.subr.bf16.mxu0 %v13229
  %13768 = vmatpush1.bf16.msra.mxu0 %v13228
  %13769 = vmatprep.subr.bf16.mxu0 %v13231
  %13770 = vmatpush1.bf16.msra.mxu0 %v13230
  %13771 = vmatprep.mubr.bf16.mxu0 %v12251
  %13772 = vmatmul.mubr.bf16.gmra.mrb[0].mxu0 %v12249
  %v13773 = vpop.f32.mrb[0].mxu0
  %v13774 = vadd.f32 %v13733, %v13773
  %v13775 = vpop.f32.mrb[0].mxu0
  %v13776 = vadd.f32 %v13735, %v13775
  %v13777 = vpop.f32.mrb[0].mxu0
  %v13778 = vpop.f32.mrb[0].mxu0
  %13779 = vdwg.mxu0
  %13780 = vmatprep.subr.bf16.mxu0 %v13233
  %13781 = vmatpush1.bf16.msra.mxu0 %v13232
  %13782 = vmatprep.subr.bf16.mxu0 %v13235
  %13783 = vmatpush1.bf16.msra.mxu0 %v13234
  %13784 = vmatprep.subr.bf16.mxu0 %v13237
  %13785 = vmatpush1.bf16.msra.mxu0 %v13236
  %13786 = vmatprep.subr.bf16.mxu0 %v13239
  %13787 = vmatpush1.bf16.msra.mxu0 %v13238
  %13788 = vmatprep.subr.bf16.mxu0 %v13241
  %13789 = vmatpush1.bf16.msra.mxu0 %v13240
  %13790 = vmatprep.subr.bf16.mxu0 %v13243
  %13791 = vmatpush1.bf16.msra.mxu0 %v13242
  %13792 = vmatprep.subr.bf16.mxu0 %v13245
  %13793 = vmatpush1.bf16.msra.mxu0 %v13244
  %13794 = vmatprep.subr.bf16.mxu0 %v13247
  %13795 = vmatpush1.bf16.msra.mxu0 %v13246
  %13796 = vmatprep.subr.bf16.mxu0 %v13249
  %13797 = vmatpush1.bf16.msra.mxu0 %v13248
  %13798 = vmatprep.subr.bf16.mxu0 %v13251
  %13799 = vmatpush1.bf16.msra.mxu0 %v13250
  %13800 = vmatprep.subr.bf16.mxu0 %v13253
  %13801 = vmatpush1.bf16.msra.mxu0 %v13252
  %13802 = vmatprep.subr.bf16.mxu0 %v13255
  %13803 = vmatpush1.bf16.msra.mxu0 %v13254
  %13804 = vmatprep.subr.bf16.mxu0 %v13257
  %13805 = vmatpush1.bf16.msra.mxu0 %v13256
  %13806 = vmatprep.subr.bf16.mxu0 %v13259
  %13807 = vmatpush1.bf16.msra.mxu0 %v13258
  %13808 = vmatprep.subr.bf16.mxu0 %v13261
  %13809 = vmatpush1.bf16.msra.mxu0 %v13260
  %13810 = vmatprep.subr.bf16.mxu0 %v13263
  %13811 = vmatpush1.bf16.msra.mxu0 %v13262
  %13812 = vmatprep.mubr.bf16.mxu0 %v12308
  %13813 = vmatmul.mubr.bf16.gmra.mrb[0].mxu0 %v12294
  %v13814 = vpop.f32.mrb[0].mxu0
  %v13815 = vadd.f32 %v13774, %v13814
  %v13816 = vpop.f32.mrb[0].mxu0
  %v13817 = vadd.f32 %v13776, %v13816
  %v13818 = vpop.f32.mrb[0].mxu0
  %v13819 = vpop.f32.mrb[0].mxu0
  %13820 = vdwg.mxu0
  %13821 = vmatprep.subr.bf16.mxu0 %v13265
  %13822 = vmatpush1.bf16.msra.mxu0 %v13264
  %13823 = vmatprep.subr.bf16.mxu0 %v13267
  %13824 = vmatpush1.bf16.msra.mxu0 %v13266
  %13825 = vmatprep.subr.bf16.mxu0 %v13269
  %13826 = vmatpush1.bf16.msra.mxu0 %v13268
  %13827 = vmatprep.subr.bf16.mxu0 %v13271
  %13828 = vmatpush1.bf16.msra.mxu0 %v13270
  %13829 = vmatprep.subr.bf16.mxu0 %v13273
  %13830 = vmatpush1.bf16.msra.mxu0 %v13272
  %13831 = vmatprep.subr.bf16.mxu0 %v13275
  %13832 = vmatpush1.bf16.msra.mxu0 %v13274
  %13833 = vmatprep.subr.bf16.mxu0 %v13277
  %13834 = vmatpush1.bf16.msra.mxu0 %v13276
  %13835 = vmatprep.subr.bf16.mxu0 %v13279
  %13836 = vmatpush1.bf16.msra.mxu0 %v13278
  %13837 = vmatprep.subr.bf16.mxu0 %v13281
  %13838 = vmatpush1.bf16.msra.mxu0 %v13280
  %13839 = vmatprep.subr.bf16.mxu0 %v13283
  %13840 = vmatpush1.bf16.msra.mxu0 %v13282
  %13841 = vmatprep.subr.bf16.mxu0 %v13285
  %13842 = vmatpush1.bf16.msra.mxu0 %v13284
  %13843 = vmatprep.subr.bf16.mxu0 %v13287
  %13844 = vmatpush1.bf16.msra.mxu0 %v13286
  %13845 = vmatprep.subr.bf16.mxu0 %v13289
  %13846 = vmatpush1.bf16.msra.mxu0 %v13288
  %13847 = vmatprep.subr.bf16.mxu0 %v13291
  %13848 = vmatpush1.bf16.msra.mxu0 %v13290
  %13849 = vmatprep.subr.bf16.mxu0 %v13293
  %13850 = vmatpush1.bf16.msra.mxu0 %v13292
  %13851 = vmatprep.subr.bf16.mxu0 %v13295
  %13852 = vmatpush1.bf16.msra.mxu0 %v13294
  %13853 = vmatprep.mubr.bf16.mxu0 %v12318
  %13854 = vmatmul.mubr.bf16.gmra.mrb[0].mxu0 %v12316
  %v13855 = vpop.f32.mrb[0].mxu0
  %v13856 = vadd.f32 %v13815, %v13855
  %v13857 = vpop.f32.mrb[0].mxu0
  %v13858 = vadd.f32 %v13817, %v13857
  %v13859 = vpop.f32.mrb[0].mxu0
  %v13860 = vpop.f32.mrb[0].mxu0
  %13861 = vdwg.mxu0
  %13862 = vmatprep.subr.bf16.mxu0 %v13297
  %13863 = vmatpush1.bf16.msra.mxu0 %v13296
  %13864 = vmatprep.subr.bf16.mxu0 %v13299
  %13865 = vmatpush1.bf16.msra.mxu0 %v13298
  %13866 = vmatprep.subr.bf16.mxu0 %v13301
  %13867 = vmatpush1.bf16.msra.mxu0 %v13300
  %13868 = vmatprep.subr.bf16.mxu0 %v13303
  %13869 = vmatpush1.bf16.msra.mxu0 %v13302
  %13870 = vmatprep.subr.bf16.mxu0 %v13305
  %13871 = vmatpush1.bf16.msra.mxu0 %v13304
  %13872 = vmatprep.subr.bf16.mxu0 %v13307
  %13873 = vmatpush1.bf16.msra.mxu0 %v13306
  %13874 = vmatprep.subr.bf16.mxu0 %v13309
  %13875 = vmatpush1.bf16.msra.mxu0 %v13308
  %13876 = vmatprep.subr.bf16.mxu0 %v13311
  %13877 = vmatpush1.bf16.msra.mxu0 %v13310
  %13878 = vmatprep.subr.bf16.mxu0 %v13313
  %13879 = vmatpush1.bf16.msra.mxu0 %v13312
  %13880 = vmatprep.subr.bf16.mxu0 %v13315
  %13881 = vmatpush1.bf16.msra.mxu0 %v13314
  %13882 = vmatprep.subr.bf16.mxu0 %v13317
  %13883 = vmatpush1.bf16.msra.mxu0 %v13316
  %13884 = vmatprep.subr.bf16.mxu0 %v13319
  %13885 = vmatpush1.bf16.msra.mxu0 %v13318
  %13886 = vmatprep.subr.bf16.mxu0 %v13321
  %13887 = vmatpush1.bf16.msra.mxu0 %v13320
  %13888 = vmatprep.subr.bf16.mxu0 %v13323
  %13889 = vmatpush1.bf16.msra.mxu0 %v13322
  %13890 = vmatprep.subr.bf16.mxu0 %v13325
  %13891 = vmatpush1.bf16.msra.mxu0 %v13324
  %13892 = vmatprep.subr.bf16.mxu0 %v13327
  %13893 = vmatpush1.bf16.msra.mxu0 %v13326
  %13894 = vmatprep.mubr.bf16.mxu0 %v12315
  %13895 = vmatmul.mubr.bf16.gmra.mrb[0].mxu0 %v12301
  %v13896 = vpop.f32.mrb[0].mxu0
  %v13897 = vadd.f32 %v13856, %v13896
  %v13898 = vpop.f32.mrb[0].mxu0
  %v13899 = vadd.f32 %v13858, %v13898
  %v13900 = vpop.f32.mrb[0].mxu0
  %v13901 = vpop.f32.mrb[0].mxu0
  %13902 = vdwg.mxu0
  %13903 = vmatprep.subr.bf16.mxu0 %v13329
  %13904 = vmatpush1.bf16.msra.mxu0 %v13328
  %13905 = vmatprep.subr.bf16.mxu0 %v13331
  %13906 = vmatpush1.bf16.msra.mxu0 %v13330
  %13907 = vmatprep.subr.bf16.mxu0 %v13333
  %13908 = vmatpush1.bf16.msra.mxu0 %v13332
  %13909 = vmatprep.subr.bf16.mxu0 %v13335
  %13910 = vmatpush1.bf16.msra.mxu0 %v13334
  %13911 = vmatprep.subr.bf16.mxu0 %v13337
  %13912 = vmatpush1.bf16.msra.mxu0 %v13336
  %13913 = vmatprep.subr.bf16.mxu0 %v13339
  %13914 = vmatpush1.bf16.msra.mxu0 %v13338
  %13915 = vmatprep.subr.bf16.mxu0 %v13341
  %13916 = vmatpush1.bf16.msra.mxu0 %v13340
  %13917 = vmatprep.subr.bf16.mxu0 %v13343
  %13918 = vmatpush1.bf16.msra.mxu0 %v13342
  %13919 = vmatprep.subr.bf16.mxu0 %v13345
  %13920 = vmatpush1.bf16.msra.mxu0 %v13344
  %13921 = vmatprep.subr.bf16.mxu0 %v13347
  %13922 = vmatpush1.bf16.msra.mxu0 %v13346
  %13923 = vmatprep.subr.bf16.mxu0 %v13349
  %13924 = vmatpush1.bf16.msra.mxu0 %v13348
  %13925 = vmatprep.subr.bf16.mxu0 %v13351
  %13926 = vmatpush1.bf16.msra.mxu0 %v13350
  %13927 = vmatprep.subr.bf16.mxu0 %v13353
  %13928 = vmatpush1.bf16.msra.mxu0 %v13352
  %13929 = vmatprep.subr.bf16.mxu0 %v13355
  %13930 = vmatpush1.bf16.msra.mxu0 %v13354
  %13931 = vmatprep.subr.bf16.mxu0 %v13357
  %13932 = vmatpush1.bf16.msra.mxu0 %v13356
  %13933 = vmatprep.subr.bf16.mxu0 %v13359
  %13934 = vmatpush1.bf16.msra.mxu0 %v13358
  %13935 = vmatprep.mubr.bf16.mxu0 %v12319
  %13936 = vmatmul.mubr.bf16.gmra.mrb[0].mxu0 %v12317
  %v13937 = vpop.f32.mrb[0].mxu0
  %v13938 = vadd.f32 %v13897, %v13937
  %v13939 = vpop.f32.mrb[0].mxu0
  %v13940 = vadd.f32 %v13899, %v13939
  %v13941 = vpop.f32.mrb[0].mxu0
  %v13942 = vpop.f32.mrb[0].mxu0
  %13943 = vdwg.mxu0
  %v13944 = vmul.f32 %v13938, 0.01
  %v13945 = vmul.f32 %v13940, 0.01
  %v13946 = vmax.f32 %v13938, %v13944
  %v13947 = vmax.f32 %v13940, %v13945
  %v13948 = vld [vmem:[%s9] sm:$0x3]
  %v13950 = vlaneseq
  %v13951 = vshrl.u32 %v13950, 7
  %v13952 = vsub.s32 0, %v13951
  %v13953 = vrot.slane %v13948, %v13952
  %v13954 = vlaneseq
  %v13955 = vshrl.u32 %v13954, 7
  %v13956 = vsub.s32 1, %v13955
  %v13957 = vrot.slane %v13948, %v13956
  %v13960 = vmul.f32 %v13946, %v13953
  %v13961 = vmul.f32 %v13947, %v13957
  %v13962 = vadd.f32 %v13960, %v13961
  %13963 = vadd.xlane.f32.xlu0 %v13962
  %v13964 = vpop.xlane.xlu0 %13963
  %v13965 = vld [vmem:[#allocation2] sm:$0x1]
  %v13967 = vlaneseq
  %v13968 = vshrl.u32 %v13967, 7
  %v13969 = vsub.s32 0, %v13968
  %v13970 = vrot.slane %v13965, %v13969
  %v13972 = vadd.f32 %v13964, %v13970
  %vm13973 = vcmask 7168
  %13974 = vst.msk [vmem:[%s11] sm:$0xff] %vm13973, %v13972
  // Predicated region
  $region46: #{critic_forward.1} parent=0 // pred_check
    _
  $region47: #{critic_forward.1} parent=0 // pred_check_branch
    %13976 = sbr.rel (0) target = $region49
  $region48: #{critic_forward.1} parent=0 // pred_region
    _
  $region49: #{critic_forward.1} parent=0 // pred_fallthru
    _
  // Predicated region
  $region50: #{critic_forward.1} parent=0 // pred_check
    _
  $region51: #{critic_forward.1} parent=0 // pred_check_branch
    %13978 = sbr.rel (0) target = $region53
  $region52: #{critic_forward.1} parent=0 // pred_region
    _
  $region53: #{critic_forward.1} parent=0 // pred_fallthru
    _

</llo_original>
